<compile_context>
chip_gen: v5e
topology: v5e:2x2
jax: 0.10.0
libtpu: 0.0.40
codegen_flags: <defaults>
</compile_context>

<pallas_src>
import jax
import jax.numpy as jnp
from jax import lax
from jax.experimental import pallas as pl
from jax.experimental.pallas import tpu as pltpu


KP = 128  # packed receptive-field (K) width == MXU / vreg lane width


def _round_up(v, m):
    return (v + m - 1) // m * m


def _pick_m_tile(m):
    # Largest multiple-of-8 divisor of m that is <= 256 (review: 128-256 rows).
    for cand in (256, 224, 192, 160, 144, 128, 96, 72, 64, 48, 32, 24, 16, 8):
        if cand <= m and m % cand == 0:
            return cand
    return m


def _fold_bn(gamma, beta, mean, var, eps=1e-5):
    gamma = gamma.astype(jnp.float32)
    beta = beta.astype(jnp.float32)
    mean = mean.astype(jnp.float32)
    var = var.astype(jnp.float32)
    scale = gamma / jnp.sqrt(var + eps)
    shift = beta - mean * scale
    return scale, shift


def _make_double_conv_kernel(H, W, Cg1, Cg2, Cout, TM):
    """Builds the fused (conv3x3 + folded-BN + ReLU) x 2 kernel (one image)."""
    Wj = W + 2                       # row width of the junk-column layout
    M = H * Wj                       # matmul M: H rows x (W+2) cols
    P = (H + 2) * Wj                 # flat size of the zero-padded activation
    n_tiles = M // TM
    assert M % TM == 0
    taps = [(dy, dx) for dy in range(3) for dx in range(3)]
    pre_end = _round_up(Wj + 1, 8)           # halo rows above the bulk store
    tail_start = (P - Wj + 1) // 8 * 8       # halo rows below the bulk store

    def kernel(x_ref, w1_ref, b1_ref, w2_ref, b2_ref, o_ref, col_ref, pad_ref):
        # x_ref  : (1, P_pad, Cg1) bf16  zero-padded input, flat row-major
        # w?_ref : (128, 128)      bf16  packed conv weights, BN scale folded
        # b?_ref : (1, 128)        f32   folded BN shift (zero in padded lanes)
        # o_ref  : (1, M, Cout)    f32   output in (H, W+2, Cout) junk layout
        # col_ref: (M, 128)        bf16  packed im2col scratch
        # pad_ref: (P_pad, Cg2)    bf16  zero-padded conv1 output (conv2 input)
        p_pad = pad_ref.shape[0]

        # Unused K lanes multiply zero weight rows, but must hold finite data
        # (NaN * 0 = NaN through the MXU), so zero the staging buffer every
        # grid step (megacore-safe: no reliance on scratch persistence).
        col_ref[...] = jnp.zeros_like(col_ref)

        def build_col(load, cg):
            # col[:, t*cg + c] = activation at tap t=(dy,dx), channel c, for
            # all output positions in (H, W+2) junk layout.  Each tap is one
            # contiguous sublane-window copy (no misaligned window reshapes).
            for t, (dy, dx) in enumerate(taps):
                off = dy * Wj + dx
                col_ref[:, t * cg:(t + 1) * cg] = load(off)

        def conv_tiles(w_ref, b_ref, store):
            # One packed K=128 matmul per M-tile; shift + ReLU epilogue; each
            # tile stored straight to its destination ref (row-blocked).
            for ti in range(n_tiles):
                acc = jnp.dot(col_ref[ti * TM:(ti + 1) * TM, :], w_ref[...],
                              preferred_element_type=jnp.float32)
                store(ti, jnp.maximum(acc + b_ref[...], 0.0))

        # ---- conv1 + folded BN1 + ReLU (Dropout2d == identity in eval) ------
        build_col(lambda off: x_ref[0, off:off + M, :], Cg1)

        # Zero the halo rows of pad_ref that the bulk h1 store below does not
        # reach (top halo + first left-halo cell, bottom halo + tail padding);
        # the bulk store rewrites the interior cells of these aligned regions.
        pad_ref[0:pre_end, :] = jnp.zeros((pre_end, Cg2), pad_ref.dtype)
        pad_ref[tail_start:p_pad, :] = jnp.zeros((p_pad - tail_start, Cg2),
                                                 pad_ref.dtype)

        def store_h1(ti, h):
            # Junk columns (x >= W) land exactly on pad_ref's left/right halo
            # cells, so zero them; then one bulk store places the whole tile
            # at flat offset Wj + 1 == padded position (1, 1).
            xj = (lax.broadcasted_iota(jnp.int32, (TM, 1), 0) + ti * TM) % Wj
            h = jnp.where(xj < W, h, 0.0)
            start = Wj + 1 + ti * TM
            pad_ref[start:start + TM, :] = h[:, :Cg2].astype(pad_ref.dtype)

        conv_tiles(w1_ref, b1_ref, store_h1)

        # ---- conv2 + folded BN2 + ReLU ---------------------------------------
        build_col(lambda off: pad_ref[off:off + M, :], Cg2)

        def store_h2(ti, h):
            # Only the Cout real channels go to HBM (padded lanes never leave
            # VMEM); the 2 junk columns per row are dropped by the wrapper.
            o_ref[0, ti * TM:(ti + 1) * TM, :] = h[:, :Cout].astype(o_ref.dtype)

        conv_tiles(w2_ref, b2_ref, store_h2)

    return kernel


@jax.jit
def double_conv(x_nchw, w1, w2, bn1, bn2):
    """DoubleConv forward (inference).

    x_nchw: (N, Cin, H, W) f32;  w1: (Cout, Cin, 3, 3);  w2: (Cout, Cout, 3, 3);
    bn?   = (gamma, beta, running_mean, running_var), each (Cout,).
    Returns (N, Cout, H, W) f32.
    """
    N, Cin, H, W = x_nchw.shape
    Cout = w1.shape[0]
    Wj = W + 2
    M = H * Wj
    P = (H + 2) * Wj
    Cg1 = _round_up(Cin, 8)          # per-tap channel group width, conv1
    Cg2 = _round_up(Cout, 8)         # per-tap channel group width, conv2
    # Packed-K path: whole 3x3 receptive field fits one 128-lane K group.
    assert 9 * Cg1 <= KP and 9 * Cg2 <= KP and Cout <= KP, \
        "packed-K path needs C <= 14; see TODO for the large-C fallback"
    P_pad = _round_up(2 * Wj + 2 + M, 8)   # covers the largest tap-window read
    TM = _pick_m_tile(M)

    # ---- parameter prep (trace-time, tiny) -----------------------------------
    s1, sh1 = _fold_bn(*bn1)
    s2, sh2 = _fold_bn(*bn2)

    def prep_w(w, scale, cin, cg):
        # (Cout, cin, 3, 3) -> packed (128, 128): row (dy*3+dx)*cg + ci,
        # column = cout, BN scale folded in; unused rows / columns are zero.
        wk = jnp.transpose(w, (2, 3, 1, 0)).astype(jnp.float32) * scale
        wk = jnp.pad(wk, ((0, 0), (0, 0), (0, cg - cin), (0, KP - Cout)))
        wk = wk.reshape(9 * cg, KP)
        wk = jnp.pad(wk, ((0, KP - 9 * cg), (0, 0)))
        return wk.astype(jnp.bfloat16)

    w1_k = prep_w(w1, s1, Cin, Cg1)
    w2_k = prep_w(w2, s2, Cout, Cg2)
    b1_k = jnp.pad(sh1, (0, KP - Cout)).reshape(1, KP).astype(jnp.float32)
    b2_k = jnp.pad(sh2, (0, KP - Cout)).reshape(1, KP).astype(jnp.float32)

    # ---- input prep: NCHW -> flat zero-padded (halo + channel group), bf16 ---
    x = jnp.transpose(x_nchw, (0, 2, 3, 1)).astype(jnp.bfloat16)
    xp = jnp.pad(x, ((0, 0), (1, 1), (1, 1), (0, Cg1 - Cin)))
    xp = xp.reshape(N, P, Cg1)
    xp = jnp.pad(xp, ((0, 0), (0, P_pad - P), (0, 0)))

    kernel = _make_double_conv_kernel(H, W, Cg1, Cg2, Cout, TM)

    out = pl.pallas_call(
        kernel,
        out_shape=jax.ShapeDtypeStruct((N, M, Cout), jnp.float32),
        grid_spec=pltpu.PrefetchScalarGridSpec(
            num_scalar_prefetch=0,
            grid=(N,),
            in_specs=[
                pl.BlockSpec((1, P_pad, Cg1), lambda n: (n, 0, 0)),
                pl.BlockSpec((KP, KP), lambda n: (0, 0)),
                pl.BlockSpec((1, KP), lambda n: (0, 0)),
                pl.BlockSpec((KP, KP), lambda n: (0, 0)),
                pl.BlockSpec((1, KP), lambda n: (0, 0)),
            ],
            out_specs=pl.BlockSpec((1, M, Cout), lambda n: (n, 0, 0)),
            scratch_shapes=[
                pltpu.VMEM((M, KP), jnp.bfloat16),        # packed im2col
                pltpu.VMEM((P_pad, Cg2), jnp.bfloat16),   # padded conv1 output
            ],
        ),
        # Batch axis feeds both TensorCores on v7x; total VMEM use here is
        # well under the default scoped limit, so no vmem_limit_bytes needed.
        compiler_params=pltpu.CompilerParams(
            dimension_semantics=("parallel",)),
    )(xp, w1_k, b1_k, w2_k, b2_k)

    # Drop the 2 junk columns per row and go back to NCHW.
    out = out.reshape(N, H, Wj, Cout)[:, :, :W, :]
    return jnp.transpose(out, (0, 3, 1, 2)).astype(x_nchw.dtype)


def _reference(x_nchw, w1, w2, bn1, bn2):
    """Pure-JAX reference mirroring the kernel numerics (bf16 operands,
    f32 accumulation, bf16 intermediate)."""
    def conv_bn_relu(h_nhwc, w, bn):
        s, b = _fold_bn(*bn)
        w_hwio = (jnp.transpose(w, (2, 3, 1, 0)).astype(jnp.float32) * s
                  ).astype(jnp.bfloat16)
        y = lax.conv_general_dilated(
            h_nhwc, w_hwio, window_strides=(1, 1), padding="SAME",
            dimension_numbers=("NHWC", "HWIO", "NHWC"),
            preferred_element_type=jnp.float32)
        return jnp.maximum(y + b.reshape(1, 1, 1, -1), 0.0)

    x = jnp.transpose(x_nchw, (0, 2, 3, 1)).astype(jnp.bfloat16)
    h = conv_bn_relu(x, w1, bn1).astype(jnp.bfloat16)
    h = conv_bn_relu(h, w2, bn2)
    return jnp.transpose(h, (0, 3, 1, 2)).astype(jnp.float32)


if __name__ == "__main__":
    key = jax.random.PRNGKey(0)
    N, Cin, Cout, H, W = 2, 4, 8, 16, 16

    k = jax.random.split(key, 10)
    x = jax.random.normal(k[0], (N, Cin, H, W), jnp.float32)

    # Deterministic synthetic parameters (nn.Conv2d / nn.BatchNorm2d shapes).
    w1 = jax.random.normal(k[1], (Cout, Cin, 3, 3), jnp.float32) * (1.0 / (Cin * 9) ** 0.5)
    w2 = jax.random.normal(k[2], (Cout, Cout, 3, 3), jnp.float32) * (1.0 / (Cout * 9) ** 0.5)
    bn1 = (jax.random.uniform(k[3], (Cout,), minval=0.5, maxval=1.5),
           jax.random.normal(k[4], (Cout,)) * 0.1,
           jax.random.normal(k[5], (Cout,)) * 0.1,
           jax.random.uniform(k[6], (Cout,), minval=0.5, maxval=1.5))
    bn2 = (jax.random.uniform(k[7], (Cout,), minval=0.5, maxval=1.5),
           jax.random.normal(k[8], (Cout,)) * 0.1,
           jax.random.normal(k[9], (Cout,)) * 0.1,
           jax.random.uniform(k[3], (Cout,), minval=0.5, maxval=1.5))

    out = double_conv(x, w1, w2, bn1, bn2)
    out = jax.block_until_ready(out)

    ref = _reference(x, w1, w2, bn1, bn2)
    assert out.shape == (N, Cout, H, W), out.shape
    err = float(jnp.max(jnp.abs(out - ref)))
    assert err < 2e-2, err

    print("KERNEL_OK")
</pallas_src>

<mosaic_0001>
module attributes {stable_mosaic.version = 11 : i64} {
  func.func @kernel(%arg0: i32, %arg1: memref<1x328x8xbf16, #tpu.memory_space<vmem>>, %arg2: memref<128x128xbf16, #tpu.memory_space<vmem>>, %arg3: memref<1x128xf32, #tpu.memory_space<vmem>>, %arg4: memref<128x128xbf16, #tpu.memory_space<vmem>>, %arg5: memref<1x128xf32, #tpu.memory_space<vmem>>, %arg6: memref<1x288x8xf32, #tpu.memory_space<vmem>>, %arg7: memref<288x128xbf16, #tpu.memory_space<vmem>>, %arg8: memref<328x8xbf16, #tpu.memory_space<vmem>>) attributes {dimension_semantics = [#tpu.dimension_semantics<parallel>], iteration_bounds = array<i64: 2>, scalar_prefetch = 0 : i64, scratch_operands = 2 : i64, tpu.core_type = #tpu.core_type<tc>, window_params = [{transform_indices = @transform_0, window_bounds = array<i64: 1, 328, 8>}, {pipeline_mode = #tpu.pipeline_mode<synchronous>, transform_indices = @transform_1, window_bounds = array<i64: 128, 128>}, {pipeline_mode = #tpu.pipeline_mode<synchronous>, transform_indices = @transform_2, window_bounds = array<i64: 1, 128>}, {pipeline_mode = #tpu.pipeline_mode<synchronous>, transform_indices = @transform_3, window_bounds = array<i64: 128, 128>}, {pipeline_mode = #tpu.pipeline_mode<synchronous>, transform_indices = @transform_4, window_bounds = array<i64: 1, 128>}, {transform_indices = @transform_5, window_bounds = array<i64: 1, 288, 8>}]} {
    %cst = arith.constant 0.000000e+00 : bf16
    %0 = vector.broadcast %cst : bf16 to vector<288x128xbf16>
    %c0 = arith.constant 0 : index
    %c0_0 = arith.constant 0 : index
    %1 = vector.load %arg7[%c0, %c0_0] : memref<288x128xbf16, #tpu.memory_space<vmem>>, vector<288x128xbf16>
    tpu.vector_store %arg7[%c0, %c0_0], %0 {strides = array<i32>} : memref<288x128xbf16, #tpu.memory_space<vmem>>, vector<288x128xbf16>,
    %c0_1 = arith.constant 0 : index
    %c0_2 = arith.constant 0 : index
    %c0_3 = arith.constant 0 : index
    %2 = vector.load %arg1[%c0_1, %c0_2, %c0_3] : memref<1x328x8xbf16, #tpu.memory_space<vmem>>, vector<1x288x8xbf16>
    %3 = vector.shape_cast %2 : vector<1x288x8xbf16> to vector<288x8xbf16>
    %c0_4 = arith.constant 0 : index
    %c0_5 = arith.constant 0 : index
    %4 = vector.load %arg7[%c0_4, %c0_5] : memref<288x128xbf16, #tpu.memory_space<vmem>>, vector<288x8xbf16>
    tpu.vector_store %arg7[%c0_4, %c0_5], %3 {strides = array<i32>} : memref<288x128xbf16, #tpu.memory_space<vmem>>, vector<288x8xbf16>,
    %c0_6 = arith.constant 0 : index
    %c1 = arith.constant 1 : index
    %c0_7 = arith.constant 0 : index
    %5 = vector.load %arg1[%c0_6, %c1, %c0_7] : memref<1x328x8xbf16, #tpu.memory_space<vmem>>, vector<1x288x8xbf16>
    %6 = vector.shape_cast %5 : vector<1x288x8xbf16> to vector<288x8xbf16>
    %c0_8 = arith.constant 0 : index
    %c8 = arith.constant 8 : index
    %7 = vector.load %arg7[%c0_8, %c8] : memref<288x128xbf16, #tpu.memory_space<vmem>>, vector<288x8xbf16>
    tpu.vector_store %arg7[%c0_8, %c8], %6 {strides = array<i32>} : memref<288x128xbf16, #tpu.memory_space<vmem>>, vector<288x8xbf16>,
    %c0_9 = arith.constant 0 : index
    %c2 = arith.constant 2 : index
    %c0_10 = arith.constant 0 : index
    %8 = vector.load %arg1[%c0_9, %c2, %c0_10] : memref<1x328x8xbf16, #tpu.memory_space<vmem>>, vector<1x288x8xbf16>
    %9 = vector.shape_cast %8 : vector<1x288x8xbf16> to vector<288x8xbf16>
    %c0_11 = arith.constant 0 : index
    %c16 = arith.constant 16 : index
    %10 = vector.load %arg7[%c0_11, %c16] : memref<288x128xbf16, #tpu.memory_space<vmem>>, vector<288x8xbf16>
    tpu.vector_store %arg7[%c0_11, %c16], %9 {strides = array<i32>} : memref<288x128xbf16, #tpu.memory_space<vmem>>, vector<288x8xbf16>,
    %c0_12 = arith.constant 0 : index
    %c18 = arith.constant 18 : index
    %c0_13 = arith.constant 0 : index
    %11 = vector.load %arg1[%c0_12, %c18, %c0_13] : memref<1x328x8xbf16, #tpu.memory_space<vmem>>, vector<1x288x8xbf16>
    %12 = vector.shape_cast %11 : vector<1x288x8xbf16> to vector<288x8xbf16>
    %c0_14 = arith.constant 0 : index
    %c24 = arith.constant 24 : index
    %13 = vector.load %arg7[%c0_14, %c24] : memref<288x128xbf16, #tpu.memory_space<vmem>>, vector<288x8xbf16>
    tpu.vector_store %arg7[%c0_14, %c24], %12 {strides = array<i32>} : memref<288x128xbf16, #tpu.memory_space<vmem>>, vector<288x8xbf16>,
    %c0_15 = arith.constant 0 : index
    %c19 = arith.constant 19 : index
    %c0_16 = arith.constant 0 : index
    %14 = vector.load %arg1[%c0_15, %c19, %c0_16] : memref<1x328x8xbf16, #tpu.memory_space<vmem>>, vector<1x288x8xbf16>
    %15 = vector.shape_cast %14 : vector<1x288x8xbf16> to vector<288x8xbf16>
    %c0_17 = arith.constant 0 : index
    %c32 = arith.constant 32 : index
    %16 = vector.load %arg7[%c0_17, %c32] : memref<288x128xbf16, #tpu.memory_space<vmem>>, vector<288x8xbf16>
    tpu.vector_store %arg7[%c0_17, %c32], %15 {strides = array<i32>} : memref<288x128xbf16, #tpu.memory_space<vmem>>, vector<288x8xbf16>,
    %c0_18 = arith.constant 0 : index
    %c20 = arith.constant 20 : index
    %c0_19 = arith.constant 0 : index
    %17 = vector.load %arg1[%c0_18, %c20, %c0_19] : memref<1x328x8xbf16, #tpu.memory_space<vmem>>, vector<1x288x8xbf16>
    %18 = vector.shape_cast %17 : vector<1x288x8xbf16> to vector<288x8xbf16>
    %c0_20 = arith.constant 0 : index
    %c40 = arith.constant 40 : index
    %19 = vector.load %arg7[%c0_20, %c40] : memref<288x128xbf16, #tpu.memory_space<vmem>>, vector<288x8xbf16>
    tpu.vector_store %arg7[%c0_20, %c40], %18 {strides = array<i32>} : memref<288x128xbf16, #tpu.memory_space<vmem>>, vector<288x8xbf16>,
    %c0_21 = arith.constant 0 : index
    %c36 = arith.constant 36 : index
    %c0_22 = arith.constant 0 : index
    %20 = vector.load %arg1[%c0_21, %c36, %c0_22] : memref<1x328x8xbf16, #tpu.memory_space<vmem>>, vector<1x288x8xbf16>
    %21 = vector.shape_cast %20 : vector<1x288x8xbf16> to vector<288x8xbf16>
    %c0_23 = arith.constant 0 : index
    %c48 = arith.constant 48 : index
    %22 = vector.load %arg7[%c0_23, %c48] : memref<288x128xbf16, #tpu.memory_space<vmem>>, vector<288x8xbf16>
    tpu.vector_store %arg7[%c0_23, %c48], %21 {strides = array<i32>} : memref<288x128xbf16, #tpu.memory_space<vmem>>, vector<288x8xbf16>,
    %c0_24 = arith.constant 0 : index
    %c37 = arith.constant 37 : index
    %c0_25 = arith.constant 0 : index
    %23 = vector.load %arg1[%c0_24, %c37, %c0_25] : memref<1x328x8xbf16, #tpu.memory_space<vmem>>, vector<1x288x8xbf16>
    %24 = vector.shape_cast %23 : vector<1x288x8xbf16> to vector<288x8xbf16>
    %c0_26 = arith.constant 0 : index
    %c56 = arith.constant 56 : index
    %25 = vector.load %arg7[%c0_26, %c56] : memref<288x128xbf16, #tpu.memory_space<vmem>>, vector<288x8xbf16>
    tpu.vector_store %arg7[%c0_26, %c56], %24 {strides = array<i32>} : memref<288x128xbf16, #tpu.memory_space<vmem>>, vector<288x8xbf16>,
    %c0_27 = arith.constant 0 : index
    %c38 = arith.constant 38 : index
    %c0_28 = arith.constant 0 : index
    %26 = vector.load %arg1[%c0_27, %c38, %c0_28] : memref<1x328x8xbf16, #tpu.memory_space<vmem>>, vector<1x288x8xbf16>
    %27 = vector.shape_cast %26 : vector<1x288x8xbf16> to vector<288x8xbf16>
    %c0_29 = arith.constant 0 : index
    %c64 = arith.constant 64 : index
    %28 = vector.load %arg7[%c0_29, %c64] : memref<288x128xbf16, #tpu.memory_space<vmem>>, vector<288x8xbf16>
    tpu.vector_store %arg7[%c0_29, %c64], %27 {strides = array<i32>} : memref<288x128xbf16, #tpu.memory_space<vmem>>, vector<288x8xbf16>,
    %cst_30 = arith.constant 0.000000e+00 : bf16
    %29 = vector.broadcast %cst_30 : bf16 to vector<24x8xbf16>
    %c0_31 = arith.constant 0 : index
    %c0_32 = arith.constant 0 : index
    %30 = vector.load %arg8[%c0_31, %c0_32] : memref<328x8xbf16, #tpu.memory_space<vmem>>, vector<24x8xbf16>
    tpu.vector_store %arg8[%c0_31, %c0_32], %29 {strides = array<i32>} : memref<328x8xbf16, #tpu.memory_space<vmem>>, vector<24x8xbf16>,
    %cst_33 = arith.constant 0.000000e+00 : bf16
    %31 = vector.broadcast %cst_33 : bf16 to vector<24x8xbf16>
    %c304 = arith.constant 304 : index
    %c0_34 = arith.constant 0 : index
    %32 = vector.load %arg8[%c304, %c0_34] : memref<328x8xbf16, #tpu.memory_space<vmem>>, vector<24x8xbf16>
    tpu.vector_store %arg8[%c304, %c0_34], %31 {strides = array<i32>} : memref<328x8xbf16, #tpu.memory_space<vmem>>, vector<24x8xbf16>,
    %c0_35 = arith.constant 0 : index
    %c0_36 = arith.constant 0 : index
    %33 = vector.load %arg7[%c0_35, %c0_36] : memref<288x128xbf16, #tpu.memory_space<vmem>>, vector<144x128xbf16>
    %c0_37 = arith.constant 0 : index
    %c0_38 = arith.constant 0 : index
    %34 = vector.load %arg2[%c0_37, %c0_38] : memref<128x128xbf16, #tpu.memory_space<vmem>>, vector<128x128xbf16>
    %cst_39 = arith.constant dense<0.000000e+00> : vector<144x128xf32>
    %35 = tpu.matmul %33, %34, %cst_39 {dimension_numbers = #tpu.dot_dimension_numbers<[1], [0], [0], [1], [0, 0, 1, 1], [], []>} : vector<144x128xbf16>, vector<128x128xbf16>, vector<144x128xf32> -> vector<144x128xf32>
    %c0_40 = arith.constant 0 : index
    %c0_41 = arith.constant 0 : index
    %36 = vector.load %arg3[%c0_40, %c0_41] : memref<1x128xf32, #tpu.memory_space<vmem>>, vector<1x128xf32>
    %37 = vector.broadcast %36 : vector<1x128xf32> to vector<144x128xf32>
    %38 = arith.addf %35, %37 : vector<144x128xf32>
    %cst_42 = arith.constant 0.000000e+00 : f32
    %39 = vector.broadcast %cst_42 : f32 to vector<144x128xf32>
    %40 = arith.maximumf %38, %39 : vector<144x128xf32>
    %41 = tpu.iota {dimensions = array<i32: 0>} : vector<144x1xi32>
    %c0_i32 = arith.constant 0 : i32
    %42 = vector.broadcast %c0_i32 : i32 to vector<144x1xi32>
    %43 = arith.addi %41, %42 : vector<144x1xi32>
    %c18_i32 = arith.constant 18 : i32
    %c0_i32_43 = arith.constant 0 : i32
    %44 = arith.cmpi eq, %c18_i32, %c0_i32_43 : i32
    %c1_i32 = arith.constant 1 : i32
    %45 = arith.select %44, %c1_i32, %c18_i32 : i32
    %46 = vector.broadcast %45 : i32 to vector<144x1xi32>
    %47 = arith.remsi %43, %46 : vector<144x1xi32>
    %c0_i32_44 = arith.constant 0 : i32
    %48 = vector.broadcast %c0_i32_44 : i32 to vector<144x1xi32>
    %49 = arith.cmpi ne, %47, %48 : vector<144x1xi32>
    %c0_i32_45 = arith.constant 0 : i32
    %50 = vector.broadcast %c0_i32_45 : i32 to vector<144x1xi32>
    %51 = arith.cmpi slt, %47, %50 : vector<144x1xi32>
    %c0_i32_46 = arith.constant 0 : i32
    %52 = arith.cmpi slt, %45, %c0_i32_46 : i32
    %53 = vector.broadcast %52 : i1 to vector<144x1xi1>
    %54 = vector.broadcast %53 : vector<144x1xi1> to vector<144x1xi1>
    %55 = arith.xori %51, %54 : vector<144x1xi1>
    %56 = arith.andi %55, %49 : vector<144x1xi1>
    %57 = vector.broadcast %45 : i32 to vector<144x1xi32>
    %58 = arith.addi %47, %57 : vector<144x1xi32>
    %59 = arith.select %56, %58, %47 : vector<144x1xi1>, vector<144x1xi32>
    %c16_i32 = arith.constant 16 : i32
    %60 = vector.broadcast %c16_i32 : i32 to vector<144x1xi32>
    %61 = arith.cmpi slt, %59, %60 : vector<144x1xi32>
    %cst_47 = arith.constant 0.000000e+00 : f32
    %62 = vector.shape_cast %61 : vector<144x1xi1> to vector<144x1xi1>
    %63 = vector.broadcast %62 : vector<144x1xi1> to vector<144x128xi1>
    %64 = vector.broadcast %cst_47 : f32 to vector<144x128xf32>
    %65 = arith.select %63, %40, %64 : vector<144x128xi1>, vector<144x128xf32>
    %66 = vector.extract_strided_slice %65 {offsets = [0, 0], sizes = [144, 8], strides = [1, 1]} : vector<144x128xf32> to vector<144x8xf32>
    %67 = arith.truncf %66 : vector<144x8xf32> to vector<144x8xbf16>
    %c19_48 = arith.constant 19 : index
    %c0_49 = arith.constant 0 : index
    %68 = vector.load %arg8[%c19_48, %c0_49] : memref<328x8xbf16, #tpu.memory_space<vmem>>, vector<144x8xbf16>
    tpu.vector_store %arg8[%c19_48, %c0_49], %67 {strides = array<i32>} : memref<328x8xbf16, #tpu.memory_space<vmem>>, vector<144x8xbf16>,
    %c144 = arith.constant 144 : index
    %c0_50 = arith.constant 0 : index
    %69 = vector.load %arg7[%c144, %c0_50] : memref<288x128xbf16, #tpu.memory_space<vmem>>, vector<144x128xbf16>
    %c0_51 = arith.constant 0 : index
    %c0_52 = arith.constant 0 : index
    %70 = vector.load %arg2[%c0_51, %c0_52] : memref<128x128xbf16, #tpu.memory_space<vmem>>, vector<128x128xbf16>
    %cst_53 = arith.constant dense<0.000000e+00> : vector<144x128xf32>
    %71 = tpu.matmul %69, %70, %cst_53 {dimension_numbers = #tpu.dot_dimension_numbers<[1], [0], [0], [1], [0, 0, 1, 1], [], []>} : vector<144x128xbf16>, vector<128x128xbf16>, vector<144x128xf32> -> vector<144x128xf32>
    %c0_54 = arith.constant 0 : index
    %c0_55 = arith.constant 0 : index
    %72 = vector.load %arg3[%c0_54, %c0_55] : memref<1x128xf32, #tpu.memory_space<vmem>>, vector<1x128xf32>
    %73 = vector.broadcast %72 : vector<1x128xf32> to vector<144x128xf32>
    %74 = arith.addf %71, %73 : vector<144x128xf32>
    %cst_56 = arith.constant 0.000000e+00 : f32
    %75 = vector.broadcast %cst_56 : f32 to vector<144x128xf32>
    %76 = arith.maximumf %74, %75 : vector<144x128xf32>
    %77 = tpu.iota {dimensions = array<i32: 0>} : vector<144x1xi32>
    %c144_i32 = arith.constant 144 : i32
    %78 = vector.broadcast %c144_i32 : i32 to vector<144x1xi32>
    %79 = arith.addi %77, %78 : vector<144x1xi32>
    %c18_i32_57 = arith.constant 18 : i32
    %c0_i32_58 = arith.constant 0 : i32
    %80 = arith.cmpi eq, %c18_i32_57, %c0_i32_58 : i32
    %c1_i32_59 = arith.constant 1 : i32
    %81 = arith.select %80, %c1_i32_59, %c18_i32_57 : i32
    %82 = vector.broadcast %81 : i32 to vector<144x1xi32>
    %83 = arith.remsi %79, %82 : vector<144x1xi32>
    %c0_i32_60 = arith.constant 0 : i32
    %84 = vector.broadcast %c0_i32_60 : i32 to vector<144x1xi32>
    %85 = arith.cmpi ne, %83, %84 : vector<144x1xi32>
    %c0_i32_61 = arith.constant 0 : i32
    %86 = vector.broadcast %c0_i32_61 : i32 to vector<144x1xi32>
    %87 = arith.cmpi slt, %83, %86 : vector<144x1xi32>
    %c0_i32_62 = arith.constant 0 : i32
    %88 = arith.cmpi slt, %81, %c0_i32_62 : i32
    %89 = vector.broadcast %88 : i1 to vector<144x1xi1>
    %90 = vector.broadcast %89 : vector<144x1xi1> to vector<144x1xi1>
    %91 = arith.xori %87, %90 : vector<144x1xi1>
    %92 = arith.andi %91, %85 : vector<144x1xi1>
    %93 = vector.broadcast %81 : i32 to vector<144x1xi32>
    %94 = arith.addi %83, %93 : vector<144x1xi32>
    %95 = arith.select %92, %94, %83 : vector<144x1xi1>, vector<144x1xi32>
    %c16_i32_63 = arith.constant 16 : i32
    %96 = vector.broadcast %c16_i32_63 : i32 to vector<144x1xi32>
    %97 = arith.cmpi slt, %95, %96 : vector<144x1xi32>
    %cst_64 = arith.constant 0.000000e+00 : f32
    %98 = vector.shape_cast %97 : vector<144x1xi1> to vector<144x1xi1>
    %99 = vector.broadcast %98 : vector<144x1xi1> to vector<144x128xi1>
    %100 = vector.broadcast %cst_64 : f32 to vector<144x128xf32>
    %101 = arith.select %99, %76, %100 : vector<144x128xi1>, vector<144x128xf32>
    %102 = vector.extract_strided_slice %101 {offsets = [0, 0], sizes = [144, 8], strides = [1, 1]} : vector<144x128xf32> to vector<144x8xf32>
    %103 = arith.truncf %102 : vector<144x8xf32> to vector<144x8xbf16>
    %c163 = arith.constant 163 : index
    %c0_65 = arith.constant 0 : index
    %104 = vector.load %arg8[%c163, %c0_65] : memref<328x8xbf16, #tpu.memory_space<vmem>>, vector<144x8xbf16>
    tpu.vector_store %arg8[%c163, %c0_65], %103 {strides = array<i32>} : memref<328x8xbf16, #tpu.memory_space<vmem>>, vector<144x8xbf16>,
    %c0_66 = arith.constant 0 : index
    %c0_67 = arith.constant 0 : index
    %105 = vector.load %arg8[%c0_66, %c0_67] : memref<328x8xbf16, #tpu.memory_space<vmem>>, vector<288x8xbf16>
    %c0_68 = arith.constant 0 : index
    %c0_69 = arith.constant 0 : index
    %106 = vector.load %arg7[%c0_68, %c0_69] : memref<288x128xbf16, #tpu.memory_space<vmem>>, vector<288x8xbf16>
    tpu.vector_store %arg7[%c0_68, %c0_69], %105 {strides = array<i32>} : memref<288x128xbf16, #tpu.memory_space<vmem>>, vector<288x8xbf16>,
    %c1_70 = arith.constant 1 : index
    %c0_71 = arith.constant 0 : index
    %107 = vector.load %arg8[%c1_70, %c0_71] : memref<328x8xbf16, #tpu.memory_space<vmem>>, vector<288x8xbf16>
    %c0_72 = arith.constant 0 : index
    %c8_73 = arith.constant 8 : index
    %108 = vector.load %arg7[%c0_72, %c8_73] : memref<288x128xbf16, #tpu.memory_space<vmem>>, vector<288x8xbf16>
    tpu.vector_store %arg7[%c0_72, %c8_73], %107 {strides = array<i32>} : memref<288x128xbf16, #tpu.memory_space<vmem>>, vector<288x8xbf16>,
    %c2_74 = arith.constant 2 : index
    %c0_75 = arith.constant 0 : index
    %109 = vector.load %arg8[%c2_74, %c0_75] : memref<328x8xbf16, #tpu.memory_space<vmem>>, vector<288x8xbf16>
    %c0_76 = arith.constant 0 : index
    %c16_77 = arith.constant 16 : index
    %110 = vector.load %arg7[%c0_76, %c16_77] : memref<288x128xbf16, #tpu.memory_space<vmem>>, vector<288x8xbf16>
    tpu.vector_store %arg7[%c0_76, %c16_77], %109 {strides = array<i32>} : memref<288x128xbf16, #tpu.memory_space<vmem>>, vector<288x8xbf16>,
    %c18_78 = arith.constant 18 : index
    %c0_79 = arith.constant 0 : index
    %111 = vector.load %arg8[%c18_78, %c0_79] : memref<328x8xbf16, #tpu.memory_space<vmem>>, vector<288x8xbf16>
    %c0_80 = arith.constant 0 : index
    %c24_81 = arith.constant 24 : index
    %112 = vector.load %arg7[%c0_80, %c24_81] : memref<288x128xbf16, #tpu.memory_space<vmem>>, vector<288x8xbf16>
    tpu.vector_store %arg7[%c0_80, %c24_81], %111 {strides = array<i32>} : memref<288x128xbf16, #tpu.memory_space<vmem>>, vector<288x8xbf16>,
    %c19_82 = arith.constant 19 : index
    %c0_83 = arith.constant 0 : index
    %113 = vector.load %arg8[%c19_82, %c0_83] : memref<328x8xbf16, #tpu.memory_space<vmem>>, vector<288x8xbf16>
    %c0_84 = arith.constant 0 : index
    %c32_85 = arith.constant 32 : index
    %114 = vector.load %arg7[%c0_84, %c32_85] : memref<288x128xbf16, #tpu.memory_space<vmem>>, vector<288x8xbf16>
    tpu.vector_store %arg7[%c0_84, %c32_85], %113 {strides = array<i32>} : memref<288x128xbf16, #tpu.memory_space<vmem>>, vector<288x8xbf16>,
    %c20_86 = arith.constant 20 : index
    %c0_87 = arith.constant 0 : index
    %115 = vector.load %arg8[%c20_86, %c0_87] : memref<328x8xbf16, #tpu.memory_space<vmem>>, vector<288x8xbf16>
    %c0_88 = arith.constant 0 : index
    %c40_89 = arith.constant 40 : index
    %116 = vector.load %arg7[%c0_88, %c40_89] : memref<288x128xbf16, #tpu.memory_space<vmem>>, vector<288x8xbf16>
    tpu.vector_store %arg7[%c0_88, %c40_89], %115 {strides = array<i32>} : memref<288x128xbf16, #tpu.memory_space<vmem>>, vector<288x8xbf16>,
    %c36_90 = arith.constant 36 : index
    %c0_91 = arith.constant 0 : index
    %117 = vector.load %arg8[%c36_90, %c0_91] : memref<328x8xbf16, #tpu.memory_space<vmem>>, vector<288x8xbf16>
    %c0_92 = arith.constant 0 : index
    %c48_93 = arith.constant 48 : index
    %118 = vector.load %arg7[%c0_92, %c48_93] : memref<288x128xbf16, #tpu.memory_space<vmem>>, vector<288x8xbf16>
    tpu.vector_store %arg7[%c0_92, %c48_93], %117 {strides = array<i32>} : memref<288x128xbf16, #tpu.memory_space<vmem>>, vector<288x8xbf16>,
    %c37_94 = arith.constant 37 : index
    %c0_95 = arith.constant 0 : index
    %119 = vector.load %arg8[%c37_94, %c0_95] : memref<328x8xbf16, #tpu.memory_space<vmem>>, vector<288x8xbf16>
    %c0_96 = arith.constant 0 : index
    %c56_97 = arith.constant 56 : index
    %120 = vector.load %arg7[%c0_96, %c56_97] : memref<288x128xbf16, #tpu.memory_space<vmem>>, vector<288x8xbf16>
    tpu.vector_store %arg7[%c0_96, %c56_97], %119 {strides = array<i32>} : memref<288x128xbf16, #tpu.memory_space<vmem>>, vector<288x8xbf16>,
    %c38_98 = arith.constant 38 : index
    %c0_99 = arith.constant 0 : index
    %121 = vector.load %arg8[%c38_98, %c0_99] : memref<328x8xbf16, #tpu.memory_space<vmem>>, vector<288x8xbf16>
    %c0_100 = arith.constant 0 : index
    %c64_101 = arith.constant 64 : index
    %122 = vector.load %arg7[%c0_100, %c64_101] : memref<288x128xbf16, #tpu.memory_space<vmem>>, vector<288x8xbf16>
    tpu.vector_store %arg7[%c0_100, %c64_101], %121 {strides = array<i32>} : memref<288x128xbf16, #tpu.memory_space<vmem>>, vector<288x8xbf16>,
    %c0_102 = arith.constant 0 : index
    %c0_103 = arith.constant 0 : index
    %123 = vector.load %arg7[%c0_102, %c0_103] : memref<288x128xbf16, #tpu.memory_space<vmem>>, vector<144x128xbf16>
    %c0_104 = arith.constant 0 : index
    %c0_105 = arith.constant 0 : index
    %124 = vector.load %arg4[%c0_104, %c0_105] : memref<128x128xbf16, #tpu.memory_space<vmem>>, vector<128x128xbf16>
    %cst_106 = arith.constant dense<0.000000e+00> : vector<144x128xf32>
    %125 = tpu.matmul %123, %124, %cst_106 {dimension_numbers = #tpu.dot_dimension_numbers<[1], [0], [0], [1], [0, 0, 1, 1], [], []>} : vector<144x128xbf16>, vector<128x128xbf16>, vector<144x128xf32> -> vector<144x128xf32>
    %c0_107 = arith.constant 0 : index
    %c0_108 = arith.constant 0 : index
    %126 = vector.load %arg5[%c0_107, %c0_108] : memref<1x128xf32, #tpu.memory_space<vmem>>, vector<1x128xf32>
    %127 = vector.broadcast %126 : vector<1x128xf32> to vector<144x128xf32>
    %128 = arith.addf %125, %127 : vector<144x128xf32>
    %cst_109 = arith.constant 0.000000e+00 : f32
    %129 = vector.broadcast %cst_109 : f32 to vector<144x128xf32>
    %130 = arith.maximumf %128, %129 : vector<144x128xf32>
    %131 = vector.extract_strided_slice %130 {offsets = [0, 0], sizes = [144, 8], strides = [1, 1]} : vector<144x128xf32> to vector<144x8xf32>
    %c0_110 = arith.constant 0 : index
    %c0_111 = arith.constant 0 : index
    %c0_112 = arith.constant 0 : index
    %132 = vector.load %arg6[%c0_110, %c0_111, %c0_112] : memref<1x288x8xf32, #tpu.memory_space<vmem>>, vector<1x144x8xf32>
    %133 = vector.shape_cast %132 : vector<1x144x8xf32> to vector<144x8xf32>
    %134 = vector.shape_cast %131 : vector<144x8xf32> to vector<1x144x8xf32>
    tpu.vector_store %arg6[%c0_110, %c0_111, %c0_112], %134 {strides = array<i32>} : memref<1x288x8xf32, #tpu.memory_space<vmem>>, vector<1x144x8xf32>,
    %c144_113 = arith.constant 144 : index
    %c0_114 = arith.constant 0 : index
    %135 = vector.load %arg7[%c144_113, %c0_114] : memref<288x128xbf16, #tpu.memory_space<vmem>>, vector<144x128xbf16>
    %c0_115 = arith.constant 0 : index
    %c0_116 = arith.constant 0 : index
    %136 = vector.load %arg4[%c0_115, %c0_116] : memref<128x128xbf16, #tpu.memory_space<vmem>>, vector<128x128xbf16>
    %cst_117 = arith.constant dense<0.000000e+00> : vector<144x128xf32>
    %137 = tpu.matmul %135, %136, %cst_117 {dimension_numbers = #tpu.dot_dimension_numbers<[1], [0], [0], [1], [0, 0, 1, 1], [], []>} : vector<144x128xbf16>, vector<128x128xbf16>, vector<144x128xf32> -> vector<144x128xf32>
    %c0_118 = arith.constant 0 : index
    %c0_119 = arith.constant 0 : index
    %138 = vector.load %arg5[%c0_118, %c0_119] : memref<1x128xf32, #tpu.memory_space<vmem>>, vector<1x128xf32>
    %139 = vector.broadcast %138 : vector<1x128xf32> to vector<144x128xf32>
    %140 = arith.addf %137, %139 : vector<144x128xf32>
    %cst_120 = arith.constant 0.000000e+00 : f32
    %141 = vector.broadcast %cst_120 : f32 to vector<144x128xf32>
    %142 = arith.maximumf %140, %141 : vector<144x128xf32>
    %143 = vector.extract_strided_slice %142 {offsets = [0, 0], sizes = [144, 8], strides = [1, 1]} : vector<144x128xf32> to vector<144x8xf32>
    %c0_121 = arith.constant 0 : index
    %c144_122 = arith.constant 144 : index
    %c0_123 = arith.constant 0 : index
    %144 = vector.load %arg6[%c0_121, %c144_122, %c0_123] : memref<1x288x8xf32, #tpu.memory_space<vmem>>, vector<1x144x8xf32>
    %145 = vector.shape_cast %144 : vector<1x144x8xf32> to vector<144x8xf32>
    %146 = vector.shape_cast %143 : vector<144x8xf32> to vector<1x144x8xf32>
    tpu.vector_store %arg6[%c0_121, %c144_122, %c0_123], %146 {strides = array<i32>} : memref<1x288x8xf32, #tpu.memory_space<vmem>>, vector<1x144x8xf32>,
    return
  }
  func.func @transform_0(%arg0: i32) -> (i32, i32, i32) {
    %c0_i32 = arith.constant 0 : i32
    %c0_i32_0 = arith.constant 0 : i32
    %c0_i32_1 = arith.constant 0 : i32
    return %arg0, %c0_i32, %c0_i32_0 : i32, i32, i32
  }
  func.func @transform_1(%arg0: i32) -> (i32, i32) {
    %c0_i32 = arith.constant 0 : i32
    %c0_i32_0 = arith.constant 0 : i32
    %c0_i32_1 = arith.constant 0 : i32
    return %c0_i32, %c0_i32_0 : i32, i32
  }
  func.func @transform_2(%arg0: i32) -> (i32, i32) {
    %c0_i32 = arith.constant 0 : i32
    %c0_i32_0 = arith.constant 0 : i32
    %c0_i32_1 = arith.constant 0 : i32
    return %c0_i32, %c0_i32_0 : i32, i32
  }
  func.func @transform_3(%arg0: i32) -> (i32, i32) {
    %c0_i32 = arith.constant 0 : i32
    %c0_i32_0 = arith.constant 0 : i32
    %c0_i32_1 = arith.constant 0 : i32
    return %c0_i32, %c0_i32_0 : i32, i32
  }
  func.func @transform_4(%arg0: i32) -> (i32, i32) {
    %c0_i32 = arith.constant 0 : i32
    %c0_i32_0 = arith.constant 0 : i32
    %c0_i32_1 = arith.constant 0 : i32
    return %c0_i32, %c0_i32_0 : i32, i32
  }
  func.func @transform_5(%arg0: i32) -> (i32, i32, i32) {
    %c0_i32 = arith.constant 0 : i32
    %c0_i32_0 = arith.constant 0 : i32
    %c0_i32_1 = arith.constant 0 : i32
    return %arg0, %c0_i32, %c0_i32_0 : i32, i32, i32
  }
}

</mosaic_0001>

<llo_original>
// kernel: double_conv.1
$region0: #{double_conv.1}
  #allocation0 [shape = 'u32[]', space=smem, size = 0x4, offset = 0x4, fixed_abs, tag = 'smem constant byte address 0x4 - core index']
  #allocation1 [shape = 'u32[72,128]{1,0:T(1,128)}', space=vmem, size = 0x9000, scoped, tag = 'internal scratch']
  #allocation2 [shape = 'bf16[288,128]{1,0:T(8,128)(2,1)}', space=vmem, size = 0x12000, scoped, tag = 'scratch operand']
  #allocation3 [shape = 'bf16[328,8]{1,0:T(8,128)(2,1)}', space=vmem, size = 0x14800, scoped, tag = 'scratch operand']
  %s0 = inlined_call_operand.vmem [shape: bf16[2,328,8], index: 0, kind: input, shape index: {}]
  %s1 = inlined_call_operand.vmem [shape: bf16[128,128], index: 1, kind: input, shape index: {}]
  %s2 = inlined_call_operand.vmem [shape: f32[1,128], index: 2, kind: input, shape index: {}]
  %s3 = inlined_call_operand.vmem [shape: bf16[128,128], index: 3, kind: input, shape index: {}]
  %s4 = inlined_call_operand.vmem [shape: f32[1,128], index: 4, kind: input, shape index: {}]
  %s5 = inlined_call_operand.vmem [shape: f32[2,288,8], index: 5, kind: output, shape index: {}]
  %s6 = sld [smem:[#allocation0]]
  $region53: #{double_conv.1} parent=0
    _
  %s8 = ssub.s32 1, %s6
  %s9 = scalar_select 0, %s8, %s6
  loop: start=0, step=1, limit=4
  $region2: #{double_conv.1} parent=0 // loop_pre_header
    _
  $region3: #{double_conv.1} parent=0 // loop_header
    %s11 = sphi 0, %s15
    %p12 = scmp.ge.s32.totalorder %s11, 4
    %s21 = sphi 0, %s23
    %s24 = sphi 0, %s21
    %s25 = sphi 0, %s24
    %s41 = sphi 0, %s25
    %s45 = sphi 0, %s45
    %s47 = sphi 0, %s45
    %s48 = sphi 0, %s47
    %s62 = sphi 0, %s48
    %s66 = sphi 0, %s66
    %s68 = sphi 0, %s66
    %s69 = sphi 0, %s68
    %s83 = sphi 0, %s69
    %s87 = sphi 0, %s87
    %s89 = sphi 0, %s87
    %s90 = sphi 0, %s89
    %s104 = sphi 0, %s90
    %s108 = sphi 0, %s108
    %s110 = sphi 0, %s108
    %s111 = sphi 0, %s110
    %s125 = sphi 0, %s111
    %s131 = sphi 0, %s133
    %s134 = sphi 0, %s131
    %s135 = sphi 0, %s134
    %s151 = sphi 0, %s135
  $region4: #{double_conv.1} parent=0 // loop_header_branch
    %14 = sbr.rel (%p12) target = $region8
  $region5: #{double_conv.1} parent=0 // loop_body
    %s16 = ssub.s32 %s11, 1
    %s17 = ssub.s32 %s11, 2
    %s18 = sadd.s32 %s11, 1
    %s19 = ssub.s32 %s11, %s18
    %p20 = scmp.eq.s32.totalorder %s19, 0
    %s22 = sadd.s32 %s21, 1
    %s23 = scalar_select %p20, %s21, %s22
    %p26 = pneg %p20
    %p27 = scmp.eq.s32.totalorder %s11, 1
    %p28 = por %p26, %p27
    %p29 = scmp.ne.s32.totalorder %s21, %s24
    %p30 = scmp.eq.s32.totalorder %s11, 0
    %p31 = por %p29, %p30
    %p32 = scmp.ne.s32.totalorder %s21, %s24
    %p33 = scmp.eq.s32.totalorder %s16, 1
    %p34 = por %p32, %p33
    %p35 = scmp.ne.s32.totalorder %s24, %s25
    %p36 = scmp.eq.s32.totalorder %s16, 0
    %p37 = por %p35, %p36
    %p38 = scmp.ne.s32.totalorder %s24, %s25
    %p39 = scmp.eq.s32.totalorder %s17, 1
    %p40 = por %p38, %p39
    %p42 = scmp.ne.s32.totalorder %s25, %s41
    %p43 = scmp.eq.s32.totalorder %s17, 0
    %p44 = por %p42, %p43
    %s46 = sadd.s32 %s45, 1
    %p49 = scmp.eq.s32.totalorder %s11, 1
    %p50 = scmp.ne.s32.totalorder %s45, %s47
    %p51 = scmp.eq.s32.totalorder %s11, 0
    %p52 = por %p50, %p51
    %p53 = scmp.ne.s32.totalorder %s45, %s47
    %p54 = scmp.eq.s32.totalorder %s16, 1
    %p55 = por %p53, %p54
    %p56 = scmp.ne.s32.totalorder %s47, %s48
    %p57 = scmp.eq.s32.totalorder %s16, 0
    %p58 = por %p56, %p57
    %p59 = scmp.ne.s32.totalorder %s47, %s48
    %p60 = scmp.eq.s32.totalorder %s17, 1
    %p61 = por %p59, %p60
    %p63 = scmp.ne.s32.totalorder %s48, %s62
    %p64 = scmp.eq.s32.totalorder %s17, 0
    %p65 = por %p63, %p64
    %s67 = sadd.s32 %s66, 1
    %p70 = scmp.eq.s32.totalorder %s11, 1
    %p71 = scmp.ne.s32.totalorder %s66, %s68
    %p72 = scmp.eq.s32.totalorder %s11, 0
    %p73 = por %p71, %p72
    %p74 = scmp.ne.s32.totalorder %s66, %s68
    %p75 = scmp.eq.s32.totalorder %s16, 1
    %p76 = por %p74, %p75
    %p77 = scmp.ne.s32.totalorder %s68, %s69
    %p78 = scmp.eq.s32.totalorder %s16, 0
    %p79 = por %p77, %p78
    %p80 = scmp.ne.s32.totalorder %s68, %s69
    %p81 = scmp.eq.s32.totalorder %s17, 1
    %p82 = por %p80, %p81
    %p84 = scmp.ne.s32.totalorder %s69, %s83
    %p85 = scmp.eq.s32.totalorder %s17, 0
    %p86 = por %p84, %p85
    %s88 = sadd.s32 %s87, 1
    %p91 = scmp.eq.s32.totalorder %s11, 1
    %p92 = scmp.ne.s32.totalorder %s87, %s89
    %p93 = scmp.eq.s32.totalorder %s11, 0
    %p94 = por %p92, %p93
    %p95 = scmp.ne.s32.totalorder %s87, %s89
    %p96 = scmp.eq.s32.totalorder %s16, 1
    %p97 = por %p95, %p96
    %p98 = scmp.ne.s32.totalorder %s89, %s90
    %p99 = scmp.eq.s32.totalorder %s16, 0
    %p100 = por %p98, %p99
    %p101 = scmp.ne.s32.totalorder %s89, %s90
    %p102 = scmp.eq.s32.totalorder %s17, 1
    %p103 = por %p101, %p102
    %p105 = scmp.ne.s32.totalorder %s90, %s104
    %p106 = scmp.eq.s32.totalorder %s17, 0
    %p107 = por %p105, %p106
    %s109 = sadd.s32 %s108, 1
    %p112 = scmp.eq.s32.totalorder %s11, 1
    %p113 = scmp.ne.s32.totalorder %s108, %s110
    %p114 = scmp.eq.s32.totalorder %s11, 0
    %p115 = por %p113, %p114
    %p116 = scmp.ne.s32.totalorder %s108, %s110
    %p117 = scmp.eq.s32.totalorder %s16, 1
    %p118 = por %p116, %p117
    %p119 = scmp.ne.s32.totalorder %s110, %s111
    %p120 = scmp.eq.s32.totalorder %s16, 0
    %p121 = por %p119, %p120
    %p122 = scmp.ne.s32.totalorder %s110, %s111
    %p123 = scmp.eq.s32.totalorder %s17, 1
    %p124 = por %p122, %p123
    %p126 = scmp.ne.s32.totalorder %s111, %s125
    %p127 = scmp.eq.s32.totalorder %s17, 0
    %p128 = por %p126, %p127
    %s129 = ssub.s32 %s11, %s18
    %p130 = scmp.eq.s32.totalorder %s129, 0
    %s132 = sadd.s32 %s131, 1
    %s133 = scalar_select %p130, %s131, %s132
    %p136 = pneg %p130
    %p137 = scmp.eq.s32.totalorder %s11, 1
    %p138 = por %p136, %p137
    %p139 = scmp.ne.s32.totalorder %s131, %s134
    %p140 = scmp.eq.s32.totalorder %s11, 0
    %p141 = por %p139, %p140
    %p142 = scmp.ne.s32.totalorder %s131, %s134
    %p143 = scmp.eq.s32.totalorder %s16, 1
    %p144 = por %p142, %p143
    %p145 = scmp.ne.s32.totalorder %s134, %s135
    %p146 = scmp.eq.s32.totalorder %s16, 0
    %p147 = por %p145, %p146
    %p148 = scmp.ne.s32.totalorder %s134, %s135
    %p149 = scmp.eq.s32.totalorder %s17, 1
    %p150 = por %p148, %p149
    %p152 = scmp.ne.s32.totalorder %s135, %s151
    %p153 = scmp.eq.s32.totalorder %s17, 0
    %p154 = por %p152, %p153
    %p155 = scmp.le.s32.totalorder 1, %s11
    %p156 = scmp.lt.s32.totalorder %s11, 3
    %p157 = pnand %p155, %p156
    %p158 = pneg %p157
    // Predicated region
    $region9: #{double_conv.1} parent=5 // pred_check
      _
    $region10: #{double_conv.1} parent=5 // pred_check_branch
      %160 = sbr.rel (%p157) target = $region12
    $region11: #{double_conv.1} parent=5 // pred_region
      %s161 = ssub.s32 %s11, 1
      // Predicated region
      $region13: #{double_conv.1} parent=11 // pred_check
        %p162 = pneg %p58
      $region14: #{double_conv.1} parent=11 // pred_check_branch
        %164 = sbr.rel (%p162) target = $region16
      $region15: #{double_conv.1} parent=11 // pred_region
        _
      $region16: #{double_conv.1} parent=11 // pred_fallthru
        _
      // Predicated region
      $region17: #{double_conv.1} parent=11 // pred_check
        %p165 = pneg %p79
      $region18: #{double_conv.1} parent=11 // pred_check_branch
        %167 = sbr.rel (%p165) target = $region20
      $region19: #{double_conv.1} parent=11 // pred_region
        _
      $region20: #{double_conv.1} parent=11 // pred_fallthru
        _
      // Predicated region
      $region21: #{double_conv.1} parent=11 // pred_check
        %p168 = pneg %p100
      $region22: #{double_conv.1} parent=11 // pred_check_branch
        %170 = sbr.rel (%p168) target = $region24
      $region23: #{double_conv.1} parent=11 // pred_region
        _
      $region24: #{double_conv.1} parent=11 // pred_fallthru
        _
      // Predicated region
      $region25: #{double_conv.1} parent=11 // pred_check
        %p171 = pneg %p121
      $region26: #{double_conv.1} parent=11 // pred_check_branch
        %173 = sbr.rel (%p171) target = $region28
      $region27: #{double_conv.1} parent=11 // pred_region
        _
      $region28: #{double_conv.1} parent=11 // pred_fallthru
        _
    $region12: #{double_conv.1} parent=5 // pred_fallthru
      _
    %p174 = scmp.lt.s32.totalorder %s11, 2
    // Predicated region
    $region29: #{double_conv.1} parent=5 // pred_check
      %p175 = pneg %p174
    $region30: #{double_conv.1} parent=5 // pred_check_branch
      %177 = sbr.rel (%p175) target = $region32
    $region31: #{double_conv.1} parent=5 // pred_region
      // Predicated region
      $region33: #{double_conv.1} parent=31 // pred_check
        %p178 = pneg %p31
      $region34: #{double_conv.1} parent=31 // pred_check_branch
        %180 = sbr.rel (%p178) target = $region36
      $region35: #{double_conv.1} parent=31 // pred_region
        %p181 = scmp.lt.s32.totalorder %s11, 1
        %s182 = scalar_select %p181, %s11, 1
        %s183 = smul.addr %s182, 41
        %s184 = smul.addr %s183, 4
        %s185 = scalar_lea.vmem %s0, %s184
      $region36: #{double_conv.1} parent=31 // pred_fallthru
        _
    $region32: #{double_conv.1} parent=5 // pred_fallthru
      _
    %p186 = scmp.le.s32.totalorder 1, %s11
    %p187 = scmp.lt.s32.totalorder %s11, 3
    %p188 = pnand %p186, %p187
    %p189 = pneg %p188
    // Predicated region
    $region37: #{double_conv.1} parent=5 // pred_check
      _
    $region38: #{double_conv.1} parent=5 // pred_check_branch
      %191 = sbr.rel (%p188) target = $region40
    $region39: #{double_conv.1} parent=5 // pred_region
      %s192 = ssub.s32 %s11, 1
      %p193 = scmp.lt.s32.totalorder %s16, 1
      %s194 = scalar_select %p193, %s16, 1
      %s195 = smul.addr %s194, 41
      %s196 = smul.addr %s195, 4
      %s197 = scalar_lea.vmem %s0, %s196
      %p198 = pneg %p37
      %p199 = pneg %p34
      %p200 = pneg %p58
      %p201 = pneg %p55
      %p202 = pneg %p79
      %p203 = pneg %p76
      %p204 = pneg %p100
      %p205 = pneg %p97
      %p206 = pneg %p121
      %p207 = pneg %p118
      %p208 = pneg %p147
      %p209 = pneg %p144
      %p210 = scmp.lt.s32.totalorder %s16, 1
      %s211 = scalar_select %p210, %s16, 1
      %s212 = smul.addr %s211, 36
      %s213 = smul.addr %s212, 8
      %s214 = scalar_lea.vmem %s5, %s213
      %p215 = scmp.lt.s32.totalorder %s16, 1
      %s216 = scalar_select %p215, %s16, 1
      %s217 = smul.addr %s216, 41
      %s218 = smul.addr %s217, 4
      %s219 = scalar_lea.vmem %s0, %s218
      %p220 = scmp.lt.s32.totalorder %s16, 1
      %s221 = scalar_select %p220, %s16, 1
      %s222 = smul.addr %s221, 36
      %s223 = smul.addr %s222, 8
      %s224 = scalar_lea.vmem %s5, %s223
      %226 = vst [vmem:[#allocation2] sm:$0xf] 0
      %227 = vst [vmem:[#allocation2 + $0x4] sm:$0xf] 0
      %228 = vst [vmem:[#allocation2 + $0x8] sm:$0xf] 0
      %229 = vst [vmem:[#allocation2 + $0xc] sm:$0xf] 0
      %230 = vst [vmem:[#allocation2 + $0x10] sm:$0xf] 0
      %231 = vst [vmem:[#allocation2 + $0x14] sm:$0xf] 0
      %232 = vst [vmem:[#allocation2 + $0x18] sm:$0xf] 0
      %233 = vst [vmem:[#allocation2 + $0x1c] sm:$0xf] 0
      %234 = vst [vmem:[#allocation2 + $0x20] sm:$0xf] 0
      %235 = vst [vmem:[#allocation2 + $0x24] sm:$0xf] 0
      %236 = vst [vmem:[#allocation2 + $0x28] sm:$0xf] 0
      %237 = vst [vmem:[#allocation2 + $0x2c] sm:$0xf] 0
      %238 = vst [vmem:[#allocation2 + $0x30] sm:$0xf] 0
      %239 = vst [vmem:[#allocation2 + $0x34] sm:$0xf] 0
      %240 = vst [vmem:[#allocation2 + $0x38] sm:$0xf] 0
      %241 = vst [vmem:[#allocation2 + $0x3c] sm:$0xf] 0
      %242 = vst [vmem:[#allocation2 + $0x40] sm:$0xf] 0
      %243 = vst [vmem:[#allocation2 + $0x44] sm:$0xf] 0
      %244 = vst [vmem:[#allocation2 + $0x48] sm:$0xf] 0
      %245 = vst [vmem:[#allocation2 + $0x4c] sm:$0xf] 0
      %246 = vst [vmem:[#allocation2 + $0x50] sm:$0xf] 0
      %247 = vst [vmem:[#allocation2 + $0x54] sm:$0xf] 0
      %248 = vst [vmem:[#allocation2 + $0x58] sm:$0xf] 0
      %249 = vst [vmem:[#allocation2 + $0x5c] sm:$0xf] 0
      %250 = vst [vmem:[#allocation2 + $0x60] sm:$0xf] 0
      %251 = vst [vmem:[#allocation2 + $0x64] sm:$0xf] 0
      %252 = vst [vmem:[#allocation2 + $0x68] sm:$0xf] 0
      %253 = vst [vmem:[#allocation2 + $0x6c] sm:$0xf] 0
      %254 = vst [vmem:[#allocation2 + $0x70] sm:$0xf] 0
      %255 = vst [vmem:[#allocation2 + $0x74] sm:$0xf] 0
      %256 = vst [vmem:[#allocation2 + $0x78] sm:$0xf] 0
      %257 = vst [vmem:[#allocation2 + $0x7c] sm:$0xf] 0
      %258 = vst [vmem:[#allocation2 + $0x80] sm:$0xf] 0
      %259 = vst [vmem:[#allocation2 + $0x84] sm:$0xf] 0
      %260 = vst [vmem:[#allocation2 + $0x88] sm:$0xf] 0
      %261 = vst [vmem:[#allocation2 + $0x8c] sm:$0xf] 0
      %v262 = vld [vmem:[%s219] sm:$0xf]
      %v263 = vld [vmem:[%s219 + $0x4] sm:$0xf]
      %v264 = vld [vmem:[%s219 + $0x8] sm:$0xf]
      %v265 = vld [vmem:[%s219 + $0xc] sm:$0xf]
      %v266 = vld [vmem:[%s219 + $0x10] sm:$0xf]
      %v267 = vld [vmem:[%s219 + $0x14] sm:$0xf]
      %v268 = vld [vmem:[%s219 + $0x18] sm:$0xf]
      %v269 = vld [vmem:[%s219 + $0x1c] sm:$0xf]
      %v270 = vld [vmem:[%s219 + $0x20] sm:$0xf]
      %v271 = vld [vmem:[%s219 + $0x24] sm:$0xf]
      %v272 = vld [vmem:[%s219 + $0x28] sm:$0xf]
      %v273 = vld [vmem:[%s219 + $0x2c] sm:$0xf]
      %v274 = vld [vmem:[%s219 + $0x30] sm:$0xf]
      %v275 = vld [vmem:[%s219 + $0x34] sm:$0xf]
      %v276 = vld [vmem:[%s219 + $0x38] sm:$0xf]
      %v277 = vld [vmem:[%s219 + $0x3c] sm:$0xf]
      %v278 = vld [vmem:[%s219 + $0x40] sm:$0xf]
      %v279 = vld [vmem:[%s219 + $0x44] sm:$0xf]
      %v280 = vld [vmem:[%s219 + $0x48] sm:$0xf]
      %v281 = vld [vmem:[%s219 + $0x4c] sm:$0xf]
      %v282 = vld [vmem:[%s219 + $0x50] sm:$0xf]
      %v283 = vld [vmem:[%s219 + $0x54] sm:$0xf]
      %v284 = vld [vmem:[%s219 + $0x58] sm:$0xf]
      %v285 = vld [vmem:[%s219 + $0x5c] sm:$0xf]
      %v286 = vld [vmem:[%s219 + $0x60] sm:$0xf]
      %v287 = vld [vmem:[%s219 + $0x64] sm:$0xf]
      %v288 = vld [vmem:[%s219 + $0x68] sm:$0xf]
      %v289 = vld [vmem:[%s219 + $0x6c] sm:$0xf]
      %v290 = vld [vmem:[%s219 + $0x70] sm:$0xf]
      %v291 = vld [vmem:[%s219 + $0x74] sm:$0xf]
      %v292 = vld [vmem:[%s219 + $0x78] sm:$0xf]
      %v293 = vld [vmem:[%s219 + $0x7c] sm:$0xf]
      %v294 = vld [vmem:[%s219 + $0x80] sm:$0xf]
      %v295 = vld [vmem:[%s219 + $0x84] sm:$0xf]
      %v296 = vld [vmem:[%s219 + $0x88] sm:$0xf]
      %v297 = vld [vmem:[%s219 + $0x8c] sm:$0xf]
      %vm298 = vcmask 60416
      %299 = vst.msk [vmem:[#allocation2] sm:$0xf] %vm298, %v262
      %300 = vst.msk [vmem:[#allocation2 + $0x4] sm:$0xf] %vm298, %v263
      %301 = vst.msk [vmem:[#allocation2 + $0x8] sm:$0xf] %vm298, %v264
      %302 = vst.msk [vmem:[#allocation2 + $0xc] sm:$0xf] %vm298, %v265
      %303 = vst.msk [vmem:[#allocation2 + $0x10] sm:$0xf] %vm298, %v266
      %304 = vst.msk [vmem:[#allocation2 + $0x14] sm:$0xf] %vm298, %v267
      %305 = vst.msk [vmem:[#allocation2 + $0x18] sm:$0xf] %vm298, %v268
      %306 = vst.msk [vmem:[#allocation2 + $0x1c] sm:$0xf] %vm298, %v269
      %307 = vst.msk [vmem:[#allocation2 + $0x20] sm:$0xf] %vm298, %v270
      %308 = vst.msk [vmem:[#allocation2 + $0x24] sm:$0xf] %vm298, %v271
      %309 = vst.msk [vmem:[#allocation2 + $0x28] sm:$0xf] %vm298, %v272
      %310 = vst.msk [vmem:[#allocation2 + $0x2c] sm:$0xf] %vm298, %v273
      %311 = vst.msk [vmem:[#allocation2 + $0x30] sm:$0xf] %vm298, %v274
      %312 = vst.msk [vmem:[#allocation2 + $0x34] sm:$0xf] %vm298, %v275
      %313 = vst.msk [vmem:[#allocation2 + $0x38] sm:$0xf] %vm298, %v276
      %314 = vst.msk [vmem:[#allocation2 + $0x3c] sm:$0xf] %vm298, %v277
      %315 = vst.msk [vmem:[#allocation2 + $0x40] sm:$0xf] %vm298, %v278
      %316 = vst.msk [vmem:[#allocation2 + $0x44] sm:$0xf] %vm298, %v279
      %317 = vst.msk [vmem:[#allocation2 + $0x48] sm:$0xf] %vm298, %v280
      %318 = vst.msk [vmem:[#allocation2 + $0x4c] sm:$0xf] %vm298, %v281
      %319 = vst.msk [vmem:[#allocation2 + $0x50] sm:$0xf] %vm298, %v282
      %320 = vst.msk [vmem:[#allocation2 + $0x54] sm:$0xf] %vm298, %v283
      %321 = vst.msk [vmem:[#allocation2 + $0x58] sm:$0xf] %vm298, %v284
      %322 = vst.msk [vmem:[#allocation2 + $0x5c] sm:$0xf] %vm298, %v285
      %323 = vst.msk [vmem:[#allocation2 + $0x60] sm:$0xf] %vm298, %v286
      %324 = vst.msk [vmem:[#allocation2 + $0x64] sm:$0xf] %vm298, %v287
      %325 = vst.msk [vmem:[#allocation2 + $0x68] sm:$0xf] %vm298, %v288
      %326 = vst.msk [vmem:[#allocation2 + $0x6c] sm:$0xf] %vm298, %v289
      %327 = vst.msk [vmem:[#allocation2 + $0x70] sm:$0xf] %vm298, %v290
      %328 = vst.msk [vmem:[#allocation2 + $0x74] sm:$0xf] %vm298, %v291
      %329 = vst.msk [vmem:[#allocation2 + $0x78] sm:$0xf] %vm298, %v292
      %330 = vst.msk [vmem:[#allocation2 + $0x7c] sm:$0xf] %vm298, %v293
      %331 = vst.msk [vmem:[#allocation2 + $0x80] sm:$0xf] %vm298, %v294
      %332 = vst.msk [vmem:[#allocation2 + $0x84] sm:$0xf] %vm298, %v295
      %333 = vst.msk [vmem:[#allocation2 + $0x88] sm:$0xf] %vm298, %v296
      %334 = vst.msk [vmem:[#allocation2 + $0x8c] sm:$0xf] %vm298, %v297
      %v335 = vld [vmem:[%s219] sm:$0xf]
      %v336 = vld [vmem:[%s219 + $0x4] sm:$0xf]
      %v337 = vld [vmem:[%s219 + $0x8] sm:$0xf]
      %v338 = vld [vmem:[%s219 + $0xc] sm:$0xf]
      %v339 = vld [vmem:[%s219 + $0x10] sm:$0xf]
      %v340 = vld [vmem:[%s219 + $0x14] sm:$0xf]
      %v341 = vld [vmem:[%s219 + $0x18] sm:$0xf]
      %v342 = vld [vmem:[%s219 + $0x1c] sm:$0xf]
      %v343 = vld [vmem:[%s219 + $0x20] sm:$0xf]
      %v344 = vld [vmem:[%s219 + $0x24] sm:$0xf]
      %v345 = vld [vmem:[%s219 + $0x28] sm:$0xf]
      %v346 = vld [vmem:[%s219 + $0x2c] sm:$0xf]
      %v347 = vld [vmem:[%s219 + $0x30] sm:$0xf]
      %v348 = vld [vmem:[%s219 + $0x34] sm:$0xf]
      %v349 = vld [vmem:[%s219 + $0x38] sm:$0xf]
      %v350 = vld [vmem:[%s219 + $0x3c] sm:$0xf]
      %v351 = vld [vmem:[%s219 + $0x40] sm:$0xf]
      %v352 = vld [vmem:[%s219 + $0x44] sm:$0xf]
      %v353 = vld [vmem:[%s219 + $0x48] sm:$0xf]
      %v354 = vld [vmem:[%s219 + $0x4c] sm:$0xf]
      %v355 = vld [vmem:[%s219 + $0x50] sm:$0xf]
      %v356 = vld [vmem:[%s219 + $0x54] sm:$0xf]
      %v357 = vld [vmem:[%s219 + $0x58] sm:$0xf]
      %v358 = vld [vmem:[%s219 + $0x5c] sm:$0xf]
      %v359 = vld [vmem:[%s219 + $0x60] sm:$0xf]
      %v360 = vld [vmem:[%s219 + $0x64] sm:$0xf]
      %v361 = vld [vmem:[%s219 + $0x68] sm:$0xf]
      %v362 = vld [vmem:[%s219 + $0x6c] sm:$0xf]
      %v363 = vld [vmem:[%s219 + $0x70] sm:$0xf]
      %v364 = vld [vmem:[%s219 + $0x74] sm:$0xf]
      %v365 = vld [vmem:[%s219 + $0x78] sm:$0xf]
      %v366 = vld [vmem:[%s219 + $0x7c] sm:$0xf]
      %v367 = vld [vmem:[%s219 + $0x80] sm:$0xf]
      %v368 = vld [vmem:[%s219 + $0x84] sm:$0xf]
      %v369 = vld [vmem:[%s219 + $0x88] sm:$0xf]
      %v370 = vld [vmem:[%s219 + $0x8c] sm:$0xf]
      %v371 = vld [vmem:[%s219 + $0x90] sm:$0x1]
      %vm372 = vsmask.f32 3328
      %vm373 = vsmask.f32 7440
      %vm374 = vmor %vm372, %vm373
      %v376 = vshrl.u32 %v335, 16
      %v378 = vrot.slane %v376, 4
      %v379 = vshll.u32 %v335, 16
      %v381 = vrot.slane %v379, 5
      %v382 = vor.u32 %v378, %v381
      %v383 = vrot.slane %v382, 4
      %v385 = vshll.u32 %v336, 16
      %v387 = vrot.slane %v385, 5
      %v388 = vsel %vm374, %v383, %v387
      %v389 = vshrl.u32 %v336, 16
      %v391 = vrot.slane %v389, 4
      %v392 = vor.u32 %v391, %v387
      %v393 = vrot.slane %v392, 4
      %v395 = vshll.u32 %v337, 16
      %v397 = vrot.slane %v395, 5
      %v398 = vsel %vm374, %v393, %v397
      %v399 = vshrl.u32 %v337, 16
      %v401 = vrot.slane %v399, 4
      %v402 = vor.u32 %v401, %v397
      %v403 = vrot.slane %v402, 4
      %v405 = vshll.u32 %v338, 16
      %v407 = vrot.slane %v405, 5
      %v408 = vsel %vm374, %v403, %v407
      %v409 = vshrl.u32 %v338, 16
      %v411 = vrot.slane %v409, 4
      %v412 = vor.u32 %v411, %v407
      %v413 = vrot.slane %v412, 4
      %v415 = vshll.u32 %v339, 16
      %v417 = vrot.slane %v415, 5
      %v418 = vsel %vm374, %v413, %v417
      %v419 = vshrl.u32 %v339, 16
      %v421 = vrot.slane %v419, 4
      %v422 = vor.u32 %v421, %v417
      %v423 = vrot.slane %v422, 4
      %v425 = vshll.u32 %v340, 16
      %v427 = vrot.slane %v425, 5
      %v428 = vsel %vm374, %v423, %v427
      %v429 = vshrl.u32 %v340, 16
      %v431 = vrot.slane %v429, 4
      %v432 = vor.u32 %v431, %v427
      %v433 = vrot.slane %v432, 4
      %v435 = vshll.u32 %v341, 16
      %v437 = vrot.slane %v435, 5
      %v438 = vsel %vm374, %v433, %v437
      %v439 = vshrl.u32 %v341, 16
      %v441 = vrot.slane %v439, 4
      %v442 = vor.u32 %v441, %v437
      %v443 = vrot.slane %v442, 4
      %v445 = vshll.u32 %v342, 16
      %v447 = vrot.slane %v445, 5
      %v448 = vsel %vm374, %v443, %v447
      %v449 = vshrl.u32 %v342, 16
      %v451 = vrot.slane %v449, 4
      %v452 = vor.u32 %v451, %v447
      %v453 = vrot.slane %v452, 4
      %v455 = vshll.u32 %v343, 16
      %v457 = vrot.slane %v455, 5
      %v458 = vsel %vm374, %v453, %v457
      %v459 = vshrl.u32 %v343, 16
      %v461 = vrot.slane %v459, 4
      %v462 = vor.u32 %v461, %v457
      %v463 = vrot.slane %v462, 4
      %v465 = vshll.u32 %v344, 16
      %v467 = vrot.slane %v465, 5
      %v468 = vsel %vm374, %v463, %v467
      %v469 = vshrl.u32 %v344, 16
      %v471 = vrot.slane %v469, 4
      %v472 = vor.u32 %v471, %v467
      %v473 = vrot.slane %v472, 4
      %v475 = vshll.u32 %v345, 16
      %v477 = vrot.slane %v475, 5
      %v478 = vsel %vm374, %v473, %v477
      %v479 = vshrl.u32 %v345, 16
      %v481 = vrot.slane %v479, 4
      %v482 = vor.u32 %v481, %v477
      %v483 = vrot.slane %v482, 4
      %v485 = vshll.u32 %v346, 16
      %v487 = vrot.slane %v485, 5
      %v488 = vsel %vm374, %v483, %v487
      %v489 = vshrl.u32 %v346, 16
      %v491 = vrot.slane %v489, 4
      %v492 = vor.u32 %v491, %v487
      %v493 = vrot.slane %v492, 4
      %v495 = vshll.u32 %v347, 16
      %v497 = vrot.slane %v495, 5
      %v498 = vsel %vm374, %v493, %v497
      %v499 = vshrl.u32 %v347, 16
      %v501 = vrot.slane %v499, 4
      %v502 = vor.u32 %v501, %v497
      %v503 = vrot.slane %v502, 4
      %v505 = vshll.u32 %v348, 16
      %v507 = vrot.slane %v505, 5
      %v508 = vsel %vm374, %v503, %v507
      %v509 = vshrl.u32 %v348, 16
      %v511 = vrot.slane %v509, 4
      %v512 = vor.u32 %v511, %v507
      %v513 = vrot.slane %v512, 4
      %v515 = vshll.u32 %v349, 16
      %v517 = vrot.slane %v515, 5
      %v518 = vsel %vm374, %v513, %v517
      %v519 = vshrl.u32 %v349, 16
      %v521 = vrot.slane %v519, 4
      %v522 = vor.u32 %v521, %v517
      %v523 = vrot.slane %v522, 4
      %v525 = vshll.u32 %v350, 16
      %v527 = vrot.slane %v525, 5
      %v528 = vsel %vm374, %v523, %v527
      %v529 = vshrl.u32 %v350, 16
      %v531 = vrot.slane %v529, 4
      %v532 = vor.u32 %v531, %v527
      %v533 = vrot.slane %v532, 4
      %v535 = vshll.u32 %v351, 16
      %v537 = vrot.slane %v535, 5
      %v538 = vsel %vm374, %v533, %v537
      %v539 = vshrl.u32 %v351, 16
      %v541 = vrot.slane %v539, 4
      %v542 = vor.u32 %v541, %v537
      %v543 = vrot.slane %v542, 4
      %v545 = vshll.u32 %v352, 16
      %v547 = vrot.slane %v545, 5
      %v548 = vsel %vm374, %v543, %v547
      %v549 = vshrl.u32 %v352, 16
      %v551 = vrot.slane %v549, 4
      %v552 = vor.u32 %v551, %v547
      %v553 = vrot.slane %v552, 4
      %v555 = vshll.u32 %v353, 16
      %v557 = vrot.slane %v555, 5
      %v558 = vsel %vm374, %v553, %v557
      %v559 = vshrl.u32 %v353, 16
      %v561 = vrot.slane %v559, 4
      %v562 = vor.u32 %v561, %v557
      %v563 = vrot.slane %v562, 4
      %v565 = vshll.u32 %v354, 16
      %v567 = vrot.slane %v565, 5
      %v568 = vsel %vm374, %v563, %v567
      %v569 = vshrl.u32 %v354, 16
      %v571 = vrot.slane %v569, 4
      %v572 = vor.u32 %v571, %v567
      %v573 = vrot.slane %v572, 4
      %v575 = vshll.u32 %v355, 16
      %v577 = vrot.slane %v575, 5
      %v578 = vsel %vm374, %v573, %v577
      %v579 = vshrl.u32 %v355, 16
      %v581 = vrot.slane %v579, 4
      %v582 = vor.u32 %v581, %v577
      %v583 = vrot.slane %v582, 4
      %v585 = vshll.u32 %v356, 16
      %v587 = vrot.slane %v585, 5
      %v588 = vsel %vm374, %v583, %v587
      %v589 = vshrl.u32 %v356, 16
      %v591 = vrot.slane %v589, 4
      %v592 = vor.u32 %v591, %v587
      %v593 = vrot.slane %v592, 4
      %v595 = vshll.u32 %v357, 16
      %v597 = vrot.slane %v595, 5
      %v598 = vsel %vm374, %v593, %v597
      %v599 = vshrl.u32 %v357, 16
      %v601 = vrot.slane %v599, 4
      %v602 = vor.u32 %v601, %v597
      %v603 = vrot.slane %v602, 4
      %v605 = vshll.u32 %v358, 16
      %v607 = vrot.slane %v605, 5
      %v608 = vsel %vm374, %v603, %v607
      %v609 = vshrl.u32 %v358, 16
      %v611 = vrot.slane %v609, 4
      %v612 = vor.u32 %v611, %v607
      %v613 = vrot.slane %v612, 4
      %v615 = vshll.u32 %v359, 16
      %v617 = vrot.slane %v615, 5
      %v618 = vsel %vm374, %v613, %v617
      %v619 = vshrl.u32 %v359, 16
      %v621 = vrot.slane %v619, 4
      %v622 = vor.u32 %v621, %v617
      %v623 = vrot.slane %v622, 4
      %v625 = vshll.u32 %v360, 16
      %v627 = vrot.slane %v625, 5
      %v628 = vsel %vm374, %v623, %v627
      %v629 = vshrl.u32 %v360, 16
      %v631 = vrot.slane %v629, 4
      %v632 = vor.u32 %v631, %v627
      %v633 = vrot.slane %v632, 4
      %v635 = vshll.u32 %v361, 16
      %v637 = vrot.slane %v635, 5
      %v638 = vsel %vm374, %v633, %v637
      %v639 = vshrl.u32 %v361, 16
      %v641 = vrot.slane %v639, 4
      %v642 = vor.u32 %v641, %v637
      %v643 = vrot.slane %v642, 4
      %v645 = vshll.u32 %v362, 16
      %v647 = vrot.slane %v645, 5
      %v648 = vsel %vm374, %v643, %v647
      %v649 = vshrl.u32 %v362, 16
      %v651 = vrot.slane %v649, 4
      %v652 = vor.u32 %v651, %v647
      %v653 = vrot.slane %v652, 4
      %v655 = vshll.u32 %v363, 16
      %v657 = vrot.slane %v655, 5
      %v658 = vsel %vm374, %v653, %v657
      %v659 = vshrl.u32 %v363, 16
      %v661 = vrot.slane %v659, 4
      %v662 = vor.u32 %v661, %v657
      %v663 = vrot.slane %v662, 4
      %v665 = vshll.u32 %v364, 16
      %v667 = vrot.slane %v665, 5
      %v668 = vsel %vm374, %v663, %v667
      %v669 = vshrl.u32 %v364, 16
      %v671 = vrot.slane %v669, 4
      %v672 = vor.u32 %v671, %v667
      %v673 = vrot.slane %v672, 4
      %v675 = vshll.u32 %v365, 16
      %v677 = vrot.slane %v675, 5
      %v678 = vsel %vm374, %v673, %v677
      %v679 = vshrl.u32 %v365, 16
      %v681 = vrot.slane %v679, 4
      %v682 = vor.u32 %v681, %v677
      %v683 = vrot.slane %v682, 4
      %v685 = vshll.u32 %v366, 16
      %v687 = vrot.slane %v685, 5
      %v688 = vsel %vm374, %v683, %v687
      %v689 = vshrl.u32 %v366, 16
      %v691 = vrot.slane %v689, 4
      %v692 = vor.u32 %v691, %v687
      %v693 = vrot.slane %v692, 4
      %v695 = vshll.u32 %v367, 16
      %v697 = vrot.slane %v695, 5
      %v698 = vsel %vm374, %v693, %v697
      %v699 = vshrl.u32 %v367, 16
      %v701 = vrot.slane %v699, 4
      %v702 = vor.u32 %v701, %v697
      %v703 = vrot.slane %v702, 4
      %v705 = vshll.u32 %v368, 16
      %v707 = vrot.slane %v705, 5
      %v708 = vsel %vm374, %v703, %v707
      %v709 = vshrl.u32 %v368, 16
      %v711 = vrot.slane %v709, 4
      %v712 = vor.u32 %v711, %v707
      %v713 = vrot.slane %v712, 4
      %v715 = vshll.u32 %v369, 16
      %v717 = vrot.slane %v715, 5
      %v718 = vsel %vm374, %v713, %v717
      %v719 = vshrl.u32 %v369, 16
      %v721 = vrot.slane %v719, 4
      %v722 = vor.u32 %v721, %v717
      %v723 = vrot.slane %v722, 4
      %v725 = vshll.u32 %v370, 16
      %v727 = vrot.slane %v725, 5
      %v728 = vsel %vm374, %v723, %v727
      %v729 = vshrl.u32 %v370, 16
      %v731 = vrot.slane %v729, 4
      %v732 = vor.u32 %v731, %v727
      %v733 = vrot.slane %v732, 4
      %v735 = vshll.u32 %v371, 16
      %v737 = vrot.slane %v735, 5
      %v738 = vsel %vm374, %v733, %v737
      %739 = vrot.lane.b32.xlu0 %v388, 8
      %v740 = vpop.permute.xlu0 %739
      %741 = vrot.lane.b32.xlu0 %v398, 8
      %v742 = vpop.permute.xlu0 %741
      %743 = vrot.lane.b32.xlu0 %v408, 8
      %v744 = vpop.permute.xlu0 %743
      %745 = vrot.lane.b32.xlu0 %v418, 8
      %v746 = vpop.permute.xlu0 %745
      %747 = vrot.lane.b32.xlu0 %v428, 8
      %v748 = vpop.permute.xlu0 %747
      %749 = vrot.lane.b32.xlu0 %v438, 8
      %v750 = vpop.permute.xlu0 %749
      %751 = vrot.lane.b32.xlu0 %v448, 8
      %v752 = vpop.permute.xlu0 %751
      %753 = vrot.lane.b32.xlu0 %v458, 8
      %v754 = vpop.permute.xlu0 %753
      %755 = vrot.lane.b32.xlu0 %v468, 8
      %v756 = vpop.permute.xlu0 %755
      %757 = vrot.lane.b32.xlu0 %v478, 8
      %v758 = vpop.permute.xlu0 %757
      %759 = vrot.lane.b32.xlu0 %v488, 8
      %v760 = vpop.permute.xlu0 %759
      %761 = vrot.lane.b32.xlu0 %v498, 8
      %v762 = vpop.permute.xlu0 %761
      %763 = vrot.lane.b32.xlu0 %v508, 8
      %v764 = vpop.permute.xlu0 %763
      %765 = vrot.lane.b32.xlu0 %v518, 8
      %v766 = vpop.permute.xlu0 %765
      %767 = vrot.lane.b32.xlu0 %v528, 8
      %v768 = vpop.permute.xlu0 %767
      %769 = vrot.lane.b32.xlu0 %v538, 8
      %v770 = vpop.permute.xlu0 %769
      %771 = vrot.lane.b32.xlu0 %v548, 8
      %v772 = vpop.permute.xlu0 %771
      %773 = vrot.lane.b32.xlu0 %v558, 8
      %v774 = vpop.permute.xlu0 %773
      %775 = vrot.lane.b32.xlu0 %v568, 8
      %v776 = vpop.permute.xlu0 %775
      %777 = vrot.lane.b32.xlu0 %v578, 8
      %v778 = vpop.permute.xlu0 %777
      %779 = vrot.lane.b32.xlu0 %v588, 8
      %v780 = vpop.permute.xlu0 %779
      %781 = vrot.lane.b32.xlu0 %v598, 8
      %v782 = vpop.permute.xlu0 %781
      %783 = vrot.lane.b32.xlu0 %v608, 8
      %v784 = vpop.permute.xlu0 %783
      %785 = vrot.lane.b32.xlu0 %v618, 8
      %v786 = vpop.permute.xlu0 %785
      %787 = vrot.lane.b32.xlu0 %v628, 8
      %v788 = vpop.permute.xlu0 %787
      %789 = vrot.lane.b32.xlu0 %v638, 8
      %v790 = vpop.permute.xlu0 %789
      %791 = vrot.lane.b32.xlu0 %v648, 8
      %v792 = vpop.permute.xlu0 %791
      %793 = vrot.lane.b32.xlu0 %v658, 8
      %v794 = vpop.permute.xlu0 %793
      %795 = vrot.lane.b32.xlu0 %v668, 8
      %v796 = vpop.permute.xlu0 %795
      %797 = vrot.lane.b32.xlu0 %v678, 8
      %v798 = vpop.permute.xlu0 %797
      %799 = vrot.lane.b32.xlu0 %v688, 8
      %v800 = vpop.permute.xlu0 %799
      %801 = vrot.lane.b32.xlu0 %v698, 8
      %v802 = vpop.permute.xlu0 %801
      %803 = vrot.lane.b32.xlu0 %v708, 8
      %v804 = vpop.permute.xlu0 %803
      %805 = vrot.lane.b32.xlu0 %v718, 8
      %v806 = vpop.permute.xlu0 %805
      %807 = vrot.lane.b32.xlu0 %v728, 8
      %v808 = vpop.permute.xlu0 %807
      %809 = vrot.lane.b32.xlu0 %v738, 8
      %v810 = vpop.permute.xlu0 %809
      %vm847 = vcmask 126016
      %848 = vst.msk [vmem:[#allocation2] sm:$0xf] %vm847, %v740
      %849 = vst.msk [vmem:[#allocation2 + $0x4] sm:$0xf] %vm847, %v742
      %850 = vst.msk [vmem:[#allocation2 + $0x8] sm:$0xf] %vm847, %v744
      %851 = vst.msk [vmem:[#allocation2 + $0xc] sm:$0xf] %vm847, %v746
      %852 = vst.msk [vmem:[#allocation2 + $0x10] sm:$0xf] %vm847, %v748
      %853 = vst.msk [vmem:[#allocation2 + $0x14] sm:$0xf] %vm847, %v750
      %854 = vst.msk [vmem:[#allocation2 + $0x18] sm:$0xf] %vm847, %v752
      %855 = vst.msk [vmem:[#allocation2 + $0x1c] sm:$0xf] %vm847, %v754
      %856 = vst.msk [vmem:[#allocation2 + $0x20] sm:$0xf] %vm847, %v756
      %857 = vst.msk [vmem:[#allocation2 + $0x24] sm:$0xf] %vm847, %v758
      %858 = vst.msk [vmem:[#allocation2 + $0x28] sm:$0xf] %vm847, %v760
      %859 = vst.msk [vmem:[#allocation2 + $0x2c] sm:$0xf] %vm847, %v762
      %860 = vst.msk [vmem:[#allocation2 + $0x30] sm:$0xf] %vm847, %v764
      %861 = vst.msk [vmem:[#allocation2 + $0x34] sm:$0xf] %vm847, %v766
      %862 = vst.msk [vmem:[#allocation2 + $0x38] sm:$0xf] %vm847, %v768
      %863 = vst.msk [vmem:[#allocation2 + $0x3c] sm:$0xf] %vm847, %v770
      %864 = vst.msk [vmem:[#allocation2 + $0x40] sm:$0xf] %vm847, %v772
      %865 = vst.msk [vmem:[#allocation2 + $0x44] sm:$0xf] %vm847, %v774
      %866 = vst.msk [vmem:[#allocation2 + $0x48] sm:$0xf] %vm847, %v776
      %867 = vst.msk [vmem:[#allocation2 + $0x4c] sm:$0xf] %vm847, %v778
      %868 = vst.msk [vmem:[#allocation2 + $0x50] sm:$0xf] %vm847, %v780
      %869 = vst.msk [vmem:[#allocation2 + $0x54] sm:$0xf] %vm847, %v782
      %870 = vst.msk [vmem:[#allocation2 + $0x58] sm:$0xf] %vm847, %v784
      %871 = vst.msk [vmem:[#allocation2 + $0x5c] sm:$0xf] %vm847, %v786
      %872 = vst.msk [vmem:[#allocation2 + $0x60] sm:$0xf] %vm847, %v788
      %873 = vst.msk [vmem:[#allocation2 + $0x64] sm:$0xf] %vm847, %v790
      %874 = vst.msk [vmem:[#allocation2 + $0x68] sm:$0xf] %vm847, %v792
      %875 = vst.msk [vmem:[#allocation2 + $0x6c] sm:$0xf] %vm847, %v794
      %876 = vst.msk [vmem:[#allocation2 + $0x70] sm:$0xf] %vm847, %v796
      %877 = vst.msk [vmem:[#allocation2 + $0x74] sm:$0xf] %vm847, %v798
      %878 = vst.msk [vmem:[#allocation2 + $0x78] sm:$0xf] %vm847, %v800
      %879 = vst.msk [vmem:[#allocation2 + $0x7c] sm:$0xf] %vm847, %v802
      %880 = vst.msk [vmem:[#allocation2 + $0x80] sm:$0xf] %vm847, %v804
      %881 = vst.msk [vmem:[#allocation2 + $0x84] sm:$0xf] %vm847, %v806
      %882 = vst.msk [vmem:[#allocation2 + $0x88] sm:$0xf] %vm847, %v808
      %883 = vst.msk [vmem:[#allocation2 + $0x8c] sm:$0xf] %vm847, %v810
      %v884 = vld [vmem:[%s219] sm:$0xe]
      %v885 = vld [vmem:[%s219 + $0x4] sm:$0xf]
      %v886 = vld [vmem:[%s219 + $0x8] sm:$0xf]
      %v887 = vld [vmem:[%s219 + $0xc] sm:$0xf]
      %v888 = vld [vmem:[%s219 + $0x10] sm:$0xf]
      %v889 = vld [vmem:[%s219 + $0x14] sm:$0xf]
      %v890 = vld [vmem:[%s219 + $0x18] sm:$0xf]
      %v891 = vld [vmem:[%s219 + $0x1c] sm:$0xf]
      %v892 = vld [vmem:[%s219 + $0x20] sm:$0xf]
      %v893 = vld [vmem:[%s219 + $0x24] sm:$0xf]
      %v894 = vld [vmem:[%s219 + $0x28] sm:$0xf]
      %v895 = vld [vmem:[%s219 + $0x2c] sm:$0xf]
      %v896 = vld [vmem:[%s219 + $0x30] sm:$0xf]
      %v897 = vld [vmem:[%s219 + $0x34] sm:$0xf]
      %v898 = vld [vmem:[%s219 + $0x38] sm:$0xf]
      %v899 = vld [vmem:[%s219 + $0x3c] sm:$0xf]
      %v900 = vld [vmem:[%s219 + $0x40] sm:$0xf]
      %v901 = vld [vmem:[%s219 + $0x44] sm:$0xf]
      %v902 = vld [vmem:[%s219 + $0x48] sm:$0xf]
      %v903 = vld [vmem:[%s219 + $0x4c] sm:$0xf]
      %v904 = vld [vmem:[%s219 + $0x50] sm:$0xf]
      %v905 = vld [vmem:[%s219 + $0x54] sm:$0xf]
      %v906 = vld [vmem:[%s219 + $0x58] sm:$0xf]
      %v907 = vld [vmem:[%s219 + $0x5c] sm:$0xf]
      %v908 = vld [vmem:[%s219 + $0x60] sm:$0xf]
      %v909 = vld [vmem:[%s219 + $0x64] sm:$0xf]
      %v910 = vld [vmem:[%s219 + $0x68] sm:$0xf]
      %v911 = vld [vmem:[%s219 + $0x6c] sm:$0xf]
      %v912 = vld [vmem:[%s219 + $0x70] sm:$0xf]
      %v913 = vld [vmem:[%s219 + $0x74] sm:$0xf]
      %v914 = vld [vmem:[%s219 + $0x78] sm:$0xf]
      %v915 = vld [vmem:[%s219 + $0x7c] sm:$0xf]
      %v916 = vld [vmem:[%s219 + $0x80] sm:$0xf]
      %v917 = vld [vmem:[%s219 + $0x84] sm:$0xf]
      %v918 = vld [vmem:[%s219 + $0x88] sm:$0xf]
      %v919 = vld [vmem:[%s219 + $0x8c] sm:$0xf]
      %v920 = vld [vmem:[%s219 + $0x90] sm:$0x1]
      %vm958 = vcmask 1042432
      %vm959 = vcmask 1046532
      %vm960 = vmor %vm958, %vm959
      %v961 = vrot.slane %v884, 5
      %v962 = vrot.slane %v961, 4
      %v963 = vrot.slane %v885, 5
      %v964 = vsel %vm960, %v962, %v963
      %v965 = vrot.slane %v963, 4
      %v966 = vrot.slane %v886, 5
      %v967 = vsel %vm960, %v965, %v966
      %v968 = vrot.slane %v966, 4
      %v969 = vrot.slane %v887, 5
      %v970 = vsel %vm960, %v968, %v969
      %v971 = vrot.slane %v969, 4
      %v972 = vrot.slane %v888, 5
      %v973 = vsel %vm960, %v971, %v972
      %v974 = vrot.slane %v972, 4
      %v975 = vrot.slane %v889, 5
      %v976 = vsel %vm960, %v974, %v975
      %v977 = vrot.slane %v975, 4
      %v978 = vrot.slane %v890, 5
      %v979 = vsel %vm960, %v977, %v978
      %v980 = vrot.slane %v978, 4
      %v981 = vrot.slane %v891, 5
      %v982 = vsel %vm960, %v980, %v981
      %v983 = vrot.slane %v981, 4
      %v984 = vrot.slane %v892, 5
      %v985 = vsel %vm960, %v983, %v984
      %v986 = vrot.slane %v984, 4
      %v987 = vrot.slane %v893, 5
      %v988 = vsel %vm960, %v986, %v987
      %v989 = vrot.slane %v987, 4
      %v990 = vrot.slane %v894, 5
      %v991 = vsel %vm960, %v989, %v990
      %v992 = vrot.slane %v990, 4
      %v993 = vrot.slane %v895, 5
      %v994 = vsel %vm960, %v992, %v993
      %v995 = vrot.slane %v993, 4
      %v996 = vrot.slane %v896, 5
      %v997 = vsel %vm960, %v995, %v996
      %v998 = vrot.slane %v996, 4
      %v999 = vrot.slane %v897, 5
      %v1000 = vsel %vm960, %v998, %v999
      %v1001 = vrot.slane %v999, 4
      %v1002 = vrot.slane %v898, 5
      %v1003 = vsel %vm960, %v1001, %v1002
      %v1004 = vrot.slane %v1002, 4
      %v1005 = vrot.slane %v899, 5
      %v1006 = vsel %vm960, %v1004, %v1005
      %v1007 = vrot.slane %v1005, 4
      %v1008 = vrot.slane %v900, 5
      %v1009 = vsel %vm960, %v1007, %v1008
      %v1010 = vrot.slane %v1008, 4
      %v1011 = vrot.slane %v901, 5
      %v1012 = vsel %vm960, %v1010, %v1011
      %v1013 = vrot.slane %v1011, 4
      %v1014 = vrot.slane %v902, 5
      %v1015 = vsel %vm960, %v1013, %v1014
      %v1016 = vrot.slane %v1014, 4
      %v1017 = vrot.slane %v903, 5
      %v1018 = vsel %vm960, %v1016, %v1017
      %v1019 = vrot.slane %v1017, 4
      %v1020 = vrot.slane %v904, 5
      %v1021 = vsel %vm960, %v1019, %v1020
      %v1022 = vrot.slane %v1020, 4
      %v1023 = vrot.slane %v905, 5
      %v1024 = vsel %vm960, %v1022, %v1023
      %v1025 = vrot.slane %v1023, 4
      %v1026 = vrot.slane %v906, 5
      %v1027 = vsel %vm960, %v1025, %v1026
      %v1028 = vrot.slane %v1026, 4
      %v1029 = vrot.slane %v907, 5
      %v1030 = vsel %vm960, %v1028, %v1029
      %v1031 = vrot.slane %v1029, 4
      %v1032 = vrot.slane %v908, 5
      %v1033 = vsel %vm960, %v1031, %v1032
      %v1034 = vrot.slane %v1032, 4
      %v1035 = vrot.slane %v909, 5
      %v1036 = vsel %vm960, %v1034, %v1035
      %v1037 = vrot.slane %v1035, 4
      %v1038 = vrot.slane %v910, 5
      %v1039 = vsel %vm960, %v1037, %v1038
      %v1040 = vrot.slane %v1038, 4
      %v1041 = vrot.slane %v911, 5
      %v1042 = vsel %vm960, %v1040, %v1041
      %v1043 = vrot.slane %v1041, 4
      %v1044 = vrot.slane %v912, 5
      %v1045 = vsel %vm960, %v1043, %v1044
      %v1046 = vrot.slane %v1044, 4
      %v1047 = vrot.slane %v913, 5
      %v1048 = vsel %vm960, %v1046, %v1047
      %v1049 = vrot.slane %v1047, 4
      %v1050 = vrot.slane %v914, 5
      %v1051 = vsel %vm960, %v1049, %v1050
      %v1052 = vrot.slane %v1050, 4
      %v1053 = vrot.slane %v915, 5
      %v1054 = vsel %vm960, %v1052, %v1053
      %v1055 = vrot.slane %v1053, 4
      %v1056 = vrot.slane %v916, 5
      %v1057 = vsel %vm960, %v1055, %v1056
      %v1058 = vrot.slane %v1056, 4
      %v1059 = vrot.slane %v917, 5
      %v1060 = vsel %vm960, %v1058, %v1059
      %v1061 = vrot.slane %v1059, 4
      %v1062 = vrot.slane %v918, 5
      %v1063 = vsel %vm960, %v1061, %v1062
      %v1064 = vrot.slane %v1062, 4
      %v1065 = vrot.slane %v919, 5
      %v1066 = vsel %vm960, %v1064, %v1065
      %v1067 = vrot.slane %v1065, 4
      %v1068 = vrot.slane %v920, 5
      %v1069 = vsel %vm960, %v1067, %v1068
      %1070 = vrot.lane.b32.xlu0 %v964, 16
      %v1071 = vpop.permute.xlu0 %1070
      %1072 = vrot.lane.b32.xlu0 %v967, 16
      %v1073 = vpop.permute.xlu0 %1072
      %1074 = vrot.lane.b32.xlu0 %v970, 16
      %v1075 = vpop.permute.xlu0 %1074
      %1076 = vrot.lane.b32.xlu0 %v973, 16
      %v1077 = vpop.permute.xlu0 %1076
      %1078 = vrot.lane.b32.xlu0 %v976, 16
      %v1079 = vpop.permute.xlu0 %1078
      %1080 = vrot.lane.b32.xlu0 %v979, 16
      %v1081 = vpop.permute.xlu0 %1080
      %1082 = vrot.lane.b32.xlu0 %v982, 16
      %v1083 = vpop.permute.xlu0 %1082
      %1084 = vrot.lane.b32.xlu0 %v985, 16
      %v1085 = vpop.permute.xlu0 %1084
      %1086 = vrot.lane.b32.xlu0 %v988, 16
      %v1087 = vpop.permute.xlu0 %1086
      %1088 = vrot.lane.b32.xlu0 %v991, 16
      %v1089 = vpop.permute.xlu0 %1088
      %1090 = vrot.lane.b32.xlu0 %v994, 16
      %v1091 = vpop.permute.xlu0 %1090
      %1092 = vrot.lane.b32.xlu0 %v997, 16
      %v1093 = vpop.permute.xlu0 %1092
      %1094 = vrot.lane.b32.xlu0 %v1000, 16
      %v1095 = vpop.permute.xlu0 %1094
      %1096 = vrot.lane.b32.xlu0 %v1003, 16
      %v1097 = vpop.permute.xlu0 %1096
      %1098 = vrot.lane.b32.xlu0 %v1006, 16
      %v1099 = vpop.permute.xlu0 %1098
      %1100 = vrot.lane.b32.xlu0 %v1009, 16
      %v1101 = vpop.permute.xlu0 %1100
      %1102 = vrot.lane.b32.xlu0 %v1012, 16
      %v1103 = vpop.permute.xlu0 %1102
      %1104 = vrot.lane.b32.xlu0 %v1015, 16
      %v1105 = vpop.permute.xlu0 %1104
      %1106 = vrot.lane.b32.xlu0 %v1018, 16
      %v1107 = vpop.permute.xlu0 %1106
      %1108 = vrot.lane.b32.xlu0 %v1021, 16
      %v1109 = vpop.permute.xlu0 %1108
      %1110 = vrot.lane.b32.xlu0 %v1024, 16
      %v1111 = vpop.permute.xlu0 %1110
      %1112 = vrot.lane.b32.xlu0 %v1027, 16
      %v1113 = vpop.permute.xlu0 %1112
      %1114 = vrot.lane.b32.xlu0 %v1030, 16
      %v1115 = vpop.permute.xlu0 %1114
      %1116 = vrot.lane.b32.xlu0 %v1033, 16
      %v1117 = vpop.permute.xlu0 %1116
      %1118 = vrot.lane.b32.xlu0 %v1036, 16
      %v1119 = vpop.permute.xlu0 %1118
      %1120 = vrot.lane.b32.xlu0 %v1039, 16
      %v1121 = vpop.permute.xlu0 %1120
      %1122 = vrot.lane.b32.xlu0 %v1042, 16
      %v1123 = vpop.permute.xlu0 %1122
      %1124 = vrot.lane.b32.xlu0 %v1045, 16
      %v1125 = vpop.permute.xlu0 %1124
      %1126 = vrot.lane.b32.xlu0 %v1048, 16
      %v1127 = vpop.permute.xlu0 %1126
      %1128 = vrot.lane.b32.xlu0 %v1051, 16
      %v1129 = vpop.permute.xlu0 %1128
      %1130 = vrot.lane.b32.xlu0 %v1054, 16
      %v1131 = vpop.permute.xlu0 %1130
      %1132 = vrot.lane.b32.xlu0 %v1057, 16
      %v1133 = vpop.permute.xlu0 %1132
      %1134 = vrot.lane.b32.xlu0 %v1060, 16
      %v1135 = vpop.permute.xlu0 %1134
      %1136 = vrot.lane.b32.xlu0 %v1063, 16
      %v1137 = vpop.permute.xlu0 %1136
      %1138 = vrot.lane.b32.xlu0 %v1066, 16
      %v1139 = vpop.permute.xlu0 %1138
      %1140 = vrot.lane.b32.xlu0 %v1069, 16
      %v1141 = vpop.permute.xlu0 %1140
      %vm1178 = vcmask 191616
      %1179 = vst.msk [vmem:[#allocation2] sm:$0xf] %vm1178, %v1071
      %1180 = vst.msk [vmem:[#allocation2 + $0x4] sm:$0xf] %vm1178, %v1073
      %1181 = vst.msk [vmem:[#allocation2 + $0x8] sm:$0xf] %vm1178, %v1075
      %1182 = vst.msk [vmem:[#allocation2 + $0xc] sm:$0xf] %vm1178, %v1077
      %1183 = vst.msk [vmem:[#allocation2 + $0x10] sm:$0xf] %vm1178, %v1079
      %1184 = vst.msk [vmem:[#allocation2 + $0x14] sm:$0xf] %vm1178, %v1081
      %1185 = vst.msk [vmem:[#allocation2 + $0x18] sm:$0xf] %vm1178, %v1083
      %1186 = vst.msk [vmem:[#allocation2 + $0x1c] sm:$0xf] %vm1178, %v1085
      %1187 = vst.msk [vmem:[#allocation2 + $0x20] sm:$0xf] %vm1178, %v1087
      %1188 = vst.msk [vmem:[#allocation2 + $0x24] sm:$0xf] %vm1178, %v1089
      %1189 = vst.msk [vmem:[#allocation2 + $0x28] sm:$0xf] %vm1178, %v1091
      %1190 = vst.msk [vmem:[#allocation2 + $0x2c] sm:$0xf] %vm1178, %v1093
      %1191 = vst.msk [vmem:[#allocation2 + $0x30] sm:$0xf] %vm1178, %v1095
      %1192 = vst.msk [vmem:[#allocation2 + $0x34] sm:$0xf] %vm1178, %v1097
      %1193 = vst.msk [vmem:[#allocation2 + $0x38] sm:$0xf] %vm1178, %v1099
      %1194 = vst.msk [vmem:[#allocation2 + $0x3c] sm:$0xf] %vm1178, %v1101
      %1195 = vst.msk [vmem:[#allocation2 + $0x40] sm:$0xf] %vm1178, %v1103
      %1196 = vst.msk [vmem:[#allocation2 + $0x44] sm:$0xf] %vm1178, %v1105
      %1197 = vst.msk [vmem:[#allocation2 + $0x48] sm:$0xf] %vm1178, %v1107
      %1198 = vst.msk [vmem:[#allocation2 + $0x4c] sm:$0xf] %vm1178, %v1109
      %1199 = vst.msk [vmem:[#allocation2 + $0x50] sm:$0xf] %vm1178, %v1111
      %1200 = vst.msk [vmem:[#allocation2 + $0x54] sm:$0xf] %vm1178, %v1113
      %1201 = vst.msk [vmem:[#allocation2 + $0x58] sm:$0xf] %vm1178, %v1115
      %1202 = vst.msk [vmem:[#allocation2 + $0x5c] sm:$0xf] %vm1178, %v1117
      %1203 = vst.msk [vmem:[#allocation2 + $0x60] sm:$0xf] %vm1178, %v1119
      %1204 = vst.msk [vmem:[#allocation2 + $0x64] sm:$0xf] %vm1178, %v1121
      %1205 = vst.msk [vmem:[#allocation2 + $0x68] sm:$0xf] %vm1178, %v1123
      %1206 = vst.msk [vmem:[#allocation2 + $0x6c] sm:$0xf] %vm1178, %v1125
      %1207 = vst.msk [vmem:[#allocation2 + $0x70] sm:$0xf] %vm1178, %v1127
      %1208 = vst.msk [vmem:[#allocation2 + $0x74] sm:$0xf] %vm1178, %v1129
      %1209 = vst.msk [vmem:[#allocation2 + $0x78] sm:$0xf] %vm1178, %v1131
      %1210 = vst.msk [vmem:[#allocation2 + $0x7c] sm:$0xf] %vm1178, %v1133
      %1211 = vst.msk [vmem:[#allocation2 + $0x80] sm:$0xf] %vm1178, %v1135
      %1212 = vst.msk [vmem:[#allocation2 + $0x84] sm:$0xf] %vm1178, %v1137
      %1213 = vst.msk [vmem:[#allocation2 + $0x88] sm:$0xf] %vm1178, %v1139
      %1214 = vst.msk [vmem:[#allocation2 + $0x8c] sm:$0xf] %vm1178, %v1141
      %v1215 = vld [vmem:[%s219 + $0x8] sm:$0xe]
      %v1216 = vld [vmem:[%s219 + $0xc] sm:$0xf]
      %v1217 = vld [vmem:[%s219 + $0x10] sm:$0xf]
      %v1218 = vld [vmem:[%s219 + $0x14] sm:$0xf]
      %v1219 = vld [vmem:[%s219 + $0x18] sm:$0xf]
      %v1220 = vld [vmem:[%s219 + $0x1c] sm:$0xf]
      %v1221 = vld [vmem:[%s219 + $0x20] sm:$0xf]
      %v1222 = vld [vmem:[%s219 + $0x24] sm:$0xf]
      %v1223 = vld [vmem:[%s219 + $0x28] sm:$0xf]
      %v1224 = vld [vmem:[%s219 + $0x2c] sm:$0xf]
      %v1225 = vld [vmem:[%s219 + $0x30] sm:$0xf]
      %v1226 = vld [vmem:[%s219 + $0x34] sm:$0xf]
      %v1227 = vld [vmem:[%s219 + $0x38] sm:$0xf]
      %v1228 = vld [vmem:[%s219 + $0x3c] sm:$0xf]
      %v1229 = vld [vmem:[%s219 + $0x40] sm:$0xf]
      %v1230 = vld [vmem:[%s219 + $0x44] sm:$0xf]
      %v1231 = vld [vmem:[%s219 + $0x48] sm:$0xf]
      %v1232 = vld [vmem:[%s219 + $0x4c] sm:$0xf]
      %v1233 = vld [vmem:[%s219 + $0x50] sm:$0xf]
      %v1234 = vld [vmem:[%s219 + $0x54] sm:$0xf]
      %v1235 = vld [vmem:[%s219 + $0x58] sm:$0xf]
      %v1236 = vld [vmem:[%s219 + $0x5c] sm:$0xf]
      %v1237 = vld [vmem:[%s219 + $0x60] sm:$0xf]
      %v1238 = vld [vmem:[%s219 + $0x64] sm:$0xf]
      %v1239 = vld [vmem:[%s219 + $0x68] sm:$0xf]
      %v1240 = vld [vmem:[%s219 + $0x6c] sm:$0xf]
      %v1241 = vld [vmem:[%s219 + $0x70] sm:$0xf]
      %v1242 = vld [vmem:[%s219 + $0x74] sm:$0xf]
      %v1243 = vld [vmem:[%s219 + $0x78] sm:$0xf]
      %v1244 = vld [vmem:[%s219 + $0x7c] sm:$0xf]
      %v1245 = vld [vmem:[%s219 + $0x80] sm:$0xf]
      %v1246 = vld [vmem:[%s219 + $0x84] sm:$0xf]
      %v1247 = vld [vmem:[%s219 + $0x88] sm:$0xf]
      %v1248 = vld [vmem:[%s219 + $0x8c] sm:$0xf]
      %v1249 = vld [vmem:[%s219 + $0x90] sm:$0xf]
      %v1250 = vld [vmem:[%s219 + $0x94] sm:$0xf]
      %v1251 = vld [vmem:[%s219 + $0x98] sm:$0x1]
      %v1289 = vrot.slane %v1215, 5
      %v1290 = vrot.slane %v1289, 4
      %v1291 = vrot.slane %v1216, 5
      %v1292 = vsel %vm960, %v1290, %v1291
      %v1293 = vrot.slane %v1291, 4
      %v1294 = vrot.slane %v1217, 5
      %v1295 = vsel %vm960, %v1293, %v1294
      %v1296 = vrot.slane %v1294, 4
      %v1297 = vrot.slane %v1218, 5
      %v1298 = vsel %vm960, %v1296, %v1297
      %v1299 = vrot.slane %v1297, 4
      %v1300 = vrot.slane %v1219, 5
      %v1301 = vsel %vm960, %v1299, %v1300
      %v1302 = vrot.slane %v1300, 4
      %v1303 = vrot.slane %v1220, 5
      %v1304 = vsel %vm960, %v1302, %v1303
      %v1305 = vrot.slane %v1303, 4
      %v1306 = vrot.slane %v1221, 5
      %v1307 = vsel %vm960, %v1305, %v1306
      %v1308 = vrot.slane %v1306, 4
      %v1309 = vrot.slane %v1222, 5
      %v1310 = vsel %vm960, %v1308, %v1309
      %v1311 = vrot.slane %v1309, 4
      %v1312 = vrot.slane %v1223, 5
      %v1313 = vsel %vm960, %v1311, %v1312
      %v1314 = vrot.slane %v1312, 4
      %v1315 = vrot.slane %v1224, 5
      %v1316 = vsel %vm960, %v1314, %v1315
      %v1317 = vrot.slane %v1315, 4
      %v1318 = vrot.slane %v1225, 5
      %v1319 = vsel %vm960, %v1317, %v1318
      %v1320 = vrot.slane %v1318, 4
      %v1321 = vrot.slane %v1226, 5
      %v1322 = vsel %vm960, %v1320, %v1321
      %v1323 = vrot.slane %v1321, 4
      %v1324 = vrot.slane %v1227, 5
      %v1325 = vsel %vm960, %v1323, %v1324
      %v1326 = vrot.slane %v1324, 4
      %v1327 = vrot.slane %v1228, 5
      %v1328 = vsel %vm960, %v1326, %v1327
      %v1329 = vrot.slane %v1327, 4
      %v1330 = vrot.slane %v1229, 5
      %v1331 = vsel %vm960, %v1329, %v1330
      %v1332 = vrot.slane %v1330, 4
      %v1333 = vrot.slane %v1230, 5
      %v1334 = vsel %vm960, %v1332, %v1333
      %v1335 = vrot.slane %v1333, 4
      %v1336 = vrot.slane %v1231, 5
      %v1337 = vsel %vm960, %v1335, %v1336
      %v1338 = vrot.slane %v1336, 4
      %v1339 = vrot.slane %v1232, 5
      %v1340 = vsel %vm960, %v1338, %v1339
      %v1341 = vrot.slane %v1339, 4
      %v1342 = vrot.slane %v1233, 5
      %v1343 = vsel %vm960, %v1341, %v1342
      %v1344 = vrot.slane %v1342, 4
      %v1345 = vrot.slane %v1234, 5
      %v1346 = vsel %vm960, %v1344, %v1345
      %v1347 = vrot.slane %v1345, 4
      %v1348 = vrot.slane %v1235, 5
      %v1349 = vsel %vm960, %v1347, %v1348
      %v1350 = vrot.slane %v1348, 4
      %v1351 = vrot.slane %v1236, 5
      %v1352 = vsel %vm960, %v1350, %v1351
      %v1353 = vrot.slane %v1351, 4
      %v1354 = vrot.slane %v1237, 5
      %v1355 = vsel %vm960, %v1353, %v1354
      %v1356 = vrot.slane %v1354, 4
      %v1357 = vrot.slane %v1238, 5
      %v1358 = vsel %vm960, %v1356, %v1357
      %v1359 = vrot.slane %v1357, 4
      %v1360 = vrot.slane %v1239, 5
      %v1361 = vsel %vm960, %v1359, %v1360
      %v1362 = vrot.slane %v1360, 4
      %v1363 = vrot.slane %v1240, 5
      %v1364 = vsel %vm960, %v1362, %v1363
      %v1365 = vrot.slane %v1363, 4
      %v1366 = vrot.slane %v1241, 5
      %v1367 = vsel %vm960, %v1365, %v1366
      %v1368 = vrot.slane %v1366, 4
      %v1369 = vrot.slane %v1242, 5
      %v1370 = vsel %vm960, %v1368, %v1369
      %v1371 = vrot.slane %v1369, 4
      %v1372 = vrot.slane %v1243, 5
      %v1373 = vsel %vm960, %v1371, %v1372
      %v1374 = vrot.slane %v1372, 4
      %v1375 = vrot.slane %v1244, 5
      %v1376 = vsel %vm960, %v1374, %v1375
      %v1377 = vrot.slane %v1375, 4
      %v1378 = vrot.slane %v1245, 5
      %v1379 = vsel %vm960, %v1377, %v1378
      %v1380 = vrot.slane %v1378, 4
      %v1381 = vrot.slane %v1246, 5
      %v1382 = vsel %vm960, %v1380, %v1381
      %v1383 = vrot.slane %v1381, 4
      %v1384 = vrot.slane %v1247, 5
      %v1385 = vsel %vm960, %v1383, %v1384
      %v1386 = vrot.slane %v1384, 4
      %v1387 = vrot.slane %v1248, 5
      %v1388 = vsel %vm960, %v1386, %v1387
      %v1389 = vrot.slane %v1387, 4
      %v1390 = vrot.slane %v1249, 5
      %v1391 = vsel %vm960, %v1389, %v1390
      %v1392 = vrot.slane %v1390, 4
      %v1393 = vrot.slane %v1250, 5
      %v1394 = vsel %vm960, %v1392, %v1393
      %v1395 = vrot.slane %v1393, 4
      %v1396 = vrot.slane %v1251, 5
      %v1397 = vsel %vm960, %v1395, %v1396
      %1398 = vrot.lane.b32.xlu0 %v1292, 24
      %v1399 = vpop.permute.xlu0 %1398
      %1400 = vrot.lane.b32.xlu0 %v1295, 24
      %v1401 = vpop.permute.xlu0 %1400
      %1402 = vrot.lane.b32.xlu0 %v1298, 24
      %v1403 = vpop.permute.xlu0 %1402
      %1404 = vrot.lane.b32.xlu0 %v1301, 24
      %v1405 = vpop.permute.xlu0 %1404
      %1406 = vrot.lane.b32.xlu0 %v1304, 24
      %v1407 = vpop.permute.xlu0 %1406
      %1408 = vrot.lane.b32.xlu0 %v1307, 24
      %v1409 = vpop.permute.xlu0 %1408
      %1410 = vrot.lane.b32.xlu0 %v1310, 24
      %v1411 = vpop.permute.xlu0 %1410
      %1412 = vrot.lane.b32.xlu0 %v1313, 24
      %v1413 = vpop.permute.xlu0 %1412
      %1414 = vrot.lane.b32.xlu0 %v1316, 24
      %v1415 = vpop.permute.xlu0 %1414
      %1416 = vrot.lane.b32.xlu0 %v1319, 24
      %v1417 = vpop.permute.xlu0 %1416
      %1418 = vrot.lane.b32.xlu0 %v1322, 24
      %v1419 = vpop.permute.xlu0 %1418
      %1420 = vrot.lane.b32.xlu0 %v1325, 24
      %v1421 = vpop.permute.xlu0 %1420
      %1422 = vrot.lane.b32.xlu0 %v1328, 24
      %v1423 = vpop.permute.xlu0 %1422
      %1424 = vrot.lane.b32.xlu0 %v1331, 24
      %v1425 = vpop.permute.xlu0 %1424
      %1426 = vrot.lane.b32.xlu0 %v1334, 24
      %v1427 = vpop.permute.xlu0 %1426
      %1428 = vrot.lane.b32.xlu0 %v1337, 24
      %v1429 = vpop.permute.xlu0 %1428
      %1430 = vrot.lane.b32.xlu0 %v1340, 24
      %v1431 = vpop.permute.xlu0 %1430
      %1432 = vrot.lane.b32.xlu0 %v1343, 24
      %v1433 = vpop.permute.xlu0 %1432
      %1434 = vrot.lane.b32.xlu0 %v1346, 24
      %v1435 = vpop.permute.xlu0 %1434
      %1436 = vrot.lane.b32.xlu0 %v1349, 24
      %v1437 = vpop.permute.xlu0 %1436
      %1438 = vrot.lane.b32.xlu0 %v1352, 24
      %v1439 = vpop.permute.xlu0 %1438
      %1440 = vrot.lane.b32.xlu0 %v1355, 24
      %v1441 = vpop.permute.xlu0 %1440
      %1442 = vrot.lane.b32.xlu0 %v1358, 24
      %v1443 = vpop.permute.xlu0 %1442
      %1444 = vrot.lane.b32.xlu0 %v1361, 24
      %v1445 = vpop.permute.xlu0 %1444
      %1446 = vrot.lane.b32.xlu0 %v1364, 24
      %v1447 = vpop.permute.xlu0 %1446
      %1448 = vrot.lane.b32.xlu0 %v1367, 24
      %v1449 = vpop.permute.xlu0 %1448
      %1450 = vrot.lane.b32.xlu0 %v1370, 24
      %v1451 = vpop.permute.xlu0 %1450
      %1452 = vrot.lane.b32.xlu0 %v1373, 24
      %v1453 = vpop.permute.xlu0 %1452
      %1454 = vrot.lane.b32.xlu0 %v1376, 24
      %v1455 = vpop.permute.xlu0 %1454
      %1456 = vrot.lane.b32.xlu0 %v1379, 24
      %v1457 = vpop.permute.xlu0 %1456
      %1458 = vrot.lane.b32.xlu0 %v1382, 24
      %v1459 = vpop.permute.xlu0 %1458
      %1460 = vrot.lane.b32.xlu0 %v1385, 24
      %v1461 = vpop.permute.xlu0 %1460
      %1462 = vrot.lane.b32.xlu0 %v1388, 24
      %v1463 = vpop.permute.xlu0 %1462
      %1464 = vrot.lane.b32.xlu0 %v1391, 24
      %v1465 = vpop.permute.xlu0 %1464
      %1466 = vrot.lane.b32.xlu0 %v1394, 24
      %v1467 = vpop.permute.xlu0 %1466
      %1468 = vrot.lane.b32.xlu0 %v1397, 24
      %v1469 = vpop.permute.xlu0 %1468
      %vm1506 = vcmask 257216
      %1507 = vst.msk [vmem:[#allocation2] sm:$0xf] %vm1506, %v1399
      %1508 = vst.msk [vmem:[#allocation2 + $0x4] sm:$0xf] %vm1506, %v1401
      %1509 = vst.msk [vmem:[#allocation2 + $0x8] sm:$0xf] %vm1506, %v1403
      %1510 = vst.msk [vmem:[#allocation2 + $0xc] sm:$0xf] %vm1506, %v1405
      %1511 = vst.msk [vmem:[#allocation2 + $0x10] sm:$0xf] %vm1506, %v1407
      %1512 = vst.msk [vmem:[#allocation2 + $0x14] sm:$0xf] %vm1506, %v1409
      %1513 = vst.msk [vmem:[#allocation2 + $0x18] sm:$0xf] %vm1506, %v1411
      %1514 = vst.msk [vmem:[#allocation2 + $0x1c] sm:$0xf] %vm1506, %v1413
      %1515 = vst.msk [vmem:[#allocation2 + $0x20] sm:$0xf] %vm1506, %v1415
      %1516 = vst.msk [vmem:[#allocation2 + $0x24] sm:$0xf] %vm1506, %v1417
      %1517 = vst.msk [vmem:[#allocation2 + $0x28] sm:$0xf] %vm1506, %v1419
      %1518 = vst.msk [vmem:[#allocation2 + $0x2c] sm:$0xf] %vm1506, %v1421
      %1519 = vst.msk [vmem:[#allocation2 + $0x30] sm:$0xf] %vm1506, %v1423
      %1520 = vst.msk [vmem:[#allocation2 + $0x34] sm:$0xf] %vm1506, %v1425
      %1521 = vst.msk [vmem:[#allocation2 + $0x38] sm:$0xf] %vm1506, %v1427
      %1522 = vst.msk [vmem:[#allocation2 + $0x3c] sm:$0xf] %vm1506, %v1429
      %1523 = vst.msk [vmem:[#allocation2 + $0x40] sm:$0xf] %vm1506, %v1431
      %1524 = vst.msk [vmem:[#allocation2 + $0x44] sm:$0xf] %vm1506, %v1433
      %1525 = vst.msk [vmem:[#allocation2 + $0x48] sm:$0xf] %vm1506, %v1435
      %1526 = vst.msk [vmem:[#allocation2 + $0x4c] sm:$0xf] %vm1506, %v1437
      %1527 = vst.msk [vmem:[#allocation2 + $0x50] sm:$0xf] %vm1506, %v1439
      %1528 = vst.msk [vmem:[#allocation2 + $0x54] sm:$0xf] %vm1506, %v1441
      %1529 = vst.msk [vmem:[#allocation2 + $0x58] sm:$0xf] %vm1506, %v1443
      %1530 = vst.msk [vmem:[#allocation2 + $0x5c] sm:$0xf] %vm1506, %v1445
      %1531 = vst.msk [vmem:[#allocation2 + $0x60] sm:$0xf] %vm1506, %v1447
      %1532 = vst.msk [vmem:[#allocation2 + $0x64] sm:$0xf] %vm1506, %v1449
      %1533 = vst.msk [vmem:[#allocation2 + $0x68] sm:$0xf] %vm1506, %v1451
      %1534 = vst.msk [vmem:[#allocation2 + $0x6c] sm:$0xf] %vm1506, %v1453
      %1535 = vst.msk [vmem:[#allocation2 + $0x70] sm:$0xf] %vm1506, %v1455
      %1536 = vst.msk [vmem:[#allocation2 + $0x74] sm:$0xf] %vm1506, %v1457
      %1537 = vst.msk [vmem:[#allocation2 + $0x78] sm:$0xf] %vm1506, %v1459
      %1538 = vst.msk [vmem:[#allocation2 + $0x7c] sm:$0xf] %vm1506, %v1461
      %1539 = vst.msk [vmem:[#allocation2 + $0x80] sm:$0xf] %vm1506, %v1463
      %1540 = vst.msk [vmem:[#allocation2 + $0x84] sm:$0xf] %vm1506, %v1465
      %1541 = vst.msk [vmem:[#allocation2 + $0x88] sm:$0xf] %vm1506, %v1467
      %1542 = vst.msk [vmem:[#allocation2 + $0x8c] sm:$0xf] %vm1506, %v1469
      %v1543 = vld [vmem:[%s219 + $0x8] sm:$0xe]
      %v1544 = vld [vmem:[%s219 + $0xc] sm:$0xf]
      %v1545 = vld [vmem:[%s219 + $0x10] sm:$0xf]
      %v1546 = vld [vmem:[%s219 + $0x14] sm:$0xf]
      %v1547 = vld [vmem:[%s219 + $0x18] sm:$0xf]
      %v1548 = vld [vmem:[%s219 + $0x1c] sm:$0xf]
      %v1549 = vld [vmem:[%s219 + $0x20] sm:$0xf]
      %v1550 = vld [vmem:[%s219 + $0x24] sm:$0xf]
      %v1551 = vld [vmem:[%s219 + $0x28] sm:$0xf]
      %v1552 = vld [vmem:[%s219 + $0x2c] sm:$0xf]
      %v1553 = vld [vmem:[%s219 + $0x30] sm:$0xf]
      %v1554 = vld [vmem:[%s219 + $0x34] sm:$0xf]
      %v1555 = vld [vmem:[%s219 + $0x38] sm:$0xf]
      %v1556 = vld [vmem:[%s219 + $0x3c] sm:$0xf]
      %v1557 = vld [vmem:[%s219 + $0x40] sm:$0xf]
      %v1558 = vld [vmem:[%s219 + $0x44] sm:$0xf]
      %v1559 = vld [vmem:[%s219 + $0x48] sm:$0xf]
      %v1560 = vld [vmem:[%s219 + $0x4c] sm:$0xf]
      %v1561 = vld [vmem:[%s219 + $0x50] sm:$0xf]
      %v1562 = vld [vmem:[%s219 + $0x54] sm:$0xf]
      %v1563 = vld [vmem:[%s219 + $0x58] sm:$0xf]
      %v1564 = vld [vmem:[%s219 + $0x5c] sm:$0xf]
      %v1565 = vld [vmem:[%s219 + $0x60] sm:$0xf]
      %v1566 = vld [vmem:[%s219 + $0x64] sm:$0xf]
      %v1567 = vld [vmem:[%s219 + $0x68] sm:$0xf]
      %v1568 = vld [vmem:[%s219 + $0x6c] sm:$0xf]
      %v1569 = vld [vmem:[%s219 + $0x70] sm:$0xf]
      %v1570 = vld [vmem:[%s219 + $0x74] sm:$0xf]
      %v1571 = vld [vmem:[%s219 + $0x78] sm:$0xf]
      %v1572 = vld [vmem:[%s219 + $0x7c] sm:$0xf]
      %v1573 = vld [vmem:[%s219 + $0x80] sm:$0xf]
      %v1574 = vld [vmem:[%s219 + $0x84] sm:$0xf]
      %v1575 = vld [vmem:[%s219 + $0x88] sm:$0xf]
      %v1576 = vld [vmem:[%s219 + $0x8c] sm:$0xf]
      %v1577 = vld [vmem:[%s219 + $0x90] sm:$0xf]
      %v1578 = vld [vmem:[%s219 + $0x94] sm:$0xf]
      %v1579 = vld [vmem:[%s219 + $0x98] sm:$0x3]
      %vm1580 = vsmask.f32 2304
      %vm1581 = vsmask.f32 6416
      %vm1582 = vmor %vm1580, %vm1581
      %v1584 = vshrl.u32 %v1543, 16
      %v1586 = vrot.slane %v1584, 5
      %v1587 = vshll.u32 %v1543, 16
      %v1589 = vrot.slane %v1587, 6
      %v1590 = vor.u32 %v1586, %v1589
      %v1591 = vrot.slane %v1590, 4
      %v1593 = vshrl.u32 %v1544, 16
      %v1595 = vrot.slane %v1593, 5
      %v1596 = vshll.u32 %v1544, 16
      %v1598 = vrot.slane %v1596, 6
      %v1599 = vor.u32 %v1595, %v1598
      %v1600 = vsel %vm1582, %v1591, %v1599
      %v1601 = vrot.slane %v1599, 4
      %v1603 = vshrl.u32 %v1545, 16
      %v1605 = vrot.slane %v1603, 5
      %v1606 = vshll.u32 %v1545, 16
      %v1608 = vrot.slane %v1606, 6
      %v1609 = vor.u32 %v1605, %v1608
      %v1610 = vsel %vm1582, %v1601, %v1609
      %v1611 = vrot.slane %v1609, 4
      %v1613 = vshrl.u32 %v1546, 16
      %v1615 = vrot.slane %v1613, 5
      %v1616 = vshll.u32 %v1546, 16
      %v1618 = vrot.slane %v1616, 6
      %v1619 = vor.u32 %v1615, %v1618
      %v1620 = vsel %vm1582, %v1611, %v1619
      %v1621 = vrot.slane %v1619, 4
      %v1623 = vshrl.u32 %v1547, 16
      %v1625 = vrot.slane %v1623, 5
      %v1626 = vshll.u32 %v1547, 16
      %v1628 = vrot.slane %v1626, 6
      %v1629 = vor.u32 %v1625, %v1628
      %v1630 = vsel %vm1582, %v1621, %v1629
      %v1631 = vrot.slane %v1629, 4
      %v1633 = vshrl.u32 %v1548, 16
      %v1635 = vrot.slane %v1633, 5
      %v1636 = vshll.u32 %v1548, 16
      %v1638 = vrot.slane %v1636, 6
      %v1639 = vor.u32 %v1635, %v1638
      %v1640 = vsel %vm1582, %v1631, %v1639
      %v1641 = vrot.slane %v1639, 4
      %v1643 = vshrl.u32 %v1549, 16
      %v1645 = vrot.slane %v1643, 5
      %v1646 = vshll.u32 %v1549, 16
      %v1648 = vrot.slane %v1646, 6
      %v1649 = vor.u32 %v1645, %v1648
      %v1650 = vsel %vm1582, %v1641, %v1649
      %v1651 = vrot.slane %v1649, 4
      %v1653 = vshrl.u32 %v1550, 16
      %v1655 = vrot.slane %v1653, 5
      %v1656 = vshll.u32 %v1550, 16
      %v1658 = vrot.slane %v1656, 6
      %v1659 = vor.u32 %v1655, %v1658
      %v1660 = vsel %vm1582, %v1651, %v1659
      %v1661 = vrot.slane %v1659, 4
      %v1663 = vshrl.u32 %v1551, 16
      %v1665 = vrot.slane %v1663, 5
      %v1666 = vshll.u32 %v1551, 16
      %v1668 = vrot.slane %v1666, 6
      %v1669 = vor.u32 %v1665, %v1668
      %v1670 = vsel %vm1582, %v1661, %v1669
      %v1671 = vrot.slane %v1669, 4
      %v1673 = vshrl.u32 %v1552, 16
      %v1675 = vrot.slane %v1673, 5
      %v1676 = vshll.u32 %v1552, 16
      %v1678 = vrot.slane %v1676, 6
      %v1679 = vor.u32 %v1675, %v1678
      %v1680 = vsel %vm1582, %v1671, %v1679
      %v1681 = vrot.slane %v1679, 4
      %v1683 = vshrl.u32 %v1553, 16
      %v1685 = vrot.slane %v1683, 5
      %v1686 = vshll.u32 %v1553, 16
      %v1688 = vrot.slane %v1686, 6
      %v1689 = vor.u32 %v1685, %v1688
      %v1690 = vsel %vm1582, %v1681, %v1689
      %v1691 = vrot.slane %v1689, 4
      %v1693 = vshrl.u32 %v1554, 16
      %v1695 = vrot.slane %v1693, 5
      %v1696 = vshll.u32 %v1554, 16
      %v1698 = vrot.slane %v1696, 6
      %v1699 = vor.u32 %v1695, %v1698
      %v1700 = vsel %vm1582, %v1691, %v1699
      %v1701 = vrot.slane %v1699, 4
      %v1703 = vshrl.u32 %v1555, 16
      %v1705 = vrot.slane %v1703, 5
      %v1706 = vshll.u32 %v1555, 16
      %v1708 = vrot.slane %v1706, 6
      %v1709 = vor.u32 %v1705, %v1708
      %v1710 = vsel %vm1582, %v1701, %v1709
      %v1711 = vrot.slane %v1709, 4
      %v1713 = vshrl.u32 %v1556, 16
      %v1715 = vrot.slane %v1713, 5
      %v1716 = vshll.u32 %v1556, 16
      %v1718 = vrot.slane %v1716, 6
      %v1719 = vor.u32 %v1715, %v1718
      %v1720 = vsel %vm1582, %v1711, %v1719
      %v1721 = vrot.slane %v1719, 4
      %v1723 = vshrl.u32 %v1557, 16
      %v1725 = vrot.slane %v1723, 5
      %v1726 = vshll.u32 %v1557, 16
      %v1728 = vrot.slane %v1726, 6
      %v1729 = vor.u32 %v1725, %v1728
      %v1730 = vsel %vm1582, %v1721, %v1729
      %v1731 = vrot.slane %v1729, 4
      %v1733 = vshrl.u32 %v1558, 16
      %v1735 = vrot.slane %v1733, 5
      %v1736 = vshll.u32 %v1558, 16
      %v1738 = vrot.slane %v1736, 6
      %v1739 = vor.u32 %v1735, %v1738
      %v1740 = vsel %vm1582, %v1731, %v1739
      %v1741 = vrot.slane %v1739, 4
      %v1743 = vshrl.u32 %v1559, 16
      %v1745 = vrot.slane %v1743, 5
      %v1746 = vshll.u32 %v1559, 16
      %v1748 = vrot.slane %v1746, 6
      %v1749 = vor.u32 %v1745, %v1748
      %v1750 = vsel %vm1582, %v1741, %v1749
      %v1751 = vrot.slane %v1749, 4
      %v1753 = vshrl.u32 %v1560, 16
      %v1755 = vrot.slane %v1753, 5
      %v1756 = vshll.u32 %v1560, 16
      %v1758 = vrot.slane %v1756, 6
      %v1759 = vor.u32 %v1755, %v1758
      %v1760 = vsel %vm1582, %v1751, %v1759
      %v1761 = vrot.slane %v1759, 4
      %v1763 = vshrl.u32 %v1561, 16
      %v1765 = vrot.slane %v1763, 5
      %v1766 = vshll.u32 %v1561, 16
      %v1768 = vrot.slane %v1766, 6
      %v1769 = vor.u32 %v1765, %v1768
      %v1770 = vsel %vm1582, %v1761, %v1769
      %v1771 = vrot.slane %v1769, 4
      %v1773 = vshrl.u32 %v1562, 16
      %v1775 = vrot.slane %v1773, 5
      %v1776 = vshll.u32 %v1562, 16
      %v1778 = vrot.slane %v1776, 6
      %v1779 = vor.u32 %v1775, %v1778
      %v1780 = vsel %vm1582, %v1771, %v1779
      %v1781 = vrot.slane %v1779, 4
      %v1783 = vshrl.u32 %v1563, 16
      %v1785 = vrot.slane %v1783, 5
      %v1786 = vshll.u32 %v1563, 16
      %v1788 = vrot.slane %v1786, 6
      %v1789 = vor.u32 %v1785, %v1788
      %v1790 = vsel %vm1582, %v1781, %v1789
      %v1791 = vrot.slane %v1789, 4
      %v1793 = vshrl.u32 %v1564, 16
      %v1795 = vrot.slane %v1793, 5
      %v1796 = vshll.u32 %v1564, 16
      %v1798 = vrot.slane %v1796, 6
      %v1799 = vor.u32 %v1795, %v1798
      %v1800 = vsel %vm1582, %v1791, %v1799
      %v1801 = vrot.slane %v1799, 4
      %v1803 = vshrl.u32 %v1565, 16
      %v1805 = vrot.slane %v1803, 5
      %v1806 = vshll.u32 %v1565, 16
      %v1808 = vrot.slane %v1806, 6
      %v1809 = vor.u32 %v1805, %v1808
      %v1810 = vsel %vm1582, %v1801, %v1809
      %v1811 = vrot.slane %v1809, 4
      %v1813 = vshrl.u32 %v1566, 16
      %v1815 = vrot.slane %v1813, 5
      %v1816 = vshll.u32 %v1566, 16
      %v1818 = vrot.slane %v1816, 6
      %v1819 = vor.u32 %v1815, %v1818
      %v1820 = vsel %vm1582, %v1811, %v1819
      %v1821 = vrot.slane %v1819, 4
      %v1823 = vshrl.u32 %v1567, 16
      %v1825 = vrot.slane %v1823, 5
      %v1826 = vshll.u32 %v1567, 16
      %v1828 = vrot.slane %v1826, 6
      %v1829 = vor.u32 %v1825, %v1828
      %v1830 = vsel %vm1582, %v1821, %v1829
      %v1831 = vrot.slane %v1829, 4
      %v1833 = vshrl.u32 %v1568, 16
      %v1835 = vrot.slane %v1833, 5
      %v1836 = vshll.u32 %v1568, 16
      %v1838 = vrot.slane %v1836, 6
      %v1839 = vor.u32 %v1835, %v1838
      %v1840 = vsel %vm1582, %v1831, %v1839
      %v1841 = vrot.slane %v1839, 4
      %v1843 = vshrl.u32 %v1569, 16
      %v1845 = vrot.slane %v1843, 5
      %v1846 = vshll.u32 %v1569, 16
      %v1848 = vrot.slane %v1846, 6
      %v1849 = vor.u32 %v1845, %v1848
      %v1850 = vsel %vm1582, %v1841, %v1849
      %v1851 = vrot.slane %v1849, 4
      %v1853 = vshrl.u32 %v1570, 16
      %v1855 = vrot.slane %v1853, 5
      %v1856 = vshll.u32 %v1570, 16
      %v1858 = vrot.slane %v1856, 6
      %v1859 = vor.u32 %v1855, %v1858
      %v1860 = vsel %vm1582, %v1851, %v1859
      %v1861 = vrot.slane %v1859, 4
      %v1863 = vshrl.u32 %v1571, 16
      %v1865 = vrot.slane %v1863, 5
      %v1866 = vshll.u32 %v1571, 16
      %v1868 = vrot.slane %v1866, 6
      %v1869 = vor.u32 %v1865, %v1868
      %v1870 = vsel %vm1582, %v1861, %v1869
      %v1871 = vrot.slane %v1869, 4
      %v1873 = vshrl.u32 %v1572, 16
      %v1875 = vrot.slane %v1873, 5
      %v1876 = vshll.u32 %v1572, 16
      %v1878 = vrot.slane %v1876, 6
      %v1879 = vor.u32 %v1875, %v1878
      %v1880 = vsel %vm1582, %v1871, %v1879
      %v1881 = vrot.slane %v1879, 4
      %v1883 = vshrl.u32 %v1573, 16
      %v1885 = vrot.slane %v1883, 5
      %v1886 = vshll.u32 %v1573, 16
      %v1888 = vrot.slane %v1886, 6
      %v1889 = vor.u32 %v1885, %v1888
      %v1890 = vsel %vm1582, %v1881, %v1889
      %v1891 = vrot.slane %v1889, 4
      %v1893 = vshrl.u32 %v1574, 16
      %v1895 = vrot.slane %v1893, 5
      %v1896 = vshll.u32 %v1574, 16
      %v1898 = vrot.slane %v1896, 6
      %v1899 = vor.u32 %v1895, %v1898
      %v1900 = vsel %vm1582, %v1891, %v1899
      %v1901 = vrot.slane %v1899, 4
      %v1903 = vshrl.u32 %v1575, 16
      %v1905 = vrot.slane %v1903, 5
      %v1906 = vshll.u32 %v1575, 16
      %v1908 = vrot.slane %v1906, 6
      %v1909 = vor.u32 %v1905, %v1908
      %v1910 = vsel %vm1582, %v1901, %v1909
      %v1911 = vrot.slane %v1909, 4
      %v1913 = vshrl.u32 %v1576, 16
      %v1915 = vrot.slane %v1913, 5
      %v1916 = vshll.u32 %v1576, 16
      %v1918 = vrot.slane %v1916, 6
      %v1919 = vor.u32 %v1915, %v1918
      %v1920 = vsel %vm1582, %v1911, %v1919
      %v1921 = vrot.slane %v1919, 4
      %v1923 = vshrl.u32 %v1577, 16
      %v1925 = vrot.slane %v1923, 5
      %v1926 = vshll.u32 %v1577, 16
      %v1928 = vrot.slane %v1926, 6
      %v1929 = vor.u32 %v1925, %v1928
      %v1930 = vsel %vm1582, %v1921, %v1929
      %v1931 = vrot.slane %v1929, 4
      %v1933 = vshrl.u32 %v1578, 16
      %v1935 = vrot.slane %v1933, 5
      %v1936 = vshll.u32 %v1578, 16
      %v1938 = vrot.slane %v1936, 6
      %v1939 = vor.u32 %v1935, %v1938
      %v1940 = vsel %vm1582, %v1931, %v1939
      %v1941 = vrot.slane %v1939, 4
      %v1943 = vshrl.u32 %v1579, 16
      %v1945 = vrot.slane %v1943, 5
      %v1946 = vshll.u32 %v1579, 16
      %v1948 = vrot.slane %v1946, 6
      %v1949 = vor.u32 %v1945, %v1948
      %v1950 = vsel %vm1582, %v1941, %v1949
      %1951 = vrot.lane.b32.xlu0 %v1600, 32
      %v1952 = vpop.permute.xlu0 %1951
      %1953 = vrot.lane.b32.xlu0 %v1610, 32
      %v1954 = vpop.permute.xlu0 %1953
      %1955 = vrot.lane.b32.xlu0 %v1620, 32
      %v1956 = vpop.permute.xlu0 %1955
      %1957 = vrot.lane.b32.xlu0 %v1630, 32
      %v1958 = vpop.permute.xlu0 %1957
      %1959 = vrot.lane.b32.xlu0 %v1640, 32
      %v1960 = vpop.permute.xlu0 %1959
      %1961 = vrot.lane.b32.xlu0 %v1650, 32
      %v1962 = vpop.permute.xlu0 %1961
      %1963 = vrot.lane.b32.xlu0 %v1660, 32
      %v1964 = vpop.permute.xlu0 %1963
      %1965 = vrot.lane.b32.xlu0 %v1670, 32
      %v1966 = vpop.permute.xlu0 %1965
      %1967 = vrot.lane.b32.xlu0 %v1680, 32
      %v1968 = vpop.permute.xlu0 %1967
      %1969 = vrot.lane.b32.xlu0 %v1690, 32
      %v1970 = vpop.permute.xlu0 %1969
      %1971 = vrot.lane.b32.xlu0 %v1700, 32
      %v1972 = vpop.permute.xlu0 %1971
      %1973 = vrot.lane.b32.xlu0 %v1710, 32
      %v1974 = vpop.permute.xlu0 %1973
      %1975 = vrot.lane.b32.xlu0 %v1720, 32
      %v1976 = vpop.permute.xlu0 %1975
      %1977 = vrot.lane.b32.xlu0 %v1730, 32
      %v1978 = vpop.permute.xlu0 %1977
      %1979 = vrot.lane.b32.xlu0 %v1740, 32
      %v1980 = vpop.permute.xlu0 %1979
      %1981 = vrot.lane.b32.xlu0 %v1750, 32
      %v1982 = vpop.permute.xlu0 %1981
      %1983 = vrot.lane.b32.xlu0 %v1760, 32
      %v1984 = vpop.permute.xlu0 %1983
      %1985 = vrot.lane.b32.xlu0 %v1770, 32
      %v1986 = vpop.permute.xlu0 %1985
      %1987 = vrot.lane.b32.xlu0 %v1780, 32
      %v1988 = vpop.permute.xlu0 %1987
      %1989 = vrot.lane.b32.xlu0 %v1790, 32
      %v1990 = vpop.permute.xlu0 %1989
      %1991 = vrot.lane.b32.xlu0 %v1800, 32
      %v1992 = vpop.permute.xlu0 %1991
      %1993 = vrot.lane.b32.xlu0 %v1810, 32
      %v1994 = vpop.permute.xlu0 %1993
      %1995 = vrot.lane.b32.xlu0 %v1820, 32
      %v1996 = vpop.permute.xlu0 %1995
      %1997 = vrot.lane.b32.xlu0 %v1830, 32
      %v1998 = vpop.permute.xlu0 %1997
      %1999 = vrot.lane.b32.xlu0 %v1840, 32
      %v2000 = vpop.permute.xlu0 %1999
      %2001 = vrot.lane.b32.xlu0 %v1850, 32
      %v2002 = vpop.permute.xlu0 %2001
      %2003 = vrot.lane.b32.xlu0 %v1860, 32
      %v2004 = vpop.permute.xlu0 %2003
      %2005 = vrot.lane.b32.xlu0 %v1870, 32
      %v2006 = vpop.permute.xlu0 %2005
      %2007 = vrot.lane.b32.xlu0 %v1880, 32
      %v2008 = vpop.permute.xlu0 %2007
      %2009 = vrot.lane.b32.xlu0 %v1890, 32
      %v2010 = vpop.permute.xlu0 %2009
      %2011 = vrot.lane.b32.xlu0 %v1900, 32
      %v2012 = vpop.permute.xlu0 %2011
      %2013 = vrot.lane.b32.xlu0 %v1910, 32
      %v2014 = vpop.permute.xlu0 %2013
      %2015 = vrot.lane.b32.xlu0 %v1920, 32
      %v2016 = vpop.permute.xlu0 %2015
      %2017 = vrot.lane.b32.xlu0 %v1930, 32
      %v2018 = vpop.permute.xlu0 %2017
      %2019 = vrot.lane.b32.xlu0 %v1940, 32
      %v2020 = vpop.permute.xlu0 %2019
      %2021 = vrot.lane.b32.xlu0 %v1950, 32
      %v2022 = vpop.permute.xlu0 %2021
      %vm2059 = vcmask 322816
      %2060 = vst.msk [vmem:[#allocation2] sm:$0xf] %vm2059, %v1952
      %2061 = vst.msk [vmem:[#allocation2 + $0x4] sm:$0xf] %vm2059, %v1954
      %2062 = vst.msk [vmem:[#allocation2 + $0x8] sm:$0xf] %vm2059, %v1956
      %2063 = vst.msk [vmem:[#allocation2 + $0xc] sm:$0xf] %vm2059, %v1958
      %2064 = vst.msk [vmem:[#allocation2 + $0x10] sm:$0xf] %vm2059, %v1960
      %2065 = vst.msk [vmem:[#allocation2 + $0x14] sm:$0xf] %vm2059, %v1962
      %2066 = vst.msk [vmem:[#allocation2 + $0x18] sm:$0xf] %vm2059, %v1964
      %2067 = vst.msk [vmem:[#allocation2 + $0x1c] sm:$0xf] %vm2059, %v1966
      %2068 = vst.msk [vmem:[#allocation2 + $0x20] sm:$0xf] %vm2059, %v1968
      %2069 = vst.msk [vmem:[#allocation2 + $0x24] sm:$0xf] %vm2059, %v1970
      %2070 = vst.msk [vmem:[#allocation2 + $0x28] sm:$0xf] %vm2059, %v1972
      %2071 = vst.msk [vmem:[#allocation2 + $0x2c] sm:$0xf] %vm2059, %v1974
      %2072 = vst.msk [vmem:[#allocation2 + $0x30] sm:$0xf] %vm2059, %v1976
      %2073 = vst.msk [vmem:[#allocation2 + $0x34] sm:$0xf] %vm2059, %v1978
      %2074 = vst.msk [vmem:[#allocation2 + $0x38] sm:$0xf] %vm2059, %v1980
      %2075 = vst.msk [vmem:[#allocation2 + $0x3c] sm:$0xf] %vm2059, %v1982
      %2076 = vst.msk [vmem:[#allocation2 + $0x40] sm:$0xf] %vm2059, %v1984
      %2077 = vst.msk [vmem:[#allocation2 + $0x44] sm:$0xf] %vm2059, %v1986
      %2078 = vst.msk [vmem:[#allocation2 + $0x48] sm:$0xf] %vm2059, %v1988
      %2079 = vst.msk [vmem:[#allocation2 + $0x4c] sm:$0xf] %vm2059, %v1990
      %2080 = vst.msk [vmem:[#allocation2 + $0x50] sm:$0xf] %vm2059, %v1992
      %2081 = vst.msk [vmem:[#allocation2 + $0x54] sm:$0xf] %vm2059, %v1994
      %2082 = vst.msk [vmem:[#allocation2 + $0x58] sm:$0xf] %vm2059, %v1996
      %2083 = vst.msk [vmem:[#allocation2 + $0x5c] sm:$0xf] %vm2059, %v1998
      %2084 = vst.msk [vmem:[#allocation2 + $0x60] sm:$0xf] %vm2059, %v2000
      %2085 = vst.msk [vmem:[#allocation2 + $0x64] sm:$0xf] %vm2059, %v2002
      %2086 = vst.msk [vmem:[#allocation2 + $0x68] sm:$0xf] %vm2059, %v2004
      %2087 = vst.msk [vmem:[#allocation2 + $0x6c] sm:$0xf] %vm2059, %v2006
      %2088 = vst.msk [vmem:[#allocation2 + $0x70] sm:$0xf] %vm2059, %v2008
      %2089 = vst.msk [vmem:[#allocation2 + $0x74] sm:$0xf] %vm2059, %v2010
      %2090 = vst.msk [vmem:[#allocation2 + $0x78] sm:$0xf] %vm2059, %v2012
      %2091 = vst.msk [vmem:[#allocation2 + $0x7c] sm:$0xf] %vm2059, %v2014
      %2092 = vst.msk [vmem:[#allocation2 + $0x80] sm:$0xf] %vm2059, %v2016
      %2093 = vst.msk [vmem:[#allocation2 + $0x84] sm:$0xf] %vm2059, %v2018
      %2094 = vst.msk [vmem:[#allocation2 + $0x88] sm:$0xf] %vm2059, %v2020
      %2095 = vst.msk [vmem:[#allocation2 + $0x8c] sm:$0xf] %vm2059, %v2022
      %v2096 = vld [vmem:[%s219 + $0x8] sm:$0xc]
      %v2097 = vld [vmem:[%s219 + $0xc] sm:$0xf]
      %v2098 = vld [vmem:[%s219 + $0x10] sm:$0xf]
      %v2099 = vld [vmem:[%s219 + $0x14] sm:$0xf]
      %v2100 = vld [vmem:[%s219 + $0x18] sm:$0xf]
      %v2101 = vld [vmem:[%s219 + $0x1c] sm:$0xf]
      %v2102 = vld [vmem:[%s219 + $0x20] sm:$0xf]
      %v2103 = vld [vmem:[%s219 + $0x24] sm:$0xf]
      %v2104 = vld [vmem:[%s219 + $0x28] sm:$0xf]
      %v2105 = vld [vmem:[%s219 + $0x2c] sm:$0xf]
      %v2106 = vld [vmem:[%s219 + $0x30] sm:$0xf]
      %v2107 = vld [vmem:[%s219 + $0x34] sm:$0xf]
      %v2108 = vld [vmem:[%s219 + $0x38] sm:$0xf]
      %v2109 = vld [vmem:[%s219 + $0x3c] sm:$0xf]
      %v2110 = vld [vmem:[%s219 + $0x40] sm:$0xf]
      %v2111 = vld [vmem:[%s219 + $0x44] sm:$0xf]
      %v2112 = vld [vmem:[%s219 + $0x48] sm:$0xf]
      %v2113 = vld [vmem:[%s219 + $0x4c] sm:$0xf]
      %v2114 = vld [vmem:[%s219 + $0x50] sm:$0xf]
      %v2115 = vld [vmem:[%s219 + $0x54] sm:$0xf]
      %v2116 = vld [vmem:[%s219 + $0x58] sm:$0xf]
      %v2117 = vld [vmem:[%s219 + $0x5c] sm:$0xf]
      %v2118 = vld [vmem:[%s219 + $0x60] sm:$0xf]
      %v2119 = vld [vmem:[%s219 + $0x64] sm:$0xf]
      %v2120 = vld [vmem:[%s219 + $0x68] sm:$0xf]
      %v2121 = vld [vmem:[%s219 + $0x6c] sm:$0xf]
      %v2122 = vld [vmem:[%s219 + $0x70] sm:$0xf]
      %v2123 = vld [vmem:[%s219 + $0x74] sm:$0xf]
      %v2124 = vld [vmem:[%s219 + $0x78] sm:$0xf]
      %v2125 = vld [vmem:[%s219 + $0x7c] sm:$0xf]
      %v2126 = vld [vmem:[%s219 + $0x80] sm:$0xf]
      %v2127 = vld [vmem:[%s219 + $0x84] sm:$0xf]
      %v2128 = vld [vmem:[%s219 + $0x88] sm:$0xf]
      %v2129 = vld [vmem:[%s219 + $0x8c] sm:$0xf]
      %v2130 = vld [vmem:[%s219 + $0x90] sm:$0xf]
      %v2131 = vld [vmem:[%s219 + $0x94] sm:$0xf]
      %v2132 = vld [vmem:[%s219 + $0x98] sm:$0x3]
      %vm2170 = vcmask 1041408
      %vm2171 = vcmask 1045508
      %vm2172 = vmor %vm2170, %vm2171
      %v2173 = vrot.slane %v2096, 6
      %v2174 = vrot.slane %v2173, 4
      %v2175 = vrot.slane %v2097, 6
      %v2176 = vsel %vm2172, %v2174, %v2175
      %v2177 = vrot.slane %v2175, 4
      %v2178 = vrot.slane %v2098, 6
      %v2179 = vsel %vm2172, %v2177, %v2178
      %v2180 = vrot.slane %v2178, 4
      %v2181 = vrot.slane %v2099, 6
      %v2182 = vsel %vm2172, %v2180, %v2181
      %v2183 = vrot.slane %v2181, 4
      %v2184 = vrot.slane %v2100, 6
      %v2185 = vsel %vm2172, %v2183, %v2184
      %v2186 = vrot.slane %v2184, 4
      %v2187 = vrot.slane %v2101, 6
      %v2188 = vsel %vm2172, %v2186, %v2187
      %v2189 = vrot.slane %v2187, 4
      %v2190 = vrot.slane %v2102, 6
      %v2191 = vsel %vm2172, %v2189, %v2190
      %v2192 = vrot.slane %v2190, 4
      %v2193 = vrot.slane %v2103, 6
      %v2194 = vsel %vm2172, %v2192, %v2193
      %v2195 = vrot.slane %v2193, 4
      %v2196 = vrot.slane %v2104, 6
      %v2197 = vsel %vm2172, %v2195, %v2196
      %v2198 = vrot.slane %v2196, 4
      %v2199 = vrot.slane %v2105, 6
      %v2200 = vsel %vm2172, %v2198, %v2199
      %v2201 = vrot.slane %v2199, 4
      %v2202 = vrot.slane %v2106, 6
      %v2203 = vsel %vm2172, %v2201, %v2202
      %v2204 = vrot.slane %v2202, 4
      %v2205 = vrot.slane %v2107, 6
      %v2206 = vsel %vm2172, %v2204, %v2205
      %v2207 = vrot.slane %v2205, 4
      %v2208 = vrot.slane %v2108, 6
      %v2209 = vsel %vm2172, %v2207, %v2208
      %v2210 = vrot.slane %v2208, 4
      %v2211 = vrot.slane %v2109, 6
      %v2212 = vsel %vm2172, %v2210, %v2211
      %v2213 = vrot.slane %v2211, 4
      %v2214 = vrot.slane %v2110, 6
      %v2215 = vsel %vm2172, %v2213, %v2214
      %v2216 = vrot.slane %v2214, 4
      %v2217 = vrot.slane %v2111, 6
      %v2218 = vsel %vm2172, %v2216, %v2217
      %v2219 = vrot.slane %v2217, 4
      %v2220 = vrot.slane %v2112, 6
      %v2221 = vsel %vm2172, %v2219, %v2220
      %v2222 = vrot.slane %v2220, 4
      %v2223 = vrot.slane %v2113, 6
      %v2224 = vsel %vm2172, %v2222, %v2223
      %v2225 = vrot.slane %v2223, 4
      %v2226 = vrot.slane %v2114, 6
      %v2227 = vsel %vm2172, %v2225, %v2226
      %v2228 = vrot.slane %v2226, 4
      %v2229 = vrot.slane %v2115, 6
      %v2230 = vsel %vm2172, %v2228, %v2229
      %v2231 = vrot.slane %v2229, 4
      %v2232 = vrot.slane %v2116, 6
      %v2233 = vsel %vm2172, %v2231, %v2232
      %v2234 = vrot.slane %v2232, 4
      %v2235 = vrot.slane %v2117, 6
      %v2236 = vsel %vm2172, %v2234, %v2235
      %v2237 = vrot.slane %v2235, 4
      %v2238 = vrot.slane %v2118, 6
      %v2239 = vsel %vm2172, %v2237, %v2238
      %v2240 = vrot.slane %v2238, 4
      %v2241 = vrot.slane %v2119, 6
      %v2242 = vsel %vm2172, %v2240, %v2241
      %v2243 = vrot.slane %v2241, 4
      %v2244 = vrot.slane %v2120, 6
      %v2245 = vsel %vm2172, %v2243, %v2244
      %v2246 = vrot.slane %v2244, 4
      %v2247 = vrot.slane %v2121, 6
      %v2248 = vsel %vm2172, %v2246, %v2247
      %v2249 = vrot.slane %v2247, 4
      %v2250 = vrot.slane %v2122, 6
      %v2251 = vsel %vm2172, %v2249, %v2250
      %v2252 = vrot.slane %v2250, 4
      %v2253 = vrot.slane %v2123, 6
      %v2254 = vsel %vm2172, %v2252, %v2253
      %v2255 = vrot.slane %v2253, 4
      %v2256 = vrot.slane %v2124, 6
      %v2257 = vsel %vm2172, %v2255, %v2256
      %v2258 = vrot.slane %v2256, 4
      %v2259 = vrot.slane %v2125, 6
      %v2260 = vsel %vm2172, %v2258, %v2259
      %v2261 = vrot.slane %v2259, 4
      %v2262 = vrot.slane %v2126, 6
      %v2263 = vsel %vm2172, %v2261, %v2262
      %v2264 = vrot.slane %v2262, 4
      %v2265 = vrot.slane %v2127, 6
      %v2266 = vsel %vm2172, %v2264, %v2265
      %v2267 = vrot.slane %v2265, 4
      %v2268 = vrot.slane %v2128, 6
      %v2269 = vsel %vm2172, %v2267, %v2268
      %v2270 = vrot.slane %v2268, 4
      %v2271 = vrot.slane %v2129, 6
      %v2272 = vsel %vm2172, %v2270, %v2271
      %v2273 = vrot.slane %v2271, 4
      %v2274 = vrot.slane %v2130, 6
      %v2275 = vsel %vm2172, %v2273, %v2274
      %v2276 = vrot.slane %v2274, 4
      %v2277 = vrot.slane %v2131, 6
      %v2278 = vsel %vm2172, %v2276, %v2277
      %v2279 = vrot.slane %v2277, 4
      %v2280 = vrot.slane %v2132, 6
      %v2281 = vsel %vm2172, %v2279, %v2280
      %2282 = vrot.lane.b32.xlu0 %v2176, 40
      %v2283 = vpop.permute.xlu0 %2282
      %2284 = vrot.lane.b32.xlu0 %v2179, 40
      %v2285 = vpop.permute.xlu0 %2284
      %2286 = vrot.lane.b32.xlu0 %v2182, 40
      %v2287 = vpop.permute.xlu0 %2286
      %2288 = vrot.lane.b32.xlu0 %v2185, 40
      %v2289 = vpop.permute.xlu0 %2288
      %2290 = vrot.lane.b32.xlu0 %v2188, 40
      %v2291 = vpop.permute.xlu0 %2290
      %2292 = vrot.lane.b32.xlu0 %v2191, 40
      %v2293 = vpop.permute.xlu0 %2292
      %2294 = vrot.lane.b32.xlu0 %v2194, 40
      %v2295 = vpop.permute.xlu0 %2294
      %2296 = vrot.lane.b32.xlu0 %v2197, 40
      %v2297 = vpop.permute.xlu0 %2296
      %2298 = vrot.lane.b32.xlu0 %v2200, 40
      %v2299 = vpop.permute.xlu0 %2298
      %2300 = vrot.lane.b32.xlu0 %v2203, 40
      %v2301 = vpop.permute.xlu0 %2300
      %2302 = vrot.lane.b32.xlu0 %v2206, 40
      %v2303 = vpop.permute.xlu0 %2302
      %2304 = vrot.lane.b32.xlu0 %v2209, 40
      %v2305 = vpop.permute.xlu0 %2304
      %2306 = vrot.lane.b32.xlu0 %v2212, 40
      %v2307 = vpop.permute.xlu0 %2306
      %2308 = vrot.lane.b32.xlu0 %v2215, 40
      %v2309 = vpop.permute.xlu0 %2308
      %2310 = vrot.lane.b32.xlu0 %v2218, 40
      %v2311 = vpop.permute.xlu0 %2310
      %2312 = vrot.lane.b32.xlu0 %v2221, 40
      %v2313 = vpop.permute.xlu0 %2312
      %2314 = vrot.lane.b32.xlu0 %v2224, 40
      %v2315 = vpop.permute.xlu0 %2314
      %2316 = vrot.lane.b32.xlu0 %v2227, 40
      %v2317 = vpop.permute.xlu0 %2316
      %2318 = vrot.lane.b32.xlu0 %v2230, 40
      %v2319 = vpop.permute.xlu0 %2318
      %2320 = vrot.lane.b32.xlu0 %v2233, 40
      %v2321 = vpop.permute.xlu0 %2320
      %2322 = vrot.lane.b32.xlu0 %v2236, 40
      %v2323 = vpop.permute.xlu0 %2322
      %2324 = vrot.lane.b32.xlu0 %v2239, 40
      %v2325 = vpop.permute.xlu0 %2324
      %2326 = vrot.lane.b32.xlu0 %v2242, 40
      %v2327 = vpop.permute.xlu0 %2326
      %2328 = vrot.lane.b32.xlu0 %v2245, 40
      %v2329 = vpop.permute.xlu0 %2328
      %2330 = vrot.lane.b32.xlu0 %v2248, 40
      %v2331 = vpop.permute.xlu0 %2330
      %2332 = vrot.lane.b32.xlu0 %v2251, 40
      %v2333 = vpop.permute.xlu0 %2332
      %2334 = vrot.lane.b32.xlu0 %v2254, 40
      %v2335 = vpop.permute.xlu0 %2334
      %2336 = vrot.lane.b32.xlu0 %v2257, 40
      %v2337 = vpop.permute.xlu0 %2336
      %2338 = vrot.lane.b32.xlu0 %v2260, 40
      %v2339 = vpop.permute.xlu0 %2338
      %2340 = vrot.lane.b32.xlu0 %v2263, 40
      %v2341 = vpop.permute.xlu0 %2340
      %2342 = vrot.lane.b32.xlu0 %v2266, 40
      %v2343 = vpop.permute.xlu0 %2342
      %2344 = vrot.lane.b32.xlu0 %v2269, 40
      %v2345 = vpop.permute.xlu0 %2344
      %2346 = vrot.lane.b32.xlu0 %v2272, 40
      %v2347 = vpop.permute.xlu0 %2346
      %2348 = vrot.lane.b32.xlu0 %v2275, 40
      %v2349 = vpop.permute.xlu0 %2348
      %2350 = vrot.lane.b32.xlu0 %v2278, 40
      %v2351 = vpop.permute.xlu0 %2350
      %2352 = vrot.lane.b32.xlu0 %v2281, 40
      %v2353 = vpop.permute.xlu0 %2352
      %vm2390 = vcmask 388416
      %2391 = vst.msk [vmem:[#allocation2] sm:$0xf] %vm2390, %v2283
      %2392 = vst.msk [vmem:[#allocation2 + $0x4] sm:$0xf] %vm2390, %v2285
      %2393 = vst.msk [vmem:[#allocation2 + $0x8] sm:$0xf] %vm2390, %v2287
      %2394 = vst.msk [vmem:[#allocation2 + $0xc] sm:$0xf] %vm2390, %v2289
      %2395 = vst.msk [vmem:[#allocation2 + $0x10] sm:$0xf] %vm2390, %v2291
      %2396 = vst.msk [vmem:[#allocation2 + $0x14] sm:$0xf] %vm2390, %v2293
      %2397 = vst.msk [vmem:[#allocation2 + $0x18] sm:$0xf] %vm2390, %v2295
      %2398 = vst.msk [vmem:[#allocation2 + $0x1c] sm:$0xf] %vm2390, %v2297
      %2399 = vst.msk [vmem:[#allocation2 + $0x20] sm:$0xf] %vm2390, %v2299
      %2400 = vst.msk [vmem:[#allocation2 + $0x24] sm:$0xf] %vm2390, %v2301
      %2401 = vst.msk [vmem:[#allocation2 + $0x28] sm:$0xf] %vm2390, %v2303
      %2402 = vst.msk [vmem:[#allocation2 + $0x2c] sm:$0xf] %vm2390, %v2305
      %2403 = vst.msk [vmem:[#allocation2 + $0x30] sm:$0xf] %vm2390, %v2307
      %2404 = vst.msk [vmem:[#allocation2 + $0x34] sm:$0xf] %vm2390, %v2309
      %2405 = vst.msk [vmem:[#allocation2 + $0x38] sm:$0xf] %vm2390, %v2311
      %2406 = vst.msk [vmem:[#allocation2 + $0x3c] sm:$0xf] %vm2390, %v2313
      %2407 = vst.msk [vmem:[#allocation2 + $0x40] sm:$0xf] %vm2390, %v2315
      %2408 = vst.msk [vmem:[#allocation2 + $0x44] sm:$0xf] %vm2390, %v2317
      %2409 = vst.msk [vmem:[#allocation2 + $0x48] sm:$0xf] %vm2390, %v2319
      %2410 = vst.msk [vmem:[#allocation2 + $0x4c] sm:$0xf] %vm2390, %v2321
      %2411 = vst.msk [vmem:[#allocation2 + $0x50] sm:$0xf] %vm2390, %v2323
      %2412 = vst.msk [vmem:[#allocation2 + $0x54] sm:$0xf] %vm2390, %v2325
      %2413 = vst.msk [vmem:[#allocation2 + $0x58] sm:$0xf] %vm2390, %v2327
      %2414 = vst.msk [vmem:[#allocation2 + $0x5c] sm:$0xf] %vm2390, %v2329
      %2415 = vst.msk [vmem:[#allocation2 + $0x60] sm:$0xf] %vm2390, %v2331
      %2416 = vst.msk [vmem:[#allocation2 + $0x64] sm:$0xf] %vm2390, %v2333
      %2417 = vst.msk [vmem:[#allocation2 + $0x68] sm:$0xf] %vm2390, %v2335
      %2418 = vst.msk [vmem:[#allocation2 + $0x6c] sm:$0xf] %vm2390, %v2337
      %2419 = vst.msk [vmem:[#allocation2 + $0x70] sm:$0xf] %vm2390, %v2339
      %2420 = vst.msk [vmem:[#allocation2 + $0x74] sm:$0xf] %vm2390, %v2341
      %2421 = vst.msk [vmem:[#allocation2 + $0x78] sm:$0xf] %vm2390, %v2343
      %2422 = vst.msk [vmem:[#allocation2 + $0x7c] sm:$0xf] %vm2390, %v2345
      %2423 = vst.msk [vmem:[#allocation2 + $0x80] sm:$0xf] %vm2390, %v2347
      %2424 = vst.msk [vmem:[#allocation2 + $0x84] sm:$0xf] %vm2390, %v2349
      %2425 = vst.msk [vmem:[#allocation2 + $0x88] sm:$0xf] %vm2390, %v2351
      %2426 = vst.msk [vmem:[#allocation2 + $0x8c] sm:$0xf] %vm2390, %v2353
      %v2427 = vld [vmem:[%s219 + $0x10] sm:$0xc]
      %v2428 = vld [vmem:[%s219 + $0x14] sm:$0xf]
      %v2429 = vld [vmem:[%s219 + $0x18] sm:$0xf]
      %v2430 = vld [vmem:[%s219 + $0x1c] sm:$0xf]
      %v2431 = vld [vmem:[%s219 + $0x20] sm:$0xf]
      %v2432 = vld [vmem:[%s219 + $0x24] sm:$0xf]
      %v2433 = vld [vmem:[%s219 + $0x28] sm:$0xf]
      %v2434 = vld [vmem:[%s219 + $0x2c] sm:$0xf]
      %v2435 = vld [vmem:[%s219 + $0x30] sm:$0xf]
      %v2436 = vld [vmem:[%s219 + $0x34] sm:$0xf]
      %v2437 = vld [vmem:[%s219 + $0x38] sm:$0xf]
      %v2438 = vld [vmem:[%s219 + $0x3c] sm:$0xf]
      %v2439 = vld [vmem:[%s219 + $0x40] sm:$0xf]
      %v2440 = vld [vmem:[%s219 + $0x44] sm:$0xf]
      %v2441 = vld [vmem:[%s219 + $0x48] sm:$0xf]
      %v2442 = vld [vmem:[%s219 + $0x4c] sm:$0xf]
      %v2443 = vld [vmem:[%s219 + $0x50] sm:$0xf]
      %v2444 = vld [vmem:[%s219 + $0x54] sm:$0xf]
      %v2445 = vld [vmem:[%s219 + $0x58] sm:$0xf]
      %v2446 = vld [vmem:[%s219 + $0x5c] sm:$0xf]
      %v2447 = vld [vmem:[%s219 + $0x60] sm:$0xf]
      %v2448 = vld [vmem:[%s219 + $0x64] sm:$0xf]
      %v2449 = vld [vmem:[%s219 + $0x68] sm:$0xf]
      %v2450 = vld [vmem:[%s219 + $0x6c] sm:$0xf]
      %v2451 = vld [vmem:[%s219 + $0x70] sm:$0xf]
      %v2452 = vld [vmem:[%s219 + $0x74] sm:$0xf]
      %v2453 = vld [vmem:[%s219 + $0x78] sm:$0xf]
      %v2454 = vld [vmem:[%s219 + $0x7c] sm:$0xf]
      %v2455 = vld [vmem:[%s219 + $0x80] sm:$0xf]
      %v2456 = vld [vmem:[%s219 + $0x84] sm:$0xf]
      %v2457 = vld [vmem:[%s219 + $0x88] sm:$0xf]
      %v2458 = vld [vmem:[%s219 + $0x8c] sm:$0xf]
      %v2459 = vld [vmem:[%s219 + $0x90] sm:$0xf]
      %v2460 = vld [vmem:[%s219 + $0x94] sm:$0xf]
      %v2461 = vld [vmem:[%s219 + $0x98] sm:$0xf]
      %v2462 = vld [vmem:[%s219 + $0x9c] sm:$0xf]
      %v2463 = vld [vmem:[%s219 + $0xa0] sm:$0x3]
      %v2501 = vrot.slane %v2427, 6
      %v2502 = vrot.slane %v2501, 4
      %v2503 = vrot.slane %v2428, 6
      %v2504 = vsel %vm2172, %v2502, %v2503
      %v2505 = vrot.slane %v2503, 4
      %v2506 = vrot.slane %v2429, 6
      %v2507 = vsel %vm2172, %v2505, %v2506
      %v2508 = vrot.slane %v2506, 4
      %v2509 = vrot.slane %v2430, 6
      %v2510 = vsel %vm2172, %v2508, %v2509
      %v2511 = vrot.slane %v2509, 4
      %v2512 = vrot.slane %v2431, 6
      %v2513 = vsel %vm2172, %v2511, %v2512
      %v2514 = vrot.slane %v2512, 4
      %v2515 = vrot.slane %v2432, 6
      %v2516 = vsel %vm2172, %v2514, %v2515
      %v2517 = vrot.slane %v2515, 4
      %v2518 = vrot.slane %v2433, 6
      %v2519 = vsel %vm2172, %v2517, %v2518
      %v2520 = vrot.slane %v2518, 4
      %v2521 = vrot.slane %v2434, 6
      %v2522 = vsel %vm2172, %v2520, %v2521
      %v2523 = vrot.slane %v2521, 4
      %v2524 = vrot.slane %v2435, 6
      %v2525 = vsel %vm2172, %v2523, %v2524
      %v2526 = vrot.slane %v2524, 4
      %v2527 = vrot.slane %v2436, 6
      %v2528 = vsel %vm2172, %v2526, %v2527
      %v2529 = vrot.slane %v2527, 4
      %v2530 = vrot.slane %v2437, 6
      %v2531 = vsel %vm2172, %v2529, %v2530
      %v2532 = vrot.slane %v2530, 4
      %v2533 = vrot.slane %v2438, 6
      %v2534 = vsel %vm2172, %v2532, %v2533
      %v2535 = vrot.slane %v2533, 4
      %v2536 = vrot.slane %v2439, 6
      %v2537 = vsel %vm2172, %v2535, %v2536
      %v2538 = vrot.slane %v2536, 4
      %v2539 = vrot.slane %v2440, 6
      %v2540 = vsel %vm2172, %v2538, %v2539
      %v2541 = vrot.slane %v2539, 4
      %v2542 = vrot.slane %v2441, 6
      %v2543 = vsel %vm2172, %v2541, %v2542
      %v2544 = vrot.slane %v2542, 4
      %v2545 = vrot.slane %v2442, 6
      %v2546 = vsel %vm2172, %v2544, %v2545
      %v2547 = vrot.slane %v2545, 4
      %v2548 = vrot.slane %v2443, 6
      %v2549 = vsel %vm2172, %v2547, %v2548
      %v2550 = vrot.slane %v2548, 4
      %v2551 = vrot.slane %v2444, 6
      %v2552 = vsel %vm2172, %v2550, %v2551
      %v2553 = vrot.slane %v2551, 4
      %v2554 = vrot.slane %v2445, 6
      %v2555 = vsel %vm2172, %v2553, %v2554
      %v2556 = vrot.slane %v2554, 4
      %v2557 = vrot.slane %v2446, 6
      %v2558 = vsel %vm2172, %v2556, %v2557
      %v2559 = vrot.slane %v2557, 4
      %v2560 = vrot.slane %v2447, 6
      %v2561 = vsel %vm2172, %v2559, %v2560
      %v2562 = vrot.slane %v2560, 4
      %v2563 = vrot.slane %v2448, 6
      %v2564 = vsel %vm2172, %v2562, %v2563
      %v2565 = vrot.slane %v2563, 4
      %v2566 = vrot.slane %v2449, 6
      %v2567 = vsel %vm2172, %v2565, %v2566
      %v2568 = vrot.slane %v2566, 4
      %v2569 = vrot.slane %v2450, 6
      %v2570 = vsel %vm2172, %v2568, %v2569
      %v2571 = vrot.slane %v2569, 4
      %v2572 = vrot.slane %v2451, 6
      %v2573 = vsel %vm2172, %v2571, %v2572
      %v2574 = vrot.slane %v2572, 4
      %v2575 = vrot.slane %v2452, 6
      %v2576 = vsel %vm2172, %v2574, %v2575
      %v2577 = vrot.slane %v2575, 4
      %v2578 = vrot.slane %v2453, 6
      %v2579 = vsel %vm2172, %v2577, %v2578
      %v2580 = vrot.slane %v2578, 4
      %v2581 = vrot.slane %v2454, 6
      %v2582 = vsel %vm2172, %v2580, %v2581
      %v2583 = vrot.slane %v2581, 4
      %v2584 = vrot.slane %v2455, 6
      %v2585 = vsel %vm2172, %v2583, %v2584
      %v2586 = vrot.slane %v2584, 4
      %v2587 = vrot.slane %v2456, 6
      %v2588 = vsel %vm2172, %v2586, %v2587
      %v2589 = vrot.slane %v2587, 4
      %v2590 = vrot.slane %v2457, 6
      %v2591 = vsel %vm2172, %v2589, %v2590
      %v2592 = vrot.slane %v2590, 4
      %v2593 = vrot.slane %v2458, 6
      %v2594 = vsel %vm2172, %v2592, %v2593
      %v2595 = vrot.slane %v2593, 4
      %v2596 = vrot.slane %v2459, 6
      %v2597 = vsel %vm2172, %v2595, %v2596
      %v2598 = vrot.slane %v2596, 4
      %v2599 = vrot.slane %v2460, 6
      %v2600 = vsel %vm2172, %v2598, %v2599
      %v2601 = vrot.slane %v2599, 4
      %v2602 = vrot.slane %v2461, 6
      %v2603 = vsel %vm2172, %v2601, %v2602
      %v2604 = vrot.slane %v2602, 4
      %v2605 = vrot.slane %v2462, 6
      %v2606 = vsel %vm2172, %v2604, %v2605
      %v2607 = vrot.slane %v2605, 4
      %v2608 = vrot.slane %v2463, 6
      %v2609 = vsel %vm2172, %v2607, %v2608
      %2610 = vrot.lane.b32.xlu0 %v2504, 48
      %v2611 = vpop.permute.xlu0 %2610
      %2612 = vrot.lane.b32.xlu0 %v2507, 48
      %v2613 = vpop.permute.xlu0 %2612
      %2614 = vrot.lane.b32.xlu0 %v2510, 48
      %v2615 = vpop.permute.xlu0 %2614
      %2616 = vrot.lane.b32.xlu0 %v2513, 48
      %v2617 = vpop.permute.xlu0 %2616
      %2618 = vrot.lane.b32.xlu0 %v2516, 48
      %v2619 = vpop.permute.xlu0 %2618
      %2620 = vrot.lane.b32.xlu0 %v2519, 48
      %v2621 = vpop.permute.xlu0 %2620
      %2622 = vrot.lane.b32.xlu0 %v2522, 48
      %v2623 = vpop.permute.xlu0 %2622
      %2624 = vrot.lane.b32.xlu0 %v2525, 48
      %v2625 = vpop.permute.xlu0 %2624
      %2626 = vrot.lane.b32.xlu0 %v2528, 48
      %v2627 = vpop.permute.xlu0 %2626
      %2628 = vrot.lane.b32.xlu0 %v2531, 48
      %v2629 = vpop.permute.xlu0 %2628
      %2630 = vrot.lane.b32.xlu0 %v2534, 48
      %v2631 = vpop.permute.xlu0 %2630
      %2632 = vrot.lane.b32.xlu0 %v2537, 48
      %v2633 = vpop.permute.xlu0 %2632
      %2634 = vrot.lane.b32.xlu0 %v2540, 48
      %v2635 = vpop.permute.xlu0 %2634
      %2636 = vrot.lane.b32.xlu0 %v2543, 48
      %v2637 = vpop.permute.xlu0 %2636
      %2638 = vrot.lane.b32.xlu0 %v2546, 48
      %v2639 = vpop.permute.xlu0 %2638
      %2640 = vrot.lane.b32.xlu0 %v2549, 48
      %v2641 = vpop.permute.xlu0 %2640
      %2642 = vrot.lane.b32.xlu0 %v2552, 48
      %v2643 = vpop.permute.xlu0 %2642
      %2644 = vrot.lane.b32.xlu0 %v2555, 48
      %v2645 = vpop.permute.xlu0 %2644
      %2646 = vrot.lane.b32.xlu0 %v2558, 48
      %v2647 = vpop.permute.xlu0 %2646
      %2648 = vrot.lane.b32.xlu0 %v2561, 48
      %v2649 = vpop.permute.xlu0 %2648
      %2650 = vrot.lane.b32.xlu0 %v2564, 48
      %v2651 = vpop.permute.xlu0 %2650
      %2652 = vrot.lane.b32.xlu0 %v2567, 48
      %v2653 = vpop.permute.xlu0 %2652
      %2654 = vrot.lane.b32.xlu0 %v2570, 48
      %v2655 = vpop.permute.xlu0 %2654
      %2656 = vrot.lane.b32.xlu0 %v2573, 48
      %v2657 = vpop.permute.xlu0 %2656
      %2658 = vrot.lane.b32.xlu0 %v2576, 48
      %v2659 = vpop.permute.xlu0 %2658
      %2660 = vrot.lane.b32.xlu0 %v2579, 48
      %v2661 = vpop.permute.xlu0 %2660
      %2662 = vrot.lane.b32.xlu0 %v2582, 48
      %v2663 = vpop.permute.xlu0 %2662
      %2664 = vrot.lane.b32.xlu0 %v2585, 48
      %v2665 = vpop.permute.xlu0 %2664
      %2666 = vrot.lane.b32.xlu0 %v2588, 48
      %v2667 = vpop.permute.xlu0 %2666
      %2668 = vrot.lane.b32.xlu0 %v2591, 48
      %v2669 = vpop.permute.xlu0 %2668
      %2670 = vrot.lane.b32.xlu0 %v2594, 48
      %v2671 = vpop.permute.xlu0 %2670
      %2672 = vrot.lane.b32.xlu0 %v2597, 48
      %v2673 = vpop.permute.xlu0 %2672
      %2674 = vrot.lane.b32.xlu0 %v2600, 48
      %v2675 = vpop.permute.xlu0 %2674
      %2676 = vrot.lane.b32.xlu0 %v2603, 48
      %v2677 = vpop.permute.xlu0 %2676
      %2678 = vrot.lane.b32.xlu0 %v2606, 48
      %v2679 = vpop.permute.xlu0 %2678
      %2680 = vrot.lane.b32.xlu0 %v2609, 48
      %v2681 = vpop.permute.xlu0 %2680
      %vm2718 = vcmask 454016
      %2719 = vst.msk [vmem:[#allocation2] sm:$0xf] %vm2718, %v2611
      %2720 = vst.msk [vmem:[#allocation2 + $0x4] sm:$0xf] %vm2718, %v2613
      %2721 = vst.msk [vmem:[#allocation2 + $0x8] sm:$0xf] %vm2718, %v2615
      %2722 = vst.msk [vmem:[#allocation2 + $0xc] sm:$0xf] %vm2718, %v2617
      %2723 = vst.msk [vmem:[#allocation2 + $0x10] sm:$0xf] %vm2718, %v2619
      %2724 = vst.msk [vmem:[#allocation2 + $0x14] sm:$0xf] %vm2718, %v2621
      %2725 = vst.msk [vmem:[#allocation2 + $0x18] sm:$0xf] %vm2718, %v2623
      %2726 = vst.msk [vmem:[#allocation2 + $0x1c] sm:$0xf] %vm2718, %v2625
      %2727 = vst.msk [vmem:[#allocation2 + $0x20] sm:$0xf] %vm2718, %v2627
      %2728 = vst.msk [vmem:[#allocation2 + $0x24] sm:$0xf] %vm2718, %v2629
      %2729 = vst.msk [vmem:[#allocation2 + $0x28] sm:$0xf] %vm2718, %v2631
      %2730 = vst.msk [vmem:[#allocation2 + $0x2c] sm:$0xf] %vm2718, %v2633
      %2731 = vst.msk [vmem:[#allocation2 + $0x30] sm:$0xf] %vm2718, %v2635
      %2732 = vst.msk [vmem:[#allocation2 + $0x34] sm:$0xf] %vm2718, %v2637
      %2733 = vst.msk [vmem:[#allocation2 + $0x38] sm:$0xf] %vm2718, %v2639
      %2734 = vst.msk [vmem:[#allocation2 + $0x3c] sm:$0xf] %vm2718, %v2641
      %2735 = vst.msk [vmem:[#allocation2 + $0x40] sm:$0xf] %vm2718, %v2643
      %2736 = vst.msk [vmem:[#allocation2 + $0x44] sm:$0xf] %vm2718, %v2645
      %2737 = vst.msk [vmem:[#allocation2 + $0x48] sm:$0xf] %vm2718, %v2647
      %2738 = vst.msk [vmem:[#allocation2 + $0x4c] sm:$0xf] %vm2718, %v2649
      %2739 = vst.msk [vmem:[#allocation2 + $0x50] sm:$0xf] %vm2718, %v2651
      %2740 = vst.msk [vmem:[#allocation2 + $0x54] sm:$0xf] %vm2718, %v2653
      %2741 = vst.msk [vmem:[#allocation2 + $0x58] sm:$0xf] %vm2718, %v2655
      %2742 = vst.msk [vmem:[#allocation2 + $0x5c] sm:$0xf] %vm2718, %v2657
      %2743 = vst.msk [vmem:[#allocation2 + $0x60] sm:$0xf] %vm2718, %v2659
      %2744 = vst.msk [vmem:[#allocation2 + $0x64] sm:$0xf] %vm2718, %v2661
      %2745 = vst.msk [vmem:[#allocation2 + $0x68] sm:$0xf] %vm2718, %v2663
      %2746 = vst.msk [vmem:[#allocation2 + $0x6c] sm:$0xf] %vm2718, %v2665
      %2747 = vst.msk [vmem:[#allocation2 + $0x70] sm:$0xf] %vm2718, %v2667
      %2748 = vst.msk [vmem:[#allocation2 + $0x74] sm:$0xf] %vm2718, %v2669
      %2749 = vst.msk [vmem:[#allocation2 + $0x78] sm:$0xf] %vm2718, %v2671
      %2750 = vst.msk [vmem:[#allocation2 + $0x7c] sm:$0xf] %vm2718, %v2673
      %2751 = vst.msk [vmem:[#allocation2 + $0x80] sm:$0xf] %vm2718, %v2675
      %2752 = vst.msk [vmem:[#allocation2 + $0x84] sm:$0xf] %vm2718, %v2677
      %2753 = vst.msk [vmem:[#allocation2 + $0x88] sm:$0xf] %vm2718, %v2679
      %2754 = vst.msk [vmem:[#allocation2 + $0x8c] sm:$0xf] %vm2718, %v2681
      %v2755 = vld [vmem:[%s219 + $0x10] sm:$0xc]
      %v2756 = vld [vmem:[%s219 + $0x14] sm:$0xf]
      %v2757 = vld [vmem:[%s219 + $0x18] sm:$0xf]
      %v2758 = vld [vmem:[%s219 + $0x1c] sm:$0xf]
      %v2759 = vld [vmem:[%s219 + $0x20] sm:$0xf]
      %v2760 = vld [vmem:[%s219 + $0x24] sm:$0xf]
      %v2761 = vld [vmem:[%s219 + $0x28] sm:$0xf]
      %v2762 = vld [vmem:[%s219 + $0x2c] sm:$0xf]
      %v2763 = vld [vmem:[%s219 + $0x30] sm:$0xf]
      %v2764 = vld [vmem:[%s219 + $0x34] sm:$0xf]
      %v2765 = vld [vmem:[%s219 + $0x38] sm:$0xf]
      %v2766 = vld [vmem:[%s219 + $0x3c] sm:$0xf]
      %v2767 = vld [vmem:[%s219 + $0x40] sm:$0xf]
      %v2768 = vld [vmem:[%s219 + $0x44] sm:$0xf]
      %v2769 = vld [vmem:[%s219 + $0x48] sm:$0xf]
      %v2770 = vld [vmem:[%s219 + $0x4c] sm:$0xf]
      %v2771 = vld [vmem:[%s219 + $0x50] sm:$0xf]
      %v2772 = vld [vmem:[%s219 + $0x54] sm:$0xf]
      %v2773 = vld [vmem:[%s219 + $0x58] sm:$0xf]
      %v2774 = vld [vmem:[%s219 + $0x5c] sm:$0xf]
      %v2775 = vld [vmem:[%s219 + $0x60] sm:$0xf]
      %v2776 = vld [vmem:[%s219 + $0x64] sm:$0xf]
      %v2777 = vld [vmem:[%s219 + $0x68] sm:$0xf]
      %v2778 = vld [vmem:[%s219 + $0x6c] sm:$0xf]
      %v2779 = vld [vmem:[%s219 + $0x70] sm:$0xf]
      %v2780 = vld [vmem:[%s219 + $0x74] sm:$0xf]
      %v2781 = vld [vmem:[%s219 + $0x78] sm:$0xf]
      %v2782 = vld [vmem:[%s219 + $0x7c] sm:$0xf]
      %v2783 = vld [vmem:[%s219 + $0x80] sm:$0xf]
      %v2784 = vld [vmem:[%s219 + $0x84] sm:$0xf]
      %v2785 = vld [vmem:[%s219 + $0x88] sm:$0xf]
      %v2786 = vld [vmem:[%s219 + $0x8c] sm:$0xf]
      %v2787 = vld [vmem:[%s219 + $0x90] sm:$0xf]
      %v2788 = vld [vmem:[%s219 + $0x94] sm:$0xf]
      %v2789 = vld [vmem:[%s219 + $0x98] sm:$0xf]
      %v2790 = vld [vmem:[%s219 + $0x9c] sm:$0xf]
      %v2791 = vld [vmem:[%s219 + $0xa0] sm:$0x7]
      %vm2792 = vsmask.f32 1280
      %vm2793 = vsmask.f32 5392
      %vm2794 = vmor %vm2792, %vm2793
      %v2796 = vshrl.u32 %v2755, 16
      %v2798 = vrot.slane %v2796, 6
      %v2799 = vshll.u32 %v2755, 16
      %v2801 = vrot.slane %v2799, 7
      %v2802 = vor.u32 %v2798, %v2801
      %v2803 = vrot.slane %v2802, 4
      %v2805 = vshrl.u32 %v2756, 16
      %v2807 = vrot.slane %v2805, 6
      %v2808 = vshll.u32 %v2756, 16
      %v2810 = vrot.slane %v2808, 7
      %v2811 = vor.u32 %v2807, %v2810
      %v2812 = vsel %vm2794, %v2803, %v2811
      %v2813 = vrot.slane %v2811, 4
      %v2815 = vshrl.u32 %v2757, 16
      %v2817 = vrot.slane %v2815, 6
      %v2818 = vshll.u32 %v2757, 16
      %v2820 = vrot.slane %v2818, 7
      %v2821 = vor.u32 %v2817, %v2820
      %v2822 = vsel %vm2794, %v2813, %v2821
      %v2823 = vrot.slane %v2821, 4
      %v2825 = vshrl.u32 %v2758, 16
      %v2827 = vrot.slane %v2825, 6
      %v2828 = vshll.u32 %v2758, 16
      %v2830 = vrot.slane %v2828, 7
      %v2831 = vor.u32 %v2827, %v2830
      %v2832 = vsel %vm2794, %v2823, %v2831
      %v2833 = vrot.slane %v2831, 4
      %v2835 = vshrl.u32 %v2759, 16
      %v2837 = vrot.slane %v2835, 6
      %v2838 = vshll.u32 %v2759, 16
      %v2840 = vrot.slane %v2838, 7
      %v2841 = vor.u32 %v2837, %v2840
      %v2842 = vsel %vm2794, %v2833, %v2841
      %v2843 = vrot.slane %v2841, 4
      %v2845 = vshrl.u32 %v2760, 16
      %v2847 = vrot.slane %v2845, 6
      %v2848 = vshll.u32 %v2760, 16
      %v2850 = vrot.slane %v2848, 7
      %v2851 = vor.u32 %v2847, %v2850
      %v2852 = vsel %vm2794, %v2843, %v2851
      %v2853 = vrot.slane %v2851, 4
      %v2855 = vshrl.u32 %v2761, 16
      %v2857 = vrot.slane %v2855, 6
      %v2858 = vshll.u32 %v2761, 16
      %v2860 = vrot.slane %v2858, 7
      %v2861 = vor.u32 %v2857, %v2860
      %v2862 = vsel %vm2794, %v2853, %v2861
      %v2863 = vrot.slane %v2861, 4
      %v2865 = vshrl.u32 %v2762, 16
      %v2867 = vrot.slane %v2865, 6
      %v2868 = vshll.u32 %v2762, 16
      %v2870 = vrot.slane %v2868, 7
      %v2871 = vor.u32 %v2867, %v2870
      %v2872 = vsel %vm2794, %v2863, %v2871
      %v2873 = vrot.slane %v2871, 4
      %v2875 = vshrl.u32 %v2763, 16
      %v2877 = vrot.slane %v2875, 6
      %v2878 = vshll.u32 %v2763, 16
      %v2880 = vrot.slane %v2878, 7
      %v2881 = vor.u32 %v2877, %v2880
      %v2882 = vsel %vm2794, %v2873, %v2881
      %v2883 = vrot.slane %v2881, 4
      %v2885 = vshrl.u32 %v2764, 16
      %v2887 = vrot.slane %v2885, 6
      %v2888 = vshll.u32 %v2764, 16
      %v2890 = vrot.slane %v2888, 7
      %v2891 = vor.u32 %v2887, %v2890
      %v2892 = vsel %vm2794, %v2883, %v2891
      %v2893 = vrot.slane %v2891, 4
      %v2895 = vshrl.u32 %v2765, 16
      %v2897 = vrot.slane %v2895, 6
      %v2898 = vshll.u32 %v2765, 16
      %v2900 = vrot.slane %v2898, 7
      %v2901 = vor.u32 %v2897, %v2900
      %v2902 = vsel %vm2794, %v2893, %v2901
      %v2903 = vrot.slane %v2901, 4
      %v2905 = vshrl.u32 %v2766, 16
      %v2907 = vrot.slane %v2905, 6
      %v2908 = vshll.u32 %v2766, 16
      %v2910 = vrot.slane %v2908, 7
      %v2911 = vor.u32 %v2907, %v2910
      %v2912 = vsel %vm2794, %v2903, %v2911
      %v2913 = vrot.slane %v2911, 4
      %v2915 = vshrl.u32 %v2767, 16
      %v2917 = vrot.slane %v2915, 6
      %v2918 = vshll.u32 %v2767, 16
      %v2920 = vrot.slane %v2918, 7
      %v2921 = vor.u32 %v2917, %v2920
      %v2922 = vsel %vm2794, %v2913, %v2921
      %v2923 = vrot.slane %v2921, 4
      %v2925 = vshrl.u32 %v2768, 16
      %v2927 = vrot.slane %v2925, 6
      %v2928 = vshll.u32 %v2768, 16
      %v2930 = vrot.slane %v2928, 7
      %v2931 = vor.u32 %v2927, %v2930
      %v2932 = vsel %vm2794, %v2923, %v2931
      %v2933 = vrot.slane %v2931, 4
      %v2935 = vshrl.u32 %v2769, 16
      %v2937 = vrot.slane %v2935, 6
      %v2938 = vshll.u32 %v2769, 16
      %v2940 = vrot.slane %v2938, 7
      %v2941 = vor.u32 %v2937, %v2940
      %v2942 = vsel %vm2794, %v2933, %v2941
      %v2943 = vrot.slane %v2941, 4
      %v2945 = vshrl.u32 %v2770, 16
      %v2947 = vrot.slane %v2945, 6
      %v2948 = vshll.u32 %v2770, 16
      %v2950 = vrot.slane %v2948, 7
      %v2951 = vor.u32 %v2947, %v2950
      %v2952 = vsel %vm2794, %v2943, %v2951
      %v2953 = vrot.slane %v2951, 4
      %v2955 = vshrl.u32 %v2771, 16
      %v2957 = vrot.slane %v2955, 6
      %v2958 = vshll.u32 %v2771, 16
      %v2960 = vrot.slane %v2958, 7
      %v2961 = vor.u32 %v2957, %v2960
      %v2962 = vsel %vm2794, %v2953, %v2961
      %v2963 = vrot.slane %v2961, 4
      %v2965 = vshrl.u32 %v2772, 16
      %v2967 = vrot.slane %v2965, 6
      %v2968 = vshll.u32 %v2772, 16
      %v2970 = vrot.slane %v2968, 7
      %v2971 = vor.u32 %v2967, %v2970
      %v2972 = vsel %vm2794, %v2963, %v2971
      %v2973 = vrot.slane %v2971, 4
      %v2975 = vshrl.u32 %v2773, 16
      %v2977 = vrot.slane %v2975, 6
      %v2978 = vshll.u32 %v2773, 16
      %v2980 = vrot.slane %v2978, 7
      %v2981 = vor.u32 %v2977, %v2980
      %v2982 = vsel %vm2794, %v2973, %v2981
      %v2983 = vrot.slane %v2981, 4
      %v2985 = vshrl.u32 %v2774, 16
      %v2987 = vrot.slane %v2985, 6
      %v2988 = vshll.u32 %v2774, 16
      %v2990 = vrot.slane %v2988, 7
      %v2991 = vor.u32 %v2987, %v2990
      %v2992 = vsel %vm2794, %v2983, %v2991
      %v2993 = vrot.slane %v2991, 4
      %v2995 = vshrl.u32 %v2775, 16
      %v2997 = vrot.slane %v2995, 6
      %v2998 = vshll.u32 %v2775, 16
      %v3000 = vrot.slane %v2998, 7
      %v3001 = vor.u32 %v2997, %v3000
      %v3002 = vsel %vm2794, %v2993, %v3001
      %v3003 = vrot.slane %v3001, 4
      %v3005 = vshrl.u32 %v2776, 16
      %v3007 = vrot.slane %v3005, 6
      %v3008 = vshll.u32 %v2776, 16
      %v3010 = vrot.slane %v3008, 7
      %v3011 = vor.u32 %v3007, %v3010
      %v3012 = vsel %vm2794, %v3003, %v3011
      %v3013 = vrot.slane %v3011, 4
      %v3015 = vshrl.u32 %v2777, 16
      %v3017 = vrot.slane %v3015, 6
      %v3018 = vshll.u32 %v2777, 16
      %v3020 = vrot.slane %v3018, 7
      %v3021 = vor.u32 %v3017, %v3020
      %v3022 = vsel %vm2794, %v3013, %v3021
      %v3023 = vrot.slane %v3021, 4
      %v3025 = vshrl.u32 %v2778, 16
      %v3027 = vrot.slane %v3025, 6
      %v3028 = vshll.u32 %v2778, 16
      %v3030 = vrot.slane %v3028, 7
      %v3031 = vor.u32 %v3027, %v3030
      %v3032 = vsel %vm2794, %v3023, %v3031
      %v3033 = vrot.slane %v3031, 4
      %v3035 = vshrl.u32 %v2779, 16
      %v3037 = vrot.slane %v3035, 6
      %v3038 = vshll.u32 %v2779, 16
      %v3040 = vrot.slane %v3038, 7
      %v3041 = vor.u32 %v3037, %v3040
      %v3042 = vsel %vm2794, %v3033, %v3041
      %v3043 = vrot.slane %v3041, 4
      %v3045 = vshrl.u32 %v2780, 16
      %v3047 = vrot.slane %v3045, 6
      %v3048 = vshll.u32 %v2780, 16
      %v3050 = vrot.slane %v3048, 7
      %v3051 = vor.u32 %v3047, %v3050
      %v3052 = vsel %vm2794, %v3043, %v3051
      %v3053 = vrot.slane %v3051, 4
      %v3055 = vshrl.u32 %v2781, 16
      %v3057 = vrot.slane %v3055, 6
      %v3058 = vshll.u32 %v2781, 16
      %v3060 = vrot.slane %v3058, 7
      %v3061 = vor.u32 %v3057, %v3060
      %v3062 = vsel %vm2794, %v3053, %v3061
      %v3063 = vrot.slane %v3061, 4
      %v3065 = vshrl.u32 %v2782, 16
      %v3067 = vrot.slane %v3065, 6
      %v3068 = vshll.u32 %v2782, 16
      %v3070 = vrot.slane %v3068, 7
      %v3071 = vor.u32 %v3067, %v3070
      %v3072 = vsel %vm2794, %v3063, %v3071
      %v3073 = vrot.slane %v3071, 4
      %v3075 = vshrl.u32 %v2783, 16
      %v3077 = vrot.slane %v3075, 6
      %v3078 = vshll.u32 %v2783, 16
      %v3080 = vrot.slane %v3078, 7
      %v3081 = vor.u32 %v3077, %v3080
      %v3082 = vsel %vm2794, %v3073, %v3081
      %v3083 = vrot.slane %v3081, 4
      %v3085 = vshrl.u32 %v2784, 16
      %v3087 = vrot.slane %v3085, 6
      %v3088 = vshll.u32 %v2784, 16
      %v3090 = vrot.slane %v3088, 7
      %v3091 = vor.u32 %v3087, %v3090
      %v3092 = vsel %vm2794, %v3083, %v3091
      %v3093 = vrot.slane %v3091, 4
      %v3095 = vshrl.u32 %v2785, 16
      %v3097 = vrot.slane %v3095, 6
      %v3098 = vshll.u32 %v2785, 16
      %v3100 = vrot.slane %v3098, 7
      %v3101 = vor.u32 %v3097, %v3100
      %v3102 = vsel %vm2794, %v3093, %v3101
      %v3103 = vrot.slane %v3101, 4
      %v3105 = vshrl.u32 %v2786, 16
      %v3107 = vrot.slane %v3105, 6
      %v3108 = vshll.u32 %v2786, 16
      %v3110 = vrot.slane %v3108, 7
      %v3111 = vor.u32 %v3107, %v3110
      %v3112 = vsel %vm2794, %v3103, %v3111
      %v3113 = vrot.slane %v3111, 4
      %v3115 = vshrl.u32 %v2787, 16
      %v3117 = vrot.slane %v3115, 6
      %v3118 = vshll.u32 %v2787, 16
      %v3120 = vrot.slane %v3118, 7
      %v3121 = vor.u32 %v3117, %v3120
      %v3122 = vsel %vm2794, %v3113, %v3121
      %v3123 = vrot.slane %v3121, 4
      %v3125 = vshrl.u32 %v2788, 16
      %v3127 = vrot.slane %v3125, 6
      %v3128 = vshll.u32 %v2788, 16
      %v3130 = vrot.slane %v3128, 7
      %v3131 = vor.u32 %v3127, %v3130
      %v3132 = vsel %vm2794, %v3123, %v3131
      %v3133 = vrot.slane %v3131, 4
      %v3135 = vshrl.u32 %v2789, 16
      %v3137 = vrot.slane %v3135, 6
      %v3138 = vshll.u32 %v2789, 16
      %v3140 = vrot.slane %v3138, 7
      %v3141 = vor.u32 %v3137, %v3140
      %v3142 = vsel %vm2794, %v3133, %v3141
      %v3143 = vrot.slane %v3141, 4
      %v3145 = vshrl.u32 %v2790, 16
      %v3147 = vrot.slane %v3145, 6
      %v3148 = vshll.u32 %v2790, 16
      %v3150 = vrot.slane %v3148, 7
      %v3151 = vor.u32 %v3147, %v3150
      %v3152 = vsel %vm2794, %v3143, %v3151
      %v3153 = vrot.slane %v3151, 4
      %v3155 = vshrl.u32 %v2791, 16
      %v3157 = vrot.slane %v3155, 6
      %v3158 = vshll.u32 %v2791, 16
      %v3160 = vrot.slane %v3158, 7
      %v3161 = vor.u32 %v3157, %v3160
      %v3162 = vsel %vm2794, %v3153, %v3161
      %3163 = vrot.lane.b32.xlu0 %v2812, 56
      %v3164 = vpop.permute.xlu0 %3163
      %3165 = vrot.lane.b32.xlu0 %v2822, 56
      %v3166 = vpop.permute.xlu0 %3165
      %3167 = vrot.lane.b32.xlu0 %v2832, 56
      %v3168 = vpop.permute.xlu0 %3167
      %3169 = vrot.lane.b32.xlu0 %v2842, 56
      %v3170 = vpop.permute.xlu0 %3169
      %3171 = vrot.lane.b32.xlu0 %v2852, 56
      %v3172 = vpop.permute.xlu0 %3171
      %3173 = vrot.lane.b32.xlu0 %v2862, 56
      %v3174 = vpop.permute.xlu0 %3173
      %3175 = vrot.lane.b32.xlu0 %v2872, 56
      %v3176 = vpop.permute.xlu0 %3175
      %3177 = vrot.lane.b32.xlu0 %v2882, 56
      %v3178 = vpop.permute.xlu0 %3177
      %3179 = vrot.lane.b32.xlu0 %v2892, 56
      %v3180 = vpop.permute.xlu0 %3179
      %3181 = vrot.lane.b32.xlu0 %v2902, 56
      %v3182 = vpop.permute.xlu0 %3181
      %3183 = vrot.lane.b32.xlu0 %v2912, 56
      %v3184 = vpop.permute.xlu0 %3183
      %3185 = vrot.lane.b32.xlu0 %v2922, 56
      %v3186 = vpop.permute.xlu0 %3185
      %3187 = vrot.lane.b32.xlu0 %v2932, 56
      %v3188 = vpop.permute.xlu0 %3187
      %3189 = vrot.lane.b32.xlu0 %v2942, 56
      %v3190 = vpop.permute.xlu0 %3189
      %3191 = vrot.lane.b32.xlu0 %v2952, 56
      %v3192 = vpop.permute.xlu0 %3191
      %3193 = vrot.lane.b32.xlu0 %v2962, 56
      %v3194 = vpop.permute.xlu0 %3193
      %3195 = vrot.lane.b32.xlu0 %v2972, 56
      %v3196 = vpop.permute.xlu0 %3195
      %3197 = vrot.lane.b32.xlu0 %v2982, 56
      %v3198 = vpop.permute.xlu0 %3197
      %3199 = vrot.lane.b32.xlu0 %v2992, 56
      %v3200 = vpop.permute.xlu0 %3199
      %3201 = vrot.lane.b32.xlu0 %v3002, 56
      %v3202 = vpop.permute.xlu0 %3201
      %3203 = vrot.lane.b32.xlu0 %v3012, 56
      %v3204 = vpop.permute.xlu0 %3203
      %3205 = vrot.lane.b32.xlu0 %v3022, 56
      %v3206 = vpop.permute.xlu0 %3205
      %3207 = vrot.lane.b32.xlu0 %v3032, 56
      %v3208 = vpop.permute.xlu0 %3207
      %3209 = vrot.lane.b32.xlu0 %v3042, 56
      %v3210 = vpop.permute.xlu0 %3209
      %3211 = vrot.lane.b32.xlu0 %v3052, 56
      %v3212 = vpop.permute.xlu0 %3211
      %3213 = vrot.lane.b32.xlu0 %v3062, 56
      %v3214 = vpop.permute.xlu0 %3213
      %3215 = vrot.lane.b32.xlu0 %v3072, 56
      %v3216 = vpop.permute.xlu0 %3215
      %3217 = vrot.lane.b32.xlu0 %v3082, 56
      %v3218 = vpop.permute.xlu0 %3217
      %3219 = vrot.lane.b32.xlu0 %v3092, 56
      %v3220 = vpop.permute.xlu0 %3219
      %3221 = vrot.lane.b32.xlu0 %v3102, 56
      %v3222 = vpop.permute.xlu0 %3221
      %3223 = vrot.lane.b32.xlu0 %v3112, 56
      %v3224 = vpop.permute.xlu0 %3223
      %3225 = vrot.lane.b32.xlu0 %v3122, 56
      %v3226 = vpop.permute.xlu0 %3225
      %3227 = vrot.lane.b32.xlu0 %v3132, 56
      %v3228 = vpop.permute.xlu0 %3227
      %3229 = vrot.lane.b32.xlu0 %v3142, 56
      %v3230 = vpop.permute.xlu0 %3229
      %3231 = vrot.lane.b32.xlu0 %v3152, 56
      %v3232 = vpop.permute.xlu0 %3231
      %3233 = vrot.lane.b32.xlu0 %v3162, 56
      %v3234 = vpop.permute.xlu0 %3233
      %vm3271 = vcmask 519616
      %3272 = vst.msk [vmem:[#allocation2] sm:$0xf] %vm3271, %v3164
      %3273 = vst.msk [vmem:[#allocation2 + $0x4] sm:$0xf] %vm3271, %v3166
      %3274 = vst.msk [vmem:[#allocation2 + $0x8] sm:$0xf] %vm3271, %v3168
      %3275 = vst.msk [vmem:[#allocation2 + $0xc] sm:$0xf] %vm3271, %v3170
      %3276 = vst.msk [vmem:[#allocation2 + $0x10] sm:$0xf] %vm3271, %v3172
      %3277 = vst.msk [vmem:[#allocation2 + $0x14] sm:$0xf] %vm3271, %v3174
      %3278 = vst.msk [vmem:[#allocation2 + $0x18] sm:$0xf] %vm3271, %v3176
      %3279 = vst.msk [vmem:[#allocation2 + $0x1c] sm:$0xf] %vm3271, %v3178
      %3280 = vst.msk [vmem:[#allocation2 + $0x20] sm:$0xf] %vm3271, %v3180
      %3281 = vst.msk [vmem:[#allocation2 + $0x24] sm:$0xf] %vm3271, %v3182
      %3282 = vst.msk [vmem:[#allocation2 + $0x28] sm:$0xf] %vm3271, %v3184
      %3283 = vst.msk [vmem:[#allocation2 + $0x2c] sm:$0xf] %vm3271, %v3186
      %3284 = vst.msk [vmem:[#allocation2 + $0x30] sm:$0xf] %vm3271, %v3188
      %3285 = vst.msk [vmem:[#allocation2 + $0x34] sm:$0xf] %vm3271, %v3190
      %3286 = vst.msk [vmem:[#allocation2 + $0x38] sm:$0xf] %vm3271, %v3192
      %3287 = vst.msk [vmem:[#allocation2 + $0x3c] sm:$0xf] %vm3271, %v3194
      %3288 = vst.msk [vmem:[#allocation2 + $0x40] sm:$0xf] %vm3271, %v3196
      %3289 = vst.msk [vmem:[#allocation2 + $0x44] sm:$0xf] %vm3271, %v3198
      %3290 = vst.msk [vmem:[#allocation2 + $0x48] sm:$0xf] %vm3271, %v3200
      %3291 = vst.msk [vmem:[#allocation2 + $0x4c] sm:$0xf] %vm3271, %v3202
      %3292 = vst.msk [vmem:[#allocation2 + $0x50] sm:$0xf] %vm3271, %v3204
      %3293 = vst.msk [vmem:[#allocation2 + $0x54] sm:$0xf] %vm3271, %v3206
      %3294 = vst.msk [vmem:[#allocation2 + $0x58] sm:$0xf] %vm3271, %v3208
      %3295 = vst.msk [vmem:[#allocation2 + $0x5c] sm:$0xf] %vm3271, %v3210
      %3296 = vst.msk [vmem:[#allocation2 + $0x60] sm:$0xf] %vm3271, %v3212
      %3297 = vst.msk [vmem:[#allocation2 + $0x64] sm:$0xf] %vm3271, %v3214
      %3298 = vst.msk [vmem:[#allocation2 + $0x68] sm:$0xf] %vm3271, %v3216
      %3299 = vst.msk [vmem:[#allocation2 + $0x6c] sm:$0xf] %vm3271, %v3218
      %3300 = vst.msk [vmem:[#allocation2 + $0x70] sm:$0xf] %vm3271, %v3220
      %3301 = vst.msk [vmem:[#allocation2 + $0x74] sm:$0xf] %vm3271, %v3222
      %3302 = vst.msk [vmem:[#allocation2 + $0x78] sm:$0xf] %vm3271, %v3224
      %3303 = vst.msk [vmem:[#allocation2 + $0x7c] sm:$0xf] %vm3271, %v3226
      %3304 = vst.msk [vmem:[#allocation2 + $0x80] sm:$0xf] %vm3271, %v3228
      %3305 = vst.msk [vmem:[#allocation2 + $0x84] sm:$0xf] %vm3271, %v3230
      %3306 = vst.msk [vmem:[#allocation2 + $0x88] sm:$0xf] %vm3271, %v3232
      %3307 = vst.msk [vmem:[#allocation2 + $0x8c] sm:$0xf] %vm3271, %v3234
      %v3308 = vld [vmem:[%s219 + $0x10] sm:$0x8]
      %v3309 = vld [vmem:[%s219 + $0x14] sm:$0xf]
      %v3310 = vld [vmem:[%s219 + $0x18] sm:$0xf]
      %v3311 = vld [vmem:[%s219 + $0x1c] sm:$0xf]
      %v3312 = vld [vmem:[%s219 + $0x20] sm:$0xf]
      %v3313 = vld [vmem:[%s219 + $0x24] sm:$0xf]
      %v3314 = vld [vmem:[%s219 + $0x28] sm:$0xf]
      %v3315 = vld [vmem:[%s219 + $0x2c] sm:$0xf]
      %v3316 = vld [vmem:[%s219 + $0x30] sm:$0xf]
      %v3317 = vld [vmem:[%s219 + $0x34] sm:$0xf]
      %v3318 = vld [vmem:[%s219 + $0x38] sm:$0xf]
      %v3319 = vld [vmem:[%s219 + $0x3c] sm:$0xf]
      %v3320 = vld [vmem:[%s219 + $0x40] sm:$0xf]
      %v3321 = vld [vmem:[%s219 + $0x44] sm:$0xf]
      %v3322 = vld [vmem:[%s219 + $0x48] sm:$0xf]
      %v3323 = vld [vmem:[%s219 + $0x4c] sm:$0xf]
      %v3324 = vld [vmem:[%s219 + $0x50] sm:$0xf]
      %v3325 = vld [vmem:[%s219 + $0x54] sm:$0xf]
      %v3326 = vld [vmem:[%s219 + $0x58] sm:$0xf]
      %v3327 = vld [vmem:[%s219 + $0x5c] sm:$0xf]
      %v3328 = vld [vmem:[%s219 + $0x60] sm:$0xf]
      %v3329 = vld [vmem:[%s219 + $0x64] sm:$0xf]
      %v3330 = vld [vmem:[%s219 + $0x68] sm:$0xf]
      %v3331 = vld [vmem:[%s219 + $0x6c] sm:$0xf]
      %v3332 = vld [vmem:[%s219 + $0x70] sm:$0xf]
      %v3333 = vld [vmem:[%s219 + $0x74] sm:$0xf]
      %v3334 = vld [vmem:[%s219 + $0x78] sm:$0xf]
      %v3335 = vld [vmem:[%s219 + $0x7c] sm:$0xf]
      %v3336 = vld [vmem:[%s219 + $0x80] sm:$0xf]
      %v3337 = vld [vmem:[%s219 + $0x84] sm:$0xf]
      %v3338 = vld [vmem:[%s219 + $0x88] sm:$0xf]
      %v3339 = vld [vmem:[%s219 + $0x8c] sm:$0xf]
      %v3340 = vld [vmem:[%s219 + $0x90] sm:$0xf]
      %v3341 = vld [vmem:[%s219 + $0x94] sm:$0xf]
      %v3342 = vld [vmem:[%s219 + $0x98] sm:$0xf]
      %v3343 = vld [vmem:[%s219 + $0x9c] sm:$0xf]
      %v3344 = vld [vmem:[%s219 + $0xa0] sm:$0x7]
      %vm3382 = vcmask 1040384
      %vm3383 = vcmask 1044484
      %vm3384 = vmor %vm3382, %vm3383
      %v3385 = vrot.slane %v3308, 7
      %v3386 = vrot.slane %v3385, 4
      %v3387 = vrot.slane %v3309, 7
      %v3388 = vsel %vm3384, %v3386, %v3387
      %v3389 = vrot.slane %v3387, 4
      %v3390 = vrot.slane %v3310, 7
      %v3391 = vsel %vm3384, %v3389, %v3390
      %v3392 = vrot.slane %v3390, 4
      %v3393 = vrot.slane %v3311, 7
      %v3394 = vsel %vm3384, %v3392, %v3393
      %v3395 = vrot.slane %v3393, 4
      %v3396 = vrot.slane %v3312, 7
      %v3397 = vsel %vm3384, %v3395, %v3396
      %v3398 = vrot.slane %v3396, 4
      %v3399 = vrot.slane %v3313, 7
      %v3400 = vsel %vm3384, %v3398, %v3399
      %v3401 = vrot.slane %v3399, 4
      %v3402 = vrot.slane %v3314, 7
      %v3403 = vsel %vm3384, %v3401, %v3402
      %v3404 = vrot.slane %v3402, 4
      %v3405 = vrot.slane %v3315, 7
      %v3406 = vsel %vm3384, %v3404, %v3405
      %v3407 = vrot.slane %v3405, 4
      %v3408 = vrot.slane %v3316, 7
      %v3409 = vsel %vm3384, %v3407, %v3408
      %v3410 = vrot.slane %v3408, 4
      %v3411 = vrot.slane %v3317, 7
      %v3412 = vsel %vm3384, %v3410, %v3411
      %v3413 = vrot.slane %v3411, 4
      %v3414 = vrot.slane %v3318, 7
      %v3415 = vsel %vm3384, %v3413, %v3414
      %v3416 = vrot.slane %v3414, 4
      %v3417 = vrot.slane %v3319, 7
      %v3418 = vsel %vm3384, %v3416, %v3417
      %v3419 = vrot.slane %v3417, 4
      %v3420 = vrot.slane %v3320, 7
      %v3421 = vsel %vm3384, %v3419, %v3420
      %v3422 = vrot.slane %v3420, 4
      %v3423 = vrot.slane %v3321, 7
      %v3424 = vsel %vm3384, %v3422, %v3423
      %v3425 = vrot.slane %v3423, 4
      %v3426 = vrot.slane %v3322, 7
      %v3427 = vsel %vm3384, %v3425, %v3426
      %v3428 = vrot.slane %v3426, 4
      %v3429 = vrot.slane %v3323, 7
      %v3430 = vsel %vm3384, %v3428, %v3429
      %v3431 = vrot.slane %v3429, 4
      %v3432 = vrot.slane %v3324, 7
      %v3433 = vsel %vm3384, %v3431, %v3432
      %v3434 = vrot.slane %v3432, 4
      %v3435 = vrot.slane %v3325, 7
      %v3436 = vsel %vm3384, %v3434, %v3435
      %v3437 = vrot.slane %v3435, 4
      %v3438 = vrot.slane %v3326, 7
      %v3439 = vsel %vm3384, %v3437, %v3438
      %v3440 = vrot.slane %v3438, 4
      %v3441 = vrot.slane %v3327, 7
      %v3442 = vsel %vm3384, %v3440, %v3441
      %v3443 = vrot.slane %v3441, 4
      %v3444 = vrot.slane %v3328, 7
      %v3445 = vsel %vm3384, %v3443, %v3444
      %v3446 = vrot.slane %v3444, 4
      %v3447 = vrot.slane %v3329, 7
      %v3448 = vsel %vm3384, %v3446, %v3447
      %v3449 = vrot.slane %v3447, 4
      %v3450 = vrot.slane %v3330, 7
      %v3451 = vsel %vm3384, %v3449, %v3450
      %v3452 = vrot.slane %v3450, 4
      %v3453 = vrot.slane %v3331, 7
      %v3454 = vsel %vm3384, %v3452, %v3453
      %v3455 = vrot.slane %v3453, 4
      %v3456 = vrot.slane %v3332, 7
      %v3457 = vsel %vm3384, %v3455, %v3456
      %v3458 = vrot.slane %v3456, 4
      %v3459 = vrot.slane %v3333, 7
      %v3460 = vsel %vm3384, %v3458, %v3459
      %v3461 = vrot.slane %v3459, 4
      %v3462 = vrot.slane %v3334, 7
      %v3463 = vsel %vm3384, %v3461, %v3462
      %v3464 = vrot.slane %v3462, 4
      %v3465 = vrot.slane %v3335, 7
      %v3466 = vsel %vm3384, %v3464, %v3465
      %v3467 = vrot.slane %v3465, 4
      %v3468 = vrot.slane %v3336, 7
      %v3469 = vsel %vm3384, %v3467, %v3468
      %v3470 = vrot.slane %v3468, 4
      %v3471 = vrot.slane %v3337, 7
      %v3472 = vsel %vm3384, %v3470, %v3471
      %v3473 = vrot.slane %v3471, 4
      %v3474 = vrot.slane %v3338, 7
      %v3475 = vsel %vm3384, %v3473, %v3474
      %v3476 = vrot.slane %v3474, 4
      %v3477 = vrot.slane %v3339, 7
      %v3478 = vsel %vm3384, %v3476, %v3477
      %v3479 = vrot.slane %v3477, 4
      %v3480 = vrot.slane %v3340, 7
      %v3481 = vsel %vm3384, %v3479, %v3480
      %v3482 = vrot.slane %v3480, 4
      %v3483 = vrot.slane %v3341, 7
      %v3484 = vsel %vm3384, %v3482, %v3483
      %v3485 = vrot.slane %v3483, 4
      %v3486 = vrot.slane %v3342, 7
      %v3487 = vsel %vm3384, %v3485, %v3486
      %v3488 = vrot.slane %v3486, 4
      %v3489 = vrot.slane %v3343, 7
      %v3490 = vsel %vm3384, %v3488, %v3489
      %v3491 = vrot.slane %v3489, 4
      %v3492 = vrot.slane %v3344, 7
      %v3493 = vsel %vm3384, %v3491, %v3492
      %3494 = vrot.lane.b32.xlu0 %v3388, 64
      %v3495 = vpop.permute.xlu0 %3494
      %3496 = vrot.lane.b32.xlu0 %v3391, 64
      %v3497 = vpop.permute.xlu0 %3496
      %3498 = vrot.lane.b32.xlu0 %v3394, 64
      %v3499 = vpop.permute.xlu0 %3498
      %3500 = vrot.lane.b32.xlu0 %v3397, 64
      %v3501 = vpop.permute.xlu0 %3500
      %3502 = vrot.lane.b32.xlu0 %v3400, 64
      %v3503 = vpop.permute.xlu0 %3502
      %3504 = vrot.lane.b32.xlu0 %v3403, 64
      %v3505 = vpop.permute.xlu0 %3504
      %3506 = vrot.lane.b32.xlu0 %v3406, 64
      %v3507 = vpop.permute.xlu0 %3506
      %3508 = vrot.lane.b32.xlu0 %v3409, 64
      %v3509 = vpop.permute.xlu0 %3508
      %3510 = vrot.lane.b32.xlu0 %v3412, 64
      %v3511 = vpop.permute.xlu0 %3510
      %3512 = vrot.lane.b32.xlu0 %v3415, 64
      %v3513 = vpop.permute.xlu0 %3512
      %3514 = vrot.lane.b32.xlu0 %v3418, 64
      %v3515 = vpop.permute.xlu0 %3514
      %3516 = vrot.lane.b32.xlu0 %v3421, 64
      %v3517 = vpop.permute.xlu0 %3516
      %3518 = vrot.lane.b32.xlu0 %v3424, 64
      %v3519 = vpop.permute.xlu0 %3518
      %3520 = vrot.lane.b32.xlu0 %v3427, 64
      %v3521 = vpop.permute.xlu0 %3520
      %3522 = vrot.lane.b32.xlu0 %v3430, 64
      %v3523 = vpop.permute.xlu0 %3522
      %3524 = vrot.lane.b32.xlu0 %v3433, 64
      %v3525 = vpop.permute.xlu0 %3524
      %3526 = vrot.lane.b32.xlu0 %v3436, 64
      %v3527 = vpop.permute.xlu0 %3526
      %3528 = vrot.lane.b32.xlu0 %v3439, 64
      %v3529 = vpop.permute.xlu0 %3528
      %3530 = vrot.lane.b32.xlu0 %v3442, 64
      %v3531 = vpop.permute.xlu0 %3530
      %3532 = vrot.lane.b32.xlu0 %v3445, 64
      %v3533 = vpop.permute.xlu0 %3532
      %3534 = vrot.lane.b32.xlu0 %v3448, 64
      %v3535 = vpop.permute.xlu0 %3534
      %3536 = vrot.lane.b32.xlu0 %v3451, 64
      %v3537 = vpop.permute.xlu0 %3536
      %3538 = vrot.lane.b32.xlu0 %v3454, 64
      %v3539 = vpop.permute.xlu0 %3538
      %3540 = vrot.lane.b32.xlu0 %v3457, 64
      %v3541 = vpop.permute.xlu0 %3540
      %3542 = vrot.lane.b32.xlu0 %v3460, 64
      %v3543 = vpop.permute.xlu0 %3542
      %3544 = vrot.lane.b32.xlu0 %v3463, 64
      %v3545 = vpop.permute.xlu0 %3544
      %3546 = vrot.lane.b32.xlu0 %v3466, 64
      %v3547 = vpop.permute.xlu0 %3546
      %3548 = vrot.lane.b32.xlu0 %v3469, 64
      %v3549 = vpop.permute.xlu0 %3548
      %3550 = vrot.lane.b32.xlu0 %v3472, 64
      %v3551 = vpop.permute.xlu0 %3550
      %3552 = vrot.lane.b32.xlu0 %v3475, 64
      %v3553 = vpop.permute.xlu0 %3552
      %3554 = vrot.lane.b32.xlu0 %v3478, 64
      %v3555 = vpop.permute.xlu0 %3554
      %3556 = vrot.lane.b32.xlu0 %v3481, 64
      %v3557 = vpop.permute.xlu0 %3556
      %3558 = vrot.lane.b32.xlu0 %v3484, 64
      %v3559 = vpop.permute.xlu0 %3558
      %3560 = vrot.lane.b32.xlu0 %v3487, 64
      %v3561 = vpop.permute.xlu0 %3560
      %3562 = vrot.lane.b32.xlu0 %v3490, 64
      %v3563 = vpop.permute.xlu0 %3562
      %3564 = vrot.lane.b32.xlu0 %v3493, 64
      %v3565 = vpop.permute.xlu0 %3564
      %vm3602 = vcmask 585216
      %3603 = vst.msk [vmem:[#allocation2] sm:$0xf] %vm3602, %v3495
      %3604 = vst.msk [vmem:[#allocation2 + $0x4] sm:$0xf] %vm3602, %v3497
      %3605 = vst.msk [vmem:[#allocation2 + $0x8] sm:$0xf] %vm3602, %v3499
      %3606 = vst.msk [vmem:[#allocation2 + $0xc] sm:$0xf] %vm3602, %v3501
      %3607 = vst.msk [vmem:[#allocation2 + $0x10] sm:$0xf] %vm3602, %v3503
      %3608 = vst.msk [vmem:[#allocation2 + $0x14] sm:$0xf] %vm3602, %v3505
      %3609 = vst.msk [vmem:[#allocation2 + $0x18] sm:$0xf] %vm3602, %v3507
      %3610 = vst.msk [vmem:[#allocation2 + $0x1c] sm:$0xf] %vm3602, %v3509
      %3611 = vst.msk [vmem:[#allocation2 + $0x20] sm:$0xf] %vm3602, %v3511
      %3612 = vst.msk [vmem:[#allocation2 + $0x24] sm:$0xf] %vm3602, %v3513
      %3613 = vst.msk [vmem:[#allocation2 + $0x28] sm:$0xf] %vm3602, %v3515
      %3614 = vst.msk [vmem:[#allocation2 + $0x2c] sm:$0xf] %vm3602, %v3517
      %3615 = vst.msk [vmem:[#allocation2 + $0x30] sm:$0xf] %vm3602, %v3519
      %3616 = vst.msk [vmem:[#allocation2 + $0x34] sm:$0xf] %vm3602, %v3521
      %3617 = vst.msk [vmem:[#allocation2 + $0x38] sm:$0xf] %vm3602, %v3523
      %3618 = vst.msk [vmem:[#allocation2 + $0x3c] sm:$0xf] %vm3602, %v3525
      %3619 = vst.msk [vmem:[#allocation2 + $0x40] sm:$0xf] %vm3602, %v3527
      %3620 = vst.msk [vmem:[#allocation2 + $0x44] sm:$0xf] %vm3602, %v3529
      %3621 = vst.msk [vmem:[#allocation2 + $0x48] sm:$0xf] %vm3602, %v3531
      %3622 = vst.msk [vmem:[#allocation2 + $0x4c] sm:$0xf] %vm3602, %v3533
      %3623 = vst.msk [vmem:[#allocation2 + $0x50] sm:$0xf] %vm3602, %v3535
      %3624 = vst.msk [vmem:[#allocation2 + $0x54] sm:$0xf] %vm3602, %v3537
      %3625 = vst.msk [vmem:[#allocation2 + $0x58] sm:$0xf] %vm3602, %v3539
      %3626 = vst.msk [vmem:[#allocation2 + $0x5c] sm:$0xf] %vm3602, %v3541
      %3627 = vst.msk [vmem:[#allocation2 + $0x60] sm:$0xf] %vm3602, %v3543
      %3628 = vst.msk [vmem:[#allocation2 + $0x64] sm:$0xf] %vm3602, %v3545
      %3629 = vst.msk [vmem:[#allocation2 + $0x68] sm:$0xf] %vm3602, %v3547
      %3630 = vst.msk [vmem:[#allocation2 + $0x6c] sm:$0xf] %vm3602, %v3549
      %3631 = vst.msk [vmem:[#allocation2 + $0x70] sm:$0xf] %vm3602, %v3551
      %3632 = vst.msk [vmem:[#allocation2 + $0x74] sm:$0xf] %vm3602, %v3553
      %3633 = vst.msk [vmem:[#allocation2 + $0x78] sm:$0xf] %vm3602, %v3555
      %3634 = vst.msk [vmem:[#allocation2 + $0x7c] sm:$0xf] %vm3602, %v3557
      %3635 = vst.msk [vmem:[#allocation2 + $0x80] sm:$0xf] %vm3602, %v3559
      %3636 = vst.msk [vmem:[#allocation2 + $0x84] sm:$0xf] %vm3602, %v3561
      %3637 = vst.msk [vmem:[#allocation2 + $0x88] sm:$0xf] %vm3602, %v3563
      %3638 = vst.msk [vmem:[#allocation2 + $0x8c] sm:$0xf] %vm3602, %v3565
      %3639 = vst.msk [vmem:[#allocation3] sm:$0xf] %vm298, 0
      %3640 = vst.msk [vmem:[#allocation3 + $0x4] sm:$0xf] %vm298, 0
      %3641 = vst.msk [vmem:[#allocation3 + $0x8] sm:$0xf] %vm298, 0
      %3642 = vst.msk [vmem:[#allocation3 + $0x98] sm:$0xf] %vm298, 0
      %3643 = vst.msk [vmem:[#allocation3 + $0x9c] sm:$0xf] %vm298, 0
      %3644 = vst.msk [vmem:[#allocation3 + $0xa0] sm:$0xf] %vm298, 0
      %v3645 = vld [vmem:[#allocation2] sm:$0xf]
      %v3646 = vld [vmem:[#allocation2 + $0x4] sm:$0xf]
      %v3647 = vld [vmem:[#allocation2 + $0x8] sm:$0xf]
      %v3648 = vld [vmem:[#allocation2 + $0xc] sm:$0xf]
      %v3649 = vld [vmem:[#allocation2 + $0x10] sm:$0xf]
      %v3650 = vld [vmem:[#allocation2 + $0x14] sm:$0xf]
      %v3651 = vld [vmem:[#allocation2 + $0x18] sm:$0xf]
      %v3652 = vld [vmem:[#allocation2 + $0x1c] sm:$0xf]
      %v3653 = vld [vmem:[#allocation2 + $0x20] sm:$0xf]
      %v3654 = vld [vmem:[#allocation2 + $0x24] sm:$0xf]
      %v3655 = vld [vmem:[#allocation2 + $0x28] sm:$0xf]
      %v3656 = vld [vmem:[#allocation2 + $0x2c] sm:$0xf]
      %v3657 = vld [vmem:[#allocation2 + $0x30] sm:$0xf]
      %v3658 = vld [vmem:[#allocation2 + $0x34] sm:$0xf]
      %v3659 = vld [vmem:[#allocation2 + $0x38] sm:$0xf]
      %v3660 = vld [vmem:[#allocation2 + $0x3c] sm:$0xf]
      %v3661 = vld [vmem:[#allocation2 + $0x40] sm:$0xf]
      %v3662 = vld [vmem:[#allocation2 + $0x44] sm:$0xf]
      %v3663 = vld [vmem:[%s1] sm:$0xf]
      %v3664 = vld [vmem:[%s1 + $0x4] sm:$0xf]
      %v3665 = vld [vmem:[%s1 + $0x8] sm:$0xf]
      %v3666 = vld [vmem:[%s1 + $0xc] sm:$0xf]
      %v3667 = vld [vmem:[%s1 + $0x10] sm:$0xf]
      %v3668 = vld [vmem:[%s1 + $0x14] sm:$0xf]
      %v3669 = vld [vmem:[%s1 + $0x18] sm:$0xf]
      %v3670 = vld [vmem:[%s1 + $0x1c] sm:$0xf]
      %v3671 = vld [vmem:[%s1 + $0x20] sm:$0xf]
      %v3672 = vld [vmem:[%s1 + $0x24] sm:$0xf]
      %v3673 = vld [vmem:[%s1 + $0x28] sm:$0xf]
      %v3674 = vld [vmem:[%s1 + $0x2c] sm:$0xf]
      %v3675 = vld [vmem:[%s1 + $0x30] sm:$0xf]
      %v3676 = vld [vmem:[%s1 + $0x34] sm:$0xf]
      %v3677 = vld [vmem:[%s1 + $0x38] sm:$0xf]
      %v3678 = vld [vmem:[%s1 + $0x3c] sm:$0xf]
      %v3679 = vld [vmem:[%s2] sm:$0x1]
      %v3681 = vperm.slane %v3679, 0
      %v3701 = vunpack.c.l.b16 %v3645
      %v3702 = vunpack.c.l.b16 %v3646
      %v3703 = vunpack.c.l.b16 %v3647
      %v3704 = vunpack.c.l.b16 %v3648
      %v3705 = vunpack.c.l.b16 %v3649
      %v3706 = vunpack.c.l.b16 %v3650
      %v3707 = vunpack.c.l.b16 %v3651
      %v3708 = vunpack.c.l.b16 %v3652
      %v3709 = vunpack.c.l.b16 %v3653
      %v3710 = vunpack.c.l.b16 %v3654
      %v3711 = vunpack.c.l.b16 %v3655
      %v3712 = vunpack.c.l.b16 %v3656
      %v3713 = vunpack.c.l.b16 %v3657
      %v3714 = vunpack.c.l.b16 %v3658
      %v3715 = vunpack.c.l.b16 %v3659
      %v3716 = vunpack.c.l.b16 %v3660
      %v3717 = vunpack.c.l.b16 %v3661
      %v3718 = vunpack.c.l.b16 %v3662
      %v3719 = vpack.c.b16 %v3702, %v3701
      %v3720 = vpack.c.b16 %v3704, %v3703
      %v3721 = vpack.c.b16 %v3706, %v3705
      %v3722 = vpack.c.b16 %v3708, %v3707
      %v3723 = vpack.c.b16 %v3710, %v3709
      %v3724 = vpack.c.b16 %v3712, %v3711
      %v3725 = vpack.c.b16 %v3714, %v3713
      %v3726 = vpack.c.b16 %v3716, %v3715
      %v3727 = vpack.c.b16 %v3718, %v3717
      %v3753 = vunpack.c.l.b16 %v3663
      %v3754 = vunpack.c.l.b16 %v3664
      %v3755 = vunpack.c.l.b16 %v3665
      %v3756 = vunpack.c.l.b16 %v3666
      %v3757 = vunpack.c.l.b16 %v3667
      %v3758 = vunpack.c.l.b16 %v3668
      %v3759 = vunpack.c.l.b16 %v3669
      %v3760 = vunpack.c.l.b16 %v3670
      %v3761 = vunpack.c.l.b16 %v3671
      %v3762 = vunpack.c.l.b16 %v3672
      %v3763 = vunpack.c.l.b16 %v3673
      %v3764 = vunpack.c.l.b16 %v3674
      %v3765 = vunpack.c.l.b16 %v3675
      %v3766 = vunpack.c.l.b16 %v3676
      %v3767 = vunpack.c.l.b16 %v3677
      %v3768 = vunpack.c.l.b16 %v3678
      %v3769 = vpack.c.b16 %v3754, %v3753
      %v3770 = vpack.c.b16 %v3756, %v3755
      %v3771 = vpack.c.b16 %v3758, %v3757
      %v3772 = vpack.c.b16 %v3760, %v3759
      %v3773 = vpack.c.b16 %v3762, %v3761
      %v3774 = vpack.c.b16 %v3764, %v3763
      %v3775 = vpack.c.b16 %v3766, %v3765
      %v3776 = vpack.c.b16 %v3768, %v3767
      %3785 = vmatpush.bf16.msra.mxu0 %v3776
      %3786 = vmatpush.bf16.msra.mxu0 %v3775
      %3787 = vmatpush.bf16.msra.mxu0 %v3774
      %3788 = vmatpush.bf16.msra.mxu0 %v3773
      %3789 = vmatpush.bf16.msra.mxu0 %v3772
      %3790 = vmatpush.bf16.msra.mxu0 %v3771
      %3791 = vmatpush.bf16.msra.mxu0 %v3770
      %3792 = vmatpush.bf16.msra.mxu0 %v3769
      %3793 = vmatmul.bf16.gmra.mxu0 %v3719
      %v3794 = vpop.f32.mrf.mxu0
      %v3795 = vadd.f32 %v3681, %v3794
      %v3796 = vpop.f32.mrf.mxu0
      %v3797 = vadd.f32 %v3681, %v3796
      %3798 = vmatmul.bf16.gmra.mxu0 %v3720
      %v3799 = vpop.f32.mrf.mxu0
      %v3800 = vadd.f32 %v3681, %v3799
      %v3801 = vpop.f32.mrf.mxu0
      %v3802 = vadd.f32 %v3681, %v3801
      %3803 = vmatmul.bf16.gmra.mxu0 %v3721
      %v3804 = vpop.f32.mrf.mxu0
      %v3805 = vadd.f32 %v3681, %v3804
      %v3806 = vpop.f32.mrf.mxu0
      %v3807 = vadd.f32 %v3681, %v3806
      %3808 = vmatmul.bf16.gmra.mxu0 %v3722
      %v3809 = vpop.f32.mrf.mxu0
      %v3810 = vadd.f32 %v3681, %v3809
      %v3811 = vpop.f32.mrf.mxu0
      %v3812 = vadd.f32 %v3681, %v3811
      %3813 = vmatmul.bf16.gmra.mxu0 %v3723
      %v3814 = vpop.f32.mrf.mxu0
      %v3815 = vadd.f32 %v3681, %v3814
      %v3816 = vpop.f32.mrf.mxu0
      %v3817 = vadd.f32 %v3681, %v3816
      %3818 = vmatmul.bf16.gmra.mxu0 %v3724
      %v3819 = vpop.f32.mrf.mxu0
      %v3820 = vadd.f32 %v3681, %v3819
      %v3821 = vpop.f32.mrf.mxu0
      %v3822 = vadd.f32 %v3681, %v3821
      %3823 = vmatmul.bf16.gmra.mxu0 %v3725
      %v3824 = vpop.f32.mrf.mxu0
      %v3825 = vadd.f32 %v3681, %v3824
      %v3826 = vpop.f32.mrf.mxu0
      %v3827 = vadd.f32 %v3681, %v3826
      %3828 = vmatmul.bf16.gmra.mxu0 %v3726
      %v3829 = vpop.f32.mrf.mxu0
      %v3830 = vadd.f32 %v3681, %v3829
      %v3831 = vpop.f32.mrf.mxu0
      %v3832 = vadd.f32 %v3681, %v3831
      %3833 = vmatmul.bf16.gmra.mxu0 %v3727
      %v3834 = vpop.f32.mrf.mxu0
      %v3835 = vadd.f32 %v3681, %v3834
      %v3836 = vpop.f32.mrf.mxu0
      %v3837 = vadd.f32 %v3681, %v3836
      %3838 = vdwg.mxu0
      %v3839 = vmax.f32 %v3795, 0.0
      %v3840 = vmax.f32 %v3797, 0.0
      %v3841 = vmax.f32 %v3800, 0.0
      %v3842 = vmax.f32 %v3802, 0.0
      %v3843 = vmax.f32 %v3805, 0.0
      %v3844 = vmax.f32 %v3807, 0.0
      %v3845 = vmax.f32 %v3810, 0.0
      %v3846 = vmax.f32 %v3812, 0.0
      %v3847 = vmax.f32 %v3815, 0.0
      %v3848 = vmax.f32 %v3817, 0.0
      %v3849 = vmax.f32 %v3820, 0.0
      %v3850 = vmax.f32 %v3822, 0.0
      %v3851 = vmax.f32 %v3825, 0.0
      %v3852 = vmax.f32 %v3827, 0.0
      %v3853 = vmax.f32 %v3830, 0.0
      %v3854 = vmax.f32 %v3832, 0.0
      %v3855 = vmax.f32 %v3835, 0.0
      %v3856 = vmax.f32 %v3837, 0.0
      %v3857 = vlaneseq
      %v3858 = vshrl.u32 %v3857, 7
      %v3859 = vadd.s32 %v3858, 8
      %v3860 = vadd.s32 %v3858, 16
      %v3861 = vadd.s32 %v3858, 24
      %v3862 = vadd.s32 %v3858, 32
      %v3863 = vadd.s32 %v3858, 40
      %v3864 = vadd.s32 %v3858, 48
      %v3865 = vadd.s32 %v3858, 56
      %v3866 = vadd.s32 %v3858, 64
      %v3867 = vadd.s32 %v3858, 72
      %v3868 = vadd.s32 %v3858, 80
      %v3869 = vadd.s32 %v3858, 88
      %v3870 = vadd.s32 %v3858, 96
      %v3871 = vadd.s32 %v3858, 104
      %v3872 = vadd.s32 %v3858, 112
      %v3873 = vadd.s32 %v3858, 120
      %v3874 = vadd.s32 %v3858, 128
      %v3875 = vadd.s32 %v3858, 136
      %vm3876 = vcmp.lt.s32.totalorder %v3858, 0
      %v3877 = vsub.s32 0, %v3858
      %v3878 = vsel %vm3876, %v3877, %v3858
      %v3879 = vand.u32 %v3878, 65535
      %v3880 = vshrl.u32 %v3878, 16
      %v3882 = vmul.u32 %v3879, 14564
      %v3883 = vmul.u32 %v3879, 58254
      %v3884 = vmul.u32 %v3880, 14564
      %v3885 = vmul.u32 %v3880, 58254
      %v3886 = vshll.u32 %v3883, 16
      %v3887 = vshrl.u32 %v3883, 16
      %v3888 = vshll.u32 %v3884, 16
      %v3889 = vshrl.u32 %v3884, 16
      %vm3890 = vc.u32 %v3882, %v3886
      %v3891 = vsel %vm3890, 1, 0
      %v3892 = vadd.s32 %v3882, %v3886
      %v3893 = vadd.s32 %v3885, %v3891
      %vm3894 = vc.u32 %v3892, %v3888
      %v3895 = vsel %vm3894, 1, 0
      %v3896 = vadd.s32 %v3892, %v3888
      %v3897 = vadd.s32 %v3893, %v3895
      %v3898 = vadd.s32 %v3897, %v3887
      %v3899 = vadd.s32 %v3898, %v3889
      %v3900 = vshrl.u32 %v3899, 4
      %v3901 = vmul.u32 %v3900, 18
      %v3902 = vsub.s32 %v3878, %v3901
      %v3903 = vsub.s32 0, %v3902
      %v3904 = vsel %vm3876, %v3903, %v3902
      %vm3905 = vcmp.lt.s32.totalorder %v3859, 0
      %v3906 = vsub.s32 0, %v3859
      %v3907 = vsel %vm3905, %v3906, %v3859
      %v3908 = vand.u32 %v3907, 65535
      %v3909 = vshrl.u32 %v3907, 16
      %v3911 = vmul.u32 %v3908, 14564
      %v3912 = vmul.u32 %v3908, 58254
      %v3913 = vmul.u32 %v3909, 14564
      %v3914 = vmul.u32 %v3909, 58254
      %v3915 = vshll.u32 %v3912, 16
      %v3916 = vshrl.u32 %v3912, 16
      %v3917 = vshll.u32 %v3913, 16
      %v3918 = vshrl.u32 %v3913, 16
      %vm3919 = vc.u32 %v3911, %v3915
      %v3920 = vsel %vm3919, 1, 0
      %v3921 = vadd.s32 %v3911, %v3915
      %v3922 = vadd.s32 %v3914, %v3920
      %vm3923 = vc.u32 %v3921, %v3917
      %v3924 = vsel %vm3923, 1, 0
      %v3925 = vadd.s32 %v3921, %v3917
      %v3926 = vadd.s32 %v3922, %v3924
      %v3927 = vadd.s32 %v3926, %v3916
      %v3928 = vadd.s32 %v3927, %v3918
      %v3929 = vshrl.u32 %v3928, 4
      %v3930 = vmul.u32 %v3929, 18
      %v3931 = vsub.s32 %v3907, %v3930
      %v3932 = vsub.s32 0, %v3931
      %v3933 = vsel %vm3905, %v3932, %v3931
      %vm3934 = vcmp.lt.s32.totalorder %v3860, 0
      %v3935 = vsub.s32 0, %v3860
      %v3936 = vsel %vm3934, %v3935, %v3860
      %v3937 = vand.u32 %v3936, 65535
      %v3938 = vshrl.u32 %v3936, 16
      %v3940 = vmul.u32 %v3937, 14564
      %v3941 = vmul.u32 %v3937, 58254
      %v3942 = vmul.u32 %v3938, 14564
      %v3943 = vmul.u32 %v3938, 58254
      %v3944 = vshll.u32 %v3941, 16
      %v3945 = vshrl.u32 %v3941, 16
      %v3946 = vshll.u32 %v3942, 16
      %v3947 = vshrl.u32 %v3942, 16
      %vm3948 = vc.u32 %v3940, %v3944
      %v3949 = vsel %vm3948, 1, 0
      %v3950 = vadd.s32 %v3940, %v3944
      %v3951 = vadd.s32 %v3943, %v3949
      %vm3952 = vc.u32 %v3950, %v3946
      %v3953 = vsel %vm3952, 1, 0
      %v3954 = vadd.s32 %v3950, %v3946
      %v3955 = vadd.s32 %v3951, %v3953
      %v3956 = vadd.s32 %v3955, %v3945
      %v3957 = vadd.s32 %v3956, %v3947
      %v3958 = vshrl.u32 %v3957, 4
      %v3959 = vmul.u32 %v3958, 18
      %v3960 = vsub.s32 %v3936, %v3959
      %v3961 = vsub.s32 0, %v3960
      %v3962 = vsel %vm3934, %v3961, %v3960
      %vm3963 = vcmp.lt.s32.totalorder %v3861, 0
      %v3964 = vsub.s32 0, %v3861
      %v3965 = vsel %vm3963, %v3964, %v3861
      %v3966 = vand.u32 %v3965, 65535
      %v3967 = vshrl.u32 %v3965, 16
      %v3969 = vmul.u32 %v3966, 14564
      %v3970 = vmul.u32 %v3966, 58254
      %v3971 = vmul.u32 %v3967, 14564
      %v3972 = vmul.u32 %v3967, 58254
      %v3973 = vshll.u32 %v3970, 16
      %v3974 = vshrl.u32 %v3970, 16
      %v3975 = vshll.u32 %v3971, 16
      %v3976 = vshrl.u32 %v3971, 16
      %vm3977 = vc.u32 %v3969, %v3973
      %v3978 = vsel %vm3977, 1, 0
      %v3979 = vadd.s32 %v3969, %v3973
      %v3980 = vadd.s32 %v3972, %v3978
      %vm3981 = vc.u32 %v3979, %v3975
      %v3982 = vsel %vm3981, 1, 0
      %v3983 = vadd.s32 %v3979, %v3975
      %v3984 = vadd.s32 %v3980, %v3982
      %v3985 = vadd.s32 %v3984, %v3974
      %v3986 = vadd.s32 %v3985, %v3976
      %v3987 = vshrl.u32 %v3986, 4
      %v3988 = vmul.u32 %v3987, 18
      %v3989 = vsub.s32 %v3965, %v3988
      %v3990 = vsub.s32 0, %v3989
      %v3991 = vsel %vm3963, %v3990, %v3989
      %vm3992 = vcmp.lt.s32.totalorder %v3862, 0
      %v3993 = vsub.s32 0, %v3862
      %v3994 = vsel %vm3992, %v3993, %v3862
      %v3995 = vand.u32 %v3994, 65535
      %v3996 = vshrl.u32 %v3994, 16
      %v3998 = vmul.u32 %v3995, 14564
      %v3999 = vmul.u32 %v3995, 58254
      %v4000 = vmul.u32 %v3996, 14564
      %v4001 = vmul.u32 %v3996, 58254
      %v4002 = vshll.u32 %v3999, 16
      %v4003 = vshrl.u32 %v3999, 16
      %v4004 = vshll.u32 %v4000, 16
      %v4005 = vshrl.u32 %v4000, 16
      %vm4006 = vc.u32 %v3998, %v4002
      %v4007 = vsel %vm4006, 1, 0
      %v4008 = vadd.s32 %v3998, %v4002
      %v4009 = vadd.s32 %v4001, %v4007
      %vm4010 = vc.u32 %v4008, %v4004
      %v4011 = vsel %vm4010, 1, 0
      %v4012 = vadd.s32 %v4008, %v4004
      %v4013 = vadd.s32 %v4009, %v4011
      %v4014 = vadd.s32 %v4013, %v4003
      %v4015 = vadd.s32 %v4014, %v4005
      %v4016 = vshrl.u32 %v4015, 4
      %v4017 = vmul.u32 %v4016, 18
      %v4018 = vsub.s32 %v3994, %v4017
      %v4019 = vsub.s32 0, %v4018
      %v4020 = vsel %vm3992, %v4019, %v4018
      %vm4021 = vcmp.lt.s32.totalorder %v3863, 0
      %v4022 = vsub.s32 0, %v3863
      %v4023 = vsel %vm4021, %v4022, %v3863
      %v4024 = vand.u32 %v4023, 65535
      %v4025 = vshrl.u32 %v4023, 16
      %v4027 = vmul.u32 %v4024, 14564
      %v4028 = vmul.u32 %v4024, 58254
      %v4029 = vmul.u32 %v4025, 14564
      %v4030 = vmul.u32 %v4025, 58254
      %v4031 = vshll.u32 %v4028, 16
      %v4032 = vshrl.u32 %v4028, 16
      %v4033 = vshll.u32 %v4029, 16
      %v4034 = vshrl.u32 %v4029, 16
      %vm4035 = vc.u32 %v4027, %v4031
      %v4036 = vsel %vm4035, 1, 0
      %v4037 = vadd.s32 %v4027, %v4031
      %v4038 = vadd.s32 %v4030, %v4036
      %vm4039 = vc.u32 %v4037, %v4033
      %v4040 = vsel %vm4039, 1, 0
      %v4041 = vadd.s32 %v4037, %v4033
      %v4042 = vadd.s32 %v4038, %v4040
      %v4043 = vadd.s32 %v4042, %v4032
      %v4044 = vadd.s32 %v4043, %v4034
      %v4045 = vshrl.u32 %v4044, 4
      %v4046 = vmul.u32 %v4045, 18
      %v4047 = vsub.s32 %v4023, %v4046
      %v4048 = vsub.s32 0, %v4047
      %v4049 = vsel %vm4021, %v4048, %v4047
      %vm4050 = vcmp.lt.s32.totalorder %v3864, 0
      %v4051 = vsub.s32 0, %v3864
      %v4052 = vsel %vm4050, %v4051, %v3864
      %v4053 = vand.u32 %v4052, 65535
      %v4054 = vshrl.u32 %v4052, 16
      %v4056 = vmul.u32 %v4053, 14564
      %v4057 = vmul.u32 %v4053, 58254
      %v4058 = vmul.u32 %v4054, 14564
      %v4059 = vmul.u32 %v4054, 58254
      %v4060 = vshll.u32 %v4057, 16
      %v4061 = vshrl.u32 %v4057, 16
      %v4062 = vshll.u32 %v4058, 16
      %v4063 = vshrl.u32 %v4058, 16
      %vm4064 = vc.u32 %v4056, %v4060
      %v4065 = vsel %vm4064, 1, 0
      %v4066 = vadd.s32 %v4056, %v4060
      %v4067 = vadd.s32 %v4059, %v4065
      %vm4068 = vc.u32 %v4066, %v4062
      %v4069 = vsel %vm4068, 1, 0
      %v4070 = vadd.s32 %v4066, %v4062
      %v4071 = vadd.s32 %v4067, %v4069
      %v4072 = vadd.s32 %v4071, %v4061
      %v4073 = vadd.s32 %v4072, %v4063
      %v4074 = vshrl.u32 %v4073, 4
      %v4075 = vmul.u32 %v4074, 18
      %v4076 = vsub.s32 %v4052, %v4075
      %v4077 = vsub.s32 0, %v4076
      %v4078 = vsel %vm4050, %v4077, %v4076
      %vm4079 = vcmp.lt.s32.totalorder %v3865, 0
      %v4080 = vsub.s32 0, %v3865
      %v4081 = vsel %vm4079, %v4080, %v3865
      %v4082 = vand.u32 %v4081, 65535
      %v4083 = vshrl.u32 %v4081, 16
      %v4085 = vmul.u32 %v4082, 14564
      %v4086 = vmul.u32 %v4082, 58254
      %v4087 = vmul.u32 %v4083, 14564
      %v4088 = vmul.u32 %v4083, 58254
      %v4089 = vshll.u32 %v4086, 16
      %v4090 = vshrl.u32 %v4086, 16
      %v4091 = vshll.u32 %v4087, 16
      %v4092 = vshrl.u32 %v4087, 16
      %vm4093 = vc.u32 %v4085, %v4089
      %v4094 = vsel %vm4093, 1, 0
      %v4095 = vadd.s32 %v4085, %v4089
      %v4096 = vadd.s32 %v4088, %v4094
      %vm4097 = vc.u32 %v4095, %v4091
      %v4098 = vsel %vm4097, 1, 0
      %v4099 = vadd.s32 %v4095, %v4091
      %v4100 = vadd.s32 %v4096, %v4098
      %v4101 = vadd.s32 %v4100, %v4090
      %v4102 = vadd.s32 %v4101, %v4092
      %v4103 = vshrl.u32 %v4102, 4
      %v4104 = vmul.u32 %v4103, 18
      %v4105 = vsub.s32 %v4081, %v4104
      %v4106 = vsub.s32 0, %v4105
      %v4107 = vsel %vm4079, %v4106, %v4105
      %vm4108 = vcmp.lt.s32.totalorder %v3866, 0
      %v4109 = vsub.s32 0, %v3866
      %v4110 = vsel %vm4108, %v4109, %v3866
      %v4111 = vand.u32 %v4110, 65535
      %v4112 = vshrl.u32 %v4110, 16
      %v4114 = vmul.u32 %v4111, 14564
      %v4115 = vmul.u32 %v4111, 58254
      %v4116 = vmul.u32 %v4112, 14564
      %v4117 = vmul.u32 %v4112, 58254
      %v4118 = vshll.u32 %v4115, 16
      %v4119 = vshrl.u32 %v4115, 16
      %v4120 = vshll.u32 %v4116, 16
      %v4121 = vshrl.u32 %v4116, 16
      %vm4122 = vc.u32 %v4114, %v4118
      %v4123 = vsel %vm4122, 1, 0
      %v4124 = vadd.s32 %v4114, %v4118
      %v4125 = vadd.s32 %v4117, %v4123
      %vm4126 = vc.u32 %v4124, %v4120
      %v4127 = vsel %vm4126, 1, 0
      %v4128 = vadd.s32 %v4124, %v4120
      %v4129 = vadd.s32 %v4125, %v4127
      %v4130 = vadd.s32 %v4129, %v4119
      %v4131 = vadd.s32 %v4130, %v4121
      %v4132 = vshrl.u32 %v4131, 4
      %v4133 = vmul.u32 %v4132, 18
      %v4134 = vsub.s32 %v4110, %v4133
      %v4135 = vsub.s32 0, %v4134
      %v4136 = vsel %vm4108, %v4135, %v4134
      %vm4137 = vcmp.lt.s32.totalorder %v3867, 0
      %v4138 = vsub.s32 0, %v3867
      %v4139 = vsel %vm4137, %v4138, %v3867
      %v4140 = vand.u32 %v4139, 65535
      %v4141 = vshrl.u32 %v4139, 16
      %v4143 = vmul.u32 %v4140, 14564
      %v4144 = vmul.u32 %v4140, 58254
      %v4145 = vmul.u32 %v4141, 14564
      %v4146 = vmul.u32 %v4141, 58254
      %v4147 = vshll.u32 %v4144, 16
      %v4148 = vshrl.u32 %v4144, 16
      %v4149 = vshll.u32 %v4145, 16
      %v4150 = vshrl.u32 %v4145, 16
      %vm4151 = vc.u32 %v4143, %v4147
      %v4152 = vsel %vm4151, 1, 0
      %v4153 = vadd.s32 %v4143, %v4147
      %v4154 = vadd.s32 %v4146, %v4152
      %vm4155 = vc.u32 %v4153, %v4149
      %v4156 = vsel %vm4155, 1, 0
      %v4157 = vadd.s32 %v4153, %v4149
      %v4158 = vadd.s32 %v4154, %v4156
      %v4159 = vadd.s32 %v4158, %v4148
      %v4160 = vadd.s32 %v4159, %v4150
      %v4161 = vshrl.u32 %v4160, 4
      %v4162 = vmul.u32 %v4161, 18
      %v4163 = vsub.s32 %v4139, %v4162
      %v4164 = vsub.s32 0, %v4163
      %v4165 = vsel %vm4137, %v4164, %v4163
      %vm4166 = vcmp.lt.s32.totalorder %v3868, 0
      %v4167 = vsub.s32 0, %v3868
      %v4168 = vsel %vm4166, %v4167, %v3868
      %v4169 = vand.u32 %v4168, 65535
      %v4170 = vshrl.u32 %v4168, 16
      %v4172 = vmul.u32 %v4169, 14564
      %v4173 = vmul.u32 %v4169, 58254
      %v4174 = vmul.u32 %v4170, 14564
      %v4175 = vmul.u32 %v4170, 58254
      %v4176 = vshll.u32 %v4173, 16
      %v4177 = vshrl.u32 %v4173, 16
      %v4178 = vshll.u32 %v4174, 16
      %v4179 = vshrl.u32 %v4174, 16
      %vm4180 = vc.u32 %v4172, %v4176
      %v4181 = vsel %vm4180, 1, 0
      %v4182 = vadd.s32 %v4172, %v4176
      %v4183 = vadd.s32 %v4175, %v4181
      %vm4184 = vc.u32 %v4182, %v4178
      %v4185 = vsel %vm4184, 1, 0
      %v4186 = vadd.s32 %v4182, %v4178
      %v4187 = vadd.s32 %v4183, %v4185
      %v4188 = vadd.s32 %v4187, %v4177
      %v4189 = vadd.s32 %v4188, %v4179
      %v4190 = vshrl.u32 %v4189, 4
      %v4191 = vmul.u32 %v4190, 18
      %v4192 = vsub.s32 %v4168, %v4191
      %v4193 = vsub.s32 0, %v4192
      %v4194 = vsel %vm4166, %v4193, %v4192
      %vm4195 = vcmp.lt.s32.totalorder %v3869, 0
      %v4196 = vsub.s32 0, %v3869
      %v4197 = vsel %vm4195, %v4196, %v3869
      %v4198 = vand.u32 %v4197, 65535
      %v4199 = vshrl.u32 %v4197, 16
      %v4201 = vmul.u32 %v4198, 14564
      %v4202 = vmul.u32 %v4198, 58254
      %v4203 = vmul.u32 %v4199, 14564
      %v4204 = vmul.u32 %v4199, 58254
      %v4205 = vshll.u32 %v4202, 16
      %v4206 = vshrl.u32 %v4202, 16
      %v4207 = vshll.u32 %v4203, 16
      %v4208 = vshrl.u32 %v4203, 16
      %vm4209 = vc.u32 %v4201, %v4205
      %v4210 = vsel %vm4209, 1, 0
      %v4211 = vadd.s32 %v4201, %v4205
      %v4212 = vadd.s32 %v4204, %v4210
      %vm4213 = vc.u32 %v4211, %v4207
      %v4214 = vsel %vm4213, 1, 0
      %v4215 = vadd.s32 %v4211, %v4207
      %v4216 = vadd.s32 %v4212, %v4214
      %v4217 = vadd.s32 %v4216, %v4206
      %v4218 = vadd.s32 %v4217, %v4208
      %v4219 = vshrl.u32 %v4218, 4
      %v4220 = vmul.u32 %v4219, 18
      %v4221 = vsub.s32 %v4197, %v4220
      %v4222 = vsub.s32 0, %v4221
      %v4223 = vsel %vm4195, %v4222, %v4221
      %vm4224 = vcmp.lt.s32.totalorder %v3870, 0
      %v4225 = vsub.s32 0, %v3870
      %v4226 = vsel %vm4224, %v4225, %v3870
      %v4227 = vand.u32 %v4226, 65535
      %v4228 = vshrl.u32 %v4226, 16
      %v4230 = vmul.u32 %v4227, 14564
      %v4231 = vmul.u32 %v4227, 58254
      %v4232 = vmul.u32 %v4228, 14564
      %v4233 = vmul.u32 %v4228, 58254
      %v4234 = vshll.u32 %v4231, 16
      %v4235 = vshrl.u32 %v4231, 16
      %v4236 = vshll.u32 %v4232, 16
      %v4237 = vshrl.u32 %v4232, 16
      %vm4238 = vc.u32 %v4230, %v4234
      %v4239 = vsel %vm4238, 1, 0
      %v4240 = vadd.s32 %v4230, %v4234
      %v4241 = vadd.s32 %v4233, %v4239
      %vm4242 = vc.u32 %v4240, %v4236
      %v4243 = vsel %vm4242, 1, 0
      %v4244 = vadd.s32 %v4240, %v4236
      %v4245 = vadd.s32 %v4241, %v4243
      %v4246 = vadd.s32 %v4245, %v4235
      %v4247 = vadd.s32 %v4246, %v4237
      %v4248 = vshrl.u32 %v4247, 4
      %v4249 = vmul.u32 %v4248, 18
      %v4250 = vsub.s32 %v4226, %v4249
      %v4251 = vsub.s32 0, %v4250
      %v4252 = vsel %vm4224, %v4251, %v4250
      %vm4253 = vcmp.lt.s32.totalorder %v3871, 0
      %v4254 = vsub.s32 0, %v3871
      %v4255 = vsel %vm4253, %v4254, %v3871
      %v4256 = vand.u32 %v4255, 65535
      %v4257 = vshrl.u32 %v4255, 16
      %v4259 = vmul.u32 %v4256, 14564
      %v4260 = vmul.u32 %v4256, 58254
      %v4261 = vmul.u32 %v4257, 14564
      %v4262 = vmul.u32 %v4257, 58254
      %v4263 = vshll.u32 %v4260, 16
      %v4264 = vshrl.u32 %v4260, 16
      %v4265 = vshll.u32 %v4261, 16
      %v4266 = vshrl.u32 %v4261, 16
      %vm4267 = vc.u32 %v4259, %v4263
      %v4268 = vsel %vm4267, 1, 0
      %v4269 = vadd.s32 %v4259, %v4263
      %v4270 = vadd.s32 %v4262, %v4268
      %vm4271 = vc.u32 %v4269, %v4265
      %v4272 = vsel %vm4271, 1, 0
      %v4273 = vadd.s32 %v4269, %v4265
      %v4274 = vadd.s32 %v4270, %v4272
      %v4275 = vadd.s32 %v4274, %v4264
      %v4276 = vadd.s32 %v4275, %v4266
      %v4277 = vshrl.u32 %v4276, 4
      %v4278 = vmul.u32 %v4277, 18
      %v4279 = vsub.s32 %v4255, %v4278
      %v4280 = vsub.s32 0, %v4279
      %v4281 = vsel %vm4253, %v4280, %v4279
      %vm4282 = vcmp.lt.s32.totalorder %v3872, 0
      %v4283 = vsub.s32 0, %v3872
      %v4284 = vsel %vm4282, %v4283, %v3872
      %v4285 = vand.u32 %v4284, 65535
      %v4286 = vshrl.u32 %v4284, 16
      %v4288 = vmul.u32 %v4285, 14564
      %v4289 = vmul.u32 %v4285, 58254
      %v4290 = vmul.u32 %v4286, 14564
      %v4291 = vmul.u32 %v4286, 58254
      %v4292 = vshll.u32 %v4289, 16
      %v4293 = vshrl.u32 %v4289, 16
      %v4294 = vshll.u32 %v4290, 16
      %v4295 = vshrl.u32 %v4290, 16
      %vm4296 = vc.u32 %v4288, %v4292
      %v4297 = vsel %vm4296, 1, 0
      %v4298 = vadd.s32 %v4288, %v4292
      %v4299 = vadd.s32 %v4291, %v4297
      %vm4300 = vc.u32 %v4298, %v4294
      %v4301 = vsel %vm4300, 1, 0
      %v4302 = vadd.s32 %v4298, %v4294
      %v4303 = vadd.s32 %v4299, %v4301
      %v4304 = vadd.s32 %v4303, %v4293
      %v4305 = vadd.s32 %v4304, %v4295
      %v4306 = vshrl.u32 %v4305, 4
      %v4307 = vmul.u32 %v4306, 18
      %v4308 = vsub.s32 %v4284, %v4307
      %v4309 = vsub.s32 0, %v4308
      %v4310 = vsel %vm4282, %v4309, %v4308
      %vm4311 = vcmp.lt.s32.totalorder %v3873, 0
      %v4312 = vsub.s32 0, %v3873
      %v4313 = vsel %vm4311, %v4312, %v3873
      %v4314 = vand.u32 %v4313, 65535
      %v4315 = vshrl.u32 %v4313, 16
      %v4317 = vmul.u32 %v4314, 14564
      %v4318 = vmul.u32 %v4314, 58254
      %v4319 = vmul.u32 %v4315, 14564
      %v4320 = vmul.u32 %v4315, 58254
      %v4321 = vshll.u32 %v4318, 16
      %v4322 = vshrl.u32 %v4318, 16
      %v4323 = vshll.u32 %v4319, 16
      %v4324 = vshrl.u32 %v4319, 16
      %vm4325 = vc.u32 %v4317, %v4321
      %v4326 = vsel %vm4325, 1, 0
      %v4327 = vadd.s32 %v4317, %v4321
      %v4328 = vadd.s32 %v4320, %v4326
      %vm4329 = vc.u32 %v4327, %v4323
      %v4330 = vsel %vm4329, 1, 0
      %v4331 = vadd.s32 %v4327, %v4323
      %v4332 = vadd.s32 %v4328, %v4330
      %v4333 = vadd.s32 %v4332, %v4322
      %v4334 = vadd.s32 %v4333, %v4324
      %v4335 = vshrl.u32 %v4334, 4
      %v4336 = vmul.u32 %v4335, 18
      %v4337 = vsub.s32 %v4313, %v4336
      %v4338 = vsub.s32 0, %v4337
      %v4339 = vsel %vm4311, %v4338, %v4337
      %vm4340 = vcmp.lt.s32.totalorder %v3874, 0
      %v4341 = vsub.s32 0, %v3874
      %v4342 = vsel %vm4340, %v4341, %v3874
      %v4343 = vand.u32 %v4342, 65535
      %v4344 = vshrl.u32 %v4342, 16
      %v4346 = vmul.u32 %v4343, 14564
      %v4347 = vmul.u32 %v4343, 58254
      %v4348 = vmul.u32 %v4344, 14564
      %v4349 = vmul.u32 %v4344, 58254
      %v4350 = vshll.u32 %v4347, 16
      %v4351 = vshrl.u32 %v4347, 16
      %v4352 = vshll.u32 %v4348, 16
      %v4353 = vshrl.u32 %v4348, 16
      %vm4354 = vc.u32 %v4346, %v4350
      %v4355 = vsel %vm4354, 1, 0
      %v4356 = vadd.s32 %v4346, %v4350
      %v4357 = vadd.s32 %v4349, %v4355
      %vm4358 = vc.u32 %v4356, %v4352
      %v4359 = vsel %vm4358, 1, 0
      %v4360 = vadd.s32 %v4356, %v4352
      %v4361 = vadd.s32 %v4357, %v4359
      %v4362 = vadd.s32 %v4361, %v4351
      %v4363 = vadd.s32 %v4362, %v4353
      %v4364 = vshrl.u32 %v4363, 4
      %v4365 = vmul.u32 %v4364, 18
      %v4366 = vsub.s32 %v4342, %v4365
      %v4367 = vsub.s32 0, %v4366
      %v4368 = vsel %vm4340, %v4367, %v4366
      %vm4369 = vcmp.lt.s32.totalorder %v3875, 0
      %v4370 = vsub.s32 0, %v3875
      %v4371 = vsel %vm4369, %v4370, %v3875
      %v4372 = vand.u32 %v4371, 65535
      %v4373 = vshrl.u32 %v4371, 16
      %v4375 = vmul.u32 %v4372, 14564
      %v4376 = vmul.u32 %v4372, 58254
      %v4377 = vmul.u32 %v4373, 14564
      %v4378 = vmul.u32 %v4373, 58254
      %v4379 = vshll.u32 %v4376, 16
      %v4380 = vshrl.u32 %v4376, 16
      %v4381 = vshll.u32 %v4377, 16
      %v4382 = vshrl.u32 %v4377, 16
      %vm4383 = vc.u32 %v4375, %v4379
      %v4384 = vsel %vm4383, 1, 0
      %v4385 = vadd.s32 %v4375, %v4379
      %v4386 = vadd.s32 %v4378, %v4384
      %vm4387 = vc.u32 %v4385, %v4381
      %v4388 = vsel %vm4387, 1, 0
      %v4389 = vadd.s32 %v4385, %v4381
      %v4390 = vadd.s32 %v4386, %v4388
      %v4391 = vadd.s32 %v4390, %v4380
      %v4392 = vadd.s32 %v4391, %v4382
      %v4393 = vshrl.u32 %v4392, 4
      %v4394 = vmul.u32 %v4393, 18
      %v4395 = vsub.s32 %v4371, %v4394
      %v4396 = vsub.s32 0, %v4395
      %v4397 = vsel %vm4369, %v4396, %v4395
      %vm4398 = vcmp.ne.s32.totalorder %v3904, 0
      %vm4399 = vcmp.ne.s32.totalorder %v3933, 0
      %vm4400 = vcmp.ne.s32.totalorder %v3962, 0
      %vm4401 = vcmp.ne.s32.totalorder %v3991, 0
      %vm4402 = vcmp.ne.s32.totalorder %v4020, 0
      %vm4403 = vcmp.ne.s32.totalorder %v4049, 0
      %vm4404 = vcmp.ne.s32.totalorder %v4078, 0
      %vm4405 = vcmp.ne.s32.totalorder %v4107, 0
      %vm4406 = vcmp.ne.s32.totalorder %v4136, 0
      %vm4407 = vcmp.ne.s32.totalorder %v4165, 0
      %vm4408 = vcmp.ne.s32.totalorder %v4194, 0
      %vm4409 = vcmp.ne.s32.totalorder %v4223, 0
      %vm4410 = vcmp.ne.s32.totalorder %v4252, 0
      %vm4411 = vcmp.ne.s32.totalorder %v4281, 0
      %vm4412 = vcmp.ne.s32.totalorder %v4310, 0
      %vm4413 = vcmp.ne.s32.totalorder %v4339, 0
      %vm4414 = vcmp.ne.s32.totalorder %v4368, 0
      %vm4415 = vcmp.ne.s32.totalorder %v4397, 0
      %vm4416 = vcmp.lt.s32.totalorder %v3904, 0
      %vm4417 = vcmp.lt.s32.totalorder %v3933, 0
      %vm4418 = vcmp.lt.s32.totalorder %v3962, 0
      %vm4419 = vcmp.lt.s32.totalorder %v3991, 0
      %vm4420 = vcmp.lt.s32.totalorder %v4020, 0
      %vm4421 = vcmp.lt.s32.totalorder %v4049, 0
      %vm4422 = vcmp.lt.s32.totalorder %v4078, 0
      %vm4423 = vcmp.lt.s32.totalorder %v4107, 0
      %vm4424 = vcmp.lt.s32.totalorder %v4136, 0
      %vm4425 = vcmp.lt.s32.totalorder %v4165, 0
      %vm4426 = vcmp.lt.s32.totalorder %v4194, 0
      %vm4427 = vcmp.lt.s32.totalorder %v4223, 0
      %vm4428 = vcmp.lt.s32.totalorder %v4252, 0
      %vm4429 = vcmp.lt.s32.totalorder %v4281, 0
      %vm4430 = vcmp.lt.s32.totalorder %v4310, 0
      %vm4431 = vcmp.lt.s32.totalorder %v4339, 0
      %vm4432 = vcmp.lt.s32.totalorder %v4368, 0
      %vm4433 = vcmp.lt.s32.totalorder %v4397, 0
      %vm4434 = vmand %vm4416, %vm4398
      %vm4435 = vmand %vm4417, %vm4399
      %vm4436 = vmand %vm4418, %vm4400
      %vm4437 = vmand %vm4419, %vm4401
      %vm4438 = vmand %vm4420, %vm4402
      %vm4439 = vmand %vm4421, %vm4403
      %vm4440 = vmand %vm4422, %vm4404
      %vm4441 = vmand %vm4423, %vm4405
      %vm4442 = vmand %vm4424, %vm4406
      %vm4443 = vmand %vm4425, %vm4407
      %vm4444 = vmand %vm4426, %vm4408
      %vm4445 = vmand %vm4427, %vm4409
      %vm4446 = vmand %vm4428, %vm4410
      %vm4447 = vmand %vm4429, %vm4411
      %vm4448 = vmand %vm4430, %vm4412
      %vm4449 = vmand %vm4431, %vm4413
      %vm4450 = vmand %vm4432, %vm4414
      %vm4451 = vmand %vm4433, %vm4415
      %v4452 = vadd.s32 %v3904, 18
      %v4453 = vadd.s32 %v3933, 18
      %v4454 = vadd.s32 %v3962, 18
      %v4455 = vadd.s32 %v3991, 18
      %v4456 = vadd.s32 %v4020, 18
      %v4457 = vadd.s32 %v4049, 18
      %v4458 = vadd.s32 %v4078, 18
      %v4459 = vadd.s32 %v4107, 18
      %v4460 = vadd.s32 %v4136, 18
      %v4461 = vadd.s32 %v4165, 18
      %v4462 = vadd.s32 %v4194, 18
      %v4463 = vadd.s32 %v4223, 18
      %v4464 = vadd.s32 %v4252, 18
      %v4465 = vadd.s32 %v4281, 18
      %v4466 = vadd.s32 %v4310, 18
      %v4467 = vadd.s32 %v4339, 18
      %v4468 = vadd.s32 %v4368, 18
      %v4469 = vadd.s32 %v4397, 18
      %v4470 = vsel %vm4434, %v4452, %v3904
      %v4471 = vsel %vm4435, %v4453, %v3933
      %v4472 = vsel %vm4436, %v4454, %v3962
      %v4473 = vsel %vm4437, %v4455, %v3991
      %v4474 = vsel %vm4438, %v4456, %v4020
      %v4475 = vsel %vm4439, %v4457, %v4049
      %v4476 = vsel %vm4440, %v4458, %v4078
      %v4477 = vsel %vm4441, %v4459, %v4107
      %v4478 = vsel %vm4442, %v4460, %v4136
      %v4479 = vsel %vm4443, %v4461, %v4165
      %v4480 = vsel %vm4444, %v4462, %v4194
      %v4481 = vsel %vm4445, %v4463, %v4223
      %v4482 = vsel %vm4446, %v4464, %v4252
      %v4483 = vsel %vm4447, %v4465, %v4281
      %v4484 = vsel %vm4448, %v4466, %v4310
      %v4485 = vsel %vm4449, %v4467, %v4339
      %v4486 = vsel %vm4450, %v4468, %v4368
      %v4487 = vsel %vm4451, %v4469, %v4397
      %vm4488 = vcmp.lt.s32.totalorder %v4470, 16
      %vm4489 = vcmp.lt.s32.totalorder %v4471, 16
      %vm4490 = vcmp.lt.s32.totalorder %v4472, 16
      %vm4491 = vcmp.lt.s32.totalorder %v4473, 16
      %vm4492 = vcmp.lt.s32.totalorder %v4474, 16
      %vm4493 = vcmp.lt.s32.totalorder %v4475, 16
      %vm4494 = vcmp.lt.s32.totalorder %v4476, 16
      %vm4495 = vcmp.lt.s32.totalorder %v4477, 16
      %vm4496 = vcmp.lt.s32.totalorder %v4478, 16
      %vm4497 = vcmp.lt.s32.totalorder %v4479, 16
      %vm4498 = vcmp.lt.s32.totalorder %v4480, 16
      %vm4499 = vcmp.lt.s32.totalorder %v4481, 16
      %vm4500 = vcmp.lt.s32.totalorder %v4482, 16
      %vm4501 = vcmp.lt.s32.totalorder %v4483, 16
      %vm4502 = vcmp.lt.s32.totalorder %v4484, 16
      %vm4503 = vcmp.lt.s32.totalorder %v4485, 16
      %vm4504 = vcmp.lt.s32.totalorder %v4486, 16
      %vm4505 = vcmp.lt.s32.totalorder %v4487, 16
      %v4506 = vsel %vm4488, 1, 0
      %v4507 = vsel %vm4489, 1, 0
      %v4508 = vsel %vm4490, 1, 0
      %v4509 = vsel %vm4491, 1, 0
      %v4510 = vsel %vm4492, 1, 0
      %v4511 = vsel %vm4493, 1, 0
      %v4512 = vsel %vm4494, 1, 0
      %v4513 = vsel %vm4495, 1, 0
      %v4514 = vsel %vm4496, 1, 0
      %v4515 = vsel %vm4497, 1, 0
      %v4516 = vsel %vm4498, 1, 0
      %v4517 = vsel %vm4499, 1, 0
      %v4518 = vsel %vm4500, 1, 0
      %v4519 = vsel %vm4501, 1, 0
      %v4520 = vsel %vm4502, 1, 0
      %v4521 = vsel %vm4503, 1, 0
      %v4522 = vsel %vm4504, 1, 0
      %v4523 = vsel %vm4505, 1, 0
      %vm4524 = vcmp.eq.s32.totalorder %v4506, 1
      %vm4525 = vcmp.eq.s32.totalorder %v4507, 1
      %vm4526 = vcmp.eq.s32.totalorder %v4508, 1
      %vm4527 = vcmp.eq.s32.totalorder %v4509, 1
      %vm4528 = vcmp.eq.s32.totalorder %v4510, 1
      %vm4529 = vcmp.eq.s32.totalorder %v4511, 1
      %vm4530 = vcmp.eq.s32.totalorder %v4512, 1
      %vm4531 = vcmp.eq.s32.totalorder %v4513, 1
      %vm4532 = vcmp.eq.s32.totalorder %v4514, 1
      %vm4533 = vcmp.eq.s32.totalorder %v4515, 1
      %vm4534 = vcmp.eq.s32.totalorder %v4516, 1
      %vm4535 = vcmp.eq.s32.totalorder %v4517, 1
      %vm4536 = vcmp.eq.s32.totalorder %v4518, 1
      %vm4537 = vcmp.eq.s32.totalorder %v4519, 1
      %vm4538 = vcmp.eq.s32.totalorder %v4520, 1
      %vm4539 = vcmp.eq.s32.totalorder %v4521, 1
      %vm4540 = vcmp.eq.s32.totalorder %v4522, 1
      %vm4541 = vcmp.eq.s32.totalorder %v4523, 1
      %v4542 = vsel %vm4524, %v3839, 0.0
      %v4543 = vsel %vm4525, %v3840, 0.0
      %v4544 = vsel %vm4526, %v3841, 0.0
      %v4545 = vsel %vm4527, %v3842, 0.0
      %v4546 = vsel %vm4528, %v3843, 0.0
      %v4547 = vsel %vm4529, %v3844, 0.0
      %v4548 = vsel %vm4530, %v3845, 0.0
      %v4549 = vsel %vm4531, %v3846, 0.0
      %v4550 = vsel %vm4532, %v3847, 0.0
      %v4551 = vsel %vm4533, %v3848, 0.0
      %v4552 = vsel %vm4534, %v3849, 0.0
      %v4553 = vsel %vm4535, %v3850, 0.0
      %v4554 = vsel %vm4536, %v3851, 0.0
      %v4555 = vsel %vm4537, %v3852, 0.0
      %v4556 = vsel %vm4538, %v3853, 0.0
      %v4557 = vsel %vm4539, %v3854, 0.0
      %v4558 = vsel %vm4540, %v3855, 0.0
      %v4559 = vsel %vm4541, %v3856, 0.0
      %v4560 = vpack.c.bf16 %v4542, %v4542
      %v4561 = vpack.c.bf16 %v4543, %v4543
      %v4562 = vpack.c.bf16 %v4544, %v4544
      %v4563 = vpack.c.bf16 %v4545, %v4545
      %v4564 = vpack.c.bf16 %v4546, %v4546
      %v4565 = vpack.c.bf16 %v4547, %v4547
      %v4566 = vpack.c.bf16 %v4548, %v4548
      %v4567 = vpack.c.bf16 %v4549, %v4549
      %v4568 = vpack.c.bf16 %v4550, %v4550
      %v4569 = vpack.c.bf16 %v4551, %v4551
      %v4570 = vpack.c.bf16 %v4552, %v4552
      %v4571 = vpack.c.bf16 %v4553, %v4553
      %v4572 = vpack.c.bf16 %v4554, %v4554
      %v4573 = vpack.c.bf16 %v4555, %v4555
      %v4574 = vpack.c.bf16 %v4556, %v4556
      %v4575 = vpack.c.bf16 %v4557, %v4557
      %v4576 = vpack.c.bf16 %v4558, %v4558
      %v4577 = vpack.c.bf16 %v4559, %v4559
      %v4579 = vshrl.u32 %v4560, 16
      %v4581 = vrot.slane %v4579, 6
      %v4582 = vshll.u32 %v4560, 16
      %v4584 = vrot.slane %v4582, 7
      %v4585 = vor.u32 %v4581, %v4584
      %v4586 = vrot.slane %v4585, 4
      %v4588 = vshrl.u32 %v4561, 16
      %v4590 = vrot.slane %v4588, 6
      %v4591 = vshll.u32 %v4561, 16
      %v4593 = vrot.slane %v4591, 7
      %v4594 = vor.u32 %v4590, %v4593
      %v4595 = vsel %vm2794, %v4586, %v4594
      %v4596 = vrot.slane %v4594, 4
      %v4598 = vshrl.u32 %v4562, 16
      %v4600 = vrot.slane %v4598, 6
      %v4601 = vshll.u32 %v4562, 16
      %v4603 = vrot.slane %v4601, 7
      %v4604 = vor.u32 %v4600, %v4603
      %v4605 = vsel %vm2794, %v4596, %v4604
      %v4606 = vrot.slane %v4604, 4
      %v4608 = vshrl.u32 %v4563, 16
      %v4610 = vrot.slane %v4608, 6
      %v4611 = vshll.u32 %v4563, 16
      %v4613 = vrot.slane %v4611, 7
      %v4614 = vor.u32 %v4610, %v4613
      %v4615 = vsel %vm2794, %v4606, %v4614
      %v4616 = vrot.slane %v4614, 4
      %v4618 = vshrl.u32 %v4564, 16
      %v4620 = vrot.slane %v4618, 6
      %v4621 = vshll.u32 %v4564, 16
      %v4623 = vrot.slane %v4621, 7
      %v4624 = vor.u32 %v4620, %v4623
      %v4625 = vsel %vm2794, %v4616, %v4624
      %v4626 = vrot.slane %v4624, 4
      %v4628 = vshrl.u32 %v4565, 16
      %v4630 = vrot.slane %v4628, 6
      %v4631 = vshll.u32 %v4565, 16
      %v4633 = vrot.slane %v4631, 7
      %v4634 = vor.u32 %v4630, %v4633
      %v4635 = vsel %vm2794, %v4626, %v4634
      %v4636 = vrot.slane %v4634, 4
      %v4638 = vshrl.u32 %v4566, 16
      %v4640 = vrot.slane %v4638, 6
      %v4641 = vshll.u32 %v4566, 16
      %v4643 = vrot.slane %v4641, 7
      %v4644 = vor.u32 %v4640, %v4643
      %v4645 = vsel %vm2794, %v4636, %v4644
      %v4646 = vrot.slane %v4644, 4
      %v4648 = vshrl.u32 %v4567, 16
      %v4650 = vrot.slane %v4648, 6
      %v4651 = vshll.u32 %v4567, 16
      %v4653 = vrot.slane %v4651, 7
      %v4654 = vor.u32 %v4650, %v4653
      %v4655 = vsel %vm2794, %v4646, %v4654
      %v4656 = vrot.slane %v4654, 4
      %v4658 = vshrl.u32 %v4568, 16
      %v4660 = vrot.slane %v4658, 6
      %v4661 = vshll.u32 %v4568, 16
      %v4663 = vrot.slane %v4661, 7
      %v4664 = vor.u32 %v4660, %v4663
      %v4665 = vsel %vm2794, %v4656, %v4664
      %v4666 = vrot.slane %v4664, 4
      %v4668 = vshrl.u32 %v4569, 16
      %v4670 = vrot.slane %v4668, 6
      %v4671 = vshll.u32 %v4569, 16
      %v4673 = vrot.slane %v4671, 7
      %v4674 = vor.u32 %v4670, %v4673
      %v4675 = vsel %vm2794, %v4666, %v4674
      %v4676 = vrot.slane %v4674, 4
      %v4678 = vshrl.u32 %v4570, 16
      %v4680 = vrot.slane %v4678, 6
      %v4681 = vshll.u32 %v4570, 16
      %v4683 = vrot.slane %v4681, 7
      %v4684 = vor.u32 %v4680, %v4683
      %v4685 = vsel %vm2794, %v4676, %v4684
      %v4686 = vrot.slane %v4684, 4
      %v4688 = vshrl.u32 %v4571, 16
      %v4690 = vrot.slane %v4688, 6
      %v4691 = vshll.u32 %v4571, 16
      %v4693 = vrot.slane %v4691, 7
      %v4694 = vor.u32 %v4690, %v4693
      %v4695 = vsel %vm2794, %v4686, %v4694
      %v4696 = vrot.slane %v4694, 4
      %v4698 = vshrl.u32 %v4572, 16
      %v4700 = vrot.slane %v4698, 6
      %v4701 = vshll.u32 %v4572, 16
      %v4703 = vrot.slane %v4701, 7
      %v4704 = vor.u32 %v4700, %v4703
      %v4705 = vsel %vm2794, %v4696, %v4704
      %v4706 = vrot.slane %v4704, 4
      %v4708 = vshrl.u32 %v4573, 16
      %v4710 = vrot.slane %v4708, 6
      %v4711 = vshll.u32 %v4573, 16
      %v4713 = vrot.slane %v4711, 7
      %v4714 = vor.u32 %v4710, %v4713
      %v4715 = vsel %vm2794, %v4706, %v4714
      %v4716 = vrot.slane %v4714, 4
      %v4718 = vshrl.u32 %v4574, 16
      %v4720 = vrot.slane %v4718, 6
      %v4721 = vshll.u32 %v4574, 16
      %v4723 = vrot.slane %v4721, 7
      %v4724 = vor.u32 %v4720, %v4723
      %v4725 = vsel %vm2794, %v4716, %v4724
      %v4726 = vrot.slane %v4724, 4
      %v4728 = vshrl.u32 %v4575, 16
      %v4730 = vrot.slane %v4728, 6
      %v4731 = vshll.u32 %v4575, 16
      %v4733 = vrot.slane %v4731, 7
      %v4734 = vor.u32 %v4730, %v4733
      %v4735 = vsel %vm2794, %v4726, %v4734
      %v4736 = vrot.slane %v4734, 4
      %v4738 = vshrl.u32 %v4576, 16
      %v4740 = vrot.slane %v4738, 6
      %v4741 = vshll.u32 %v4576, 16
      %v4743 = vrot.slane %v4741, 7
      %v4744 = vor.u32 %v4740, %v4743
      %v4745 = vsel %vm2794, %v4736, %v4744
      %v4746 = vrot.slane %v4744, 4
      %v4748 = vshrl.u32 %v4577, 16
      %v4750 = vrot.slane %v4748, 6
      %v4751 = vshll.u32 %v4577, 16
      %v4753 = vrot.slane %v4751, 7
      %v4754 = vor.u32 %v4750, %v4753
      %v4755 = vsel %vm2794, %v4746, %v4754
      %v4756 = vrot.slane %v4754, 4
      %vm4776 = vcmask 60417
      %vm4777 = vsmask.f32 7942
      %vm4778 = vmand %vm4776, %vm4777
      %v4779 = vld [vmem:[#allocation3 + $0x8] sm:$0xe]
      %v4780 = vsel %vm4778, %v4585, %v4779
      %4781 = vst [vmem:[#allocation3 + $0x8] sm:$0xe] %v4780
      %4782 = vst.msk [vmem:[#allocation3 + $0xc] sm:$0xf] %vm298, %v4595
      %4783 = vst.msk [vmem:[#allocation3 + $0x10] sm:$0xf] %vm298, %v4605
      %4784 = vst.msk [vmem:[#allocation3 + $0x14] sm:$0xf] %vm298, %v4615
      %4785 = vst.msk [vmem:[#allocation3 + $0x18] sm:$0xf] %vm298, %v4625
      %4786 = vst.msk [vmem:[#allocation3 + $0x1c] sm:$0xf] %vm298, %v4635
      %4787 = vst.msk [vmem:[#allocation3 + $0x20] sm:$0xf] %vm298, %v4645
      %4788 = vst.msk [vmem:[#allocation3 + $0x24] sm:$0xf] %vm298, %v4655
      %4789 = vst.msk [vmem:[#allocation3 + $0x28] sm:$0xf] %vm298, %v4665
      %4790 = vst.msk [vmem:[#allocation3 + $0x2c] sm:$0xf] %vm298, %v4675
      %4791 = vst.msk [vmem:[#allocation3 + $0x30] sm:$0xf] %vm298, %v4685
      %4792 = vst.msk [vmem:[#allocation3 + $0x34] sm:$0xf] %vm298, %v4695
      %4793 = vst.msk [vmem:[#allocation3 + $0x38] sm:$0xf] %vm298, %v4705
      %4794 = vst.msk [vmem:[#allocation3 + $0x3c] sm:$0xf] %vm298, %v4715
      %4795 = vst.msk [vmem:[#allocation3 + $0x40] sm:$0xf] %vm298, %v4725
      %4796 = vst.msk [vmem:[#allocation3 + $0x44] sm:$0xf] %vm298, %v4735
      %4797 = vst.msk [vmem:[#allocation3 + $0x48] sm:$0xf] %vm298, %v4745
      %4798 = vst.msk [vmem:[#allocation3 + $0x4c] sm:$0xf] %vm298, %v4755
      %vm4799 = vcmask 58368
      %vm4800 = vmand %vm4799, %vm2792
      %v4801 = vld [vmem:[#allocation3 + $0x50] sm:$0x3]
      %v4802 = vsel %vm4800, %v4756, %v4801
      %4803 = vst [vmem:[#allocation3 + $0x50] sm:$0x3] %v4802
      %v4804 = vld [vmem:[#allocation2 + $0x48] sm:$0xf]
      %v4805 = vld [vmem:[#allocation2 + $0x4c] sm:$0xf]
      %v4806 = vld [vmem:[#allocation2 + $0x50] sm:$0xf]
      %v4807 = vld [vmem:[#allocation2 + $0x54] sm:$0xf]
      %v4808 = vld [vmem:[#allocation2 + $0x58] sm:$0xf]
      %v4809 = vld [vmem:[#allocation2 + $0x5c] sm:$0xf]
      %v4810 = vld [vmem:[#allocation2 + $0x60] sm:$0xf]
      %v4811 = vld [vmem:[#allocation2 + $0x64] sm:$0xf]
      %v4812 = vld [vmem:[#allocation2 + $0x68] sm:$0xf]
      %v4813 = vld [vmem:[#allocation2 + $0x6c] sm:$0xf]
      %v4814 = vld [vmem:[#allocation2 + $0x70] sm:$0xf]
      %v4815 = vld [vmem:[#allocation2 + $0x74] sm:$0xf]
      %v4816 = vld [vmem:[#allocation2 + $0x78] sm:$0xf]
      %v4817 = vld [vmem:[#allocation2 + $0x7c] sm:$0xf]
      %v4818 = vld [vmem:[#allocation2 + $0x80] sm:$0xf]
      %v4819 = vld [vmem:[#allocation2 + $0x84] sm:$0xf]
      %v4820 = vld [vmem:[#allocation2 + $0x88] sm:$0xf]
      %v4821 = vld [vmem:[#allocation2 + $0x8c] sm:$0xf]
      %v4822 = vld [vmem:[%s1] sm:$0xf]
      %v4823 = vld [vmem:[%s1 + $0x4] sm:$0xf]
      %v4824 = vld [vmem:[%s1 + $0x8] sm:$0xf]
      %v4825 = vld [vmem:[%s1 + $0xc] sm:$0xf]
      %v4826 = vld [vmem:[%s1 + $0x10] sm:$0xf]
      %v4827 = vld [vmem:[%s1 + $0x14] sm:$0xf]
      %v4828 = vld [vmem:[%s1 + $0x18] sm:$0xf]
      %v4829 = vld [vmem:[%s1 + $0x1c] sm:$0xf]
      %v4830 = vld [vmem:[%s1 + $0x20] sm:$0xf]
      %v4831 = vld [vmem:[%s1 + $0x24] sm:$0xf]
      %v4832 = vld [vmem:[%s1 + $0x28] sm:$0xf]
      %v4833 = vld [vmem:[%s1 + $0x2c] sm:$0xf]
      %v4834 = vld [vmem:[%s1 + $0x30] sm:$0xf]
      %v4835 = vld [vmem:[%s1 + $0x34] sm:$0xf]
      %v4836 = vld [vmem:[%s1 + $0x38] sm:$0xf]
      %v4837 = vld [vmem:[%s1 + $0x3c] sm:$0xf]
      %v4838 = vld [vmem:[%s2] sm:$0x1]
      %v4840 = vperm.slane %v4838, 0
      %v4860 = vunpack.c.l.b16 %v4804
      %v4861 = vunpack.c.l.b16 %v4805
      %v4862 = vunpack.c.l.b16 %v4806
      %v4863 = vunpack.c.l.b16 %v4807
      %v4864 = vunpack.c.l.b16 %v4808
      %v4865 = vunpack.c.l.b16 %v4809
      %v4866 = vunpack.c.l.b16 %v4810
      %v4867 = vunpack.c.l.b16 %v4811
      %v4868 = vunpack.c.l.b16 %v4812
      %v4869 = vunpack.c.l.b16 %v4813
      %v4870 = vunpack.c.l.b16 %v4814
      %v4871 = vunpack.c.l.b16 %v4815
      %v4872 = vunpack.c.l.b16 %v4816
      %v4873 = vunpack.c.l.b16 %v4817
      %v4874 = vunpack.c.l.b16 %v4818
      %v4875 = vunpack.c.l.b16 %v4819
      %v4876 = vunpack.c.l.b16 %v4820
      %v4877 = vunpack.c.l.b16 %v4821
      %v4878 = vpack.c.b16 %v4861, %v4860
      %v4879 = vpack.c.b16 %v4863, %v4862
      %v4880 = vpack.c.b16 %v4865, %v4864
      %v4881 = vpack.c.b16 %v4867, %v4866
      %v4882 = vpack.c.b16 %v4869, %v4868
      %v4883 = vpack.c.b16 %v4871, %v4870
      %v4884 = vpack.c.b16 %v4873, %v4872
      %v4885 = vpack.c.b16 %v4875, %v4874
      %v4886 = vpack.c.b16 %v4877, %v4876
      %v4912 = vunpack.c.l.b16 %v4822
      %v4913 = vunpack.c.l.b16 %v4823
      %v4914 = vunpack.c.l.b16 %v4824
      %v4915 = vunpack.c.l.b16 %v4825
      %v4916 = vunpack.c.l.b16 %v4826
      %v4917 = vunpack.c.l.b16 %v4827
      %v4918 = vunpack.c.l.b16 %v4828
      %v4919 = vunpack.c.l.b16 %v4829
      %v4920 = vunpack.c.l.b16 %v4830
      %v4921 = vunpack.c.l.b16 %v4831
      %v4922 = vunpack.c.l.b16 %v4832
      %v4923 = vunpack.c.l.b16 %v4833
      %v4924 = vunpack.c.l.b16 %v4834
      %v4925 = vunpack.c.l.b16 %v4835
      %v4926 = vunpack.c.l.b16 %v4836
      %v4927 = vunpack.c.l.b16 %v4837
      %v4928 = vpack.c.b16 %v4913, %v4912
      %v4929 = vpack.c.b16 %v4915, %v4914
      %v4930 = vpack.c.b16 %v4917, %v4916
      %v4931 = vpack.c.b16 %v4919, %v4918
      %v4932 = vpack.c.b16 %v4921, %v4920
      %v4933 = vpack.c.b16 %v4923, %v4922
      %v4934 = vpack.c.b16 %v4925, %v4924
      %v4935 = vpack.c.b16 %v4927, %v4926
      %4944 = vmatpush.bf16.msra.mxu0 %v4935
      %4945 = vmatpush.bf16.msra.mxu0 %v4934
      %4946 = vmatpush.bf16.msra.mxu0 %v4933
      %4947 = vmatpush.bf16.msra.mxu0 %v4932
      %4948 = vmatpush.bf16.msra.mxu0 %v4931
      %4949 = vmatpush.bf16.msra.mxu0 %v4930
      %4950 = vmatpush.bf16.msra.mxu0 %v4929
      %4951 = vmatpush.bf16.msra.mxu0 %v4928
      %4952 = vmatmul.bf16.gmra.mxu0 %v4878
      %v4953 = vpop.f32.mrf.mxu0
      %v4954 = vadd.f32 %v4840, %v4953
      %v4955 = vpop.f32.mrf.mxu0
      %v4956 = vadd.f32 %v4840, %v4955
      %4957 = vmatmul.bf16.gmra.mxu0 %v4879
      %v4958 = vpop.f32.mrf.mxu0
      %v4959 = vadd.f32 %v4840, %v4958
      %v4960 = vpop.f32.mrf.mxu0
      %v4961 = vadd.f32 %v4840, %v4960
      %4962 = vmatmul.bf16.gmra.mxu0 %v4880
      %v4963 = vpop.f32.mrf.mxu0
      %v4964 = vadd.f32 %v4840, %v4963
      %v4965 = vpop.f32.mrf.mxu0
      %v4966 = vadd.f32 %v4840, %v4965
      %4967 = vmatmul.bf16.gmra.mxu0 %v4881
      %v4968 = vpop.f32.mrf.mxu0
      %v4969 = vadd.f32 %v4840, %v4968
      %v4970 = vpop.f32.mrf.mxu0
      %v4971 = vadd.f32 %v4840, %v4970
      %4972 = vmatmul.bf16.gmra.mxu0 %v4882
      %v4973 = vpop.f32.mrf.mxu0
      %v4974 = vadd.f32 %v4840, %v4973
      %v4975 = vpop.f32.mrf.mxu0
      %v4976 = vadd.f32 %v4840, %v4975
      %4977 = vmatmul.bf16.gmra.mxu0 %v4883
      %v4978 = vpop.f32.mrf.mxu0
      %v4979 = vadd.f32 %v4840, %v4978
      %v4980 = vpop.f32.mrf.mxu0
      %v4981 = vadd.f32 %v4840, %v4980
      %4982 = vmatmul.bf16.gmra.mxu0 %v4884
      %v4983 = vpop.f32.mrf.mxu0
      %v4984 = vadd.f32 %v4840, %v4983
      %v4985 = vpop.f32.mrf.mxu0
      %v4986 = vadd.f32 %v4840, %v4985
      %4987 = vmatmul.bf16.gmra.mxu0 %v4885
      %v4988 = vpop.f32.mrf.mxu0
      %v4989 = vadd.f32 %v4840, %v4988
      %v4990 = vpop.f32.mrf.mxu0
      %v4991 = vadd.f32 %v4840, %v4990
      %4992 = vmatmul.bf16.gmra.mxu0 %v4886
      %v4993 = vpop.f32.mrf.mxu0
      %v4994 = vadd.f32 %v4840, %v4993
      %v4995 = vpop.f32.mrf.mxu0
      %v4996 = vadd.f32 %v4840, %v4995
      %4997 = vdwg.mxu0
      %v4998 = vmax.f32 %v4954, 0.0
      %v4999 = vmax.f32 %v4956, 0.0
      %v5000 = vmax.f32 %v4959, 0.0
      %v5001 = vmax.f32 %v4961, 0.0
      %v5002 = vmax.f32 %v4964, 0.0
      %v5003 = vmax.f32 %v4966, 0.0
      %v5004 = vmax.f32 %v4969, 0.0
      %v5005 = vmax.f32 %v4971, 0.0
      %v5006 = vmax.f32 %v4974, 0.0
      %v5007 = vmax.f32 %v4976, 0.0
      %v5008 = vmax.f32 %v4979, 0.0
      %v5009 = vmax.f32 %v4981, 0.0
      %v5010 = vmax.f32 %v4984, 0.0
      %v5011 = vmax.f32 %v4986, 0.0
      %v5012 = vmax.f32 %v4989, 0.0
      %v5013 = vmax.f32 %v4991, 0.0
      %v5014 = vmax.f32 %v4994, 0.0
      %v5015 = vmax.f32 %v4996, 0.0
      %v5016 = vadd.s32 %v3858, 144
      %v5017 = vadd.s32 %v3859, 144
      %v5018 = vadd.s32 %v3860, 144
      %v5019 = vadd.s32 %v3861, 144
      %v5020 = vadd.s32 %v3862, 144
      %v5021 = vadd.s32 %v3863, 144
      %v5022 = vadd.s32 %v3864, 144
      %v5023 = vadd.s32 %v3865, 144
      %v5024 = vadd.s32 %v3866, 144
      %v5025 = vadd.s32 %v3867, 144
      %v5026 = vadd.s32 %v3868, 144
      %v5027 = vadd.s32 %v3869, 144
      %v5028 = vadd.s32 %v3870, 144
      %v5029 = vadd.s32 %v3871, 144
      %v5030 = vadd.s32 %v3872, 144
      %v5031 = vadd.s32 %v3873, 144
      %v5032 = vadd.s32 %v3874, 144
      %v5033 = vadd.s32 %v3875, 144
      %vm5034 = vcmp.lt.s32.totalorder %v5016, 0
      %v5035 = vsub.s32 0, %v5016
      %v5036 = vsel %vm5034, %v5035, %v5016
      %v5037 = vand.u32 %v5036, 65535
      %v5038 = vshrl.u32 %v5036, 16
      %v5040 = vmul.u32 %v5037, 14564
      %v5041 = vmul.u32 %v5037, 58254
      %v5042 = vmul.u32 %v5038, 14564
      %v5043 = vmul.u32 %v5038, 58254
      %v5044 = vshll.u32 %v5041, 16
      %v5045 = vshrl.u32 %v5041, 16
      %v5046 = vshll.u32 %v5042, 16
      %v5047 = vshrl.u32 %v5042, 16
      %vm5048 = vc.u32 %v5040, %v5044
      %v5049 = vsel %vm5048, 1, 0
      %v5050 = vadd.s32 %v5040, %v5044
      %v5051 = vadd.s32 %v5043, %v5049
      %vm5052 = vc.u32 %v5050, %v5046
      %v5053 = vsel %vm5052, 1, 0
      %v5054 = vadd.s32 %v5050, %v5046
      %v5055 = vadd.s32 %v5051, %v5053
      %v5056 = vadd.s32 %v5055, %v5045
      %v5057 = vadd.s32 %v5056, %v5047
      %v5058 = vshrl.u32 %v5057, 4
      %v5059 = vmul.u32 %v5058, 18
      %v5060 = vsub.s32 %v5036, %v5059
      %v5061 = vsub.s32 0, %v5060
      %v5062 = vsel %vm5034, %v5061, %v5060
      %vm5063 = vcmp.lt.s32.totalorder %v5017, 0
      %v5064 = vsub.s32 0, %v5017
      %v5065 = vsel %vm5063, %v5064, %v5017
      %v5066 = vand.u32 %v5065, 65535
      %v5067 = vshrl.u32 %v5065, 16
      %v5069 = vmul.u32 %v5066, 14564
      %v5070 = vmul.u32 %v5066, 58254
      %v5071 = vmul.u32 %v5067, 14564
      %v5072 = vmul.u32 %v5067, 58254
      %v5073 = vshll.u32 %v5070, 16
      %v5074 = vshrl.u32 %v5070, 16
      %v5075 = vshll.u32 %v5071, 16
      %v5076 = vshrl.u32 %v5071, 16
      %vm5077 = vc.u32 %v5069, %v5073
      %v5078 = vsel %vm5077, 1, 0
      %v5079 = vadd.s32 %v5069, %v5073
      %v5080 = vadd.s32 %v5072, %v5078
      %vm5081 = vc.u32 %v5079, %v5075
      %v5082 = vsel %vm5081, 1, 0
      %v5083 = vadd.s32 %v5079, %v5075
      %v5084 = vadd.s32 %v5080, %v5082
      %v5085 = vadd.s32 %v5084, %v5074
      %v5086 = vadd.s32 %v5085, %v5076
      %v5087 = vshrl.u32 %v5086, 4
      %v5088 = vmul.u32 %v5087, 18
      %v5089 = vsub.s32 %v5065, %v5088
      %v5090 = vsub.s32 0, %v5089
      %v5091 = vsel %vm5063, %v5090, %v5089
      %vm5092 = vcmp.lt.s32.totalorder %v5018, 0
      %v5093 = vsub.s32 0, %v5018
      %v5094 = vsel %vm5092, %v5093, %v5018
      %v5095 = vand.u32 %v5094, 65535
      %v5096 = vshrl.u32 %v5094, 16
      %v5098 = vmul.u32 %v5095, 14564
      %v5099 = vmul.u32 %v5095, 58254
      %v5100 = vmul.u32 %v5096, 14564
      %v5101 = vmul.u32 %v5096, 58254
      %v5102 = vshll.u32 %v5099, 16
      %v5103 = vshrl.u32 %v5099, 16
      %v5104 = vshll.u32 %v5100, 16
      %v5105 = vshrl.u32 %v5100, 16
      %vm5106 = vc.u32 %v5098, %v5102
      %v5107 = vsel %vm5106, 1, 0
      %v5108 = vadd.s32 %v5098, %v5102
      %v5109 = vadd.s32 %v5101, %v5107
      %vm5110 = vc.u32 %v5108, %v5104
      %v5111 = vsel %vm5110, 1, 0
      %v5112 = vadd.s32 %v5108, %v5104
      %v5113 = vadd.s32 %v5109, %v5111
      %v5114 = vadd.s32 %v5113, %v5103
      %v5115 = vadd.s32 %v5114, %v5105
      %v5116 = vshrl.u32 %v5115, 4
      %v5117 = vmul.u32 %v5116, 18
      %v5118 = vsub.s32 %v5094, %v5117
      %v5119 = vsub.s32 0, %v5118
      %v5120 = vsel %vm5092, %v5119, %v5118
      %vm5121 = vcmp.lt.s32.totalorder %v5019, 0
      %v5122 = vsub.s32 0, %v5019
      %v5123 = vsel %vm5121, %v5122, %v5019
      %v5124 = vand.u32 %v5123, 65535
      %v5125 = vshrl.u32 %v5123, 16
      %v5127 = vmul.u32 %v5124, 14564
      %v5128 = vmul.u32 %v5124, 58254
      %v5129 = vmul.u32 %v5125, 14564
      %v5130 = vmul.u32 %v5125, 58254
      %v5131 = vshll.u32 %v5128, 16
      %v5132 = vshrl.u32 %v5128, 16
      %v5133 = vshll.u32 %v5129, 16
      %v5134 = vshrl.u32 %v5129, 16
      %vm5135 = vc.u32 %v5127, %v5131
      %v5136 = vsel %vm5135, 1, 0
      %v5137 = vadd.s32 %v5127, %v5131
      %v5138 = vadd.s32 %v5130, %v5136
      %vm5139 = vc.u32 %v5137, %v5133
      %v5140 = vsel %vm5139, 1, 0
      %v5141 = vadd.s32 %v5137, %v5133
      %v5142 = vadd.s32 %v5138, %v5140
      %v5143 = vadd.s32 %v5142, %v5132
      %v5144 = vadd.s32 %v5143, %v5134
      %v5145 = vshrl.u32 %v5144, 4
      %v5146 = vmul.u32 %v5145, 18
      %v5147 = vsub.s32 %v5123, %v5146
      %v5148 = vsub.s32 0, %v5147
      %v5149 = vsel %vm5121, %v5148, %v5147
      %vm5150 = vcmp.lt.s32.totalorder %v5020, 0
      %v5151 = vsub.s32 0, %v5020
      %v5152 = vsel %vm5150, %v5151, %v5020
      %v5153 = vand.u32 %v5152, 65535
      %v5154 = vshrl.u32 %v5152, 16
      %v5156 = vmul.u32 %v5153, 14564
      %v5157 = vmul.u32 %v5153, 58254
      %v5158 = vmul.u32 %v5154, 14564
      %v5159 = vmul.u32 %v5154, 58254
      %v5160 = vshll.u32 %v5157, 16
      %v5161 = vshrl.u32 %v5157, 16
      %v5162 = vshll.u32 %v5158, 16
      %v5163 = vshrl.u32 %v5158, 16
      %vm5164 = vc.u32 %v5156, %v5160
      %v5165 = vsel %vm5164, 1, 0
      %v5166 = vadd.s32 %v5156, %v5160
      %v5167 = vadd.s32 %v5159, %v5165
      %vm5168 = vc.u32 %v5166, %v5162
      %v5169 = vsel %vm5168, 1, 0
      %v5170 = vadd.s32 %v5166, %v5162
      %v5171 = vadd.s32 %v5167, %v5169
      %v5172 = vadd.s32 %v5171, %v5161
      %v5173 = vadd.s32 %v5172, %v5163
      %v5174 = vshrl.u32 %v5173, 4
      %v5175 = vmul.u32 %v5174, 18
      %v5176 = vsub.s32 %v5152, %v5175
      %v5177 = vsub.s32 0, %v5176
      %v5178 = vsel %vm5150, %v5177, %v5176
      %vm5179 = vcmp.lt.s32.totalorder %v5021, 0
      %v5180 = vsub.s32 0, %v5021
      %v5181 = vsel %vm5179, %v5180, %v5021
      %v5182 = vand.u32 %v5181, 65535
      %v5183 = vshrl.u32 %v5181, 16
      %v5185 = vmul.u32 %v5182, 14564
      %v5186 = vmul.u32 %v5182, 58254
      %v5187 = vmul.u32 %v5183, 14564
      %v5188 = vmul.u32 %v5183, 58254
      %v5189 = vshll.u32 %v5186, 16
      %v5190 = vshrl.u32 %v5186, 16
      %v5191 = vshll.u32 %v5187, 16
      %v5192 = vshrl.u32 %v5187, 16
      %vm5193 = vc.u32 %v5185, %v5189
      %v5194 = vsel %vm5193, 1, 0
      %v5195 = vadd.s32 %v5185, %v5189
      %v5196 = vadd.s32 %v5188, %v5194
      %vm5197 = vc.u32 %v5195, %v5191
      %v5198 = vsel %vm5197, 1, 0
      %v5199 = vadd.s32 %v5195, %v5191
      %v5200 = vadd.s32 %v5196, %v5198
      %v5201 = vadd.s32 %v5200, %v5190
      %v5202 = vadd.s32 %v5201, %v5192
      %v5203 = vshrl.u32 %v5202, 4
      %v5204 = vmul.u32 %v5203, 18
      %v5205 = vsub.s32 %v5181, %v5204
      %v5206 = vsub.s32 0, %v5205
      %v5207 = vsel %vm5179, %v5206, %v5205
      %vm5208 = vcmp.lt.s32.totalorder %v5022, 0
      %v5209 = vsub.s32 0, %v5022
      %v5210 = vsel %vm5208, %v5209, %v5022
      %v5211 = vand.u32 %v5210, 65535
      %v5212 = vshrl.u32 %v5210, 16
      %v5214 = vmul.u32 %v5211, 14564
      %v5215 = vmul.u32 %v5211, 58254
      %v5216 = vmul.u32 %v5212, 14564
      %v5217 = vmul.u32 %v5212, 58254
      %v5218 = vshll.u32 %v5215, 16
      %v5219 = vshrl.u32 %v5215, 16
      %v5220 = vshll.u32 %v5216, 16
      %v5221 = vshrl.u32 %v5216, 16
      %vm5222 = vc.u32 %v5214, %v5218
      %v5223 = vsel %vm5222, 1, 0
      %v5224 = vadd.s32 %v5214, %v5218
      %v5225 = vadd.s32 %v5217, %v5223
      %vm5226 = vc.u32 %v5224, %v5220
      %v5227 = vsel %vm5226, 1, 0
      %v5228 = vadd.s32 %v5224, %v5220
      %v5229 = vadd.s32 %v5225, %v5227
      %v5230 = vadd.s32 %v5229, %v5219
      %v5231 = vadd.s32 %v5230, %v5221
      %v5232 = vshrl.u32 %v5231, 4
      %v5233 = vmul.u32 %v5232, 18
      %v5234 = vsub.s32 %v5210, %v5233
      %v5235 = vsub.s32 0, %v5234
      %v5236 = vsel %vm5208, %v5235, %v5234
      %vm5237 = vcmp.lt.s32.totalorder %v5023, 0
      %v5238 = vsub.s32 0, %v5023
      %v5239 = vsel %vm5237, %v5238, %v5023
      %v5240 = vand.u32 %v5239, 65535
      %v5241 = vshrl.u32 %v5239, 16
      %v5243 = vmul.u32 %v5240, 14564
      %v5244 = vmul.u32 %v5240, 58254
      %v5245 = vmul.u32 %v5241, 14564
      %v5246 = vmul.u32 %v5241, 58254
      %v5247 = vshll.u32 %v5244, 16
      %v5248 = vshrl.u32 %v5244, 16
      %v5249 = vshll.u32 %v5245, 16
      %v5250 = vshrl.u32 %v5245, 16
      %vm5251 = vc.u32 %v5243, %v5247
      %v5252 = vsel %vm5251, 1, 0
      %v5253 = vadd.s32 %v5243, %v5247
      %v5254 = vadd.s32 %v5246, %v5252
      %vm5255 = vc.u32 %v5253, %v5249
      %v5256 = vsel %vm5255, 1, 0
      %v5257 = vadd.s32 %v5253, %v5249
      %v5258 = vadd.s32 %v5254, %v5256
      %v5259 = vadd.s32 %v5258, %v5248
      %v5260 = vadd.s32 %v5259, %v5250
      %v5261 = vshrl.u32 %v5260, 4
      %v5262 = vmul.u32 %v5261, 18
      %v5263 = vsub.s32 %v5239, %v5262
      %v5264 = vsub.s32 0, %v5263
      %v5265 = vsel %vm5237, %v5264, %v5263
      %vm5266 = vcmp.lt.s32.totalorder %v5024, 0
      %v5267 = vsub.s32 0, %v5024
      %v5268 = vsel %vm5266, %v5267, %v5024
      %v5269 = vand.u32 %v5268, 65535
      %v5270 = vshrl.u32 %v5268, 16
      %v5272 = vmul.u32 %v5269, 14564
      %v5273 = vmul.u32 %v5269, 58254
      %v5274 = vmul.u32 %v5270, 14564
      %v5275 = vmul.u32 %v5270, 58254
      %v5276 = vshll.u32 %v5273, 16
      %v5277 = vshrl.u32 %v5273, 16
      %v5278 = vshll.u32 %v5274, 16
      %v5279 = vshrl.u32 %v5274, 16
      %vm5280 = vc.u32 %v5272, %v5276
      %v5281 = vsel %vm5280, 1, 0
      %v5282 = vadd.s32 %v5272, %v5276
      %v5283 = vadd.s32 %v5275, %v5281
      %vm5284 = vc.u32 %v5282, %v5278
      %v5285 = vsel %vm5284, 1, 0
      %v5286 = vadd.s32 %v5282, %v5278
      %v5287 = vadd.s32 %v5283, %v5285
      %v5288 = vadd.s32 %v5287, %v5277
      %v5289 = vadd.s32 %v5288, %v5279
      %v5290 = vshrl.u32 %v5289, 4
      %v5291 = vmul.u32 %v5290, 18
      %v5292 = vsub.s32 %v5268, %v5291
      %v5293 = vsub.s32 0, %v5292
      %v5294 = vsel %vm5266, %v5293, %v5292
      %vm5295 = vcmp.lt.s32.totalorder %v5025, 0
      %v5296 = vsub.s32 0, %v5025
      %v5297 = vsel %vm5295, %v5296, %v5025
      %v5298 = vand.u32 %v5297, 65535
      %v5299 = vshrl.u32 %v5297, 16
      %v5301 = vmul.u32 %v5298, 14564
      %v5302 = vmul.u32 %v5298, 58254
      %v5303 = vmul.u32 %v5299, 14564
      %v5304 = vmul.u32 %v5299, 58254
      %v5305 = vshll.u32 %v5302, 16
      %v5306 = vshrl.u32 %v5302, 16
      %v5307 = vshll.u32 %v5303, 16
      %v5308 = vshrl.u32 %v5303, 16
      %vm5309 = vc.u32 %v5301, %v5305
      %v5310 = vsel %vm5309, 1, 0
      %v5311 = vadd.s32 %v5301, %v5305
      %v5312 = vadd.s32 %v5304, %v5310
      %vm5313 = vc.u32 %v5311, %v5307
      %v5314 = vsel %vm5313, 1, 0
      %v5315 = vadd.s32 %v5311, %v5307
      %v5316 = vadd.s32 %v5312, %v5314
      %v5317 = vadd.s32 %v5316, %v5306
      %v5318 = vadd.s32 %v5317, %v5308
      %v5319 = vshrl.u32 %v5318, 4
      %v5320 = vmul.u32 %v5319, 18
      %v5321 = vsub.s32 %v5297, %v5320
      %v5322 = vsub.s32 0, %v5321
      %v5323 = vsel %vm5295, %v5322, %v5321
      %vm5324 = vcmp.lt.s32.totalorder %v5026, 0
      %v5325 = vsub.s32 0, %v5026
      %v5326 = vsel %vm5324, %v5325, %v5026
      %v5327 = vand.u32 %v5326, 65535
      %v5328 = vshrl.u32 %v5326, 16
      %v5330 = vmul.u32 %v5327, 14564
      %v5331 = vmul.u32 %v5327, 58254
      %v5332 = vmul.u32 %v5328, 14564
      %v5333 = vmul.u32 %v5328, 58254
      %v5334 = vshll.u32 %v5331, 16
      %v5335 = vshrl.u32 %v5331, 16
      %v5336 = vshll.u32 %v5332, 16
      %v5337 = vshrl.u32 %v5332, 16
      %vm5338 = vc.u32 %v5330, %v5334
      %v5339 = vsel %vm5338, 1, 0
      %v5340 = vadd.s32 %v5330, %v5334
      %v5341 = vadd.s32 %v5333, %v5339
      %vm5342 = vc.u32 %v5340, %v5336
      %v5343 = vsel %vm5342, 1, 0
      %v5344 = vadd.s32 %v5340, %v5336
      %v5345 = vadd.s32 %v5341, %v5343
      %v5346 = vadd.s32 %v5345, %v5335
      %v5347 = vadd.s32 %v5346, %v5337
      %v5348 = vshrl.u32 %v5347, 4
      %v5349 = vmul.u32 %v5348, 18
      %v5350 = vsub.s32 %v5326, %v5349
      %v5351 = vsub.s32 0, %v5350
      %v5352 = vsel %vm5324, %v5351, %v5350
      %vm5353 = vcmp.lt.s32.totalorder %v5027, 0
      %v5354 = vsub.s32 0, %v5027
      %v5355 = vsel %vm5353, %v5354, %v5027
      %v5356 = vand.u32 %v5355, 65535
      %v5357 = vshrl.u32 %v5355, 16
      %v5359 = vmul.u32 %v5356, 14564
      %v5360 = vmul.u32 %v5356, 58254
      %v5361 = vmul.u32 %v5357, 14564
      %v5362 = vmul.u32 %v5357, 58254
      %v5363 = vshll.u32 %v5360, 16
      %v5364 = vshrl.u32 %v5360, 16
      %v5365 = vshll.u32 %v5361, 16
      %v5366 = vshrl.u32 %v5361, 16
      %vm5367 = vc.u32 %v5359, %v5363
      %v5368 = vsel %vm5367, 1, 0
      %v5369 = vadd.s32 %v5359, %v5363
      %v5370 = vadd.s32 %v5362, %v5368
      %vm5371 = vc.u32 %v5369, %v5365
      %v5372 = vsel %vm5371, 1, 0
      %v5373 = vadd.s32 %v5369, %v5365
      %v5374 = vadd.s32 %v5370, %v5372
      %v5375 = vadd.s32 %v5374, %v5364
      %v5376 = vadd.s32 %v5375, %v5366
      %v5377 = vshrl.u32 %v5376, 4
      %v5378 = vmul.u32 %v5377, 18
      %v5379 = vsub.s32 %v5355, %v5378
      %v5380 = vsub.s32 0, %v5379
      %v5381 = vsel %vm5353, %v5380, %v5379
      %vm5382 = vcmp.lt.s32.totalorder %v5028, 0
      %v5383 = vsub.s32 0, %v5028
      %v5384 = vsel %vm5382, %v5383, %v5028
      %v5385 = vand.u32 %v5384, 65535
      %v5386 = vshrl.u32 %v5384, 16
      %v5388 = vmul.u32 %v5385, 14564
      %v5389 = vmul.u32 %v5385, 58254
      %v5390 = vmul.u32 %v5386, 14564
      %v5391 = vmul.u32 %v5386, 58254
      %v5392 = vshll.u32 %v5389, 16
      %v5393 = vshrl.u32 %v5389, 16
      %v5394 = vshll.u32 %v5390, 16
      %v5395 = vshrl.u32 %v5390, 16
      %vm5396 = vc.u32 %v5388, %v5392
      %v5397 = vsel %vm5396, 1, 0
      %v5398 = vadd.s32 %v5388, %v5392
      %v5399 = vadd.s32 %v5391, %v5397
      %vm5400 = vc.u32 %v5398, %v5394
      %v5401 = vsel %vm5400, 1, 0
      %v5402 = vadd.s32 %v5398, %v5394
      %v5403 = vadd.s32 %v5399, %v5401
      %v5404 = vadd.s32 %v5403, %v5393
      %v5405 = vadd.s32 %v5404, %v5395
      %v5406 = vshrl.u32 %v5405, 4
      %v5407 = vmul.u32 %v5406, 18
      %v5408 = vsub.s32 %v5384, %v5407
      %v5409 = vsub.s32 0, %v5408
      %v5410 = vsel %vm5382, %v5409, %v5408
      %vm5411 = vcmp.lt.s32.totalorder %v5029, 0
      %v5412 = vsub.s32 0, %v5029
      %v5413 = vsel %vm5411, %v5412, %v5029
      %v5414 = vand.u32 %v5413, 65535
      %v5415 = vshrl.u32 %v5413, 16
      %v5417 = vmul.u32 %v5414, 14564
      %v5418 = vmul.u32 %v5414, 58254
      %v5419 = vmul.u32 %v5415, 14564
      %v5420 = vmul.u32 %v5415, 58254
      %v5421 = vshll.u32 %v5418, 16
      %v5422 = vshrl.u32 %v5418, 16
      %v5423 = vshll.u32 %v5419, 16
      %v5424 = vshrl.u32 %v5419, 16
      %vm5425 = vc.u32 %v5417, %v5421
      %v5426 = vsel %vm5425, 1, 0
      %v5427 = vadd.s32 %v5417, %v5421
      %v5428 = vadd.s32 %v5420, %v5426
      %vm5429 = vc.u32 %v5427, %v5423
      %v5430 = vsel %vm5429, 1, 0
      %v5431 = vadd.s32 %v5427, %v5423
      %v5432 = vadd.s32 %v5428, %v5430
      %v5433 = vadd.s32 %v5432, %v5422
      %v5434 = vadd.s32 %v5433, %v5424
      %v5435 = vshrl.u32 %v5434, 4
      %v5436 = vmul.u32 %v5435, 18
      %v5437 = vsub.s32 %v5413, %v5436
      %v5438 = vsub.s32 0, %v5437
      %v5439 = vsel %vm5411, %v5438, %v5437
      %vm5440 = vcmp.lt.s32.totalorder %v5030, 0
      %v5441 = vsub.s32 0, %v5030
      %v5442 = vsel %vm5440, %v5441, %v5030
      %v5443 = vand.u32 %v5442, 65535
      %v5444 = vshrl.u32 %v5442, 16
      %v5446 = vmul.u32 %v5443, 14564
      %v5447 = vmul.u32 %v5443, 58254
      %v5448 = vmul.u32 %v5444, 14564
      %v5449 = vmul.u32 %v5444, 58254
      %v5450 = vshll.u32 %v5447, 16
      %v5451 = vshrl.u32 %v5447, 16
      %v5452 = vshll.u32 %v5448, 16
      %v5453 = vshrl.u32 %v5448, 16
      %vm5454 = vc.u32 %v5446, %v5450
      %v5455 = vsel %vm5454, 1, 0
      %v5456 = vadd.s32 %v5446, %v5450
      %v5457 = vadd.s32 %v5449, %v5455
      %vm5458 = vc.u32 %v5456, %v5452
      %v5459 = vsel %vm5458, 1, 0
      %v5460 = vadd.s32 %v5456, %v5452
      %v5461 = vadd.s32 %v5457, %v5459
      %v5462 = vadd.s32 %v5461, %v5451
      %v5463 = vadd.s32 %v5462, %v5453
      %v5464 = vshrl.u32 %v5463, 4
      %v5465 = vmul.u32 %v5464, 18
      %v5466 = vsub.s32 %v5442, %v5465
      %v5467 = vsub.s32 0, %v5466
      %v5468 = vsel %vm5440, %v5467, %v5466
      %vm5469 = vcmp.lt.s32.totalorder %v5031, 0
      %v5470 = vsub.s32 0, %v5031
      %v5471 = vsel %vm5469, %v5470, %v5031
      %v5472 = vand.u32 %v5471, 65535
      %v5473 = vshrl.u32 %v5471, 16
      %v5475 = vmul.u32 %v5472, 14564
      %v5476 = vmul.u32 %v5472, 58254
      %v5477 = vmul.u32 %v5473, 14564
      %v5478 = vmul.u32 %v5473, 58254
      %v5479 = vshll.u32 %v5476, 16
      %v5480 = vshrl.u32 %v5476, 16
      %v5481 = vshll.u32 %v5477, 16
      %v5482 = vshrl.u32 %v5477, 16
      %vm5483 = vc.u32 %v5475, %v5479
      %v5484 = vsel %vm5483, 1, 0
      %v5485 = vadd.s32 %v5475, %v5479
      %v5486 = vadd.s32 %v5478, %v5484
      %vm5487 = vc.u32 %v5485, %v5481
      %v5488 = vsel %vm5487, 1, 0
      %v5489 = vadd.s32 %v5485, %v5481
      %v5490 = vadd.s32 %v5486, %v5488
      %v5491 = vadd.s32 %v5490, %v5480
      %v5492 = vadd.s32 %v5491, %v5482
      %v5493 = vshrl.u32 %v5492, 4
      %v5494 = vmul.u32 %v5493, 18
      %v5495 = vsub.s32 %v5471, %v5494
      %v5496 = vsub.s32 0, %v5495
      %v5497 = vsel %vm5469, %v5496, %v5495
      %vm5498 = vcmp.lt.s32.totalorder %v5032, 0
      %v5499 = vsub.s32 0, %v5032
      %v5500 = vsel %vm5498, %v5499, %v5032
      %v5501 = vand.u32 %v5500, 65535
      %v5502 = vshrl.u32 %v5500, 16
      %v5504 = vmul.u32 %v5501, 14564
      %v5505 = vmul.u32 %v5501, 58254
      %v5506 = vmul.u32 %v5502, 14564
      %v5507 = vmul.u32 %v5502, 58254
      %v5508 = vshll.u32 %v5505, 16
      %v5509 = vshrl.u32 %v5505, 16
      %v5510 = vshll.u32 %v5506, 16
      %v5511 = vshrl.u32 %v5506, 16
      %vm5512 = vc.u32 %v5504, %v5508
      %v5513 = vsel %vm5512, 1, 0
      %v5514 = vadd.s32 %v5504, %v5508
      %v5515 = vadd.s32 %v5507, %v5513
      %vm5516 = vc.u32 %v5514, %v5510
      %v5517 = vsel %vm5516, 1, 0
      %v5518 = vadd.s32 %v5514, %v5510
      %v5519 = vadd.s32 %v5515, %v5517
      %v5520 = vadd.s32 %v5519, %v5509
      %v5521 = vadd.s32 %v5520, %v5511
      %v5522 = vshrl.u32 %v5521, 4
      %v5523 = vmul.u32 %v5522, 18
      %v5524 = vsub.s32 %v5500, %v5523
      %v5525 = vsub.s32 0, %v5524
      %v5526 = vsel %vm5498, %v5525, %v5524
      %vm5527 = vcmp.lt.s32.totalorder %v5033, 0
      %v5528 = vsub.s32 0, %v5033
      %v5529 = vsel %vm5527, %v5528, %v5033
      %v5530 = vand.u32 %v5529, 65535
      %v5531 = vshrl.u32 %v5529, 16
      %v5533 = vmul.u32 %v5530, 14564
      %v5534 = vmul.u32 %v5530, 58254
      %v5535 = vmul.u32 %v5531, 14564
      %v5536 = vmul.u32 %v5531, 58254
      %v5537 = vshll.u32 %v5534, 16
      %v5538 = vshrl.u32 %v5534, 16
      %v5539 = vshll.u32 %v5535, 16
      %v5540 = vshrl.u32 %v5535, 16
      %vm5541 = vc.u32 %v5533, %v5537
      %v5542 = vsel %vm5541, 1, 0
      %v5543 = vadd.s32 %v5533, %v5537
      %v5544 = vadd.s32 %v5536, %v5542
      %vm5545 = vc.u32 %v5543, %v5539
      %v5546 = vsel %vm5545, 1, 0
      %v5547 = vadd.s32 %v5543, %v5539
      %v5548 = vadd.s32 %v5544, %v5546
      %v5549 = vadd.s32 %v5548, %v5538
      %v5550 = vadd.s32 %v5549, %v5540
      %v5551 = vshrl.u32 %v5550, 4
      %v5552 = vmul.u32 %v5551, 18
      %v5553 = vsub.s32 %v5529, %v5552
      %v5554 = vsub.s32 0, %v5553
      %v5555 = vsel %vm5527, %v5554, %v5553
      %vm5556 = vcmp.ne.s32.totalorder %v5062, 0
      %vm5557 = vcmp.ne.s32.totalorder %v5091, 0
      %vm5558 = vcmp.ne.s32.totalorder %v5120, 0
      %vm5559 = vcmp.ne.s32.totalorder %v5149, 0
      %vm5560 = vcmp.ne.s32.totalorder %v5178, 0
      %vm5561 = vcmp.ne.s32.totalorder %v5207, 0
      %vm5562 = vcmp.ne.s32.totalorder %v5236, 0
      %vm5563 = vcmp.ne.s32.totalorder %v5265, 0
      %vm5564 = vcmp.ne.s32.totalorder %v5294, 0
      %vm5565 = vcmp.ne.s32.totalorder %v5323, 0
      %vm5566 = vcmp.ne.s32.totalorder %v5352, 0
      %vm5567 = vcmp.ne.s32.totalorder %v5381, 0
      %vm5568 = vcmp.ne.s32.totalorder %v5410, 0
      %vm5569 = vcmp.ne.s32.totalorder %v5439, 0
      %vm5570 = vcmp.ne.s32.totalorder %v5468, 0
      %vm5571 = vcmp.ne.s32.totalorder %v5497, 0
      %vm5572 = vcmp.ne.s32.totalorder %v5526, 0
      %vm5573 = vcmp.ne.s32.totalorder %v5555, 0
      %vm5574 = vcmp.lt.s32.totalorder %v5062, 0
      %vm5575 = vcmp.lt.s32.totalorder %v5091, 0
      %vm5576 = vcmp.lt.s32.totalorder %v5120, 0
      %vm5577 = vcmp.lt.s32.totalorder %v5149, 0
      %vm5578 = vcmp.lt.s32.totalorder %v5178, 0
      %vm5579 = vcmp.lt.s32.totalorder %v5207, 0
      %vm5580 = vcmp.lt.s32.totalorder %v5236, 0
      %vm5581 = vcmp.lt.s32.totalorder %v5265, 0
      %vm5582 = vcmp.lt.s32.totalorder %v5294, 0
      %vm5583 = vcmp.lt.s32.totalorder %v5323, 0
      %vm5584 = vcmp.lt.s32.totalorder %v5352, 0
      %vm5585 = vcmp.lt.s32.totalorder %v5381, 0
      %vm5586 = vcmp.lt.s32.totalorder %v5410, 0
      %vm5587 = vcmp.lt.s32.totalorder %v5439, 0
      %vm5588 = vcmp.lt.s32.totalorder %v5468, 0
      %vm5589 = vcmp.lt.s32.totalorder %v5497, 0
      %vm5590 = vcmp.lt.s32.totalorder %v5526, 0
      %vm5591 = vcmp.lt.s32.totalorder %v5555, 0
      %vm5592 = vmand %vm5574, %vm5556
      %vm5593 = vmand %vm5575, %vm5557
      %vm5594 = vmand %vm5576, %vm5558
      %vm5595 = vmand %vm5577, %vm5559
      %vm5596 = vmand %vm5578, %vm5560
      %vm5597 = vmand %vm5579, %vm5561
      %vm5598 = vmand %vm5580, %vm5562
      %vm5599 = vmand %vm5581, %vm5563
      %vm5600 = vmand %vm5582, %vm5564
      %vm5601 = vmand %vm5583, %vm5565
      %vm5602 = vmand %vm5584, %vm5566
      %vm5603 = vmand %vm5585, %vm5567
      %vm5604 = vmand %vm5586, %vm5568
      %vm5605 = vmand %vm5587, %vm5569
      %vm5606 = vmand %vm5588, %vm5570
      %vm5607 = vmand %vm5589, %vm5571
      %vm5608 = vmand %vm5590, %vm5572
      %vm5609 = vmand %vm5591, %vm5573
      %v5610 = vadd.s32 %v5062, 18
      %v5611 = vadd.s32 %v5091, 18
      %v5612 = vadd.s32 %v5120, 18
      %v5613 = vadd.s32 %v5149, 18
      %v5614 = vadd.s32 %v5178, 18
      %v5615 = vadd.s32 %v5207, 18
      %v5616 = vadd.s32 %v5236, 18
      %v5617 = vadd.s32 %v5265, 18
      %v5618 = vadd.s32 %v5294, 18
      %v5619 = vadd.s32 %v5323, 18
      %v5620 = vadd.s32 %v5352, 18
      %v5621 = vadd.s32 %v5381, 18
      %v5622 = vadd.s32 %v5410, 18
      %v5623 = vadd.s32 %v5439, 18
      %v5624 = vadd.s32 %v5468, 18
      %v5625 = vadd.s32 %v5497, 18
      %v5626 = vadd.s32 %v5526, 18
      %v5627 = vadd.s32 %v5555, 18
      %v5628 = vsel %vm5592, %v5610, %v5062
      %v5629 = vsel %vm5593, %v5611, %v5091
      %v5630 = vsel %vm5594, %v5612, %v5120
      %v5631 = vsel %vm5595, %v5613, %v5149
      %v5632 = vsel %vm5596, %v5614, %v5178
      %v5633 = vsel %vm5597, %v5615, %v5207
      %v5634 = vsel %vm5598, %v5616, %v5236
      %v5635 = vsel %vm5599, %v5617, %v5265
      %v5636 = vsel %vm5600, %v5618, %v5294
      %v5637 = vsel %vm5601, %v5619, %v5323
      %v5638 = vsel %vm5602, %v5620, %v5352
      %v5639 = vsel %vm5603, %v5621, %v5381
      %v5640 = vsel %vm5604, %v5622, %v5410
      %v5641 = vsel %vm5605, %v5623, %v5439
      %v5642 = vsel %vm5606, %v5624, %v5468
      %v5643 = vsel %vm5607, %v5625, %v5497
      %v5644 = vsel %vm5608, %v5626, %v5526
      %v5645 = vsel %vm5609, %v5627, %v5555
      %vm5646 = vcmp.lt.s32.totalorder %v5628, 16
      %vm5647 = vcmp.lt.s32.totalorder %v5629, 16
      %vm5648 = vcmp.lt.s32.totalorder %v5630, 16
      %vm5649 = vcmp.lt.s32.totalorder %v5631, 16
      %vm5650 = vcmp.lt.s32.totalorder %v5632, 16
      %vm5651 = vcmp.lt.s32.totalorder %v5633, 16
      %vm5652 = vcmp.lt.s32.totalorder %v5634, 16
      %vm5653 = vcmp.lt.s32.totalorder %v5635, 16
      %vm5654 = vcmp.lt.s32.totalorder %v5636, 16
      %vm5655 = vcmp.lt.s32.totalorder %v5637, 16
      %vm5656 = vcmp.lt.s32.totalorder %v5638, 16
      %vm5657 = vcmp.lt.s32.totalorder %v5639, 16
      %vm5658 = vcmp.lt.s32.totalorder %v5640, 16
      %vm5659 = vcmp.lt.s32.totalorder %v5641, 16
      %vm5660 = vcmp.lt.s32.totalorder %v5642, 16
      %vm5661 = vcmp.lt.s32.totalorder %v5643, 16
      %vm5662 = vcmp.lt.s32.totalorder %v5644, 16
      %vm5663 = vcmp.lt.s32.totalorder %v5645, 16
      %v5664 = vsel %vm5646, 1, 0
      %v5665 = vsel %vm5647, 1, 0
      %v5666 = vsel %vm5648, 1, 0
      %v5667 = vsel %vm5649, 1, 0
      %v5668 = vsel %vm5650, 1, 0
      %v5669 = vsel %vm5651, 1, 0
      %v5670 = vsel %vm5652, 1, 0
      %v5671 = vsel %vm5653, 1, 0
      %v5672 = vsel %vm5654, 1, 0
      %v5673 = vsel %vm5655, 1, 0
      %v5674 = vsel %vm5656, 1, 0
      %v5675 = vsel %vm5657, 1, 0
      %v5676 = vsel %vm5658, 1, 0
      %v5677 = vsel %vm5659, 1, 0
      %v5678 = vsel %vm5660, 1, 0
      %v5679 = vsel %vm5661, 1, 0
      %v5680 = vsel %vm5662, 1, 0
      %v5681 = vsel %vm5663, 1, 0
      %vm5682 = vcmp.eq.s32.totalorder %v5664, 1
      %vm5683 = vcmp.eq.s32.totalorder %v5665, 1
      %vm5684 = vcmp.eq.s32.totalorder %v5666, 1
      %vm5685 = vcmp.eq.s32.totalorder %v5667, 1
      %vm5686 = vcmp.eq.s32.totalorder %v5668, 1
      %vm5687 = vcmp.eq.s32.totalorder %v5669, 1
      %vm5688 = vcmp.eq.s32.totalorder %v5670, 1
      %vm5689 = vcmp.eq.s32.totalorder %v5671, 1
      %vm5690 = vcmp.eq.s32.totalorder %v5672, 1
      %vm5691 = vcmp.eq.s32.totalorder %v5673, 1
      %vm5692 = vcmp.eq.s32.totalorder %v5674, 1
      %vm5693 = vcmp.eq.s32.totalorder %v5675, 1
      %vm5694 = vcmp.eq.s32.totalorder %v5676, 1
      %vm5695 = vcmp.eq.s32.totalorder %v5677, 1
      %vm5696 = vcmp.eq.s32.totalorder %v5678, 1
      %vm5697 = vcmp.eq.s32.totalorder %v5679, 1
      %vm5698 = vcmp.eq.s32.totalorder %v5680, 1
      %vm5699 = vcmp.eq.s32.totalorder %v5681, 1
      %v5700 = vsel %vm5682, %v4998, 0.0
      %v5701 = vsel %vm5683, %v4999, 0.0
      %v5702 = vsel %vm5684, %v5000, 0.0
      %v5703 = vsel %vm5685, %v5001, 0.0
      %v5704 = vsel %vm5686, %v5002, 0.0
      %v5705 = vsel %vm5687, %v5003, 0.0
      %v5706 = vsel %vm5688, %v5004, 0.0
      %v5707 = vsel %vm5689, %v5005, 0.0
      %v5708 = vsel %vm5690, %v5006, 0.0
      %v5709 = vsel %vm5691, %v5007, 0.0
      %v5710 = vsel %vm5692, %v5008, 0.0
      %v5711 = vsel %vm5693, %v5009, 0.0
      %v5712 = vsel %vm5694, %v5010, 0.0
      %v5713 = vsel %vm5695, %v5011, 0.0
      %v5714 = vsel %vm5696, %v5012, 0.0
      %v5715 = vsel %vm5697, %v5013, 0.0
      %v5716 = vsel %vm5698, %v5014, 0.0
      %v5717 = vsel %vm5699, %v5015, 0.0
      %v5718 = vpack.c.bf16 %v5700, %v5700
      %v5719 = vpack.c.bf16 %v5701, %v5701
      %v5720 = vpack.c.bf16 %v5702, %v5702
      %v5721 = vpack.c.bf16 %v5703, %v5703
      %v5722 = vpack.c.bf16 %v5704, %v5704
      %v5723 = vpack.c.bf16 %v5705, %v5705
      %v5724 = vpack.c.bf16 %v5706, %v5706
      %v5725 = vpack.c.bf16 %v5707, %v5707
      %v5726 = vpack.c.bf16 %v5708, %v5708
      %v5727 = vpack.c.bf16 %v5709, %v5709
      %v5728 = vpack.c.bf16 %v5710, %v5710
      %v5729 = vpack.c.bf16 %v5711, %v5711
      %v5730 = vpack.c.bf16 %v5712, %v5712
      %v5731 = vpack.c.bf16 %v5713, %v5713
      %v5732 = vpack.c.bf16 %v5714, %v5714
      %v5733 = vpack.c.bf16 %v5715, %v5715
      %v5734 = vpack.c.bf16 %v5716, %v5716
      %v5735 = vpack.c.bf16 %v5717, %v5717
      %v5737 = vshrl.u32 %v5718, 16
      %v5739 = vrot.slane %v5737, 6
      %v5740 = vshll.u32 %v5718, 16
      %v5742 = vrot.slane %v5740, 7
      %v5743 = vor.u32 %v5739, %v5742
      %v5744 = vrot.slane %v5743, 4
      %v5746 = vshrl.u32 %v5719, 16
      %v5748 = vrot.slane %v5746, 6
      %v5749 = vshll.u32 %v5719, 16
      %v5751 = vrot.slane %v5749, 7
      %v5752 = vor.u32 %v5748, %v5751
      %v5753 = vsel %vm2794, %v5744, %v5752
      %v5754 = vrot.slane %v5752, 4
      %v5756 = vshrl.u32 %v5720, 16
      %v5758 = vrot.slane %v5756, 6
      %v5759 = vshll.u32 %v5720, 16
      %v5761 = vrot.slane %v5759, 7
      %v5762 = vor.u32 %v5758, %v5761
      %v5763 = vsel %vm2794, %v5754, %v5762
      %v5764 = vrot.slane %v5762, 4
      %v5766 = vshrl.u32 %v5721, 16
      %v5768 = vrot.slane %v5766, 6
      %v5769 = vshll.u32 %v5721, 16
      %v5771 = vrot.slane %v5769, 7
      %v5772 = vor.u32 %v5768, %v5771
      %v5773 = vsel %vm2794, %v5764, %v5772
      %v5774 = vrot.slane %v5772, 4
      %v5776 = vshrl.u32 %v5722, 16
      %v5778 = vrot.slane %v5776, 6
      %v5779 = vshll.u32 %v5722, 16
      %v5781 = vrot.slane %v5779, 7
      %v5782 = vor.u32 %v5778, %v5781
      %v5783 = vsel %vm2794, %v5774, %v5782
      %v5784 = vrot.slane %v5782, 4
      %v5786 = vshrl.u32 %v5723, 16
      %v5788 = vrot.slane %v5786, 6
      %v5789 = vshll.u32 %v5723, 16
      %v5791 = vrot.slane %v5789, 7
      %v5792 = vor.u32 %v5788, %v5791
      %v5793 = vsel %vm2794, %v5784, %v5792
      %v5794 = vrot.slane %v5792, 4
      %v5796 = vshrl.u32 %v5724, 16
      %v5798 = vrot.slane %v5796, 6
      %v5799 = vshll.u32 %v5724, 16
      %v5801 = vrot.slane %v5799, 7
      %v5802 = vor.u32 %v5798, %v5801
      %v5803 = vsel %vm2794, %v5794, %v5802
      %v5804 = vrot.slane %v5802, 4
      %v5806 = vshrl.u32 %v5725, 16
      %v5808 = vrot.slane %v5806, 6
      %v5809 = vshll.u32 %v5725, 16
      %v5811 = vrot.slane %v5809, 7
      %v5812 = vor.u32 %v5808, %v5811
      %v5813 = vsel %vm2794, %v5804, %v5812
      %v5814 = vrot.slane %v5812, 4
      %v5816 = vshrl.u32 %v5726, 16
      %v5818 = vrot.slane %v5816, 6
      %v5819 = vshll.u32 %v5726, 16
      %v5821 = vrot.slane %v5819, 7
      %v5822 = vor.u32 %v5818, %v5821
      %v5823 = vsel %vm2794, %v5814, %v5822
      %v5824 = vrot.slane %v5822, 4
      %v5826 = vshrl.u32 %v5727, 16
      %v5828 = vrot.slane %v5826, 6
      %v5829 = vshll.u32 %v5727, 16
      %v5831 = vrot.slane %v5829, 7
      %v5832 = vor.u32 %v5828, %v5831
      %v5833 = vsel %vm2794, %v5824, %v5832
      %v5834 = vrot.slane %v5832, 4
      %v5836 = vshrl.u32 %v5728, 16
      %v5838 = vrot.slane %v5836, 6
      %v5839 = vshll.u32 %v5728, 16
      %v5841 = vrot.slane %v5839, 7
      %v5842 = vor.u32 %v5838, %v5841
      %v5843 = vsel %vm2794, %v5834, %v5842
      %v5844 = vrot.slane %v5842, 4
      %v5846 = vshrl.u32 %v5729, 16
      %v5848 = vrot.slane %v5846, 6
      %v5849 = vshll.u32 %v5729, 16
      %v5851 = vrot.slane %v5849, 7
      %v5852 = vor.u32 %v5848, %v5851
      %v5853 = vsel %vm2794, %v5844, %v5852
      %v5854 = vrot.slane %v5852, 4
      %v5856 = vshrl.u32 %v5730, 16
      %v5858 = vrot.slane %v5856, 6
      %v5859 = vshll.u32 %v5730, 16
      %v5861 = vrot.slane %v5859, 7
      %v5862 = vor.u32 %v5858, %v5861
      %v5863 = vsel %vm2794, %v5854, %v5862
      %v5864 = vrot.slane %v5862, 4
      %v5866 = vshrl.u32 %v5731, 16
      %v5868 = vrot.slane %v5866, 6
      %v5869 = vshll.u32 %v5731, 16
      %v5871 = vrot.slane %v5869, 7
      %v5872 = vor.u32 %v5868, %v5871
      %v5873 = vsel %vm2794, %v5864, %v5872
      %v5874 = vrot.slane %v5872, 4
      %v5876 = vshrl.u32 %v5732, 16
      %v5878 = vrot.slane %v5876, 6
      %v5879 = vshll.u32 %v5732, 16
      %v5881 = vrot.slane %v5879, 7
      %v5882 = vor.u32 %v5878, %v5881
      %v5883 = vsel %vm2794, %v5874, %v5882
      %v5884 = vrot.slane %v5882, 4
      %v5886 = vshrl.u32 %v5733, 16
      %v5888 = vrot.slane %v5886, 6
      %v5889 = vshll.u32 %v5733, 16
      %v5891 = vrot.slane %v5889, 7
      %v5892 = vor.u32 %v5888, %v5891
      %v5893 = vsel %vm2794, %v5884, %v5892
      %v5894 = vrot.slane %v5892, 4
      %v5896 = vshrl.u32 %v5734, 16
      %v5898 = vrot.slane %v5896, 6
      %v5899 = vshll.u32 %v5734, 16
      %v5901 = vrot.slane %v5899, 7
      %v5902 = vor.u32 %v5898, %v5901
      %v5903 = vsel %vm2794, %v5894, %v5902
      %v5904 = vrot.slane %v5902, 4
      %v5906 = vshrl.u32 %v5735, 16
      %v5908 = vrot.slane %v5906, 6
      %v5909 = vshll.u32 %v5735, 16
      %v5911 = vrot.slane %v5909, 7
      %v5912 = vor.u32 %v5908, %v5911
      %v5913 = vsel %vm2794, %v5904, %v5912
      %v5914 = vrot.slane %v5912, 4
      %v5934 = vld [vmem:[#allocation3 + $0x50] sm:$0xe]
      %v5935 = vsel %vm4778, %v5743, %v5934
      %5936 = vst [vmem:[#allocation3 + $0x50] sm:$0xe] %v5935
      %5937 = vst.msk [vmem:[#allocation3 + $0x54] sm:$0xf] %vm298, %v5753
      %5938 = vst.msk [vmem:[#allocation3 + $0x58] sm:$0xf] %vm298, %v5763
      %5939 = vst.msk [vmem:[#allocation3 + $0x5c] sm:$0xf] %vm298, %v5773
      %5940 = vst.msk [vmem:[#allocation3 + $0x60] sm:$0xf] %vm298, %v5783
      %5941 = vst.msk [vmem:[#allocation3 + $0x64] sm:$0xf] %vm298, %v5793
      %5942 = vst.msk [vmem:[#allocation3 + $0x68] sm:$0xf] %vm298, %v5803
      %5943 = vst.msk [vmem:[#allocation3 + $0x6c] sm:$0xf] %vm298, %v5813
      %5944 = vst.msk [vmem:[#allocation3 + $0x70] sm:$0xf] %vm298, %v5823
      %5945 = vst.msk [vmem:[#allocation3 + $0x74] sm:$0xf] %vm298, %v5833
      %5946 = vst.msk [vmem:[#allocation3 + $0x78] sm:$0xf] %vm298, %v5843
      %5947 = vst.msk [vmem:[#allocation3 + $0x7c] sm:$0xf] %vm298, %v5853
      %5948 = vst.msk [vmem:[#allocation3 + $0x80] sm:$0xf] %vm298, %v5863
      %5949 = vst.msk [vmem:[#allocation3 + $0x84] sm:$0xf] %vm298, %v5873
      %5950 = vst.msk [vmem:[#allocation3 + $0x88] sm:$0xf] %vm298, %v5883
      %5951 = vst.msk [vmem:[#allocation3 + $0x8c] sm:$0xf] %vm298, %v5893
      %5952 = vst.msk [vmem:[#allocation3 + $0x90] sm:$0xf] %vm298, %v5903
      %5953 = vst.msk [vmem:[#allocation3 + $0x94] sm:$0xf] %vm298, %v5913
      %v5954 = vld [vmem:[#allocation3 + $0x98] sm:$0x3]
      %v5955 = vsel %vm4800, %v5914, %v5954
      %5956 = vst [vmem:[#allocation3 + $0x98] sm:$0x3] %v5955
      %v5957 = vld [vmem:[#allocation3] sm:$0xf]
      %v5958 = vld [vmem:[#allocation3 + $0x4] sm:$0xf]
      %v5959 = vld [vmem:[#allocation3 + $0x8] sm:$0xf]
      %v5960 = vld [vmem:[#allocation3 + $0xc] sm:$0xf]
      %v5961 = vld [vmem:[#allocation3 + $0x10] sm:$0xf]
      %v5962 = vld [vmem:[#allocation3 + $0x14] sm:$0xf]
      %v5963 = vld [vmem:[#allocation3 + $0x18] sm:$0xf]
      %v5964 = vld [vmem:[#allocation3 + $0x1c] sm:$0xf]
      %v5965 = vld [vmem:[#allocation3 + $0x20] sm:$0xf]
      %v5966 = vld [vmem:[#allocation3 + $0x24] sm:$0xf]
      %v5967 = vld [vmem:[#allocation3 + $0x28] sm:$0xf]
      %v5968 = vld [vmem:[#allocation3 + $0x2c] sm:$0xf]
      %v5969 = vld [vmem:[#allocation3 + $0x30] sm:$0xf]
      %v5970 = vld [vmem:[#allocation3 + $0x34] sm:$0xf]
      %v5971 = vld [vmem:[#allocation3 + $0x38] sm:$0xf]
      %v5972 = vld [vmem:[#allocation3 + $0x3c] sm:$0xf]
      %v5973 = vld [vmem:[#allocation3 + $0x40] sm:$0xf]
      %v5974 = vld [vmem:[#allocation3 + $0x44] sm:$0xf]
      %v5975 = vld [vmem:[#allocation3 + $0x48] sm:$0xf]
      %v5976 = vld [vmem:[#allocation3 + $0x4c] sm:$0xf]
      %v5977 = vld [vmem:[#allocation3 + $0x50] sm:$0xf]
      %v5978 = vld [vmem:[#allocation3 + $0x54] sm:$0xf]
      %v5979 = vld [vmem:[#allocation3 + $0x58] sm:$0xf]
      %v5980 = vld [vmem:[#allocation3 + $0x5c] sm:$0xf]
      %v5981 = vld [vmem:[#allocation3 + $0x60] sm:$0xf]
      %v5982 = vld [vmem:[#allocation3 + $0x64] sm:$0xf]
      %v5983 = vld [vmem:[#allocation3 + $0x68] sm:$0xf]
      %v5984 = vld [vmem:[#allocation3 + $0x6c] sm:$0xf]
      %v5985 = vld [vmem:[#allocation3 + $0x70] sm:$0xf]
      %v5986 = vld [vmem:[#allocation3 + $0x74] sm:$0xf]
      %v5987 = vld [vmem:[#allocation3 + $0x78] sm:$0xf]
      %v5988 = vld [vmem:[#allocation3 + $0x7c] sm:$0xf]
      %v5989 = vld [vmem:[#allocation3 + $0x80] sm:$0xf]
      %v5990 = vld [vmem:[#allocation3 + $0x84] sm:$0xf]
      %v5991 = vld [vmem:[#allocation3 + $0x88] sm:$0xf]
      %v5992 = vld [vmem:[#allocation3 + $0x8c] sm:$0xf]
      %5993 = vst.msk [vmem:[#allocation2] sm:$0xf] %vm298, %v5957
      %5994 = vst.msk [vmem:[#allocation2 + $0x4] sm:$0xf] %vm298, %v5958
      %5995 = vst.msk [vmem:[#allocation2 + $0x8] sm:$0xf] %vm298, %v5959
      %5996 = vst.msk [vmem:[#allocation2 + $0xc] sm:$0xf] %vm298, %v5960
      %5997 = vst.msk [vmem:[#allocation2 + $0x10] sm:$0xf] %vm298, %v5961
      %5998 = vst.msk [vmem:[#allocation2 + $0x14] sm:$0xf] %vm298, %v5962
      %5999 = vst.msk [vmem:[#allocation2 + $0x18] sm:$0xf] %vm298, %v5963
      %6000 = vst.msk [vmem:[#allocation2 + $0x1c] sm:$0xf] %vm298, %v5964
      %6001 = vst.msk [vmem:[#allocation2 + $0x20] sm:$0xf] %vm298, %v5965
      %6002 = vst.msk [vmem:[#allocation2 + $0x24] sm:$0xf] %vm298, %v5966
      %6003 = vst.msk [vmem:[#allocation2 + $0x28] sm:$0xf] %vm298, %v5967
      %6004 = vst.msk [vmem:[#allocation2 + $0x2c] sm:$0xf] %vm298, %v5968
      %6005 = vst.msk [vmem:[#allocation2 + $0x30] sm:$0xf] %vm298, %v5969
      %6006 = vst.msk [vmem:[#allocation2 + $0x34] sm:$0xf] %vm298, %v5970
      %6007 = vst.msk [vmem:[#allocation2 + $0x38] sm:$0xf] %vm298, %v5971
      %6008 = vst.msk [vmem:[#allocation2 + $0x3c] sm:$0xf] %vm298, %v5972
      %6009 = vst.msk [vmem:[#allocation2 + $0x40] sm:$0xf] %vm298, %v5973
      %6010 = vst.msk [vmem:[#allocation2 + $0x44] sm:$0xf] %vm298, %v5974
      %6011 = vst.msk [vmem:[#allocation2 + $0x48] sm:$0xf] %vm298, %v5975
      %6012 = vst.msk [vmem:[#allocation2 + $0x4c] sm:$0xf] %vm298, %v5976
      %6013 = vst.msk [vmem:[#allocation2 + $0x50] sm:$0xf] %vm298, %v5977
      %6014 = vst.msk [vmem:[#allocation2 + $0x54] sm:$0xf] %vm298, %v5978
      %6015 = vst.msk [vmem:[#allocation2 + $0x58] sm:$0xf] %vm298, %v5979
      %6016 = vst.msk [vmem:[#allocation2 + $0x5c] sm:$0xf] %vm298, %v5980
      %6017 = vst.msk [vmem:[#allocation2 + $0x60] sm:$0xf] %vm298, %v5981
      %6018 = vst.msk [vmem:[#allocation2 + $0x64] sm:$0xf] %vm298, %v5982
      %6019 = vst.msk [vmem:[#allocation2 + $0x68] sm:$0xf] %vm298, %v5983
      %6020 = vst.msk [vmem:[#allocation2 + $0x6c] sm:$0xf] %vm298, %v5984
      %6021 = vst.msk [vmem:[#allocation2 + $0x70] sm:$0xf] %vm298, %v5985
      %6022 = vst.msk [vmem:[#allocation2 + $0x74] sm:$0xf] %vm298, %v5986
      %6023 = vst.msk [vmem:[#allocation2 + $0x78] sm:$0xf] %vm298, %v5987
      %6024 = vst.msk [vmem:[#allocation2 + $0x7c] sm:$0xf] %vm298, %v5988
      %6025 = vst.msk [vmem:[#allocation2 + $0x80] sm:$0xf] %vm298, %v5989
      %6026 = vst.msk [vmem:[#allocation2 + $0x84] sm:$0xf] %vm298, %v5990
      %6027 = vst.msk [vmem:[#allocation2 + $0x88] sm:$0xf] %vm298, %v5991
      %6028 = vst.msk [vmem:[#allocation2 + $0x8c] sm:$0xf] %vm298, %v5992
      %v6029 = vld [vmem:[#allocation3] sm:$0xf]
      %v6030 = vld [vmem:[#allocation3 + $0x4] sm:$0xf]
      %v6031 = vld [vmem:[#allocation3 + $0x8] sm:$0xf]
      %v6032 = vld [vmem:[#allocation3 + $0xc] sm:$0xf]
      %v6033 = vld [vmem:[#allocation3 + $0x10] sm:$0xf]
      %v6034 = vld [vmem:[#allocation3 + $0x14] sm:$0xf]
      %v6035 = vld [vmem:[#allocation3 + $0x18] sm:$0xf]
      %v6036 = vld [vmem:[#allocation3 + $0x1c] sm:$0xf]
      %v6037 = vld [vmem:[#allocation3 + $0x20] sm:$0xf]
      %v6038 = vld [vmem:[#allocation3 + $0x24] sm:$0xf]
      %v6039 = vld [vmem:[#allocation3 + $0x28] sm:$0xf]
      %v6040 = vld [vmem:[#allocation3 + $0x2c] sm:$0xf]
      %v6041 = vld [vmem:[#allocation3 + $0x30] sm:$0xf]
      %v6042 = vld [vmem:[#allocation3 + $0x34] sm:$0xf]
      %v6043 = vld [vmem:[#allocation3 + $0x38] sm:$0xf]
      %v6044 = vld [vmem:[#allocation3 + $0x3c] sm:$0xf]
      %v6045 = vld [vmem:[#allocation3 + $0x40] sm:$0xf]
      %v6046 = vld [vmem:[#allocation3 + $0x44] sm:$0xf]
      %v6047 = vld [vmem:[#allocation3 + $0x48] sm:$0xf]
      %v6048 = vld [vmem:[#allocation3 + $0x4c] sm:$0xf]
      %v6049 = vld [vmem:[#allocation3 + $0x50] sm:$0xf]
      %v6050 = vld [vmem:[#allocation3 + $0x54] sm:$0xf]
      %v6051 = vld [vmem:[#allocation3 + $0x58] sm:$0xf]
      %v6052 = vld [vmem:[#allocation3 + $0x5c] sm:$0xf]
      %v6053 = vld [vmem:[#allocation3 + $0x60] sm:$0xf]
      %v6054 = vld [vmem:[#allocation3 + $0x64] sm:$0xf]
      %v6055 = vld [vmem:[#allocation3 + $0x68] sm:$0xf]
      %v6056 = vld [vmem:[#allocation3 + $0x6c] sm:$0xf]
      %v6057 = vld [vmem:[#allocation3 + $0x70] sm:$0xf]
      %v6058 = vld [vmem:[#allocation3 + $0x74] sm:$0xf]
      %v6059 = vld [vmem:[#allocation3 + $0x78] sm:$0xf]
      %v6060 = vld [vmem:[#allocation3 + $0x7c] sm:$0xf]
      %v6061 = vld [vmem:[#allocation3 + $0x80] sm:$0xf]
      %v6062 = vld [vmem:[#allocation3 + $0x84] sm:$0xf]
      %v6063 = vld [vmem:[#allocation3 + $0x88] sm:$0xf]
      %v6064 = vld [vmem:[#allocation3 + $0x8c] sm:$0xf]
      %v6065 = vld [vmem:[#allocation3 + $0x90] sm:$0x1]
      %v6067 = vshrl.u32 %v6029, 16
      %v6069 = vrot.slane %v6067, 4
      %v6070 = vshll.u32 %v6029, 16
      %v6072 = vrot.slane %v6070, 5
      %v6073 = vor.u32 %v6069, %v6072
      %v6074 = vrot.slane %v6073, 4
      %v6076 = vshll.u32 %v6030, 16
      %v6078 = vrot.slane %v6076, 5
      %v6079 = vsel %vm374, %v6074, %v6078
      %v6080 = vshrl.u32 %v6030, 16
      %v6082 = vrot.slane %v6080, 4
      %v6083 = vor.u32 %v6082, %v6078
      %v6084 = vrot.slane %v6083, 4
      %v6086 = vshll.u32 %v6031, 16
      %v6088 = vrot.slane %v6086, 5
      %v6089 = vsel %vm374, %v6084, %v6088
      %v6090 = vshrl.u32 %v6031, 16
      %v6092 = vrot.slane %v6090, 4
      %v6093 = vor.u32 %v6092, %v6088
      %v6094 = vrot.slane %v6093, 4
      %v6096 = vshll.u32 %v6032, 16
      %v6098 = vrot.slane %v6096, 5
      %v6099 = vsel %vm374, %v6094, %v6098
      %v6100 = vshrl.u32 %v6032, 16
      %v6102 = vrot.slane %v6100, 4
      %v6103 = vor.u32 %v6102, %v6098
      %v6104 = vrot.slane %v6103, 4
      %v6106 = vshll.u32 %v6033, 16
      %v6108 = vrot.slane %v6106, 5
      %v6109 = vsel %vm374, %v6104, %v6108
      %v6110 = vshrl.u32 %v6033, 16
      %v6112 = vrot.slane %v6110, 4
      %v6113 = vor.u32 %v6112, %v6108
      %v6114 = vrot.slane %v6113, 4
      %v6116 = vshll.u32 %v6034, 16
      %v6118 = vrot.slane %v6116, 5
      %v6119 = vsel %vm374, %v6114, %v6118
      %v6120 = vshrl.u32 %v6034, 16
      %v6122 = vrot.slane %v6120, 4
      %v6123 = vor.u32 %v6122, %v6118
      %v6124 = vrot.slane %v6123, 4
      %v6126 = vshll.u32 %v6035, 16
      %v6128 = vrot.slane %v6126, 5
      %v6129 = vsel %vm374, %v6124, %v6128
      %v6130 = vshrl.u32 %v6035, 16
      %v6132 = vrot.slane %v6130, 4
      %v6133 = vor.u32 %v6132, %v6128
      %v6134 = vrot.slane %v6133, 4
      %v6136 = vshll.u32 %v6036, 16
      %v6138 = vrot.slane %v6136, 5
      %v6139 = vsel %vm374, %v6134, %v6138
      %v6140 = vshrl.u32 %v6036, 16
      %v6142 = vrot.slane %v6140, 4
      %v6143 = vor.u32 %v6142, %v6138
      %v6144 = vrot.slane %v6143, 4
      %v6146 = vshll.u32 %v6037, 16
      %v6148 = vrot.slane %v6146, 5
      %v6149 = vsel %vm374, %v6144, %v6148
      %v6150 = vshrl.u32 %v6037, 16
      %v6152 = vrot.slane %v6150, 4
      %v6153 = vor.u32 %v6152, %v6148
      %v6154 = vrot.slane %v6153, 4
      %v6156 = vshll.u32 %v6038, 16
      %v6158 = vrot.slane %v6156, 5
      %v6159 = vsel %vm374, %v6154, %v6158
      %v6160 = vshrl.u32 %v6038, 16
      %v6162 = vrot.slane %v6160, 4
      %v6163 = vor.u32 %v6162, %v6158
      %v6164 = vrot.slane %v6163, 4
      %v6166 = vshll.u32 %v6039, 16
      %v6168 = vrot.slane %v6166, 5
      %v6169 = vsel %vm374, %v6164, %v6168
      %v6170 = vshrl.u32 %v6039, 16
      %v6172 = vrot.slane %v6170, 4
      %v6173 = vor.u32 %v6172, %v6168
      %v6174 = vrot.slane %v6173, 4
      %v6176 = vshll.u32 %v6040, 16
      %v6178 = vrot.slane %v6176, 5
      %v6179 = vsel %vm374, %v6174, %v6178
      %v6180 = vshrl.u32 %v6040, 16
      %v6182 = vrot.slane %v6180, 4
      %v6183 = vor.u32 %v6182, %v6178
      %v6184 = vrot.slane %v6183, 4
      %v6186 = vshll.u32 %v6041, 16
      %v6188 = vrot.slane %v6186, 5
      %v6189 = vsel %vm374, %v6184, %v6188
      %v6190 = vshrl.u32 %v6041, 16
      %v6192 = vrot.slane %v6190, 4
      %v6193 = vor.u32 %v6192, %v6188
      %v6194 = vrot.slane %v6193, 4
      %v6196 = vshll.u32 %v6042, 16
      %v6198 = vrot.slane %v6196, 5
      %v6199 = vsel %vm374, %v6194, %v6198
      %v6200 = vshrl.u32 %v6042, 16
      %v6202 = vrot.slane %v6200, 4
      %v6203 = vor.u32 %v6202, %v6198
      %v6204 = vrot.slane %v6203, 4
      %v6206 = vshll.u32 %v6043, 16
      %v6208 = vrot.slane %v6206, 5
      %v6209 = vsel %vm374, %v6204, %v6208
      %v6210 = vshrl.u32 %v6043, 16
      %v6212 = vrot.slane %v6210, 4
      %v6213 = vor.u32 %v6212, %v6208
      %v6214 = vrot.slane %v6213, 4
      %v6216 = vshll.u32 %v6044, 16
      %v6218 = vrot.slane %v6216, 5
      %v6219 = vsel %vm374, %v6214, %v6218
      %v6220 = vshrl.u32 %v6044, 16
      %v6222 = vrot.slane %v6220, 4
      %v6223 = vor.u32 %v6222, %v6218
      %v6224 = vrot.slane %v6223, 4
      %v6226 = vshll.u32 %v6045, 16
      %v6228 = vrot.slane %v6226, 5
      %v6229 = vsel %vm374, %v6224, %v6228
      %v6230 = vshrl.u32 %v6045, 16
      %v6232 = vrot.slane %v6230, 4
      %v6233 = vor.u32 %v6232, %v6228
      %v6234 = vrot.slane %v6233, 4
      %v6236 = vshll.u32 %v6046, 16
      %v6238 = vrot.slane %v6236, 5
      %v6239 = vsel %vm374, %v6234, %v6238
      %v6240 = vshrl.u32 %v6046, 16
      %v6242 = vrot.slane %v6240, 4
      %v6243 = vor.u32 %v6242, %v6238
      %v6244 = vrot.slane %v6243, 4
      %v6246 = vshll.u32 %v6047, 16
      %v6248 = vrot.slane %v6246, 5
      %v6249 = vsel %vm374, %v6244, %v6248
      %v6250 = vshrl.u32 %v6047, 16
      %v6252 = vrot.slane %v6250, 4
      %v6253 = vor.u32 %v6252, %v6248
      %v6254 = vrot.slane %v6253, 4
      %v6256 = vshll.u32 %v6048, 16
      %v6258 = vrot.slane %v6256, 5
      %v6259 = vsel %vm374, %v6254, %v6258
      %v6260 = vshrl.u32 %v6048, 16
      %v6262 = vrot.slane %v6260, 4
      %v6263 = vor.u32 %v6262, %v6258
      %v6264 = vrot.slane %v6263, 4
      %v6266 = vshll.u32 %v6049, 16
      %v6268 = vrot.slane %v6266, 5
      %v6269 = vsel %vm374, %v6264, %v6268
      %v6270 = vshrl.u32 %v6049, 16
      %v6272 = vrot.slane %v6270, 4
      %v6273 = vor.u32 %v6272, %v6268
      %v6274 = vrot.slane %v6273, 4
      %v6276 = vshll.u32 %v6050, 16
      %v6278 = vrot.slane %v6276, 5
      %v6279 = vsel %vm374, %v6274, %v6278
      %v6280 = vshrl.u32 %v6050, 16
      %v6282 = vrot.slane %v6280, 4
      %v6283 = vor.u32 %v6282, %v6278
      %v6284 = vrot.slane %v6283, 4
      %v6286 = vshll.u32 %v6051, 16
      %v6288 = vrot.slane %v6286, 5
      %v6289 = vsel %vm374, %v6284, %v6288
      %v6290 = vshrl.u32 %v6051, 16
      %v6292 = vrot.slane %v6290, 4
      %v6293 = vor.u32 %v6292, %v6288
      %v6294 = vrot.slane %v6293, 4
      %v6296 = vshll.u32 %v6052, 16
      %v6298 = vrot.slane %v6296, 5
      %v6299 = vsel %vm374, %v6294, %v6298
      %v6300 = vshrl.u32 %v6052, 16
      %v6302 = vrot.slane %v6300, 4
      %v6303 = vor.u32 %v6302, %v6298
      %v6304 = vrot.slane %v6303, 4
      %v6306 = vshll.u32 %v6053, 16
      %v6308 = vrot.slane %v6306, 5
      %v6309 = vsel %vm374, %v6304, %v6308
      %v6310 = vshrl.u32 %v6053, 16
      %v6312 = vrot.slane %v6310, 4
      %v6313 = vor.u32 %v6312, %v6308
      %v6314 = vrot.slane %v6313, 4
      %v6316 = vshll.u32 %v6054, 16
      %v6318 = vrot.slane %v6316, 5
      %v6319 = vsel %vm374, %v6314, %v6318
      %v6320 = vshrl.u32 %v6054, 16
      %v6322 = vrot.slane %v6320, 4
      %v6323 = vor.u32 %v6322, %v6318
      %v6324 = vrot.slane %v6323, 4
      %v6326 = vshll.u32 %v6055, 16
      %v6328 = vrot.slane %v6326, 5
      %v6329 = vsel %vm374, %v6324, %v6328
      %v6330 = vshrl.u32 %v6055, 16
      %v6332 = vrot.slane %v6330, 4
      %v6333 = vor.u32 %v6332, %v6328
      %v6334 = vrot.slane %v6333, 4
      %v6336 = vshll.u32 %v6056, 16
      %v6338 = vrot.slane %v6336, 5
      %v6339 = vsel %vm374, %v6334, %v6338
      %v6340 = vshrl.u32 %v6056, 16
      %v6342 = vrot.slane %v6340, 4
      %v6343 = vor.u32 %v6342, %v6338
      %v6344 = vrot.slane %v6343, 4
      %v6346 = vshll.u32 %v6057, 16
      %v6348 = vrot.slane %v6346, 5
      %v6349 = vsel %vm374, %v6344, %v6348
      %v6350 = vshrl.u32 %v6057, 16
      %v6352 = vrot.slane %v6350, 4
      %v6353 = vor.u32 %v6352, %v6348
      %v6354 = vrot.slane %v6353, 4
      %v6356 = vshll.u32 %v6058, 16
      %v6358 = vrot.slane %v6356, 5
      %v6359 = vsel %vm374, %v6354, %v6358
      %v6360 = vshrl.u32 %v6058, 16
      %v6362 = vrot.slane %v6360, 4
      %v6363 = vor.u32 %v6362, %v6358
      %v6364 = vrot.slane %v6363, 4
      %v6366 = vshll.u32 %v6059, 16
      %v6368 = vrot.slane %v6366, 5
      %v6369 = vsel %vm374, %v6364, %v6368
      %v6370 = vshrl.u32 %v6059, 16
      %v6372 = vrot.slane %v6370, 4
      %v6373 = vor.u32 %v6372, %v6368
      %v6374 = vrot.slane %v6373, 4
      %v6376 = vshll.u32 %v6060, 16
      %v6378 = vrot.slane %v6376, 5
      %v6379 = vsel %vm374, %v6374, %v6378
      %v6380 = vshrl.u32 %v6060, 16
      %v6382 = vrot.slane %v6380, 4
      %v6383 = vor.u32 %v6382, %v6378
      %v6384 = vrot.slane %v6383, 4
      %v6386 = vshll.u32 %v6061, 16
      %v6388 = vrot.slane %v6386, 5
      %v6389 = vsel %vm374, %v6384, %v6388
      %v6390 = vshrl.u32 %v6061, 16
      %v6392 = vrot.slane %v6390, 4
      %v6393 = vor.u32 %v6392, %v6388
      %v6394 = vrot.slane %v6393, 4
      %v6396 = vshll.u32 %v6062, 16
      %v6398 = vrot.slane %v6396, 5
      %v6399 = vsel %vm374, %v6394, %v6398
      %v6400 = vshrl.u32 %v6062, 16
      %v6402 = vrot.slane %v6400, 4
      %v6403 = vor.u32 %v6402, %v6398
      %v6404 = vrot.slane %v6403, 4
      %v6406 = vshll.u32 %v6063, 16
      %v6408 = vrot.slane %v6406, 5
      %v6409 = vsel %vm374, %v6404, %v6408
      %v6410 = vshrl.u32 %v6063, 16
      %v6412 = vrot.slane %v6410, 4
      %v6413 = vor.u32 %v6412, %v6408
      %v6414 = vrot.slane %v6413, 4
      %v6416 = vshll.u32 %v6064, 16
      %v6418 = vrot.slane %v6416, 5
      %v6419 = vsel %vm374, %v6414, %v6418
      %v6420 = vshrl.u32 %v6064, 16
      %v6422 = vrot.slane %v6420, 4
      %v6423 = vor.u32 %v6422, %v6418
      %v6424 = vrot.slane %v6423, 4
      %v6426 = vshll.u32 %v6065, 16
      %v6428 = vrot.slane %v6426, 5
      %v6429 = vsel %vm374, %v6424, %v6428
      %6430 = vrot.lane.b32.xlu0 %v6079, 8
      %v6431 = vpop.permute.xlu0 %6430
      %6432 = vrot.lane.b32.xlu0 %v6089, 8
      %v6433 = vpop.permute.xlu0 %6432
      %6434 = vrot.lane.b32.xlu0 %v6099, 8
      %v6435 = vpop.permute.xlu0 %6434
      %6436 = vrot.lane.b32.xlu0 %v6109, 8
      %v6437 = vpop.permute.xlu0 %6436
      %6438 = vrot.lane.b32.xlu0 %v6119, 8
      %v6439 = vpop.permute.xlu0 %6438
      %6440 = vrot.lane.b32.xlu0 %v6129, 8
      %v6441 = vpop.permute.xlu0 %6440
      %6442 = vrot.lane.b32.xlu0 %v6139, 8
      %v6443 = vpop.permute.xlu0 %6442
      %6444 = vrot.lane.b32.xlu0 %v6149, 8
      %v6445 = vpop.permute.xlu0 %6444
      %6446 = vrot.lane.b32.xlu0 %v6159, 8
      %v6447 = vpop.permute.xlu0 %6446
      %6448 = vrot.lane.b32.xlu0 %v6169, 8
      %v6449 = vpop.permute.xlu0 %6448
      %6450 = vrot.lane.b32.xlu0 %v6179, 8
      %v6451 = vpop.permute.xlu0 %6450
      %6452 = vrot.lane.b32.xlu0 %v6189, 8
      %v6453 = vpop.permute.xlu0 %6452
      %6454 = vrot.lane.b32.xlu0 %v6199, 8
      %v6455 = vpop.permute.xlu0 %6454
      %6456 = vrot.lane.b32.xlu0 %v6209, 8
      %v6457 = vpop.permute.xlu0 %6456
      %6458 = vrot.lane.b32.xlu0 %v6219, 8
      %v6459 = vpop.permute.xlu0 %6458
      %6460 = vrot.lane.b32.xlu0 %v6229, 8
      %v6461 = vpop.permute.xlu0 %6460
      %6462 = vrot.lane.b32.xlu0 %v6239, 8
      %v6463 = vpop.permute.xlu0 %6462
      %6464 = vrot.lane.b32.xlu0 %v6249, 8
      %v6465 = vpop.permute.xlu0 %6464
      %6466 = vrot.lane.b32.xlu0 %v6259, 8
      %v6467 = vpop.permute.xlu0 %6466
      %6468 = vrot.lane.b32.xlu0 %v6269, 8
      %v6469 = vpop.permute.xlu0 %6468
      %6470 = vrot.lane.b32.xlu0 %v6279, 8
      %v6471 = vpop.permute.xlu0 %6470
      %6472 = vrot.lane.b32.xlu0 %v6289, 8
      %v6473 = vpop.permute.xlu0 %6472
      %6474 = vrot.lane.b32.xlu0 %v6299, 8
      %v6475 = vpop.permute.xlu0 %6474
      %6476 = vrot.lane.b32.xlu0 %v6309, 8
      %v6477 = vpop.permute.xlu0 %6476
      %6478 = vrot.lane.b32.xlu0 %v6319, 8
      %v6479 = vpop.permute.xlu0 %6478
      %6480 = vrot.lane.b32.xlu0 %v6329, 8
      %v6481 = vpop.permute.xlu0 %6480
      %6482 = vrot.lane.b32.xlu0 %v6339, 8
      %v6483 = vpop.permute.xlu0 %6482
      %6484 = vrot.lane.b32.xlu0 %v6349, 8
      %v6485 = vpop.permute.xlu0 %6484
      %6486 = vrot.lane.b32.xlu0 %v6359, 8
      %v6487 = vpop.permute.xlu0 %6486
      %6488 = vrot.lane.b32.xlu0 %v6369, 8
      %v6489 = vpop.permute.xlu0 %6488
      %6490 = vrot.lane.b32.xlu0 %v6379, 8
      %v6491 = vpop.permute.xlu0 %6490
      %6492 = vrot.lane.b32.xlu0 %v6389, 8
      %v6493 = vpop.permute.xlu0 %6492
      %6494 = vrot.lane.b32.xlu0 %v6399, 8
      %v6495 = vpop.permute.xlu0 %6494
      %6496 = vrot.lane.b32.xlu0 %v6409, 8
      %v6497 = vpop.permute.xlu0 %6496
      %6498 = vrot.lane.b32.xlu0 %v6419, 8
      %v6499 = vpop.permute.xlu0 %6498
      %6500 = vrot.lane.b32.xlu0 %v6429, 8
      %v6501 = vpop.permute.xlu0 %6500
      %6538 = vst.msk [vmem:[#allocation2] sm:$0xf] %vm847, %v6431
      %6539 = vst.msk [vmem:[#allocation2 + $0x4] sm:$0xf] %vm847, %v6433
      %6540 = vst.msk [vmem:[#allocation2 + $0x8] sm:$0xf] %vm847, %v6435
      %6541 = vst.msk [vmem:[#allocation2 + $0xc] sm:$0xf] %vm847, %v6437
      %6542 = vst.msk [vmem:[#allocation2 + $0x10] sm:$0xf] %vm847, %v6439
      %6543 = vst.msk [vmem:[#allocation2 + $0x14] sm:$0xf] %vm847, %v6441
      %6544 = vst.msk [vmem:[#allocation2 + $0x18] sm:$0xf] %vm847, %v6443
      %6545 = vst.msk [vmem:[#allocation2 + $0x1c] sm:$0xf] %vm847, %v6445
      %6546 = vst.msk [vmem:[#allocation2 + $0x20] sm:$0xf] %vm847, %v6447
      %6547 = vst.msk [vmem:[#allocation2 + $0x24] sm:$0xf] %vm847, %v6449
      %6548 = vst.msk [vmem:[#allocation2 + $0x28] sm:$0xf] %vm847, %v6451
      %6549 = vst.msk [vmem:[#allocation2 + $0x2c] sm:$0xf] %vm847, %v6453
      %6550 = vst.msk [vmem:[#allocation2 + $0x30] sm:$0xf] %vm847, %v6455
      %6551 = vst.msk [vmem:[#allocation2 + $0x34] sm:$0xf] %vm847, %v6457
      %6552 = vst.msk [vmem:[#allocation2 + $0x38] sm:$0xf] %vm847, %v6459
      %6553 = vst.msk [vmem:[#allocation2 + $0x3c] sm:$0xf] %vm847, %v6461
      %6554 = vst.msk [vmem:[#allocation2 + $0x40] sm:$0xf] %vm847, %v6463
      %6555 = vst.msk [vmem:[#allocation2 + $0x44] sm:$0xf] %vm847, %v6465
      %6556 = vst.msk [vmem:[#allocation2 + $0x48] sm:$0xf] %vm847, %v6467
      %6557 = vst.msk [vmem:[#allocation2 + $0x4c] sm:$0xf] %vm847, %v6469
      %6558 = vst.msk [vmem:[#allocation2 + $0x50] sm:$0xf] %vm847, %v6471
      %6559 = vst.msk [vmem:[#allocation2 + $0x54] sm:$0xf] %vm847, %v6473
      %6560 = vst.msk [vmem:[#allocation2 + $0x58] sm:$0xf] %vm847, %v6475
      %6561 = vst.msk [vmem:[#allocation2 + $0x5c] sm:$0xf] %vm847, %v6477
      %6562 = vst.msk [vmem:[#allocation2 + $0x60] sm:$0xf] %vm847, %v6479
      %6563 = vst.msk [vmem:[#allocation2 + $0x64] sm:$0xf] %vm847, %v6481
      %6564 = vst.msk [vmem:[#allocation2 + $0x68] sm:$0xf] %vm847, %v6483
      %6565 = vst.msk [vmem:[#allocation2 + $0x6c] sm:$0xf] %vm847, %v6485
      %6566 = vst.msk [vmem:[#allocation2 + $0x70] sm:$0xf] %vm847, %v6487
      %6567 = vst.msk [vmem:[#allocation2 + $0x74] sm:$0xf] %vm847, %v6489
      %6568 = vst.msk [vmem:[#allocation2 + $0x78] sm:$0xf] %vm847, %v6491
      %6569 = vst.msk [vmem:[#allocation2 + $0x7c] sm:$0xf] %vm847, %v6493
      %6570 = vst.msk [vmem:[#allocation2 + $0x80] sm:$0xf] %vm847, %v6495
      %6571 = vst.msk [vmem:[#allocation2 + $0x84] sm:$0xf] %vm847, %v6497
      %6572 = vst.msk [vmem:[#allocation2 + $0x88] sm:$0xf] %vm847, %v6499
      %6573 = vst.msk [vmem:[#allocation2 + $0x8c] sm:$0xf] %vm847, %v6501
      %v6574 = vld [vmem:[#allocation3] sm:$0xe]
      %v6575 = vld [vmem:[#allocation3 + $0x4] sm:$0xf]
      %v6576 = vld [vmem:[#allocation3 + $0x8] sm:$0xf]
      %v6577 = vld [vmem:[#allocation3 + $0xc] sm:$0xf]
      %v6578 = vld [vmem:[#allocation3 + $0x10] sm:$0xf]
      %v6579 = vld [vmem:[#allocation3 + $0x14] sm:$0xf]
      %v6580 = vld [vmem:[#allocation3 + $0x18] sm:$0xf]
      %v6581 = vld [vmem:[#allocation3 + $0x1c] sm:$0xf]
      %v6582 = vld [vmem:[#allocation3 + $0x20] sm:$0xf]
      %v6583 = vld [vmem:[#allocation3 + $0x24] sm:$0xf]
      %v6584 = vld [vmem:[#allocation3 + $0x28] sm:$0xf]
      %v6585 = vld [vmem:[#allocation3 + $0x2c] sm:$0xf]
      %v6586 = vld [vmem:[#allocation3 + $0x30] sm:$0xf]
      %v6587 = vld [vmem:[#allocation3 + $0x34] sm:$0xf]
      %v6588 = vld [vmem:[#allocation3 + $0x38] sm:$0xf]
      %v6589 = vld [vmem:[#allocation3 + $0x3c] sm:$0xf]
      %v6590 = vld [vmem:[#allocation3 + $0x40] sm:$0xf]
      %v6591 = vld [vmem:[#allocation3 + $0x44] sm:$0xf]
      %v6592 = vld [vmem:[#allocation3 + $0x48] sm:$0xf]
      %v6593 = vld [vmem:[#allocation3 + $0x4c] sm:$0xf]
      %v6594 = vld [vmem:[#allocation3 + $0x50] sm:$0xf]
      %v6595 = vld [vmem:[#allocation3 + $0x54] sm:$0xf]
      %v6596 = vld [vmem:[#allocation3 + $0x58] sm:$0xf]
      %v6597 = vld [vmem:[#allocation3 + $0x5c] sm:$0xf]
      %v6598 = vld [vmem:[#allocation3 + $0x60] sm:$0xf]
      %v6599 = vld [vmem:[#allocation3 + $0x64] sm:$0xf]
      %v6600 = vld [vmem:[#allocation3 + $0x68] sm:$0xf]
      %v6601 = vld [vmem:[#allocation3 + $0x6c] sm:$0xf]
      %v6602 = vld [vmem:[#allocation3 + $0x70] sm:$0xf]
      %v6603 = vld [vmem:[#allocation3 + $0x74] sm:$0xf]
      %v6604 = vld [vmem:[#allocation3 + $0x78] sm:$0xf]
      %v6605 = vld [vmem:[#allocation3 + $0x7c] sm:$0xf]
      %v6606 = vld [vmem:[#allocation3 + $0x80] sm:$0xf]
      %v6607 = vld [vmem:[#allocation3 + $0x84] sm:$0xf]
      %v6608 = vld [vmem:[#allocation3 + $0x88] sm:$0xf]
      %v6609 = vld [vmem:[#allocation3 + $0x8c] sm:$0xf]
      %v6610 = vld [vmem:[#allocation3 + $0x90] sm:$0x1]
      %v6648 = vrot.slane %v6574, 5
      %v6649 = vrot.slane %v6648, 4
      %v6650 = vrot.slane %v6575, 5
      %v6651 = vsel %vm960, %v6649, %v6650
      %v6652 = vrot.slane %v6650, 4
      %v6653 = vrot.slane %v6576, 5
      %v6654 = vsel %vm960, %v6652, %v6653
      %v6655 = vrot.slane %v6653, 4
      %v6656 = vrot.slane %v6577, 5
      %v6657 = vsel %vm960, %v6655, %v6656
      %v6658 = vrot.slane %v6656, 4
      %v6659 = vrot.slane %v6578, 5
      %v6660 = vsel %vm960, %v6658, %v6659
      %v6661 = vrot.slane %v6659, 4
      %v6662 = vrot.slane %v6579, 5
      %v6663 = vsel %vm960, %v6661, %v6662
      %v6664 = vrot.slane %v6662, 4
      %v6665 = vrot.slane %v6580, 5
      %v6666 = vsel %vm960, %v6664, %v6665
      %v6667 = vrot.slane %v6665, 4
      %v6668 = vrot.slane %v6581, 5
      %v6669 = vsel %vm960, %v6667, %v6668
      %v6670 = vrot.slane %v6668, 4
      %v6671 = vrot.slane %v6582, 5
      %v6672 = vsel %vm960, %v6670, %v6671
      %v6673 = vrot.slane %v6671, 4
      %v6674 = vrot.slane %v6583, 5
      %v6675 = vsel %vm960, %v6673, %v6674
      %v6676 = vrot.slane %v6674, 4
      %v6677 = vrot.slane %v6584, 5
      %v6678 = vsel %vm960, %v6676, %v6677
      %v6679 = vrot.slane %v6677, 4
      %v6680 = vrot.slane %v6585, 5
      %v6681 = vsel %vm960, %v6679, %v6680
      %v6682 = vrot.slane %v6680, 4
      %v6683 = vrot.slane %v6586, 5
      %v6684 = vsel %vm960, %v6682, %v6683
      %v6685 = vrot.slane %v6683, 4
      %v6686 = vrot.slane %v6587, 5
      %v6687 = vsel %vm960, %v6685, %v6686
      %v6688 = vrot.slane %v6686, 4
      %v6689 = vrot.slane %v6588, 5
      %v6690 = vsel %vm960, %v6688, %v6689
      %v6691 = vrot.slane %v6689, 4
      %v6692 = vrot.slane %v6589, 5
      %v6693 = vsel %vm960, %v6691, %v6692
      %v6694 = vrot.slane %v6692, 4
      %v6695 = vrot.slane %v6590, 5
      %v6696 = vsel %vm960, %v6694, %v6695
      %v6697 = vrot.slane %v6695, 4
      %v6698 = vrot.slane %v6591, 5
      %v6699 = vsel %vm960, %v6697, %v6698
      %v6700 = vrot.slane %v6698, 4
      %v6701 = vrot.slane %v6592, 5
      %v6702 = vsel %vm960, %v6700, %v6701
      %v6703 = vrot.slane %v6701, 4
      %v6704 = vrot.slane %v6593, 5
      %v6705 = vsel %vm960, %v6703, %v6704
      %v6706 = vrot.slane %v6704, 4
      %v6707 = vrot.slane %v6594, 5
      %v6708 = vsel %vm960, %v6706, %v6707
      %v6709 = vrot.slane %v6707, 4
      %v6710 = vrot.slane %v6595, 5
      %v6711 = vsel %vm960, %v6709, %v6710
      %v6712 = vrot.slane %v6710, 4
      %v6713 = vrot.slane %v6596, 5
      %v6714 = vsel %vm960, %v6712, %v6713
      %v6715 = vrot.slane %v6713, 4
      %v6716 = vrot.slane %v6597, 5
      %v6717 = vsel %vm960, %v6715, %v6716
      %v6718 = vrot.slane %v6716, 4
      %v6719 = vrot.slane %v6598, 5
      %v6720 = vsel %vm960, %v6718, %v6719
      %v6721 = vrot.slane %v6719, 4
      %v6722 = vrot.slane %v6599, 5
      %v6723 = vsel %vm960, %v6721, %v6722
      %v6724 = vrot.slane %v6722, 4
      %v6725 = vrot.slane %v6600, 5
      %v6726 = vsel %vm960, %v6724, %v6725
      %v6727 = vrot.slane %v6725, 4
      %v6728 = vrot.slane %v6601, 5
      %v6729 = vsel %vm960, %v6727, %v6728
      %v6730 = vrot.slane %v6728, 4
      %v6731 = vrot.slane %v6602, 5
      %v6732 = vsel %vm960, %v6730, %v6731
      %v6733 = vrot.slane %v6731, 4
      %v6734 = vrot.slane %v6603, 5
      %v6735 = vsel %vm960, %v6733, %v6734
      %v6736 = vrot.slane %v6734, 4
      %v6737 = vrot.slane %v6604, 5
      %v6738 = vsel %vm960, %v6736, %v6737
      %v6739 = vrot.slane %v6737, 4
      %v6740 = vrot.slane %v6605, 5
      %v6741 = vsel %vm960, %v6739, %v6740
      %v6742 = vrot.slane %v6740, 4
      %v6743 = vrot.slane %v6606, 5
      %v6744 = vsel %vm960, %v6742, %v6743
      %v6745 = vrot.slane %v6743, 4
      %v6746 = vrot.slane %v6607, 5
      %v6747 = vsel %vm960, %v6745, %v6746
      %v6748 = vrot.slane %v6746, 4
      %v6749 = vrot.slane %v6608, 5
      %v6750 = vsel %vm960, %v6748, %v6749
      %v6751 = vrot.slane %v6749, 4
      %v6752 = vrot.slane %v6609, 5
      %v6753 = vsel %vm960, %v6751, %v6752
      %v6754 = vrot.slane %v6752, 4
      %v6755 = vrot.slane %v6610, 5
      %v6756 = vsel %vm960, %v6754, %v6755
      %6757 = vrot.lane.b32.xlu0 %v6651, 16
      %v6758 = vpop.permute.xlu0 %6757
      %6759 = vrot.lane.b32.xlu0 %v6654, 16
      %v6760 = vpop.permute.xlu0 %6759
      %6761 = vrot.lane.b32.xlu0 %v6657, 16
      %v6762 = vpop.permute.xlu0 %6761
      %6763 = vrot.lane.b32.xlu0 %v6660, 16
      %v6764 = vpop.permute.xlu0 %6763
      %6765 = vrot.lane.b32.xlu0 %v6663, 16
      %v6766 = vpop.permute.xlu0 %6765
      %6767 = vrot.lane.b32.xlu0 %v6666, 16
      %v6768 = vpop.permute.xlu0 %6767
      %6769 = vrot.lane.b32.xlu0 %v6669, 16
      %v6770 = vpop.permute.xlu0 %6769
      %6771 = vrot.lane.b32.xlu0 %v6672, 16
      %v6772 = vpop.permute.xlu0 %6771
      %6773 = vrot.lane.b32.xlu0 %v6675, 16
      %v6774 = vpop.permute.xlu0 %6773
      %6775 = vrot.lane.b32.xlu0 %v6678, 16
      %v6776 = vpop.permute.xlu0 %6775
      %6777 = vrot.lane.b32.xlu0 %v6681, 16
      %v6778 = vpop.permute.xlu0 %6777
      %6779 = vrot.lane.b32.xlu0 %v6684, 16
      %v6780 = vpop.permute.xlu0 %6779
      %6781 = vrot.lane.b32.xlu0 %v6687, 16
      %v6782 = vpop.permute.xlu0 %6781
      %6783 = vrot.lane.b32.xlu0 %v6690, 16
      %v6784 = vpop.permute.xlu0 %6783
      %6785 = vrot.lane.b32.xlu0 %v6693, 16
      %v6786 = vpop.permute.xlu0 %6785
      %6787 = vrot.lane.b32.xlu0 %v6696, 16
      %v6788 = vpop.permute.xlu0 %6787
      %6789 = vrot.lane.b32.xlu0 %v6699, 16
      %v6790 = vpop.permute.xlu0 %6789
      %6791 = vrot.lane.b32.xlu0 %v6702, 16
      %v6792 = vpop.permute.xlu0 %6791
      %6793 = vrot.lane.b32.xlu0 %v6705, 16
      %v6794 = vpop.permute.xlu0 %6793
      %6795 = vrot.lane.b32.xlu0 %v6708, 16
      %v6796 = vpop.permute.xlu0 %6795
      %6797 = vrot.lane.b32.xlu0 %v6711, 16
      %v6798 = vpop.permute.xlu0 %6797
      %6799 = vrot.lane.b32.xlu0 %v6714, 16
      %v6800 = vpop.permute.xlu0 %6799
      %6801 = vrot.lane.b32.xlu0 %v6717, 16
      %v6802 = vpop.permute.xlu0 %6801
      %6803 = vrot.lane.b32.xlu0 %v6720, 16
      %v6804 = vpop.permute.xlu0 %6803
      %6805 = vrot.lane.b32.xlu0 %v6723, 16
      %v6806 = vpop.permute.xlu0 %6805
      %6807 = vrot.lane.b32.xlu0 %v6726, 16
      %v6808 = vpop.permute.xlu0 %6807
      %6809 = vrot.lane.b32.xlu0 %v6729, 16
      %v6810 = vpop.permute.xlu0 %6809
      %6811 = vrot.lane.b32.xlu0 %v6732, 16
      %v6812 = vpop.permute.xlu0 %6811
      %6813 = vrot.lane.b32.xlu0 %v6735, 16
      %v6814 = vpop.permute.xlu0 %6813
      %6815 = vrot.lane.b32.xlu0 %v6738, 16
      %v6816 = vpop.permute.xlu0 %6815
      %6817 = vrot.lane.b32.xlu0 %v6741, 16
      %v6818 = vpop.permute.xlu0 %6817
      %6819 = vrot.lane.b32.xlu0 %v6744, 16
      %v6820 = vpop.permute.xlu0 %6819
      %6821 = vrot.lane.b32.xlu0 %v6747, 16
      %v6822 = vpop.permute.xlu0 %6821
      %6823 = vrot.lane.b32.xlu0 %v6750, 16
      %v6824 = vpop.permute.xlu0 %6823
      %6825 = vrot.lane.b32.xlu0 %v6753, 16
      %v6826 = vpop.permute.xlu0 %6825
      %6827 = vrot.lane.b32.xlu0 %v6756, 16
      %v6828 = vpop.permute.xlu0 %6827
      %6865 = vst.msk [vmem:[#allocation2] sm:$0xf] %vm1178, %v6758
      %6866 = vst.msk [vmem:[#allocation2 + $0x4] sm:$0xf] %vm1178, %v6760
      %6867 = vst.msk [vmem:[#allocation2 + $0x8] sm:$0xf] %vm1178, %v6762
      %6868 = vst.msk [vmem:[#allocation2 + $0xc] sm:$0xf] %vm1178, %v6764
      %6869 = vst.msk [vmem:[#allocation2 + $0x10] sm:$0xf] %vm1178, %v6766
      %6870 = vst.msk [vmem:[#allocation2 + $0x14] sm:$0xf] %vm1178, %v6768
      %6871 = vst.msk [vmem:[#allocation2 + $0x18] sm:$0xf] %vm1178, %v6770
      %6872 = vst.msk [vmem:[#allocation2 + $0x1c] sm:$0xf] %vm1178, %v6772
      %6873 = vst.msk [vmem:[#allocation2 + $0x20] sm:$0xf] %vm1178, %v6774
      %6874 = vst.msk [vmem:[#allocation2 + $0x24] sm:$0xf] %vm1178, %v6776
      %6875 = vst.msk [vmem:[#allocation2 + $0x28] sm:$0xf] %vm1178, %v6778
      %6876 = vst.msk [vmem:[#allocation2 + $0x2c] sm:$0xf] %vm1178, %v6780
      %6877 = vst.msk [vmem:[#allocation2 + $0x30] sm:$0xf] %vm1178, %v6782
      %6878 = vst.msk [vmem:[#allocation2 + $0x34] sm:$0xf] %vm1178, %v6784
      %6879 = vst.msk [vmem:[#allocation2 + $0x38] sm:$0xf] %vm1178, %v6786
      %6880 = vst.msk [vmem:[#allocation2 + $0x3c] sm:$0xf] %vm1178, %v6788
      %6881 = vst.msk [vmem:[#allocation2 + $0x40] sm:$0xf] %vm1178, %v6790
      %6882 = vst.msk [vmem:[#allocation2 + $0x44] sm:$0xf] %vm1178, %v6792
      %6883 = vst.msk [vmem:[#allocation2 + $0x48] sm:$0xf] %vm1178, %v6794
      %6884 = vst.msk [vmem:[#allocation2 + $0x4c] sm:$0xf] %vm1178, %v6796
      %6885 = vst.msk [vmem:[#allocation2 + $0x50] sm:$0xf] %vm1178, %v6798
      %6886 = vst.msk [vmem:[#allocation2 + $0x54] sm:$0xf] %vm1178, %v6800
      %6887 = vst.msk [vmem:[#allocation2 + $0x58] sm:$0xf] %vm1178, %v6802
      %6888 = vst.msk [vmem:[#allocation2 + $0x5c] sm:$0xf] %vm1178, %v6804
      %6889 = vst.msk [vmem:[#allocation2 + $0x60] sm:$0xf] %vm1178, %v6806
      %6890 = vst.msk [vmem:[#allocation2 + $0x64] sm:$0xf] %vm1178, %v6808
      %6891 = vst.msk [vmem:[#allocation2 + $0x68] sm:$0xf] %vm1178, %v6810
      %6892 = vst.msk [vmem:[#allocation2 + $0x6c] sm:$0xf] %vm1178, %v6812
      %6893 = vst.msk [vmem:[#allocation2 + $0x70] sm:$0xf] %vm1178, %v6814
      %6894 = vst.msk [vmem:[#allocation2 + $0x74] sm:$0xf] %vm1178, %v6816
      %6895 = vst.msk [vmem:[#allocation2 + $0x78] sm:$0xf] %vm1178, %v6818
      %6896 = vst.msk [vmem:[#allocation2 + $0x7c] sm:$0xf] %vm1178, %v6820
      %6897 = vst.msk [vmem:[#allocation2 + $0x80] sm:$0xf] %vm1178, %v6822
      %6898 = vst.msk [vmem:[#allocation2 + $0x84] sm:$0xf] %vm1178, %v6824
      %6899 = vst.msk [vmem:[#allocation2 + $0x88] sm:$0xf] %vm1178, %v6826
      %6900 = vst.msk [vmem:[#allocation2 + $0x8c] sm:$0xf] %vm1178, %v6828
      %v6901 = vld [vmem:[#allocation3 + $0x8] sm:$0xe]
      %v6902 = vld [vmem:[#allocation3 + $0xc] sm:$0xf]
      %v6903 = vld [vmem:[#allocation3 + $0x10] sm:$0xf]
      %v6904 = vld [vmem:[#allocation3 + $0x14] sm:$0xf]
      %v6905 = vld [vmem:[#allocation3 + $0x18] sm:$0xf]
      %v6906 = vld [vmem:[#allocation3 + $0x1c] sm:$0xf]
      %v6907 = vld [vmem:[#allocation3 + $0x20] sm:$0xf]
      %v6908 = vld [vmem:[#allocation3 + $0x24] sm:$0xf]
      %v6909 = vld [vmem:[#allocation3 + $0x28] sm:$0xf]
      %v6910 = vld [vmem:[#allocation3 + $0x2c] sm:$0xf]
      %v6911 = vld [vmem:[#allocation3 + $0x30] sm:$0xf]
      %v6912 = vld [vmem:[#allocation3 + $0x34] sm:$0xf]
      %v6913 = vld [vmem:[#allocation3 + $0x38] sm:$0xf]
      %v6914 = vld [vmem:[#allocation3 + $0x3c] sm:$0xf]
      %v6915 = vld [vmem:[#allocation3 + $0x40] sm:$0xf]
      %v6916 = vld [vmem:[#allocation3 + $0x44] sm:$0xf]
      %v6917 = vld [vmem:[#allocation3 + $0x48] sm:$0xf]
      %v6918 = vld [vmem:[#allocation3 + $0x4c] sm:$0xf]
      %v6919 = vld [vmem:[#allocation3 + $0x50] sm:$0xf]
      %v6920 = vld [vmem:[#allocation3 + $0x54] sm:$0xf]
      %v6921 = vld [vmem:[#allocation3 + $0x58] sm:$0xf]
      %v6922 = vld [vmem:[#allocation3 + $0x5c] sm:$0xf]
      %v6923 = vld [vmem:[#allocation3 + $0x60] sm:$0xf]
      %v6924 = vld [vmem:[#allocation3 + $0x64] sm:$0xf]
      %v6925 = vld [vmem:[#allocation3 + $0x68] sm:$0xf]
      %v6926 = vld [vmem:[#allocation3 + $0x6c] sm:$0xf]
      %v6927 = vld [vmem:[#allocation3 + $0x70] sm:$0xf]
      %v6928 = vld [vmem:[#allocation3 + $0x74] sm:$0xf]
      %v6929 = vld [vmem:[#allocation3 + $0x78] sm:$0xf]
      %v6930 = vld [vmem:[#allocation3 + $0x7c] sm:$0xf]
      %v6931 = vld [vmem:[#allocation3 + $0x80] sm:$0xf]
      %v6932 = vld [vmem:[#allocation3 + $0x84] sm:$0xf]
      %v6933 = vld [vmem:[#allocation3 + $0x88] sm:$0xf]
      %v6934 = vld [vmem:[#allocation3 + $0x8c] sm:$0xf]
      %v6935 = vld [vmem:[#allocation3 + $0x90] sm:$0xf]
      %v6936 = vld [vmem:[#allocation3 + $0x94] sm:$0xf]
      %v6937 = vld [vmem:[#allocation3 + $0x98] sm:$0x1]
      %v6975 = vrot.slane %v6901, 5
      %v6976 = vrot.slane %v6975, 4
      %v6977 = vrot.slane %v6902, 5
      %v6978 = vsel %vm960, %v6976, %v6977
      %v6979 = vrot.slane %v6977, 4
      %v6980 = vrot.slane %v6903, 5
      %v6981 = vsel %vm960, %v6979, %v6980
      %v6982 = vrot.slane %v6980, 4
      %v6983 = vrot.slane %v6904, 5
      %v6984 = vsel %vm960, %v6982, %v6983
      %v6985 = vrot.slane %v6983, 4
      %v6986 = vrot.slane %v6905, 5
      %v6987 = vsel %vm960, %v6985, %v6986
      %v6988 = vrot.slane %v6986, 4
      %v6989 = vrot.slane %v6906, 5
      %v6990 = vsel %vm960, %v6988, %v6989
      %v6991 = vrot.slane %v6989, 4
      %v6992 = vrot.slane %v6907, 5
      %v6993 = vsel %vm960, %v6991, %v6992
      %v6994 = vrot.slane %v6992, 4
      %v6995 = vrot.slane %v6908, 5
      %v6996 = vsel %vm960, %v6994, %v6995
      %v6997 = vrot.slane %v6995, 4
      %v6998 = vrot.slane %v6909, 5
      %v6999 = vsel %vm960, %v6997, %v6998
      %v7000 = vrot.slane %v6998, 4
      %v7001 = vrot.slane %v6910, 5
      %v7002 = vsel %vm960, %v7000, %v7001
      %v7003 = vrot.slane %v7001, 4
      %v7004 = vrot.slane %v6911, 5
      %v7005 = vsel %vm960, %v7003, %v7004
      %v7006 = vrot.slane %v7004, 4
      %v7007 = vrot.slane %v6912, 5
      %v7008 = vsel %vm960, %v7006, %v7007
      %v7009 = vrot.slane %v7007, 4
      %v7010 = vrot.slane %v6913, 5
      %v7011 = vsel %vm960, %v7009, %v7010
      %v7012 = vrot.slane %v7010, 4
      %v7013 = vrot.slane %v6914, 5
      %v7014 = vsel %vm960, %v7012, %v7013
      %v7015 = vrot.slane %v7013, 4
      %v7016 = vrot.slane %v6915, 5
      %v7017 = vsel %vm960, %v7015, %v7016
      %v7018 = vrot.slane %v7016, 4
      %v7019 = vrot.slane %v6916, 5
      %v7020 = vsel %vm960, %v7018, %v7019
      %v7021 = vrot.slane %v7019, 4
      %v7022 = vrot.slane %v6917, 5
      %v7023 = vsel %vm960, %v7021, %v7022
      %v7024 = vrot.slane %v7022, 4
      %v7025 = vrot.slane %v6918, 5
      %v7026 = vsel %vm960, %v7024, %v7025
      %v7027 = vrot.slane %v7025, 4
      %v7028 = vrot.slane %v6919, 5
      %v7029 = vsel %vm960, %v7027, %v7028
      %v7030 = vrot.slane %v7028, 4
      %v7031 = vrot.slane %v6920, 5
      %v7032 = vsel %vm960, %v7030, %v7031
      %v7033 = vrot.slane %v7031, 4
      %v7034 = vrot.slane %v6921, 5
      %v7035 = vsel %vm960, %v7033, %v7034
      %v7036 = vrot.slane %v7034, 4
      %v7037 = vrot.slane %v6922, 5
      %v7038 = vsel %vm960, %v7036, %v7037
      %v7039 = vrot.slane %v7037, 4
      %v7040 = vrot.slane %v6923, 5
      %v7041 = vsel %vm960, %v7039, %v7040
      %v7042 = vrot.slane %v7040, 4
      %v7043 = vrot.slane %v6924, 5
      %v7044 = vsel %vm960, %v7042, %v7043
      %v7045 = vrot.slane %v7043, 4
      %v7046 = vrot.slane %v6925, 5
      %v7047 = vsel %vm960, %v7045, %v7046
      %v7048 = vrot.slane %v7046, 4
      %v7049 = vrot.slane %v6926, 5
      %v7050 = vsel %vm960, %v7048, %v7049
      %v7051 = vrot.slane %v7049, 4
      %v7052 = vrot.slane %v6927, 5
      %v7053 = vsel %vm960, %v7051, %v7052
      %v7054 = vrot.slane %v7052, 4
      %v7055 = vrot.slane %v6928, 5
      %v7056 = vsel %vm960, %v7054, %v7055
      %v7057 = vrot.slane %v7055, 4
      %v7058 = vrot.slane %v6929, 5
      %v7059 = vsel %vm960, %v7057, %v7058
      %v7060 = vrot.slane %v7058, 4
      %v7061 = vrot.slane %v6930, 5
      %v7062 = vsel %vm960, %v7060, %v7061
      %v7063 = vrot.slane %v7061, 4
      %v7064 = vrot.slane %v6931, 5
      %v7065 = vsel %vm960, %v7063, %v7064
      %v7066 = vrot.slane %v7064, 4
      %v7067 = vrot.slane %v6932, 5
      %v7068 = vsel %vm960, %v7066, %v7067
      %v7069 = vrot.slane %v7067, 4
      %v7070 = vrot.slane %v6933, 5
      %v7071 = vsel %vm960, %v7069, %v7070
      %v7072 = vrot.slane %v7070, 4
      %v7073 = vrot.slane %v6934, 5
      %v7074 = vsel %vm960, %v7072, %v7073
      %v7075 = vrot.slane %v7073, 4
      %v7076 = vrot.slane %v6935, 5
      %v7077 = vsel %vm960, %v7075, %v7076
      %v7078 = vrot.slane %v7076, 4
      %v7079 = vrot.slane %v6936, 5
      %v7080 = vsel %vm960, %v7078, %v7079
      %v7081 = vrot.slane %v7079, 4
      %v7082 = vrot.slane %v6937, 5
      %v7083 = vsel %vm960, %v7081, %v7082
      %7084 = vrot.lane.b32.xlu0 %v6978, 24
      %v7085 = vpop.permute.xlu0 %7084
      %7086 = vrot.lane.b32.xlu0 %v6981, 24
      %v7087 = vpop.permute.xlu0 %7086
      %7088 = vrot.lane.b32.xlu0 %v6984, 24
      %v7089 = vpop.permute.xlu0 %7088
      %7090 = vrot.lane.b32.xlu0 %v6987, 24
      %v7091 = vpop.permute.xlu0 %7090
      %7092 = vrot.lane.b32.xlu0 %v6990, 24
      %v7093 = vpop.permute.xlu0 %7092
      %7094 = vrot.lane.b32.xlu0 %v6993, 24
      %v7095 = vpop.permute.xlu0 %7094
      %7096 = vrot.lane.b32.xlu0 %v6996, 24
      %v7097 = vpop.permute.xlu0 %7096
      %7098 = vrot.lane.b32.xlu0 %v6999, 24
      %v7099 = vpop.permute.xlu0 %7098
      %7100 = vrot.lane.b32.xlu0 %v7002, 24
      %v7101 = vpop.permute.xlu0 %7100
      %7102 = vrot.lane.b32.xlu0 %v7005, 24
      %v7103 = vpop.permute.xlu0 %7102
      %7104 = vrot.lane.b32.xlu0 %v7008, 24
      %v7105 = vpop.permute.xlu0 %7104
      %7106 = vrot.lane.b32.xlu0 %v7011, 24
      %v7107 = vpop.permute.xlu0 %7106
      %7108 = vrot.lane.b32.xlu0 %v7014, 24
      %v7109 = vpop.permute.xlu0 %7108
      %7110 = vrot.lane.b32.xlu0 %v7017, 24
      %v7111 = vpop.permute.xlu0 %7110
      %7112 = vrot.lane.b32.xlu0 %v7020, 24
      %v7113 = vpop.permute.xlu0 %7112
      %7114 = vrot.lane.b32.xlu0 %v7023, 24
      %v7115 = vpop.permute.xlu0 %7114
      %7116 = vrot.lane.b32.xlu0 %v7026, 24
      %v7117 = vpop.permute.xlu0 %7116
      %7118 = vrot.lane.b32.xlu0 %v7029, 24
      %v7119 = vpop.permute.xlu0 %7118
      %7120 = vrot.lane.b32.xlu0 %v7032, 24
      %v7121 = vpop.permute.xlu0 %7120
      %7122 = vrot.lane.b32.xlu0 %v7035, 24
      %v7123 = vpop.permute.xlu0 %7122
      %7124 = vrot.lane.b32.xlu0 %v7038, 24
      %v7125 = vpop.permute.xlu0 %7124
      %7126 = vrot.lane.b32.xlu0 %v7041, 24
      %v7127 = vpop.permute.xlu0 %7126
      %7128 = vrot.lane.b32.xlu0 %v7044, 24
      %v7129 = vpop.permute.xlu0 %7128
      %7130 = vrot.lane.b32.xlu0 %v7047, 24
      %v7131 = vpop.permute.xlu0 %7130
      %7132 = vrot.lane.b32.xlu0 %v7050, 24
      %v7133 = vpop.permute.xlu0 %7132
      %7134 = vrot.lane.b32.xlu0 %v7053, 24
      %v7135 = vpop.permute.xlu0 %7134
      %7136 = vrot.lane.b32.xlu0 %v7056, 24
      %v7137 = vpop.permute.xlu0 %7136
      %7138 = vrot.lane.b32.xlu0 %v7059, 24
      %v7139 = vpop.permute.xlu0 %7138
      %7140 = vrot.lane.b32.xlu0 %v7062, 24
      %v7141 = vpop.permute.xlu0 %7140
      %7142 = vrot.lane.b32.xlu0 %v7065, 24
      %v7143 = vpop.permute.xlu0 %7142
      %7144 = vrot.lane.b32.xlu0 %v7068, 24
      %v7145 = vpop.permute.xlu0 %7144
      %7146 = vrot.lane.b32.xlu0 %v7071, 24
      %v7147 = vpop.permute.xlu0 %7146
      %7148 = vrot.lane.b32.xlu0 %v7074, 24
      %v7149 = vpop.permute.xlu0 %7148
      %7150 = vrot.lane.b32.xlu0 %v7077, 24
      %v7151 = vpop.permute.xlu0 %7150
      %7152 = vrot.lane.b32.xlu0 %v7080, 24
      %v7153 = vpop.permute.xlu0 %7152
      %7154 = vrot.lane.b32.xlu0 %v7083, 24
      %v7155 = vpop.permute.xlu0 %7154
      %7192 = vst.msk [vmem:[#allocation2] sm:$0xf] %vm1506, %v7085
      %7193 = vst.msk [vmem:[#allocation2 + $0x4] sm:$0xf] %vm1506, %v7087
      %7194 = vst.msk [vmem:[#allocation2 + $0x8] sm:$0xf] %vm1506, %v7089
      %7195 = vst.msk [vmem:[#allocation2 + $0xc] sm:$0xf] %vm1506, %v7091
      %7196 = vst.msk [vmem:[#allocation2 + $0x10] sm:$0xf] %vm1506, %v7093
      %7197 = vst.msk [vmem:[#allocation2 + $0x14] sm:$0xf] %vm1506, %v7095
      %7198 = vst.msk [vmem:[#allocation2 + $0x18] sm:$0xf] %vm1506, %v7097
      %7199 = vst.msk [vmem:[#allocation2 + $0x1c] sm:$0xf] %vm1506, %v7099
      %7200 = vst.msk [vmem:[#allocation2 + $0x20] sm:$0xf] %vm1506, %v7101
      %7201 = vst.msk [vmem:[#allocation2 + $0x24] sm:$0xf] %vm1506, %v7103
      %7202 = vst.msk [vmem:[#allocation2 + $0x28] sm:$0xf] %vm1506, %v7105
      %7203 = vst.msk [vmem:[#allocation2 + $0x2c] sm:$0xf] %vm1506, %v7107
      %7204 = vst.msk [vmem:[#allocation2 + $0x30] sm:$0xf] %vm1506, %v7109
      %7205 = vst.msk [vmem:[#allocation2 + $0x34] sm:$0xf] %vm1506, %v7111
      %7206 = vst.msk [vmem:[#allocation2 + $0x38] sm:$0xf] %vm1506, %v7113
      %7207 = vst.msk [vmem:[#allocation2 + $0x3c] sm:$0xf] %vm1506, %v7115
      %7208 = vst.msk [vmem:[#allocation2 + $0x40] sm:$0xf] %vm1506, %v7117
      %7209 = vst.msk [vmem:[#allocation2 + $0x44] sm:$0xf] %vm1506, %v7119
      %7210 = vst.msk [vmem:[#allocation2 + $0x48] sm:$0xf] %vm1506, %v7121
      %7211 = vst.msk [vmem:[#allocation2 + $0x4c] sm:$0xf] %vm1506, %v7123
      %7212 = vst.msk [vmem:[#allocation2 + $0x50] sm:$0xf] %vm1506, %v7125
      %7213 = vst.msk [vmem:[#allocation2 + $0x54] sm:$0xf] %vm1506, %v7127
      %7214 = vst.msk [vmem:[#allocation2 + $0x58] sm:$0xf] %vm1506, %v7129
      %7215 = vst.msk [vmem:[#allocation2 + $0x5c] sm:$0xf] %vm1506, %v7131
      %7216 = vst.msk [vmem:[#allocation2 + $0x60] sm:$0xf] %vm1506, %v7133
      %7217 = vst.msk [vmem:[#allocation2 + $0x64] sm:$0xf] %vm1506, %v7135
      %7218 = vst.msk [vmem:[#allocation2 + $0x68] sm:$0xf] %vm1506, %v7137
      %7219 = vst.msk [vmem:[#allocation2 + $0x6c] sm:$0xf] %vm1506, %v7139
      %7220 = vst.msk [vmem:[#allocation2 + $0x70] sm:$0xf] %vm1506, %v7141
      %7221 = vst.msk [vmem:[#allocation2 + $0x74] sm:$0xf] %vm1506, %v7143
      %7222 = vst.msk [vmem:[#allocation2 + $0x78] sm:$0xf] %vm1506, %v7145
      %7223 = vst.msk [vmem:[#allocation2 + $0x7c] sm:$0xf] %vm1506, %v7147
      %7224 = vst.msk [vmem:[#allocation2 + $0x80] sm:$0xf] %vm1506, %v7149
      %7225 = vst.msk [vmem:[#allocation2 + $0x84] sm:$0xf] %vm1506, %v7151
      %7226 = vst.msk [vmem:[#allocation2 + $0x88] sm:$0xf] %vm1506, %v7153
      %7227 = vst.msk [vmem:[#allocation2 + $0x8c] sm:$0xf] %vm1506, %v7155
      %v7228 = vld [vmem:[#allocation3 + $0x8] sm:$0xe]
      %v7229 = vld [vmem:[#allocation3 + $0xc] sm:$0xf]
      %v7230 = vld [vmem:[#allocation3 + $0x10] sm:$0xf]
      %v7231 = vld [vmem:[#allocation3 + $0x14] sm:$0xf]
      %v7232 = vld [vmem:[#allocation3 + $0x18] sm:$0xf]
      %v7233 = vld [vmem:[#allocation3 + $0x1c] sm:$0xf]
      %v7234 = vld [vmem:[#allocation3 + $0x20] sm:$0xf]
      %v7235 = vld [vmem:[#allocation3 + $0x24] sm:$0xf]
      %v7236 = vld [vmem:[#allocation3 + $0x28] sm:$0xf]
      %v7237 = vld [vmem:[#allocation3 + $0x2c] sm:$0xf]
      %v7238 = vld [vmem:[#allocation3 + $0x30] sm:$0xf]
      %v7239 = vld [vmem:[#allocation3 + $0x34] sm:$0xf]
      %v7240 = vld [vmem:[#allocation3 + $0x38] sm:$0xf]
      %v7241 = vld [vmem:[#allocation3 + $0x3c] sm:$0xf]
      %v7242 = vld [vmem:[#allocation3 + $0x40] sm:$0xf]
      %v7243 = vld [vmem:[#allocation3 + $0x44] sm:$0xf]
      %v7244 = vld [vmem:[#allocation3 + $0x48] sm:$0xf]
      %v7245 = vld [vmem:[#allocation3 + $0x4c] sm:$0xf]
      %v7246 = vld [vmem:[#allocation3 + $0x50] sm:$0xf]
      %v7247 = vld [vmem:[#allocation3 + $0x54] sm:$0xf]
      %v7248 = vld [vmem:[#allocation3 + $0x58] sm:$0xf]
      %v7249 = vld [vmem:[#allocation3 + $0x5c] sm:$0xf]
      %v7250 = vld [vmem:[#allocation3 + $0x60] sm:$0xf]
      %v7251 = vld [vmem:[#allocation3 + $0x64] sm:$0xf]
      %v7252 = vld [vmem:[#allocation3 + $0x68] sm:$0xf]
      %v7253 = vld [vmem:[#allocation3 + $0x6c] sm:$0xf]
      %v7254 = vld [vmem:[#allocation3 + $0x70] sm:$0xf]
      %v7255 = vld [vmem:[#allocation3 + $0x74] sm:$0xf]
      %v7256 = vld [vmem:[#allocation3 + $0x78] sm:$0xf]
      %v7257 = vld [vmem:[#allocation3 + $0x7c] sm:$0xf]
      %v7258 = vld [vmem:[#allocation3 + $0x80] sm:$0xf]
      %v7259 = vld [vmem:[#allocation3 + $0x84] sm:$0xf]
      %v7260 = vld [vmem:[#allocation3 + $0x88] sm:$0xf]
      %v7261 = vld [vmem:[#allocation3 + $0x8c] sm:$0xf]
      %v7262 = vld [vmem:[#allocation3 + $0x90] sm:$0xf]
      %v7263 = vld [vmem:[#allocation3 + $0x94] sm:$0xf]
      %v7264 = vld [vmem:[#allocation3 + $0x98] sm:$0x3]
      %v7266 = vshrl.u32 %v7228, 16
      %v7268 = vrot.slane %v7266, 5
      %v7269 = vshll.u32 %v7228, 16
      %v7271 = vrot.slane %v7269, 6
      %v7272 = vor.u32 %v7268, %v7271
      %v7273 = vrot.slane %v7272, 4
      %v7275 = vshrl.u32 %v7229, 16
      %v7277 = vrot.slane %v7275, 5
      %v7278 = vshll.u32 %v7229, 16
      %v7280 = vrot.slane %v7278, 6
      %v7281 = vor.u32 %v7277, %v7280
      %v7282 = vsel %vm1582, %v7273, %v7281
      %v7283 = vrot.slane %v7281, 4
      %v7285 = vshrl.u32 %v7230, 16
      %v7287 = vrot.slane %v7285, 5
      %v7288 = vshll.u32 %v7230, 16
      %v7290 = vrot.slane %v7288, 6
      %v7291 = vor.u32 %v7287, %v7290
      %v7292 = vsel %vm1582, %v7283, %v7291
      %v7293 = vrot.slane %v7291, 4
      %v7295 = vshrl.u32 %v7231, 16
      %v7297 = vrot.slane %v7295, 5
      %v7298 = vshll.u32 %v7231, 16
      %v7300 = vrot.slane %v7298, 6
      %v7301 = vor.u32 %v7297, %v7300
      %v7302 = vsel %vm1582, %v7293, %v7301
      %v7303 = vrot.slane %v7301, 4
      %v7305 = vshrl.u32 %v7232, 16
      %v7307 = vrot.slane %v7305, 5
      %v7308 = vshll.u32 %v7232, 16
      %v7310 = vrot.slane %v7308, 6
      %v7311 = vor.u32 %v7307, %v7310
      %v7312 = vsel %vm1582, %v7303, %v7311
      %v7313 = vrot.slane %v7311, 4
      %v7315 = vshrl.u32 %v7233, 16
      %v7317 = vrot.slane %v7315, 5
      %v7318 = vshll.u32 %v7233, 16
      %v7320 = vrot.slane %v7318, 6
      %v7321 = vor.u32 %v7317, %v7320
      %v7322 = vsel %vm1582, %v7313, %v7321
      %v7323 = vrot.slane %v7321, 4
      %v7325 = vshrl.u32 %v7234, 16
      %v7327 = vrot.slane %v7325, 5
      %v7328 = vshll.u32 %v7234, 16
      %v7330 = vrot.slane %v7328, 6
      %v7331 = vor.u32 %v7327, %v7330
      %v7332 = vsel %vm1582, %v7323, %v7331
      %v7333 = vrot.slane %v7331, 4
      %v7335 = vshrl.u32 %v7235, 16
      %v7337 = vrot.slane %v7335, 5
      %v7338 = vshll.u32 %v7235, 16
      %v7340 = vrot.slane %v7338, 6
      %v7341 = vor.u32 %v7337, %v7340
      %v7342 = vsel %vm1582, %v7333, %v7341
      %v7343 = vrot.slane %v7341, 4
      %v7345 = vshrl.u32 %v7236, 16
      %v7347 = vrot.slane %v7345, 5
      %v7348 = vshll.u32 %v7236, 16
      %v7350 = vrot.slane %v7348, 6
      %v7351 = vor.u32 %v7347, %v7350
      %v7352 = vsel %vm1582, %v7343, %v7351
      %v7353 = vrot.slane %v7351, 4
      %v7355 = vshrl.u32 %v7237, 16
      %v7357 = vrot.slane %v7355, 5
      %v7358 = vshll.u32 %v7237, 16
      %v7360 = vrot.slane %v7358, 6
      %v7361 = vor.u32 %v7357, %v7360
      %v7362 = vsel %vm1582, %v7353, %v7361
      %v7363 = vrot.slane %v7361, 4
      %v7365 = vshrl.u32 %v7238, 16
      %v7367 = vrot.slane %v7365, 5
      %v7368 = vshll.u32 %v7238, 16
      %v7370 = vrot.slane %v7368, 6
      %v7371 = vor.u32 %v7367, %v7370
      %v7372 = vsel %vm1582, %v7363, %v7371
      %v7373 = vrot.slane %v7371, 4
      %v7375 = vshrl.u32 %v7239, 16
      %v7377 = vrot.slane %v7375, 5
      %v7378 = vshll.u32 %v7239, 16
      %v7380 = vrot.slane %v7378, 6
      %v7381 = vor.u32 %v7377, %v7380
      %v7382 = vsel %vm1582, %v7373, %v7381
      %v7383 = vrot.slane %v7381, 4
      %v7385 = vshrl.u32 %v7240, 16
      %v7387 = vrot.slane %v7385, 5
      %v7388 = vshll.u32 %v7240, 16
      %v7390 = vrot.slane %v7388, 6
      %v7391 = vor.u32 %v7387, %v7390
      %v7392 = vsel %vm1582, %v7383, %v7391
      %v7393 = vrot.slane %v7391, 4
      %v7395 = vshrl.u32 %v7241, 16
      %v7397 = vrot.slane %v7395, 5
      %v7398 = vshll.u32 %v7241, 16
      %v7400 = vrot.slane %v7398, 6
      %v7401 = vor.u32 %v7397, %v7400
      %v7402 = vsel %vm1582, %v7393, %v7401
      %v7403 = vrot.slane %v7401, 4
      %v7405 = vshrl.u32 %v7242, 16
      %v7407 = vrot.slane %v7405, 5
      %v7408 = vshll.u32 %v7242, 16
      %v7410 = vrot.slane %v7408, 6
      %v7411 = vor.u32 %v7407, %v7410
      %v7412 = vsel %vm1582, %v7403, %v7411
      %v7413 = vrot.slane %v7411, 4
      %v7415 = vshrl.u32 %v7243, 16
      %v7417 = vrot.slane %v7415, 5
      %v7418 = vshll.u32 %v7243, 16
      %v7420 = vrot.slane %v7418, 6
      %v7421 = vor.u32 %v7417, %v7420
      %v7422 = vsel %vm1582, %v7413, %v7421
      %v7423 = vrot.slane %v7421, 4
      %v7425 = vshrl.u32 %v7244, 16
      %v7427 = vrot.slane %v7425, 5
      %v7428 = vshll.u32 %v7244, 16
      %v7430 = vrot.slane %v7428, 6
      %v7431 = vor.u32 %v7427, %v7430
      %v7432 = vsel %vm1582, %v7423, %v7431
      %v7433 = vrot.slane %v7431, 4
      %v7435 = vshrl.u32 %v7245, 16
      %v7437 = vrot.slane %v7435, 5
      %v7438 = vshll.u32 %v7245, 16
      %v7440 = vrot.slane %v7438, 6
      %v7441 = vor.u32 %v7437, %v7440
      %v7442 = vsel %vm1582, %v7433, %v7441
      %v7443 = vrot.slane %v7441, 4
      %v7445 = vshrl.u32 %v7246, 16
      %v7447 = vrot.slane %v7445, 5
      %v7448 = vshll.u32 %v7246, 16
      %v7450 = vrot.slane %v7448, 6
      %v7451 = vor.u32 %v7447, %v7450
      %v7452 = vsel %vm1582, %v7443, %v7451
      %v7453 = vrot.slane %v7451, 4
      %v7455 = vshrl.u32 %v7247, 16
      %v7457 = vrot.slane %v7455, 5
      %v7458 = vshll.u32 %v7247, 16
      %v7460 = vrot.slane %v7458, 6
      %v7461 = vor.u32 %v7457, %v7460
      %v7462 = vsel %vm1582, %v7453, %v7461
      %v7463 = vrot.slane %v7461, 4
      %v7465 = vshrl.u32 %v7248, 16
      %v7467 = vrot.slane %v7465, 5
      %v7468 = vshll.u32 %v7248, 16
      %v7470 = vrot.slane %v7468, 6
      %v7471 = vor.u32 %v7467, %v7470
      %v7472 = vsel %vm1582, %v7463, %v7471
      %v7473 = vrot.slane %v7471, 4
      %v7475 = vshrl.u32 %v7249, 16
      %v7477 = vrot.slane %v7475, 5
      %v7478 = vshll.u32 %v7249, 16
      %v7480 = vrot.slane %v7478, 6
      %v7481 = vor.u32 %v7477, %v7480
      %v7482 = vsel %vm1582, %v7473, %v7481
      %v7483 = vrot.slane %v7481, 4
      %v7485 = vshrl.u32 %v7250, 16
      %v7487 = vrot.slane %v7485, 5
      %v7488 = vshll.u32 %v7250, 16
      %v7490 = vrot.slane %v7488, 6
      %v7491 = vor.u32 %v7487, %v7490
      %v7492 = vsel %vm1582, %v7483, %v7491
      %v7493 = vrot.slane %v7491, 4
      %v7495 = vshrl.u32 %v7251, 16
      %v7497 = vrot.slane %v7495, 5
      %v7498 = vshll.u32 %v7251, 16
      %v7500 = vrot.slane %v7498, 6
      %v7501 = vor.u32 %v7497, %v7500
      %v7502 = vsel %vm1582, %v7493, %v7501
      %v7503 = vrot.slane %v7501, 4
      %v7505 = vshrl.u32 %v7252, 16
      %v7507 = vrot.slane %v7505, 5
      %v7508 = vshll.u32 %v7252, 16
      %v7510 = vrot.slane %v7508, 6
      %v7511 = vor.u32 %v7507, %v7510
      %v7512 = vsel %vm1582, %v7503, %v7511
      %v7513 = vrot.slane %v7511, 4
      %v7515 = vshrl.u32 %v7253, 16
      %v7517 = vrot.slane %v7515, 5
      %v7518 = vshll.u32 %v7253, 16
      %v7520 = vrot.slane %v7518, 6
      %v7521 = vor.u32 %v7517, %v7520
      %v7522 = vsel %vm1582, %v7513, %v7521
      %v7523 = vrot.slane %v7521, 4
      %v7525 = vshrl.u32 %v7254, 16
      %v7527 = vrot.slane %v7525, 5
      %v7528 = vshll.u32 %v7254, 16
      %v7530 = vrot.slane %v7528, 6
      %v7531 = vor.u32 %v7527, %v7530
      %v7532 = vsel %vm1582, %v7523, %v7531
      %v7533 = vrot.slane %v7531, 4
      %v7535 = vshrl.u32 %v7255, 16
      %v7537 = vrot.slane %v7535, 5
      %v7538 = vshll.u32 %v7255, 16
      %v7540 = vrot.slane %v7538, 6
      %v7541 = vor.u32 %v7537, %v7540
      %v7542 = vsel %vm1582, %v7533, %v7541
      %v7543 = vrot.slane %v7541, 4
      %v7545 = vshrl.u32 %v7256, 16
      %v7547 = vrot.slane %v7545, 5
      %v7548 = vshll.u32 %v7256, 16
      %v7550 = vrot.slane %v7548, 6
      %v7551 = vor.u32 %v7547, %v7550
      %v7552 = vsel %vm1582, %v7543, %v7551
      %v7553 = vrot.slane %v7551, 4
      %v7555 = vshrl.u32 %v7257, 16
      %v7557 = vrot.slane %v7555, 5
      %v7558 = vshll.u32 %v7257, 16
      %v7560 = vrot.slane %v7558, 6
      %v7561 = vor.u32 %v7557, %v7560
      %v7562 = vsel %vm1582, %v7553, %v7561
      %v7563 = vrot.slane %v7561, 4
      %v7565 = vshrl.u32 %v7258, 16
      %v7567 = vrot.slane %v7565, 5
      %v7568 = vshll.u32 %v7258, 16
      %v7570 = vrot.slane %v7568, 6
      %v7571 = vor.u32 %v7567, %v7570
      %v7572 = vsel %vm1582, %v7563, %v7571
      %v7573 = vrot.slane %v7571, 4
      %v7575 = vshrl.u32 %v7259, 16
      %v7577 = vrot.slane %v7575, 5
      %v7578 = vshll.u32 %v7259, 16
      %v7580 = vrot.slane %v7578, 6
      %v7581 = vor.u32 %v7577, %v7580
      %v7582 = vsel %vm1582, %v7573, %v7581
      %v7583 = vrot.slane %v7581, 4
      %v7585 = vshrl.u32 %v7260, 16
      %v7587 = vrot.slane %v7585, 5
      %v7588 = vshll.u32 %v7260, 16
      %v7590 = vrot.slane %v7588, 6
      %v7591 = vor.u32 %v7587, %v7590
      %v7592 = vsel %vm1582, %v7583, %v7591
      %v7593 = vrot.slane %v7591, 4
      %v7595 = vshrl.u32 %v7261, 16
      %v7597 = vrot.slane %v7595, 5
      %v7598 = vshll.u32 %v7261, 16
      %v7600 = vrot.slane %v7598, 6
      %v7601 = vor.u32 %v7597, %v7600
      %v7602 = vsel %vm1582, %v7593, %v7601
      %v7603 = vrot.slane %v7601, 4
      %v7605 = vshrl.u32 %v7262, 16
      %v7607 = vrot.slane %v7605, 5
      %v7608 = vshll.u32 %v7262, 16
      %v7610 = vrot.slane %v7608, 6
      %v7611 = vor.u32 %v7607, %v7610
      %v7612 = vsel %vm1582, %v7603, %v7611
      %v7613 = vrot.slane %v7611, 4
      %v7615 = vshrl.u32 %v7263, 16
      %v7617 = vrot.slane %v7615, 5
      %v7618 = vshll.u32 %v7263, 16
      %v7620 = vrot.slane %v7618, 6
      %v7621 = vor.u32 %v7617, %v7620
      %v7622 = vsel %vm1582, %v7613, %v7621
      %v7623 = vrot.slane %v7621, 4
      %v7625 = vshrl.u32 %v7264, 16
      %v7627 = vrot.slane %v7625, 5
      %v7628 = vshll.u32 %v7264, 16
      %v7630 = vrot.slane %v7628, 6
      %v7631 = vor.u32 %v7627, %v7630
      %v7632 = vsel %vm1582, %v7623, %v7631
      %7633 = vrot.lane.b32.xlu0 %v7282, 32
      %v7634 = vpop.permute.xlu0 %7633
      %7635 = vrot.lane.b32.xlu0 %v7292, 32
      %v7636 = vpop.permute.xlu0 %7635
      %7637 = vrot.lane.b32.xlu0 %v7302, 32
      %v7638 = vpop.permute.xlu0 %7637
      %7639 = vrot.lane.b32.xlu0 %v7312, 32
      %v7640 = vpop.permute.xlu0 %7639
      %7641 = vrot.lane.b32.xlu0 %v7322, 32
      %v7642 = vpop.permute.xlu0 %7641
      %7643 = vrot.lane.b32.xlu0 %v7332, 32
      %v7644 = vpop.permute.xlu0 %7643
      %7645 = vrot.lane.b32.xlu0 %v7342, 32
      %v7646 = vpop.permute.xlu0 %7645
      %7647 = vrot.lane.b32.xlu0 %v7352, 32
      %v7648 = vpop.permute.xlu0 %7647
      %7649 = vrot.lane.b32.xlu0 %v7362, 32
      %v7650 = vpop.permute.xlu0 %7649
      %7651 = vrot.lane.b32.xlu0 %v7372, 32
      %v7652 = vpop.permute.xlu0 %7651
      %7653 = vrot.lane.b32.xlu0 %v7382, 32
      %v7654 = vpop.permute.xlu0 %7653
      %7655 = vrot.lane.b32.xlu0 %v7392, 32
      %v7656 = vpop.permute.xlu0 %7655
      %7657 = vrot.lane.b32.xlu0 %v7402, 32
      %v7658 = vpop.permute.xlu0 %7657
      %7659 = vrot.lane.b32.xlu0 %v7412, 32
      %v7660 = vpop.permute.xlu0 %7659
      %7661 = vrot.lane.b32.xlu0 %v7422, 32
      %v7662 = vpop.permute.xlu0 %7661
      %7663 = vrot.lane.b32.xlu0 %v7432, 32
      %v7664 = vpop.permute.xlu0 %7663
      %7665 = vrot.lane.b32.xlu0 %v7442, 32
      %v7666 = vpop.permute.xlu0 %7665
      %7667 = vrot.lane.b32.xlu0 %v7452, 32
      %v7668 = vpop.permute.xlu0 %7667
      %7669 = vrot.lane.b32.xlu0 %v7462, 32
      %v7670 = vpop.permute.xlu0 %7669
      %7671 = vrot.lane.b32.xlu0 %v7472, 32
      %v7672 = vpop.permute.xlu0 %7671
      %7673 = vrot.lane.b32.xlu0 %v7482, 32
      %v7674 = vpop.permute.xlu0 %7673
      %7675 = vrot.lane.b32.xlu0 %v7492, 32
      %v7676 = vpop.permute.xlu0 %7675
      %7677 = vrot.lane.b32.xlu0 %v7502, 32
      %v7678 = vpop.permute.xlu0 %7677
      %7679 = vrot.lane.b32.xlu0 %v7512, 32
      %v7680 = vpop.permute.xlu0 %7679
      %7681 = vrot.lane.b32.xlu0 %v7522, 32
      %v7682 = vpop.permute.xlu0 %7681
      %7683 = vrot.lane.b32.xlu0 %v7532, 32
      %v7684 = vpop.permute.xlu0 %7683
      %7685 = vrot.lane.b32.xlu0 %v7542, 32
      %v7686 = vpop.permute.xlu0 %7685
      %7687 = vrot.lane.b32.xlu0 %v7552, 32
      %v7688 = vpop.permute.xlu0 %7687
      %7689 = vrot.lane.b32.xlu0 %v7562, 32
      %v7690 = vpop.permute.xlu0 %7689
      %7691 = vrot.lane.b32.xlu0 %v7572, 32
      %v7692 = vpop.permute.xlu0 %7691
      %7693 = vrot.lane.b32.xlu0 %v7582, 32
      %v7694 = vpop.permute.xlu0 %7693
      %7695 = vrot.lane.b32.xlu0 %v7592, 32
      %v7696 = vpop.permute.xlu0 %7695
      %7697 = vrot.lane.b32.xlu0 %v7602, 32
      %v7698 = vpop.permute.xlu0 %7697
      %7699 = vrot.lane.b32.xlu0 %v7612, 32
      %v7700 = vpop.permute.xlu0 %7699
      %7701 = vrot.lane.b32.xlu0 %v7622, 32
      %v7702 = vpop.permute.xlu0 %7701
      %7703 = vrot.lane.b32.xlu0 %v7632, 32
      %v7704 = vpop.permute.xlu0 %7703
      %7741 = vst.msk [vmem:[#allocation2] sm:$0xf] %vm2059, %v7634
      %7742 = vst.msk [vmem:[#allocation2 + $0x4] sm:$0xf] %vm2059, %v7636
      %7743 = vst.msk [vmem:[#allocation2 + $0x8] sm:$0xf] %vm2059, %v7638
      %7744 = vst.msk [vmem:[#allocation2 + $0xc] sm:$0xf] %vm2059, %v7640
      %7745 = vst.msk [vmem:[#allocation2 + $0x10] sm:$0xf] %vm2059, %v7642
      %7746 = vst.msk [vmem:[#allocation2 + $0x14] sm:$0xf] %vm2059, %v7644
      %7747 = vst.msk [vmem:[#allocation2 + $0x18] sm:$0xf] %vm2059, %v7646
      %7748 = vst.msk [vmem:[#allocation2 + $0x1c] sm:$0xf] %vm2059, %v7648
      %7749 = vst.msk [vmem:[#allocation2 + $0x20] sm:$0xf] %vm2059, %v7650
      %7750 = vst.msk [vmem:[#allocation2 + $0x24] sm:$0xf] %vm2059, %v7652
      %7751 = vst.msk [vmem:[#allocation2 + $0x28] sm:$0xf] %vm2059, %v7654
      %7752 = vst.msk [vmem:[#allocation2 + $0x2c] sm:$0xf] %vm2059, %v7656
      %7753 = vst.msk [vmem:[#allocation2 + $0x30] sm:$0xf] %vm2059, %v7658
      %7754 = vst.msk [vmem:[#allocation2 + $0x34] sm:$0xf] %vm2059, %v7660
      %7755 = vst.msk [vmem:[#allocation2 + $0x38] sm:$0xf] %vm2059, %v7662
      %7756 = vst.msk [vmem:[#allocation2 + $0x3c] sm:$0xf] %vm2059, %v7664
      %7757 = vst.msk [vmem:[#allocation2 + $0x40] sm:$0xf] %vm2059, %v7666
      %7758 = vst.msk [vmem:[#allocation2 + $0x44] sm:$0xf] %vm2059, %v7668
      %7759 = vst.msk [vmem:[#allocation2 + $0x48] sm:$0xf] %vm2059, %v7670
      %7760 = vst.msk [vmem:[#allocation2 + $0x4c] sm:$0xf] %vm2059, %v7672
      %7761 = vst.msk [vmem:[#allocation2 + $0x50] sm:$0xf] %vm2059, %v7674
      %7762 = vst.msk [vmem:[#allocation2 + $0x54] sm:$0xf] %vm2059, %v7676
      %7763 = vst.msk [vmem:[#allocation2 + $0x58] sm:$0xf] %vm2059, %v7678
      %7764 = vst.msk [vmem:[#allocation2 + $0x5c] sm:$0xf] %vm2059, %v7680
      %7765 = vst.msk [vmem:[#allocation2 + $0x60] sm:$0xf] %vm2059, %v7682
      %7766 = vst.msk [vmem:[#allocation2 + $0x64] sm:$0xf] %vm2059, %v7684
      %7767 = vst.msk [vmem:[#allocation2 + $0x68] sm:$0xf] %vm2059, %v7686
      %7768 = vst.msk [vmem:[#allocation2 + $0x6c] sm:$0xf] %vm2059, %v7688
      %7769 = vst.msk [vmem:[#allocation2 + $0x70] sm:$0xf] %vm2059, %v7690
      %7770 = vst.msk [vmem:[#allocation2 + $0x74] sm:$0xf] %vm2059, %v7692
      %7771 = vst.msk [vmem:[#allocation2 + $0x78] sm:$0xf] %vm2059, %v7694
      %7772 = vst.msk [vmem:[#allocation2 + $0x7c] sm:$0xf] %vm2059, %v7696
      %7773 = vst.msk [vmem:[#allocation2 + $0x80] sm:$0xf] %vm2059, %v7698
      %7774 = vst.msk [vmem:[#allocation2 + $0x84] sm:$0xf] %vm2059, %v7700
      %7775 = vst.msk [vmem:[#allocation2 + $0x88] sm:$0xf] %vm2059, %v7702
      %7776 = vst.msk [vmem:[#allocation2 + $0x8c] sm:$0xf] %vm2059, %v7704
      %v7777 = vld [vmem:[#allocation3 + $0x8] sm:$0xc]
      %v7778 = vld [vmem:[#allocation3 + $0xc] sm:$0xf]
      %v7779 = vld [vmem:[#allocation3 + $0x10] sm:$0xf]
      %v7780 = vld [vmem:[#allocation3 + $0x14] sm:$0xf]
      %v7781 = vld [vmem:[#allocation3 + $0x18] sm:$0xf]
      %v7782 = vld [vmem:[#allocation3 + $0x1c] sm:$0xf]
      %v7783 = vld [vmem:[#allocation3 + $0x20] sm:$0xf]
      %v7784 = vld [vmem:[#allocation3 + $0x24] sm:$0xf]
      %v7785 = vld [vmem:[#allocation3 + $0x28] sm:$0xf]
      %v7786 = vld [vmem:[#allocation3 + $0x2c] sm:$0xf]
      %v7787 = vld [vmem:[#allocation3 + $0x30] sm:$0xf]
      %v7788 = vld [vmem:[#allocation3 + $0x34] sm:$0xf]
      %v7789 = vld [vmem:[#allocation3 + $0x38] sm:$0xf]
      %v7790 = vld [vmem:[#allocation3 + $0x3c] sm:$0xf]
      %v7791 = vld [vmem:[#allocation3 + $0x40] sm:$0xf]
      %v7792 = vld [vmem:[#allocation3 + $0x44] sm:$0xf]
      %v7793 = vld [vmem:[#allocation3 + $0x48] sm:$0xf]
      %v7794 = vld [vmem:[#allocation3 + $0x4c] sm:$0xf]
      %v7795 = vld [vmem:[#allocation3 + $0x50] sm:$0xf]
      %v7796 = vld [vmem:[#allocation3 + $0x54] sm:$0xf]
      %v7797 = vld [vmem:[#allocation3 + $0x58] sm:$0xf]
      %v7798 = vld [vmem:[#allocation3 + $0x5c] sm:$0xf]
      %v7799 = vld [vmem:[#allocation3 + $0x60] sm:$0xf]
      %v7800 = vld [vmem:[#allocation3 + $0x64] sm:$0xf]
      %v7801 = vld [vmem:[#allocation3 + $0x68] sm:$0xf]
      %v7802 = vld [vmem:[#allocation3 + $0x6c] sm:$0xf]
      %v7803 = vld [vmem:[#allocation3 + $0x70] sm:$0xf]
      %v7804 = vld [vmem:[#allocation3 + $0x74] sm:$0xf]
      %v7805 = vld [vmem:[#allocation3 + $0x78] sm:$0xf]
      %v7806 = vld [vmem:[#allocation3 + $0x7c] sm:$0xf]
      %v7807 = vld [vmem:[#allocation3 + $0x80] sm:$0xf]
      %v7808 = vld [vmem:[#allocation3 + $0x84] sm:$0xf]
      %v7809 = vld [vmem:[#allocation3 + $0x88] sm:$0xf]
      %v7810 = vld [vmem:[#allocation3 + $0x8c] sm:$0xf]
      %v7811 = vld [vmem:[#allocation3 + $0x90] sm:$0xf]
      %v7812 = vld [vmem:[#allocation3 + $0x94] sm:$0xf]
      %v7813 = vld [vmem:[#allocation3 + $0x98] sm:$0x3]
      %v7851 = vrot.slane %v7777, 6
      %v7852 = vrot.slane %v7851, 4
      %v7853 = vrot.slane %v7778, 6
      %v7854 = vsel %vm2172, %v7852, %v7853
      %v7855 = vrot.slane %v7853, 4
      %v7856 = vrot.slane %v7779, 6
      %v7857 = vsel %vm2172, %v7855, %v7856
      %v7858 = vrot.slane %v7856, 4
      %v7859 = vrot.slane %v7780, 6
      %v7860 = vsel %vm2172, %v7858, %v7859
      %v7861 = vrot.slane %v7859, 4
      %v7862 = vrot.slane %v7781, 6
      %v7863 = vsel %vm2172, %v7861, %v7862
      %v7864 = vrot.slane %v7862, 4
      %v7865 = vrot.slane %v7782, 6
      %v7866 = vsel %vm2172, %v7864, %v7865
      %v7867 = vrot.slane %v7865, 4
      %v7868 = vrot.slane %v7783, 6
      %v7869 = vsel %vm2172, %v7867, %v7868
      %v7870 = vrot.slane %v7868, 4
      %v7871 = vrot.slane %v7784, 6
      %v7872 = vsel %vm2172, %v7870, %v7871
      %v7873 = vrot.slane %v7871, 4
      %v7874 = vrot.slane %v7785, 6
      %v7875 = vsel %vm2172, %v7873, %v7874
      %v7876 = vrot.slane %v7874, 4
      %v7877 = vrot.slane %v7786, 6
      %v7878 = vsel %vm2172, %v7876, %v7877
      %v7879 = vrot.slane %v7877, 4
      %v7880 = vrot.slane %v7787, 6
      %v7881 = vsel %vm2172, %v7879, %v7880
      %v7882 = vrot.slane %v7880, 4
      %v7883 = vrot.slane %v7788, 6
      %v7884 = vsel %vm2172, %v7882, %v7883
      %v7885 = vrot.slane %v7883, 4
      %v7886 = vrot.slane %v7789, 6
      %v7887 = vsel %vm2172, %v7885, %v7886
      %v7888 = vrot.slane %v7886, 4
      %v7889 = vrot.slane %v7790, 6
      %v7890 = vsel %vm2172, %v7888, %v7889
      %v7891 = vrot.slane %v7889, 4
      %v7892 = vrot.slane %v7791, 6
      %v7893 = vsel %vm2172, %v7891, %v7892
      %v7894 = vrot.slane %v7892, 4
      %v7895 = vrot.slane %v7792, 6
      %v7896 = vsel %vm2172, %v7894, %v7895
      %v7897 = vrot.slane %v7895, 4
      %v7898 = vrot.slane %v7793, 6
      %v7899 = vsel %vm2172, %v7897, %v7898
      %v7900 = vrot.slane %v7898, 4
      %v7901 = vrot.slane %v7794, 6
      %v7902 = vsel %vm2172, %v7900, %v7901
      %v7903 = vrot.slane %v7901, 4
      %v7904 = vrot.slane %v7795, 6
      %v7905 = vsel %vm2172, %v7903, %v7904
      %v7906 = vrot.slane %v7904, 4
      %v7907 = vrot.slane %v7796, 6
      %v7908 = vsel %vm2172, %v7906, %v7907
      %v7909 = vrot.slane %v7907, 4
      %v7910 = vrot.slane %v7797, 6
      %v7911 = vsel %vm2172, %v7909, %v7910
      %v7912 = vrot.slane %v7910, 4
      %v7913 = vrot.slane %v7798, 6
      %v7914 = vsel %vm2172, %v7912, %v7913
      %v7915 = vrot.slane %v7913, 4
      %v7916 = vrot.slane %v7799, 6
      %v7917 = vsel %vm2172, %v7915, %v7916
      %v7918 = vrot.slane %v7916, 4
      %v7919 = vrot.slane %v7800, 6
      %v7920 = vsel %vm2172, %v7918, %v7919
      %v7921 = vrot.slane %v7919, 4
      %v7922 = vrot.slane %v7801, 6
      %v7923 = vsel %vm2172, %v7921, %v7922
      %v7924 = vrot.slane %v7922, 4
      %v7925 = vrot.slane %v7802, 6
      %v7926 = vsel %vm2172, %v7924, %v7925
      %v7927 = vrot.slane %v7925, 4
      %v7928 = vrot.slane %v7803, 6
      %v7929 = vsel %vm2172, %v7927, %v7928
      %v7930 = vrot.slane %v7928, 4
      %v7931 = vrot.slane %v7804, 6
      %v7932 = vsel %vm2172, %v7930, %v7931
      %v7933 = vrot.slane %v7931, 4
      %v7934 = vrot.slane %v7805, 6
      %v7935 = vsel %vm2172, %v7933, %v7934
      %v7936 = vrot.slane %v7934, 4
      %v7937 = vrot.slane %v7806, 6
      %v7938 = vsel %vm2172, %v7936, %v7937
      %v7939 = vrot.slane %v7937, 4
      %v7940 = vrot.slane %v7807, 6
      %v7941 = vsel %vm2172, %v7939, %v7940
      %v7942 = vrot.slane %v7940, 4
      %v7943 = vrot.slane %v7808, 6
      %v7944 = vsel %vm2172, %v7942, %v7943
      %v7945 = vrot.slane %v7943, 4
      %v7946 = vrot.slane %v7809, 6
      %v7947 = vsel %vm2172, %v7945, %v7946
      %v7948 = vrot.slane %v7946, 4
      %v7949 = vrot.slane %v7810, 6
      %v7950 = vsel %vm2172, %v7948, %v7949
      %v7951 = vrot.slane %v7949, 4
      %v7952 = vrot.slane %v7811, 6
      %v7953 = vsel %vm2172, %v7951, %v7952
      %v7954 = vrot.slane %v7952, 4
      %v7955 = vrot.slane %v7812, 6
      %v7956 = vsel %vm2172, %v7954, %v7955
      %v7957 = vrot.slane %v7955, 4
      %v7958 = vrot.slane %v7813, 6
      %v7959 = vsel %vm2172, %v7957, %v7958
      %7960 = vrot.lane.b32.xlu0 %v7854, 40
      %v7961 = vpop.permute.xlu0 %7960
      %7962 = vrot.lane.b32.xlu0 %v7857, 40
      %v7963 = vpop.permute.xlu0 %7962
      %7964 = vrot.lane.b32.xlu0 %v7860, 40
      %v7965 = vpop.permute.xlu0 %7964
      %7966 = vrot.lane.b32.xlu0 %v7863, 40
      %v7967 = vpop.permute.xlu0 %7966
      %7968 = vrot.lane.b32.xlu0 %v7866, 40
      %v7969 = vpop.permute.xlu0 %7968
      %7970 = vrot.lane.b32.xlu0 %v7869, 40
      %v7971 = vpop.permute.xlu0 %7970
      %7972 = vrot.lane.b32.xlu0 %v7872, 40
      %v7973 = vpop.permute.xlu0 %7972
      %7974 = vrot.lane.b32.xlu0 %v7875, 40
      %v7975 = vpop.permute.xlu0 %7974
      %7976 = vrot.lane.b32.xlu0 %v7878, 40
      %v7977 = vpop.permute.xlu0 %7976
      %7978 = vrot.lane.b32.xlu0 %v7881, 40
      %v7979 = vpop.permute.xlu0 %7978
      %7980 = vrot.lane.b32.xlu0 %v7884, 40
      %v7981 = vpop.permute.xlu0 %7980
      %7982 = vrot.lane.b32.xlu0 %v7887, 40
      %v7983 = vpop.permute.xlu0 %7982
      %7984 = vrot.lane.b32.xlu0 %v7890, 40
      %v7985 = vpop.permute.xlu0 %7984
      %7986 = vrot.lane.b32.xlu0 %v7893, 40
      %v7987 = vpop.permute.xlu0 %7986
      %7988 = vrot.lane.b32.xlu0 %v7896, 40
      %v7989 = vpop.permute.xlu0 %7988
      %7990 = vrot.lane.b32.xlu0 %v7899, 40
      %v7991 = vpop.permute.xlu0 %7990
      %7992 = vrot.lane.b32.xlu0 %v7902, 40
      %v7993 = vpop.permute.xlu0 %7992
      %7994 = vrot.lane.b32.xlu0 %v7905, 40
      %v7995 = vpop.permute.xlu0 %7994
      %7996 = vrot.lane.b32.xlu0 %v7908, 40
      %v7997 = vpop.permute.xlu0 %7996
      %7998 = vrot.lane.b32.xlu0 %v7911, 40
      %v7999 = vpop.permute.xlu0 %7998
      %8000 = vrot.lane.b32.xlu0 %v7914, 40
      %v8001 = vpop.permute.xlu0 %8000
      %8002 = vrot.lane.b32.xlu0 %v7917, 40
      %v8003 = vpop.permute.xlu0 %8002
      %8004 = vrot.lane.b32.xlu0 %v7920, 40
      %v8005 = vpop.permute.xlu0 %8004
      %8006 = vrot.lane.b32.xlu0 %v7923, 40
      %v8007 = vpop.permute.xlu0 %8006
      %8008 = vrot.lane.b32.xlu0 %v7926, 40
      %v8009 = vpop.permute.xlu0 %8008
      %8010 = vrot.lane.b32.xlu0 %v7929, 40
      %v8011 = vpop.permute.xlu0 %8010
      %8012 = vrot.lane.b32.xlu0 %v7932, 40
      %v8013 = vpop.permute.xlu0 %8012
      %8014 = vrot.lane.b32.xlu0 %v7935, 40
      %v8015 = vpop.permute.xlu0 %8014
      %8016 = vrot.lane.b32.xlu0 %v7938, 40
      %v8017 = vpop.permute.xlu0 %8016
      %8018 = vrot.lane.b32.xlu0 %v7941, 40
      %v8019 = vpop.permute.xlu0 %8018
      %8020 = vrot.lane.b32.xlu0 %v7944, 40
      %v8021 = vpop.permute.xlu0 %8020
      %8022 = vrot.lane.b32.xlu0 %v7947, 40
      %v8023 = vpop.permute.xlu0 %8022
      %8024 = vrot.lane.b32.xlu0 %v7950, 40
      %v8025 = vpop.permute.xlu0 %8024
      %8026 = vrot.lane.b32.xlu0 %v7953, 40
      %v8027 = vpop.permute.xlu0 %8026
      %8028 = vrot.lane.b32.xlu0 %v7956, 40
      %v8029 = vpop.permute.xlu0 %8028
      %8030 = vrot.lane.b32.xlu0 %v7959, 40
      %v8031 = vpop.permute.xlu0 %8030
      %8068 = vst.msk [vmem:[#allocation2] sm:$0xf] %vm2390, %v7961
      %8069 = vst.msk [vmem:[#allocation2 + $0x4] sm:$0xf] %vm2390, %v7963
      %8070 = vst.msk [vmem:[#allocation2 + $0x8] sm:$0xf] %vm2390, %v7965
      %8071 = vst.msk [vmem:[#allocation2 + $0xc] sm:$0xf] %vm2390, %v7967
      %8072 = vst.msk [vmem:[#allocation2 + $0x10] sm:$0xf] %vm2390, %v7969
      %8073 = vst.msk [vmem:[#allocation2 + $0x14] sm:$0xf] %vm2390, %v7971
      %8074 = vst.msk [vmem:[#allocation2 + $0x18] sm:$0xf] %vm2390, %v7973
      %8075 = vst.msk [vmem:[#allocation2 + $0x1c] sm:$0xf] %vm2390, %v7975
      %8076 = vst.msk [vmem:[#allocation2 + $0x20] sm:$0xf] %vm2390, %v7977
      %8077 = vst.msk [vmem:[#allocation2 + $0x24] sm:$0xf] %vm2390, %v7979
      %8078 = vst.msk [vmem:[#allocation2 + $0x28] sm:$0xf] %vm2390, %v7981
      %8079 = vst.msk [vmem:[#allocation2 + $0x2c] sm:$0xf] %vm2390, %v7983
      %8080 = vst.msk [vmem:[#allocation2 + $0x30] sm:$0xf] %vm2390, %v7985
      %8081 = vst.msk [vmem:[#allocation2 + $0x34] sm:$0xf] %vm2390, %v7987
      %8082 = vst.msk [vmem:[#allocation2 + $0x38] sm:$0xf] %vm2390, %v7989
      %8083 = vst.msk [vmem:[#allocation2 + $0x3c] sm:$0xf] %vm2390, %v7991
      %8084 = vst.msk [vmem:[#allocation2 + $0x40] sm:$0xf] %vm2390, %v7993
      %8085 = vst.msk [vmem:[#allocation2 + $0x44] sm:$0xf] %vm2390, %v7995
      %8086 = vst.msk [vmem:[#allocation2 + $0x48] sm:$0xf] %vm2390, %v7997
      %8087 = vst.msk [vmem:[#allocation2 + $0x4c] sm:$0xf] %vm2390, %v7999
      %8088 = vst.msk [vmem:[#allocation2 + $0x50] sm:$0xf] %vm2390, %v8001
      %8089 = vst.msk [vmem:[#allocation2 + $0x54] sm:$0xf] %vm2390, %v8003
      %8090 = vst.msk [vmem:[#allocation2 + $0x58] sm:$0xf] %vm2390, %v8005
      %8091 = vst.msk [vmem:[#allocation2 + $0x5c] sm:$0xf] %vm2390, %v8007
      %8092 = vst.msk [vmem:[#allocation2 + $0x60] sm:$0xf] %vm2390, %v8009
      %8093 = vst.msk [vmem:[#allocation2 + $0x64] sm:$0xf] %vm2390, %v8011
      %8094 = vst.msk [vmem:[#allocation2 + $0x68] sm:$0xf] %vm2390, %v8013
      %8095 = vst.msk [vmem:[#allocation2 + $0x6c] sm:$0xf] %vm2390, %v8015
      %8096 = vst.msk [vmem:[#allocation2 + $0x70] sm:$0xf] %vm2390, %v8017
      %8097 = vst.msk [vmem:[#allocation2 + $0x74] sm:$0xf] %vm2390, %v8019
      %8098 = vst.msk [vmem:[#allocation2 + $0x78] sm:$0xf] %vm2390, %v8021
      %8099 = vst.msk [vmem:[#allocation2 + $0x7c] sm:$0xf] %vm2390, %v8023
      %8100 = vst.msk [vmem:[#allocation2 + $0x80] sm:$0xf] %vm2390, %v8025
      %8101 = vst.msk [vmem:[#allocation2 + $0x84] sm:$0xf] %vm2390, %v8027
      %8102 = vst.msk [vmem:[#allocation2 + $0x88] sm:$0xf] %vm2390, %v8029
      %8103 = vst.msk [vmem:[#allocation2 + $0x8c] sm:$0xf] %vm2390, %v8031
      %v8104 = vld [vmem:[#allocation3 + $0x10] sm:$0xc]
      %v8105 = vld [vmem:[#allocation3 + $0x14] sm:$0xf]
      %v8106 = vld [vmem:[#allocation3 + $0x18] sm:$0xf]
      %v8107 = vld [vmem:[#allocation3 + $0x1c] sm:$0xf]
      %v8108 = vld [vmem:[#allocation3 + $0x20] sm:$0xf]
      %v8109 = vld [vmem:[#allocation3 + $0x24] sm:$0xf]
      %v8110 = vld [vmem:[#allocation3 + $0x28] sm:$0xf]
      %v8111 = vld [vmem:[#allocation3 + $0x2c] sm:$0xf]
      %v8112 = vld [vmem:[#allocation3 + $0x30] sm:$0xf]
      %v8113 = vld [vmem:[#allocation3 + $0x34] sm:$0xf]
      %v8114 = vld [vmem:[#allocation3 + $0x38] sm:$0xf]
      %v8115 = vld [vmem:[#allocation3 + $0x3c] sm:$0xf]
      %v8116 = vld [vmem:[#allocation3 + $0x40] sm:$0xf]
      %v8117 = vld [vmem:[#allocation3 + $0x44] sm:$0xf]
      %v8118 = vld [vmem:[#allocation3 + $0x48] sm:$0xf]
      %v8119 = vld [vmem:[#allocation3 + $0x4c] sm:$0xf]
      %v8120 = vld [vmem:[#allocation3 + $0x50] sm:$0xf]
      %v8121 = vld [vmem:[#allocation3 + $0x54] sm:$0xf]
      %v8122 = vld [vmem:[#allocation3 + $0x58] sm:$0xf]
      %v8123 = vld [vmem:[#allocation3 + $0x5c] sm:$0xf]
      %v8124 = vld [vmem:[#allocation3 + $0x60] sm:$0xf]
      %v8125 = vld [vmem:[#allocation3 + $0x64] sm:$0xf]
      %v8126 = vld [vmem:[#allocation3 + $0x68] sm:$0xf]
      %v8127 = vld [vmem:[#allocation3 + $0x6c] sm:$0xf]
      %v8128 = vld [vmem:[#allocation3 + $0x70] sm:$0xf]
      %v8129 = vld [vmem:[#allocation3 + $0x74] sm:$0xf]
      %v8130 = vld [vmem:[#allocation3 + $0x78] sm:$0xf]
      %v8131 = vld [vmem:[#allocation3 + $0x7c] sm:$0xf]
      %v8132 = vld [vmem:[#allocation3 + $0x80] sm:$0xf]
      %v8133 = vld [vmem:[#allocation3 + $0x84] sm:$0xf]
      %v8134 = vld [vmem:[#allocation3 + $0x88] sm:$0xf]
      %v8135 = vld [vmem:[#allocation3 + $0x8c] sm:$0xf]
      %v8136 = vld [vmem:[#allocation3 + $0x90] sm:$0xf]
      %v8137 = vld [vmem:[#allocation3 + $0x94] sm:$0xf]
      %v8138 = vld [vmem:[#allocation3 + $0x98] sm:$0xf]
      %v8139 = vld [vmem:[#allocation3 + $0x9c] sm:$0xf]
      %v8140 = vld [vmem:[#allocation3 + $0xa0] sm:$0x3]
      %v8178 = vrot.slane %v8104, 6
      %v8179 = vrot.slane %v8178, 4
      %v8180 = vrot.slane %v8105, 6
      %v8181 = vsel %vm2172, %v8179, %v8180
      %v8182 = vrot.slane %v8180, 4
      %v8183 = vrot.slane %v8106, 6
      %v8184 = vsel %vm2172, %v8182, %v8183
      %v8185 = vrot.slane %v8183, 4
      %v8186 = vrot.slane %v8107, 6
      %v8187 = vsel %vm2172, %v8185, %v8186
      %v8188 = vrot.slane %v8186, 4
      %v8189 = vrot.slane %v8108, 6
      %v8190 = vsel %vm2172, %v8188, %v8189
      %v8191 = vrot.slane %v8189, 4
      %v8192 = vrot.slane %v8109, 6
      %v8193 = vsel %vm2172, %v8191, %v8192
      %v8194 = vrot.slane %v8192, 4
      %v8195 = vrot.slane %v8110, 6
      %v8196 = vsel %vm2172, %v8194, %v8195
      %v8197 = vrot.slane %v8195, 4
      %v8198 = vrot.slane %v8111, 6
      %v8199 = vsel %vm2172, %v8197, %v8198
      %v8200 = vrot.slane %v8198, 4
      %v8201 = vrot.slane %v8112, 6
      %v8202 = vsel %vm2172, %v8200, %v8201
      %v8203 = vrot.slane %v8201, 4
      %v8204 = vrot.slane %v8113, 6
      %v8205 = vsel %vm2172, %v8203, %v8204
      %v8206 = vrot.slane %v8204, 4
      %v8207 = vrot.slane %v8114, 6
      %v8208 = vsel %vm2172, %v8206, %v8207
      %v8209 = vrot.slane %v8207, 4
      %v8210 = vrot.slane %v8115, 6
      %v8211 = vsel %vm2172, %v8209, %v8210
      %v8212 = vrot.slane %v8210, 4
      %v8213 = vrot.slane %v8116, 6
      %v8214 = vsel %vm2172, %v8212, %v8213
      %v8215 = vrot.slane %v8213, 4
      %v8216 = vrot.slane %v8117, 6
      %v8217 = vsel %vm2172, %v8215, %v8216
      %v8218 = vrot.slane %v8216, 4
      %v8219 = vrot.slane %v8118, 6
      %v8220 = vsel %vm2172, %v8218, %v8219
      %v8221 = vrot.slane %v8219, 4
      %v8222 = vrot.slane %v8119, 6
      %v8223 = vsel %vm2172, %v8221, %v8222
      %v8224 = vrot.slane %v8222, 4
      %v8225 = vrot.slane %v8120, 6
      %v8226 = vsel %vm2172, %v8224, %v8225
      %v8227 = vrot.slane %v8225, 4
      %v8228 = vrot.slane %v8121, 6
      %v8229 = vsel %vm2172, %v8227, %v8228
      %v8230 = vrot.slane %v8228, 4
      %v8231 = vrot.slane %v8122, 6
      %v8232 = vsel %vm2172, %v8230, %v8231
      %v8233 = vrot.slane %v8231, 4
      %v8234 = vrot.slane %v8123, 6
      %v8235 = vsel %vm2172, %v8233, %v8234
      %v8236 = vrot.slane %v8234, 4
      %v8237 = vrot.slane %v8124, 6
      %v8238 = vsel %vm2172, %v8236, %v8237
      %v8239 = vrot.slane %v8237, 4
      %v8240 = vrot.slane %v8125, 6
      %v8241 = vsel %vm2172, %v8239, %v8240
      %v8242 = vrot.slane %v8240, 4
      %v8243 = vrot.slane %v8126, 6
      %v8244 = vsel %vm2172, %v8242, %v8243
      %v8245 = vrot.slane %v8243, 4
      %v8246 = vrot.slane %v8127, 6
      %v8247 = vsel %vm2172, %v8245, %v8246
      %v8248 = vrot.slane %v8246, 4
      %v8249 = vrot.slane %v8128, 6
      %v8250 = vsel %vm2172, %v8248, %v8249
      %v8251 = vrot.slane %v8249, 4
      %v8252 = vrot.slane %v8129, 6
      %v8253 = vsel %vm2172, %v8251, %v8252
      %v8254 = vrot.slane %v8252, 4
      %v8255 = vrot.slane %v8130, 6
      %v8256 = vsel %vm2172, %v8254, %v8255
      %v8257 = vrot.slane %v8255, 4
      %v8258 = vrot.slane %v8131, 6
      %v8259 = vsel %vm2172, %v8257, %v8258
      %v8260 = vrot.slane %v8258, 4
      %v8261 = vrot.slane %v8132, 6
      %v8262 = vsel %vm2172, %v8260, %v8261
      %v8263 = vrot.slane %v8261, 4
      %v8264 = vrot.slane %v8133, 6
      %v8265 = vsel %vm2172, %v8263, %v8264
      %v8266 = vrot.slane %v8264, 4
      %v8267 = vrot.slane %v8134, 6
      %v8268 = vsel %vm2172, %v8266, %v8267
      %v8269 = vrot.slane %v8267, 4
      %v8270 = vrot.slane %v8135, 6
      %v8271 = vsel %vm2172, %v8269, %v8270
      %v8272 = vrot.slane %v8270, 4
      %v8273 = vrot.slane %v8136, 6
      %v8274 = vsel %vm2172, %v8272, %v8273
      %v8275 = vrot.slane %v8273, 4
      %v8276 = vrot.slane %v8137, 6
      %v8277 = vsel %vm2172, %v8275, %v8276
      %v8278 = vrot.slane %v8276, 4
      %v8279 = vrot.slane %v8138, 6
      %v8280 = vsel %vm2172, %v8278, %v8279
      %v8281 = vrot.slane %v8279, 4
      %v8282 = vrot.slane %v8139, 6
      %v8283 = vsel %vm2172, %v8281, %v8282
      %v8284 = vrot.slane %v8282, 4
      %v8285 = vrot.slane %v8140, 6
      %v8286 = vsel %vm2172, %v8284, %v8285
      %8287 = vrot.lane.b32.xlu0 %v8181, 48
      %v8288 = vpop.permute.xlu0 %8287
      %8289 = vrot.lane.b32.xlu0 %v8184, 48
      %v8290 = vpop.permute.xlu0 %8289
      %8291 = vrot.lane.b32.xlu0 %v8187, 48
      %v8292 = vpop.permute.xlu0 %8291
      %8293 = vrot.lane.b32.xlu0 %v8190, 48
      %v8294 = vpop.permute.xlu0 %8293
      %8295 = vrot.lane.b32.xlu0 %v8193, 48
      %v8296 = vpop.permute.xlu0 %8295
      %8297 = vrot.lane.b32.xlu0 %v8196, 48
      %v8298 = vpop.permute.xlu0 %8297
      %8299 = vrot.lane.b32.xlu0 %v8199, 48
      %v8300 = vpop.permute.xlu0 %8299
      %8301 = vrot.lane.b32.xlu0 %v8202, 48
      %v8302 = vpop.permute.xlu0 %8301
      %8303 = vrot.lane.b32.xlu0 %v8205, 48
      %v8304 = vpop.permute.xlu0 %8303
      %8305 = vrot.lane.b32.xlu0 %v8208, 48
      %v8306 = vpop.permute.xlu0 %8305
      %8307 = vrot.lane.b32.xlu0 %v8211, 48
      %v8308 = vpop.permute.xlu0 %8307
      %8309 = vrot.lane.b32.xlu0 %v8214, 48
      %v8310 = vpop.permute.xlu0 %8309
      %8311 = vrot.lane.b32.xlu0 %v8217, 48
      %v8312 = vpop.permute.xlu0 %8311
      %8313 = vrot.lane.b32.xlu0 %v8220, 48
      %v8314 = vpop.permute.xlu0 %8313
      %8315 = vrot.lane.b32.xlu0 %v8223, 48
      %v8316 = vpop.permute.xlu0 %8315
      %8317 = vrot.lane.b32.xlu0 %v8226, 48
      %v8318 = vpop.permute.xlu0 %8317
      %8319 = vrot.lane.b32.xlu0 %v8229, 48
      %v8320 = vpop.permute.xlu0 %8319
      %8321 = vrot.lane.b32.xlu0 %v8232, 48
      %v8322 = vpop.permute.xlu0 %8321
      %8323 = vrot.lane.b32.xlu0 %v8235, 48
      %v8324 = vpop.permute.xlu0 %8323
      %8325 = vrot.lane.b32.xlu0 %v8238, 48
      %v8326 = vpop.permute.xlu0 %8325
      %8327 = vrot.lane.b32.xlu0 %v8241, 48
      %v8328 = vpop.permute.xlu0 %8327
      %8329 = vrot.lane.b32.xlu0 %v8244, 48
      %v8330 = vpop.permute.xlu0 %8329
      %8331 = vrot.lane.b32.xlu0 %v8247, 48
      %v8332 = vpop.permute.xlu0 %8331
      %8333 = vrot.lane.b32.xlu0 %v8250, 48
      %v8334 = vpop.permute.xlu0 %8333
      %8335 = vrot.lane.b32.xlu0 %v8253, 48
      %v8336 = vpop.permute.xlu0 %8335
      %8337 = vrot.lane.b32.xlu0 %v8256, 48
      %v8338 = vpop.permute.xlu0 %8337
      %8339 = vrot.lane.b32.xlu0 %v8259, 48
      %v8340 = vpop.permute.xlu0 %8339
      %8341 = vrot.lane.b32.xlu0 %v8262, 48
      %v8342 = vpop.permute.xlu0 %8341
      %8343 = vrot.lane.b32.xlu0 %v8265, 48
      %v8344 = vpop.permute.xlu0 %8343
      %8345 = vrot.lane.b32.xlu0 %v8268, 48
      %v8346 = vpop.permute.xlu0 %8345
      %8347 = vrot.lane.b32.xlu0 %v8271, 48
      %v8348 = vpop.permute.xlu0 %8347
      %8349 = vrot.lane.b32.xlu0 %v8274, 48
      %v8350 = vpop.permute.xlu0 %8349
      %8351 = vrot.lane.b32.xlu0 %v8277, 48
      %v8352 = vpop.permute.xlu0 %8351
      %8353 = vrot.lane.b32.xlu0 %v8280, 48
      %v8354 = vpop.permute.xlu0 %8353
      %8355 = vrot.lane.b32.xlu0 %v8283, 48
      %v8356 = vpop.permute.xlu0 %8355
      %8357 = vrot.lane.b32.xlu0 %v8286, 48
      %v8358 = vpop.permute.xlu0 %8357
      %8395 = vst.msk [vmem:[#allocation2] sm:$0xf] %vm2718, %v8288
      %8396 = vst.msk [vmem:[#allocation2 + $0x4] sm:$0xf] %vm2718, %v8290
      %8397 = vst.msk [vmem:[#allocation2 + $0x8] sm:$0xf] %vm2718, %v8292
      %8398 = vst.msk [vmem:[#allocation2 + $0xc] sm:$0xf] %vm2718, %v8294
      %8399 = vst.msk [vmem:[#allocation2 + $0x10] sm:$0xf] %vm2718, %v8296
      %8400 = vst.msk [vmem:[#allocation2 + $0x14] sm:$0xf] %vm2718, %v8298
      %8401 = vst.msk [vmem:[#allocation2 + $0x18] sm:$0xf] %vm2718, %v8300
      %8402 = vst.msk [vmem:[#allocation2 + $0x1c] sm:$0xf] %vm2718, %v8302
      %8403 = vst.msk [vmem:[#allocation2 + $0x20] sm:$0xf] %vm2718, %v8304
      %8404 = vst.msk [vmem:[#allocation2 + $0x24] sm:$0xf] %vm2718, %v8306
      %8405 = vst.msk [vmem:[#allocation2 + $0x28] sm:$0xf] %vm2718, %v8308
      %8406 = vst.msk [vmem:[#allocation2 + $0x2c] sm:$0xf] %vm2718, %v8310
      %8407 = vst.msk [vmem:[#allocation2 + $0x30] sm:$0xf] %vm2718, %v8312
      %8408 = vst.msk [vmem:[#allocation2 + $0x34] sm:$0xf] %vm2718, %v8314
      %8409 = vst.msk [vmem:[#allocation2 + $0x38] sm:$0xf] %vm2718, %v8316
      %8410 = vst.msk [vmem:[#allocation2 + $0x3c] sm:$0xf] %vm2718, %v8318
      %8411 = vst.msk [vmem:[#allocation2 + $0x40] sm:$0xf] %vm2718, %v8320
      %8412 = vst.msk [vmem:[#allocation2 + $0x44] sm:$0xf] %vm2718, %v8322
      %8413 = vst.msk [vmem:[#allocation2 + $0x48] sm:$0xf] %vm2718, %v8324
      %8414 = vst.msk [vmem:[#allocation2 + $0x4c] sm:$0xf] %vm2718, %v8326
      %8415 = vst.msk [vmem:[#allocation2 + $0x50] sm:$0xf] %vm2718, %v8328
      %8416 = vst.msk [vmem:[#allocation2 + $0x54] sm:$0xf] %vm2718, %v8330
      %8417 = vst.msk [vmem:[#allocation2 + $0x58] sm:$0xf] %vm2718, %v8332
      %8418 = vst.msk [vmem:[#allocation2 + $0x5c] sm:$0xf] %vm2718, %v8334
      %8419 = vst.msk [vmem:[#allocation2 + $0x60] sm:$0xf] %vm2718, %v8336
      %8420 = vst.msk [vmem:[#allocation2 + $0x64] sm:$0xf] %vm2718, %v8338
      %8421 = vst.msk [vmem:[#allocation2 + $0x68] sm:$0xf] %vm2718, %v8340
      %8422 = vst.msk [vmem:[#allocation2 + $0x6c] sm:$0xf] %vm2718, %v8342
      %8423 = vst.msk [vmem:[#allocation2 + $0x70] sm:$0xf] %vm2718, %v8344
      %8424 = vst.msk [vmem:[#allocation2 + $0x74] sm:$0xf] %vm2718, %v8346
      %8425 = vst.msk [vmem:[#allocation2 + $0x78] sm:$0xf] %vm2718, %v8348
      %8426 = vst.msk [vmem:[#allocation2 + $0x7c] sm:$0xf] %vm2718, %v8350
      %8427 = vst.msk [vmem:[#allocation2 + $0x80] sm:$0xf] %vm2718, %v8352
      %8428 = vst.msk [vmem:[#allocation2 + $0x84] sm:$0xf] %vm2718, %v8354
      %8429 = vst.msk [vmem:[#allocation2 + $0x88] sm:$0xf] %vm2718, %v8356
      %8430 = vst.msk [vmem:[#allocation2 + $0x8c] sm:$0xf] %vm2718, %v8358
      %v8431 = vld [vmem:[#allocation3 + $0x10] sm:$0xc]
      %v8432 = vld [vmem:[#allocation3 + $0x14] sm:$0xf]
      %v8433 = vld [vmem:[#allocation3 + $0x18] sm:$0xf]
      %v8434 = vld [vmem:[#allocation3 + $0x1c] sm:$0xf]
      %v8435 = vld [vmem:[#allocation3 + $0x20] sm:$0xf]
      %v8436 = vld [vmem:[#allocation3 + $0x24] sm:$0xf]
      %v8437 = vld [vmem:[#allocation3 + $0x28] sm:$0xf]
      %v8438 = vld [vmem:[#allocation3 + $0x2c] sm:$0xf]
      %v8439 = vld [vmem:[#allocation3 + $0x30] sm:$0xf]
      %v8440 = vld [vmem:[#allocation3 + $0x34] sm:$0xf]
      %v8441 = vld [vmem:[#allocation3 + $0x38] sm:$0xf]
      %v8442 = vld [vmem:[#allocation3 + $0x3c] sm:$0xf]
      %v8443 = vld [vmem:[#allocation3 + $0x40] sm:$0xf]
      %v8444 = vld [vmem:[#allocation3 + $0x44] sm:$0xf]
      %v8445 = vld [vmem:[#allocation3 + $0x48] sm:$0xf]
      %v8446 = vld [vmem:[#allocation3 + $0x4c] sm:$0xf]
      %v8447 = vld [vmem:[#allocation3 + $0x50] sm:$0xf]
      %v8448 = vld [vmem:[#allocation3 + $0x54] sm:$0xf]
      %v8449 = vld [vmem:[#allocation3 + $0x58] sm:$0xf]
      %v8450 = vld [vmem:[#allocation3 + $0x5c] sm:$0xf]
      %v8451 = vld [vmem:[#allocation3 + $0x60] sm:$0xf]
      %v8452 = vld [vmem:[#allocation3 + $0x64] sm:$0xf]
      %v8453 = vld [vmem:[#allocation3 + $0x68] sm:$0xf]
      %v8454 = vld [vmem:[#allocation3 + $0x6c] sm:$0xf]
      %v8455 = vld [vmem:[#allocation3 + $0x70] sm:$0xf]
      %v8456 = vld [vmem:[#allocation3 + $0x74] sm:$0xf]
      %v8457 = vld [vmem:[#allocation3 + $0x78] sm:$0xf]
      %v8458 = vld [vmem:[#allocation3 + $0x7c] sm:$0xf]
      %v8459 = vld [vmem:[#allocation3 + $0x80] sm:$0xf]
      %v8460 = vld [vmem:[#allocation3 + $0x84] sm:$0xf]
      %v8461 = vld [vmem:[#allocation3 + $0x88] sm:$0xf]
      %v8462 = vld [vmem:[#allocation3 + $0x8c] sm:$0xf]
      %v8463 = vld [vmem:[#allocation3 + $0x90] sm:$0xf]
      %v8464 = vld [vmem:[#allocation3 + $0x94] sm:$0xf]
      %v8465 = vld [vmem:[#allocation3 + $0x98] sm:$0xf]
      %v8466 = vld [vmem:[#allocation3 + $0x9c] sm:$0xf]
      %v8467 = vld [vmem:[#allocation3 + $0xa0] sm:$0x7]
      %v8469 = vshrl.u32 %v8431, 16
      %v8471 = vrot.slane %v8469, 6
      %v8472 = vshll.u32 %v8431, 16
      %v8474 = vrot.slane %v8472, 7
      %v8475 = vor.u32 %v8471, %v8474
      %v8476 = vrot.slane %v8475, 4
      %v8478 = vshrl.u32 %v8432, 16
      %v8480 = vrot.slane %v8478, 6
      %v8481 = vshll.u32 %v8432, 16
      %v8483 = vrot.slane %v8481, 7
      %v8484 = vor.u32 %v8480, %v8483
      %v8485 = vsel %vm2794, %v8476, %v8484
      %v8486 = vrot.slane %v8484, 4
      %v8488 = vshrl.u32 %v8433, 16
      %v8490 = vrot.slane %v8488, 6
      %v8491 = vshll.u32 %v8433, 16
      %v8493 = vrot.slane %v8491, 7
      %v8494 = vor.u32 %v8490, %v8493
      %v8495 = vsel %vm2794, %v8486, %v8494
      %v8496 = vrot.slane %v8494, 4
      %v8498 = vshrl.u32 %v8434, 16
      %v8500 = vrot.slane %v8498, 6
      %v8501 = vshll.u32 %v8434, 16
      %v8503 = vrot.slane %v8501, 7
      %v8504 = vor.u32 %v8500, %v8503
      %v8505 = vsel %vm2794, %v8496, %v8504
      %v8506 = vrot.slane %v8504, 4
      %v8508 = vshrl.u32 %v8435, 16
      %v8510 = vrot.slane %v8508, 6
      %v8511 = vshll.u32 %v8435, 16
      %v8513 = vrot.slane %v8511, 7
      %v8514 = vor.u32 %v8510, %v8513
      %v8515 = vsel %vm2794, %v8506, %v8514
      %v8516 = vrot.slane %v8514, 4
      %v8518 = vshrl.u32 %v8436, 16
      %v8520 = vrot.slane %v8518, 6
      %v8521 = vshll.u32 %v8436, 16
      %v8523 = vrot.slane %v8521, 7
      %v8524 = vor.u32 %v8520, %v8523
      %v8525 = vsel %vm2794, %v8516, %v8524
      %v8526 = vrot.slane %v8524, 4
      %v8528 = vshrl.u32 %v8437, 16
      %v8530 = vrot.slane %v8528, 6
      %v8531 = vshll.u32 %v8437, 16
      %v8533 = vrot.slane %v8531, 7
      %v8534 = vor.u32 %v8530, %v8533
      %v8535 = vsel %vm2794, %v8526, %v8534
      %v8536 = vrot.slane %v8534, 4
      %v8538 = vshrl.u32 %v8438, 16
      %v8540 = vrot.slane %v8538, 6
      %v8541 = vshll.u32 %v8438, 16
      %v8543 = vrot.slane %v8541, 7
      %v8544 = vor.u32 %v8540, %v8543
      %v8545 = vsel %vm2794, %v8536, %v8544
      %v8546 = vrot.slane %v8544, 4
      %v8548 = vshrl.u32 %v8439, 16
      %v8550 = vrot.slane %v8548, 6
      %v8551 = vshll.u32 %v8439, 16
      %v8553 = vrot.slane %v8551, 7
      %v8554 = vor.u32 %v8550, %v8553
      %v8555 = vsel %vm2794, %v8546, %v8554
      %v8556 = vrot.slane %v8554, 4
      %v8558 = vshrl.u32 %v8440, 16
      %v8560 = vrot.slane %v8558, 6
      %v8561 = vshll.u32 %v8440, 16
      %v8563 = vrot.slane %v8561, 7
      %v8564 = vor.u32 %v8560, %v8563
      %v8565 = vsel %vm2794, %v8556, %v8564
      %v8566 = vrot.slane %v8564, 4
      %v8568 = vshrl.u32 %v8441, 16
      %v8570 = vrot.slane %v8568, 6
      %v8571 = vshll.u32 %v8441, 16
      %v8573 = vrot.slane %v8571, 7
      %v8574 = vor.u32 %v8570, %v8573
      %v8575 = vsel %vm2794, %v8566, %v8574
      %v8576 = vrot.slane %v8574, 4
      %v8578 = vshrl.u32 %v8442, 16
      %v8580 = vrot.slane %v8578, 6
      %v8581 = vshll.u32 %v8442, 16
      %v8583 = vrot.slane %v8581, 7
      %v8584 = vor.u32 %v8580, %v8583
      %v8585 = vsel %vm2794, %v8576, %v8584
      %v8586 = vrot.slane %v8584, 4
      %v8588 = vshrl.u32 %v8443, 16
      %v8590 = vrot.slane %v8588, 6
      %v8591 = vshll.u32 %v8443, 16
      %v8593 = vrot.slane %v8591, 7
      %v8594 = vor.u32 %v8590, %v8593
      %v8595 = vsel %vm2794, %v8586, %v8594
      %v8596 = vrot.slane %v8594, 4
      %v8598 = vshrl.u32 %v8444, 16
      %v8600 = vrot.slane %v8598, 6
      %v8601 = vshll.u32 %v8444, 16
      %v8603 = vrot.slane %v8601, 7
      %v8604 = vor.u32 %v8600, %v8603
      %v8605 = vsel %vm2794, %v8596, %v8604
      %v8606 = vrot.slane %v8604, 4
      %v8608 = vshrl.u32 %v8445, 16
      %v8610 = vrot.slane %v8608, 6
      %v8611 = vshll.u32 %v8445, 16
      %v8613 = vrot.slane %v8611, 7
      %v8614 = vor.u32 %v8610, %v8613
      %v8615 = vsel %vm2794, %v8606, %v8614
      %v8616 = vrot.slane %v8614, 4
      %v8618 = vshrl.u32 %v8446, 16
      %v8620 = vrot.slane %v8618, 6
      %v8621 = vshll.u32 %v8446, 16
      %v8623 = vrot.slane %v8621, 7
      %v8624 = vor.u32 %v8620, %v8623
      %v8625 = vsel %vm2794, %v8616, %v8624
      %v8626 = vrot.slane %v8624, 4
      %v8628 = vshrl.u32 %v8447, 16
      %v8630 = vrot.slane %v8628, 6
      %v8631 = vshll.u32 %v8447, 16
      %v8633 = vrot.slane %v8631, 7
      %v8634 = vor.u32 %v8630, %v8633
      %v8635 = vsel %vm2794, %v8626, %v8634
      %v8636 = vrot.slane %v8634, 4
      %v8638 = vshrl.u32 %v8448, 16
      %v8640 = vrot.slane %v8638, 6
      %v8641 = vshll.u32 %v8448, 16
      %v8643 = vrot.slane %v8641, 7
      %v8644 = vor.u32 %v8640, %v8643
      %v8645 = vsel %vm2794, %v8636, %v8644
      %v8646 = vrot.slane %v8644, 4
      %v8648 = vshrl.u32 %v8449, 16
      %v8650 = vrot.slane %v8648, 6
      %v8651 = vshll.u32 %v8449, 16
      %v8653 = vrot.slane %v8651, 7
      %v8654 = vor.u32 %v8650, %v8653
      %v8655 = vsel %vm2794, %v8646, %v8654
      %v8656 = vrot.slane %v8654, 4
      %v8658 = vshrl.u32 %v8450, 16
      %v8660 = vrot.slane %v8658, 6
      %v8661 = vshll.u32 %v8450, 16
      %v8663 = vrot.slane %v8661, 7
      %v8664 = vor.u32 %v8660, %v8663
      %v8665 = vsel %vm2794, %v8656, %v8664
      %v8666 = vrot.slane %v8664, 4
      %v8668 = vshrl.u32 %v8451, 16
      %v8670 = vrot.slane %v8668, 6
      %v8671 = vshll.u32 %v8451, 16
      %v8673 = vrot.slane %v8671, 7
      %v8674 = vor.u32 %v8670, %v8673
      %v8675 = vsel %vm2794, %v8666, %v8674
      %v8676 = vrot.slane %v8674, 4
      %v8678 = vshrl.u32 %v8452, 16
      %v8680 = vrot.slane %v8678, 6
      %v8681 = vshll.u32 %v8452, 16
      %v8683 = vrot.slane %v8681, 7
      %v8684 = vor.u32 %v8680, %v8683
      %v8685 = vsel %vm2794, %v8676, %v8684
      %v8686 = vrot.slane %v8684, 4
      %v8688 = vshrl.u32 %v8453, 16
      %v8690 = vrot.slane %v8688, 6
      %v8691 = vshll.u32 %v8453, 16
      %v8693 = vrot.slane %v8691, 7
      %v8694 = vor.u32 %v8690, %v8693
      %v8695 = vsel %vm2794, %v8686, %v8694
      %v8696 = vrot.slane %v8694, 4
      %v8698 = vshrl.u32 %v8454, 16
      %v8700 = vrot.slane %v8698, 6
      %v8701 = vshll.u32 %v8454, 16
      %v8703 = vrot.slane %v8701, 7
      %v8704 = vor.u32 %v8700, %v8703
      %v8705 = vsel %vm2794, %v8696, %v8704
      %v8706 = vrot.slane %v8704, 4
      %v8708 = vshrl.u32 %v8455, 16
      %v8710 = vrot.slane %v8708, 6
      %v8711 = vshll.u32 %v8455, 16
      %v8713 = vrot.slane %v8711, 7
      %v8714 = vor.u32 %v8710, %v8713
      %v8715 = vsel %vm2794, %v8706, %v8714
      %v8716 = vrot.slane %v8714, 4
      %v8718 = vshrl.u32 %v8456, 16
      %v8720 = vrot.slane %v8718, 6
      %v8721 = vshll.u32 %v8456, 16
      %v8723 = vrot.slane %v8721, 7
      %v8724 = vor.u32 %v8720, %v8723
      %v8725 = vsel %vm2794, %v8716, %v8724
      %v8726 = vrot.slane %v8724, 4
      %v8728 = vshrl.u32 %v8457, 16
      %v8730 = vrot.slane %v8728, 6
      %v8731 = vshll.u32 %v8457, 16
      %v8733 = vrot.slane %v8731, 7
      %v8734 = vor.u32 %v8730, %v8733
      %v8735 = vsel %vm2794, %v8726, %v8734
      %v8736 = vrot.slane %v8734, 4
      %v8738 = vshrl.u32 %v8458, 16
      %v8740 = vrot.slane %v8738, 6
      %v8741 = vshll.u32 %v8458, 16
      %v8743 = vrot.slane %v8741, 7
      %v8744 = vor.u32 %v8740, %v8743
      %v8745 = vsel %vm2794, %v8736, %v8744
      %v8746 = vrot.slane %v8744, 4
      %v8748 = vshrl.u32 %v8459, 16
      %v8750 = vrot.slane %v8748, 6
      %v8751 = vshll.u32 %v8459, 16
      %v8753 = vrot.slane %v8751, 7
      %v8754 = vor.u32 %v8750, %v8753
      %v8755 = vsel %vm2794, %v8746, %v8754
      %v8756 = vrot.slane %v8754, 4
      %v8758 = vshrl.u32 %v8460, 16
      %v8760 = vrot.slane %v8758, 6
      %v8761 = vshll.u32 %v8460, 16
      %v8763 = vrot.slane %v8761, 7
      %v8764 = vor.u32 %v8760, %v8763
      %v8765 = vsel %vm2794, %v8756, %v8764
      %v8766 = vrot.slane %v8764, 4
      %v8768 = vshrl.u32 %v8461, 16
      %v8770 = vrot.slane %v8768, 6
      %v8771 = vshll.u32 %v8461, 16
      %v8773 = vrot.slane %v8771, 7
      %v8774 = vor.u32 %v8770, %v8773
      %v8775 = vsel %vm2794, %v8766, %v8774
      %v8776 = vrot.slane %v8774, 4
      %v8778 = vshrl.u32 %v8462, 16
      %v8780 = vrot.slane %v8778, 6
      %v8781 = vshll.u32 %v8462, 16
      %v8783 = vrot.slane %v8781, 7
      %v8784 = vor.u32 %v8780, %v8783
      %v8785 = vsel %vm2794, %v8776, %v8784
      %v8786 = vrot.slane %v8784, 4
      %v8788 = vshrl.u32 %v8463, 16
      %v8790 = vrot.slane %v8788, 6
      %v8791 = vshll.u32 %v8463, 16
      %v8793 = vrot.slane %v8791, 7
      %v8794 = vor.u32 %v8790, %v8793
      %v8795 = vsel %vm2794, %v8786, %v8794
      %v8796 = vrot.slane %v8794, 4
      %v8798 = vshrl.u32 %v8464, 16
      %v8800 = vrot.slane %v8798, 6
      %v8801 = vshll.u32 %v8464, 16
      %v8803 = vrot.slane %v8801, 7
      %v8804 = vor.u32 %v8800, %v8803
      %v8805 = vsel %vm2794, %v8796, %v8804
      %v8806 = vrot.slane %v8804, 4
      %v8808 = vshrl.u32 %v8465, 16
      %v8810 = vrot.slane %v8808, 6
      %v8811 = vshll.u32 %v8465, 16
      %v8813 = vrot.slane %v8811, 7
      %v8814 = vor.u32 %v8810, %v8813
      %v8815 = vsel %vm2794, %v8806, %v8814
      %v8816 = vrot.slane %v8814, 4
      %v8818 = vshrl.u32 %v8466, 16
      %v8820 = vrot.slane %v8818, 6
      %v8821 = vshll.u32 %v8466, 16
      %v8823 = vrot.slane %v8821, 7
      %v8824 = vor.u32 %v8820, %v8823
      %v8825 = vsel %vm2794, %v8816, %v8824
      %v8826 = vrot.slane %v8824, 4
      %v8828 = vshrl.u32 %v8467, 16
      %v8830 = vrot.slane %v8828, 6
      %v8831 = vshll.u32 %v8467, 16
      %v8833 = vrot.slane %v8831, 7
      %v8834 = vor.u32 %v8830, %v8833
      %v8835 = vsel %vm2794, %v8826, %v8834
      %8836 = vrot.lane.b32.xlu0 %v8485, 56
      %v8837 = vpop.permute.xlu0 %8836
      %8838 = vrot.lane.b32.xlu0 %v8495, 56
      %v8839 = vpop.permute.xlu0 %8838
      %8840 = vrot.lane.b32.xlu0 %v8505, 56
      %v8841 = vpop.permute.xlu0 %8840
      %8842 = vrot.lane.b32.xlu0 %v8515, 56
      %v8843 = vpop.permute.xlu0 %8842
      %8844 = vrot.lane.b32.xlu0 %v8525, 56
      %v8845 = vpop.permute.xlu0 %8844
      %8846 = vrot.lane.b32.xlu0 %v8535, 56
      %v8847 = vpop.permute.xlu0 %8846
      %8848 = vrot.lane.b32.xlu0 %v8545, 56
      %v8849 = vpop.permute.xlu0 %8848
      %8850 = vrot.lane.b32.xlu0 %v8555, 56
      %v8851 = vpop.permute.xlu0 %8850
      %8852 = vrot.lane.b32.xlu0 %v8565, 56
      %v8853 = vpop.permute.xlu0 %8852
      %8854 = vrot.lane.b32.xlu0 %v8575, 56
      %v8855 = vpop.permute.xlu0 %8854
      %8856 = vrot.lane.b32.xlu0 %v8585, 56
      %v8857 = vpop.permute.xlu0 %8856
      %8858 = vrot.lane.b32.xlu0 %v8595, 56
      %v8859 = vpop.permute.xlu0 %8858
      %8860 = vrot.lane.b32.xlu0 %v8605, 56
      %v8861 = vpop.permute.xlu0 %8860
      %8862 = vrot.lane.b32.xlu0 %v8615, 56
      %v8863 = vpop.permute.xlu0 %8862
      %8864 = vrot.lane.b32.xlu0 %v8625, 56
      %v8865 = vpop.permute.xlu0 %8864
      %8866 = vrot.lane.b32.xlu0 %v8635, 56
      %v8867 = vpop.permute.xlu0 %8866
      %8868 = vrot.lane.b32.xlu0 %v8645, 56
      %v8869 = vpop.permute.xlu0 %8868
      %8870 = vrot.lane.b32.xlu0 %v8655, 56
      %v8871 = vpop.permute.xlu0 %8870
      %8872 = vrot.lane.b32.xlu0 %v8665, 56
      %v8873 = vpop.permute.xlu0 %8872
      %8874 = vrot.lane.b32.xlu0 %v8675, 56
      %v8875 = vpop.permute.xlu0 %8874
      %8876 = vrot.lane.b32.xlu0 %v8685, 56
      %v8877 = vpop.permute.xlu0 %8876
      %8878 = vrot.lane.b32.xlu0 %v8695, 56
      %v8879 = vpop.permute.xlu0 %8878
      %8880 = vrot.lane.b32.xlu0 %v8705, 56
      %v8881 = vpop.permute.xlu0 %8880
      %8882 = vrot.lane.b32.xlu0 %v8715, 56
      %v8883 = vpop.permute.xlu0 %8882
      %8884 = vrot.lane.b32.xlu0 %v8725, 56
      %v8885 = vpop.permute.xlu0 %8884
      %8886 = vrot.lane.b32.xlu0 %v8735, 56
      %v8887 = vpop.permute.xlu0 %8886
      %8888 = vrot.lane.b32.xlu0 %v8745, 56
      %v8889 = vpop.permute.xlu0 %8888
      %8890 = vrot.lane.b32.xlu0 %v8755, 56
      %v8891 = vpop.permute.xlu0 %8890
      %8892 = vrot.lane.b32.xlu0 %v8765, 56
      %v8893 = vpop.permute.xlu0 %8892
      %8894 = vrot.lane.b32.xlu0 %v8775, 56
      %v8895 = vpop.permute.xlu0 %8894
      %8896 = vrot.lane.b32.xlu0 %v8785, 56
      %v8897 = vpop.permute.xlu0 %8896
      %8898 = vrot.lane.b32.xlu0 %v8795, 56
      %v8899 = vpop.permute.xlu0 %8898
      %8900 = vrot.lane.b32.xlu0 %v8805, 56
      %v8901 = vpop.permute.xlu0 %8900
      %8902 = vrot.lane.b32.xlu0 %v8815, 56
      %v8903 = vpop.permute.xlu0 %8902
      %8904 = vrot.lane.b32.xlu0 %v8825, 56
      %v8905 = vpop.permute.xlu0 %8904
      %8906 = vrot.lane.b32.xlu0 %v8835, 56
      %v8907 = vpop.permute.xlu0 %8906
      %8944 = vst.msk [vmem:[#allocation2] sm:$0xf] %vm3271, %v8837
      %8945 = vst.msk [vmem:[#allocation2 + $0x4] sm:$0xf] %vm3271, %v8839
      %8946 = vst.msk [vmem:[#allocation2 + $0x8] sm:$0xf] %vm3271, %v8841
      %8947 = vst.msk [vmem:[#allocation2 + $0xc] sm:$0xf] %vm3271, %v8843
      %8948 = vst.msk [vmem:[#allocation2 + $0x10] sm:$0xf] %vm3271, %v8845
      %8949 = vst.msk [vmem:[#allocation2 + $0x14] sm:$0xf] %vm3271, %v8847
      %8950 = vst.msk [vmem:[#allocation2 + $0x18] sm:$0xf] %vm3271, %v8849
      %8951 = vst.msk [vmem:[#allocation2 + $0x1c] sm:$0xf] %vm3271, %v8851
      %8952 = vst.msk [vmem:[#allocation2 + $0x20] sm:$0xf] %vm3271, %v8853
      %8953 = vst.msk [vmem:[#allocation2 + $0x24] sm:$0xf] %vm3271, %v8855
      %8954 = vst.msk [vmem:[#allocation2 + $0x28] sm:$0xf] %vm3271, %v8857
      %8955 = vst.msk [vmem:[#allocation2 + $0x2c] sm:$0xf] %vm3271, %v8859
      %8956 = vst.msk [vmem:[#allocation2 + $0x30] sm:$0xf] %vm3271, %v8861
      %8957 = vst.msk [vmem:[#allocation2 + $0x34] sm:$0xf] %vm3271, %v8863
      %8958 = vst.msk [vmem:[#allocation2 + $0x38] sm:$0xf] %vm3271, %v8865
      %8959 = vst.msk [vmem:[#allocation2 + $0x3c] sm:$0xf] %vm3271, %v8867
      %8960 = vst.msk [vmem:[#allocation2 + $0x40] sm:$0xf] %vm3271, %v8869
      %8961 = vst.msk [vmem:[#allocation2 + $0x44] sm:$0xf] %vm3271, %v8871
      %8962 = vst.msk [vmem:[#allocation2 + $0x48] sm:$0xf] %vm3271, %v8873
      %8963 = vst.msk [vmem:[#allocation2 + $0x4c] sm:$0xf] %vm3271, %v8875
      %8964 = vst.msk [vmem:[#allocation2 + $0x50] sm:$0xf] %vm3271, %v8877
      %8965 = vst.msk [vmem:[#allocation2 + $0x54] sm:$0xf] %vm3271, %v8879
      %8966 = vst.msk [vmem:[#allocation2 + $0x58] sm:$0xf] %vm3271, %v8881
      %8967 = vst.msk [vmem:[#allocation2 + $0x5c] sm:$0xf] %vm3271, %v8883
      %8968 = vst.msk [vmem:[#allocation2 + $0x60] sm:$0xf] %vm3271, %v8885
      %8969 = vst.msk [vmem:[#allocation2 + $0x64] sm:$0xf] %vm3271, %v8887
      %8970 = vst.msk [vmem:[#allocation2 + $0x68] sm:$0xf] %vm3271, %v8889
      %8971 = vst.msk [vmem:[#allocation2 + $0x6c] sm:$0xf] %vm3271, %v8891
      %8972 = vst.msk [vmem:[#allocation2 + $0x70] sm:$0xf] %vm3271, %v8893
      %8973 = vst.msk [vmem:[#allocation2 + $0x74] sm:$0xf] %vm3271, %v8895
      %8974 = vst.msk [vmem:[#allocation2 + $0x78] sm:$0xf] %vm3271, %v8897
      %8975 = vst.msk [vmem:[#allocation2 + $0x7c] sm:$0xf] %vm3271, %v8899
      %8976 = vst.msk [vmem:[#allocation2 + $0x80] sm:$0xf] %vm3271, %v8901
      %8977 = vst.msk [vmem:[#allocation2 + $0x84] sm:$0xf] %vm3271, %v8903
      %8978 = vst.msk [vmem:[#allocation2 + $0x88] sm:$0xf] %vm3271, %v8905
      %8979 = vst.msk [vmem:[#allocation2 + $0x8c] sm:$0xf] %vm3271, %v8907
      %v8980 = vld [vmem:[#allocation3 + $0x10] sm:$0x8]
      %v8981 = vld [vmem:[#allocation3 + $0x14] sm:$0xf]
      %v8982 = vld [vmem:[#allocation3 + $0x18] sm:$0xf]
      %v8983 = vld [vmem:[#allocation3 + $0x1c] sm:$0xf]
      %v8984 = vld [vmem:[#allocation3 + $0x20] sm:$0xf]
      %v8985 = vld [vmem:[#allocation3 + $0x24] sm:$0xf]
      %v8986 = vld [vmem:[#allocation3 + $0x28] sm:$0xf]
      %v8987 = vld [vmem:[#allocation3 + $0x2c] sm:$0xf]
      %v8988 = vld [vmem:[#allocation3 + $0x30] sm:$0xf]
      %v8989 = vld [vmem:[#allocation3 + $0x34] sm:$0xf]
      %v8990 = vld [vmem:[#allocation3 + $0x38] sm:$0xf]
      %v8991 = vld [vmem:[#allocation3 + $0x3c] sm:$0xf]
      %v8992 = vld [vmem:[#allocation3 + $0x40] sm:$0xf]
      %v8993 = vld [vmem:[#allocation3 + $0x44] sm:$0xf]
      %v8994 = vld [vmem:[#allocation3 + $0x48] sm:$0xf]
      %v8995 = vld [vmem:[#allocation3 + $0x4c] sm:$0xf]
      %v8996 = vld [vmem:[#allocation3 + $0x50] sm:$0xf]
      %v8997 = vld [vmem:[#allocation3 + $0x54] sm:$0xf]
      %v8998 = vld [vmem:[#allocation3 + $0x58] sm:$0xf]
      %v8999 = vld [vmem:[#allocation3 + $0x5c] sm:$0xf]
      %v9000 = vld [vmem:[#allocation3 + $0x60] sm:$0xf]
      %v9001 = vld [vmem:[#allocation3 + $0x64] sm:$0xf]
      %v9002 = vld [vmem:[#allocation3 + $0x68] sm:$0xf]
      %v9003 = vld [vmem:[#allocation3 + $0x6c] sm:$0xf]
      %v9004 = vld [vmem:[#allocation3 + $0x70] sm:$0xf]
      %v9005 = vld [vmem:[#allocation3 + $0x74] sm:$0xf]
      %v9006 = vld [vmem:[#allocation3 + $0x78] sm:$0xf]
      %v9007 = vld [vmem:[#allocation3 + $0x7c] sm:$0xf]
      %v9008 = vld [vmem:[#allocation3 + $0x80] sm:$0xf]
      %v9009 = vld [vmem:[#allocation3 + $0x84] sm:$0xf]
      %v9010 = vld [vmem:[#allocation3 + $0x88] sm:$0xf]
      %v9011 = vld [vmem:[#allocation3 + $0x8c] sm:$0xf]
      %v9012 = vld [vmem:[#allocation3 + $0x90] sm:$0xf]
      %v9013 = vld [vmem:[#allocation3 + $0x94] sm:$0xf]
      %v9014 = vld [vmem:[#allocation3 + $0x98] sm:$0xf]
      %v9015 = vld [vmem:[#allocation3 + $0x9c] sm:$0xf]
      %v9016 = vld [vmem:[#allocation3 + $0xa0] sm:$0x7]
      %v9054 = vrot.slane %v8980, 7
      %v9055 = vrot.slane %v9054, 4
      %v9056 = vrot.slane %v8981, 7
      %v9057 = vsel %vm3384, %v9055, %v9056
      %v9058 = vrot.slane %v9056, 4
      %v9059 = vrot.slane %v8982, 7
      %v9060 = vsel %vm3384, %v9058, %v9059
      %v9061 = vrot.slane %v9059, 4
      %v9062 = vrot.slane %v8983, 7
      %v9063 = vsel %vm3384, %v9061, %v9062
      %v9064 = vrot.slane %v9062, 4
      %v9065 = vrot.slane %v8984, 7
      %v9066 = vsel %vm3384, %v9064, %v9065
      %v9067 = vrot.slane %v9065, 4
      %v9068 = vrot.slane %v8985, 7
      %v9069 = vsel %vm3384, %v9067, %v9068
      %v9070 = vrot.slane %v9068, 4
      %v9071 = vrot.slane %v8986, 7
      %v9072 = vsel %vm3384, %v9070, %v9071
      %v9073 = vrot.slane %v9071, 4
      %v9074 = vrot.slane %v8987, 7
      %v9075 = vsel %vm3384, %v9073, %v9074
      %v9076 = vrot.slane %v9074, 4
      %v9077 = vrot.slane %v8988, 7
      %v9078 = vsel %vm3384, %v9076, %v9077
      %v9079 = vrot.slane %v9077, 4
      %v9080 = vrot.slane %v8989, 7
      %v9081 = vsel %vm3384, %v9079, %v9080
      %v9082 = vrot.slane %v9080, 4
      %v9083 = vrot.slane %v8990, 7
      %v9084 = vsel %vm3384, %v9082, %v9083
      %v9085 = vrot.slane %v9083, 4
      %v9086 = vrot.slane %v8991, 7
      %v9087 = vsel %vm3384, %v9085, %v9086
      %v9088 = vrot.slane %v9086, 4
      %v9089 = vrot.slane %v8992, 7
      %v9090 = vsel %vm3384, %v9088, %v9089
      %v9091 = vrot.slane %v9089, 4
      %v9092 = vrot.slane %v8993, 7
      %v9093 = vsel %vm3384, %v9091, %v9092
      %v9094 = vrot.slane %v9092, 4
      %v9095 = vrot.slane %v8994, 7
      %v9096 = vsel %vm3384, %v9094, %v9095
      %v9097 = vrot.slane %v9095, 4
      %v9098 = vrot.slane %v8995, 7
      %v9099 = vsel %vm3384, %v9097, %v9098
      %v9100 = vrot.slane %v9098, 4
      %v9101 = vrot.slane %v8996, 7
      %v9102 = vsel %vm3384, %v9100, %v9101
      %v9103 = vrot.slane %v9101, 4
      %v9104 = vrot.slane %v8997, 7
      %v9105 = vsel %vm3384, %v9103, %v9104
      %v9106 = vrot.slane %v9104, 4
      %v9107 = vrot.slane %v8998, 7
      %v9108 = vsel %vm3384, %v9106, %v9107
      %v9109 = vrot.slane %v9107, 4
      %v9110 = vrot.slane %v8999, 7
      %v9111 = vsel %vm3384, %v9109, %v9110
      %v9112 = vrot.slane %v9110, 4
      %v9113 = vrot.slane %v9000, 7
      %v9114 = vsel %vm3384, %v9112, %v9113
      %v9115 = vrot.slane %v9113, 4
      %v9116 = vrot.slane %v9001, 7
      %v9117 = vsel %vm3384, %v9115, %v9116
      %v9118 = vrot.slane %v9116, 4
      %v9119 = vrot.slane %v9002, 7
      %v9120 = vsel %vm3384, %v9118, %v9119
      %v9121 = vrot.slane %v9119, 4
      %v9122 = vrot.slane %v9003, 7
      %v9123 = vsel %vm3384, %v9121, %v9122
      %v9124 = vrot.slane %v9122, 4
      %v9125 = vrot.slane %v9004, 7
      %v9126 = vsel %vm3384, %v9124, %v9125
      %v9127 = vrot.slane %v9125, 4
      %v9128 = vrot.slane %v9005, 7
      %v9129 = vsel %vm3384, %v9127, %v9128
      %v9130 = vrot.slane %v9128, 4
      %v9131 = vrot.slane %v9006, 7
      %v9132 = vsel %vm3384, %v9130, %v9131
      %v9133 = vrot.slane %v9131, 4
      %v9134 = vrot.slane %v9007, 7
      %v9135 = vsel %vm3384, %v9133, %v9134
      %v9136 = vrot.slane %v9134, 4
      %v9137 = vrot.slane %v9008, 7
      %v9138 = vsel %vm3384, %v9136, %v9137
      %v9139 = vrot.slane %v9137, 4
      %v9140 = vrot.slane %v9009, 7
      %v9141 = vsel %vm3384, %v9139, %v9140
      %v9142 = vrot.slane %v9140, 4
      %v9143 = vrot.slane %v9010, 7
      %v9144 = vsel %vm3384, %v9142, %v9143
      %v9145 = vrot.slane %v9143, 4
      %v9146 = vrot.slane %v9011, 7
      %v9147 = vsel %vm3384, %v9145, %v9146
      %v9148 = vrot.slane %v9146, 4
      %v9149 = vrot.slane %v9012, 7
      %v9150 = vsel %vm3384, %v9148, %v9149
      %v9151 = vrot.slane %v9149, 4
      %v9152 = vrot.slane %v9013, 7
      %v9153 = vsel %vm3384, %v9151, %v9152
      %v9154 = vrot.slane %v9152, 4
      %v9155 = vrot.slane %v9014, 7
      %v9156 = vsel %vm3384, %v9154, %v9155
      %v9157 = vrot.slane %v9155, 4
      %v9158 = vrot.slane %v9015, 7
      %v9159 = vsel %vm3384, %v9157, %v9158
      %v9160 = vrot.slane %v9158, 4
      %v9161 = vrot.slane %v9016, 7
      %v9162 = vsel %vm3384, %v9160, %v9161
      %9163 = vrot.lane.b32.xlu0 %v9057, 64
      %v9164 = vpop.permute.xlu0 %9163
      %9165 = vrot.lane.b32.xlu0 %v9060, 64
      %v9166 = vpop.permute.xlu0 %9165
      %9167 = vrot.lane.b32.xlu0 %v9063, 64
      %v9168 = vpop.permute.xlu0 %9167
      %9169 = vrot.lane.b32.xlu0 %v9066, 64
      %v9170 = vpop.permute.xlu0 %9169
      %9171 = vrot.lane.b32.xlu0 %v9069, 64
      %v9172 = vpop.permute.xlu0 %9171
      %9173 = vrot.lane.b32.xlu0 %v9072, 64
      %v9174 = vpop.permute.xlu0 %9173
      %9175 = vrot.lane.b32.xlu0 %v9075, 64
      %v9176 = vpop.permute.xlu0 %9175
      %9177 = vrot.lane.b32.xlu0 %v9078, 64
      %v9178 = vpop.permute.xlu0 %9177
      %9179 = vrot.lane.b32.xlu0 %v9081, 64
      %v9180 = vpop.permute.xlu0 %9179
      %9181 = vrot.lane.b32.xlu0 %v9084, 64
      %v9182 = vpop.permute.xlu0 %9181
      %9183 = vrot.lane.b32.xlu0 %v9087, 64
      %v9184 = vpop.permute.xlu0 %9183
      %9185 = vrot.lane.b32.xlu0 %v9090, 64
      %v9186 = vpop.permute.xlu0 %9185
      %9187 = vrot.lane.b32.xlu0 %v9093, 64
      %v9188 = vpop.permute.xlu0 %9187
      %9189 = vrot.lane.b32.xlu0 %v9096, 64
      %v9190 = vpop.permute.xlu0 %9189
      %9191 = vrot.lane.b32.xlu0 %v9099, 64
      %v9192 = vpop.permute.xlu0 %9191
      %9193 = vrot.lane.b32.xlu0 %v9102, 64
      %v9194 = vpop.permute.xlu0 %9193
      %9195 = vrot.lane.b32.xlu0 %v9105, 64
      %v9196 = vpop.permute.xlu0 %9195
      %9197 = vrot.lane.b32.xlu0 %v9108, 64
      %v9198 = vpop.permute.xlu0 %9197
      %9199 = vrot.lane.b32.xlu0 %v9111, 64
      %v9200 = vpop.permute.xlu0 %9199
      %9201 = vrot.lane.b32.xlu0 %v9114, 64
      %v9202 = vpop.permute.xlu0 %9201
      %9203 = vrot.lane.b32.xlu0 %v9117, 64
      %v9204 = vpop.permute.xlu0 %9203
      %9205 = vrot.lane.b32.xlu0 %v9120, 64
      %v9206 = vpop.permute.xlu0 %9205
      %9207 = vrot.lane.b32.xlu0 %v9123, 64
      %v9208 = vpop.permute.xlu0 %9207
      %9209 = vrot.lane.b32.xlu0 %v9126, 64
      %v9210 = vpop.permute.xlu0 %9209
      %9211 = vrot.lane.b32.xlu0 %v9129, 64
      %v9212 = vpop.permute.xlu0 %9211
      %9213 = vrot.lane.b32.xlu0 %v9132, 64
      %v9214 = vpop.permute.xlu0 %9213
      %9215 = vrot.lane.b32.xlu0 %v9135, 64
      %v9216 = vpop.permute.xlu0 %9215
      %9217 = vrot.lane.b32.xlu0 %v9138, 64
      %v9218 = vpop.permute.xlu0 %9217
      %9219 = vrot.lane.b32.xlu0 %v9141, 64
      %v9220 = vpop.permute.xlu0 %9219
      %9221 = vrot.lane.b32.xlu0 %v9144, 64
      %v9222 = vpop.permute.xlu0 %9221
      %9223 = vrot.lane.b32.xlu0 %v9147, 64
      %v9224 = vpop.permute.xlu0 %9223
      %9225 = vrot.lane.b32.xlu0 %v9150, 64
      %v9226 = vpop.permute.xlu0 %9225
      %9227 = vrot.lane.b32.xlu0 %v9153, 64
      %v9228 = vpop.permute.xlu0 %9227
      %9229 = vrot.lane.b32.xlu0 %v9156, 64
      %v9230 = vpop.permute.xlu0 %9229
      %9231 = vrot.lane.b32.xlu0 %v9159, 64
      %v9232 = vpop.permute.xlu0 %9231
      %9233 = vrot.lane.b32.xlu0 %v9162, 64
      %v9234 = vpop.permute.xlu0 %9233
      %9271 = vst.msk [vmem:[#allocation2] sm:$0xf] %vm3602, %v9164
      %9272 = vst.msk [vmem:[#allocation2 + $0x4] sm:$0xf] %vm3602, %v9166
      %9273 = vst.msk [vmem:[#allocation2 + $0x8] sm:$0xf] %vm3602, %v9168
      %9274 = vst.msk [vmem:[#allocation2 + $0xc] sm:$0xf] %vm3602, %v9170
      %9275 = vst.msk [vmem:[#allocation2 + $0x10] sm:$0xf] %vm3602, %v9172
      %9276 = vst.msk [vmem:[#allocation2 + $0x14] sm:$0xf] %vm3602, %v9174
      %9277 = vst.msk [vmem:[#allocation2 + $0x18] sm:$0xf] %vm3602, %v9176
      %9278 = vst.msk [vmem:[#allocation2 + $0x1c] sm:$0xf] %vm3602, %v9178
      %9279 = vst.msk [vmem:[#allocation2 + $0x20] sm:$0xf] %vm3602, %v9180
      %9280 = vst.msk [vmem:[#allocation2 + $0x24] sm:$0xf] %vm3602, %v9182
      %9281 = vst.msk [vmem:[#allocation2 + $0x28] sm:$0xf] %vm3602, %v9184
      %9282 = vst.msk [vmem:[#allocation2 + $0x2c] sm:$0xf] %vm3602, %v9186
      %9283 = vst.msk [vmem:[#allocation2 + $0x30] sm:$0xf] %vm3602, %v9188
      %9284 = vst.msk [vmem:[#allocation2 + $0x34] sm:$0xf] %vm3602, %v9190
      %9285 = vst.msk [vmem:[#allocation2 + $0x38] sm:$0xf] %vm3602, %v9192
      %9286 = vst.msk [vmem:[#allocation2 + $0x3c] sm:$0xf] %vm3602, %v9194
      %9287 = vst.msk [vmem:[#allocation2 + $0x40] sm:$0xf] %vm3602, %v9196
      %9288 = vst.msk [vmem:[#allocation2 + $0x44] sm:$0xf] %vm3602, %v9198
      %9289 = vst.msk [vmem:[#allocation2 + $0x48] sm:$0xf] %vm3602, %v9200
      %9290 = vst.msk [vmem:[#allocation2 + $0x4c] sm:$0xf] %vm3602, %v9202
      %9291 = vst.msk [vmem:[#allocation2 + $0x50] sm:$0xf] %vm3602, %v9204
      %9292 = vst.msk [vmem:[#allocation2 + $0x54] sm:$0xf] %vm3602, %v9206
      %9293 = vst.msk [vmem:[#allocation2 + $0x58] sm:$0xf] %vm3602, %v9208
      %9294 = vst.msk [vmem:[#allocation2 + $0x5c] sm:$0xf] %vm3602, %v9210
      %9295 = vst.msk [vmem:[#allocation2 + $0x60] sm:$0xf] %vm3602, %v9212
      %9296 = vst.msk [vmem:[#allocation2 + $0x64] sm:$0xf] %vm3602, %v9214
      %9297 = vst.msk [vmem:[#allocation2 + $0x68] sm:$0xf] %vm3602, %v9216
      %9298 = vst.msk [vmem:[#allocation2 + $0x6c] sm:$0xf] %vm3602, %v9218
      %9299 = vst.msk [vmem:[#allocation2 + $0x70] sm:$0xf] %vm3602, %v9220
      %9300 = vst.msk [vmem:[#allocation2 + $0x74] sm:$0xf] %vm3602, %v9222
      %9301 = vst.msk [vmem:[#allocation2 + $0x78] sm:$0xf] %vm3602, %v9224
      %9302 = vst.msk [vmem:[#allocation2 + $0x7c] sm:$0xf] %vm3602, %v9226
      %9303 = vst.msk [vmem:[#allocation2 + $0x80] sm:$0xf] %vm3602, %v9228
      %9304 = vst.msk [vmem:[#allocation2 + $0x84] sm:$0xf] %vm3602, %v9230
      %9305 = vst.msk [vmem:[#allocation2 + $0x88] sm:$0xf] %vm3602, %v9232
      %9306 = vst.msk [vmem:[#allocation2 + $0x8c] sm:$0xf] %vm3602, %v9234
      %v9307 = vld [vmem:[#allocation2] sm:$0xf]
      %v9308 = vld [vmem:[#allocation2 + $0x4] sm:$0xf]
      %v9309 = vld [vmem:[#allocation2 + $0x8] sm:$0xf]
      %v9310 = vld [vmem:[#allocation2 + $0xc] sm:$0xf]
      %v9311 = vld [vmem:[#allocation2 + $0x10] sm:$0xf]
      %v9312 = vld [vmem:[#allocation2 + $0x14] sm:$0xf]
      %v9313 = vld [vmem:[#allocation2 + $0x18] sm:$0xf]
      %v9314 = vld [vmem:[#allocation2 + $0x1c] sm:$0xf]
      %v9315 = vld [vmem:[#allocation2 + $0x20] sm:$0xf]
      %v9316 = vld [vmem:[#allocation2 + $0x24] sm:$0xf]
      %v9317 = vld [vmem:[#allocation2 + $0x28] sm:$0xf]
      %v9318 = vld [vmem:[#allocation2 + $0x2c] sm:$0xf]
      %v9319 = vld [vmem:[#allocation2 + $0x30] sm:$0xf]
      %v9320 = vld [vmem:[#allocation2 + $0x34] sm:$0xf]
      %v9321 = vld [vmem:[#allocation2 + $0x38] sm:$0xf]
      %v9322 = vld [vmem:[#allocation2 + $0x3c] sm:$0xf]
      %v9323 = vld [vmem:[#allocation2 + $0x40] sm:$0xf]
      %v9324 = vld [vmem:[#allocation2 + $0x44] sm:$0xf]
      %v9325 = vld [vmem:[%s3] sm:$0xf]
      %v9326 = vld [vmem:[%s3 + $0x4] sm:$0xf]
      %v9327 = vld [vmem:[%s3 + $0x8] sm:$0xf]
      %v9328 = vld [vmem:[%s3 + $0xc] sm:$0xf]
      %v9329 = vld [vmem:[%s3 + $0x10] sm:$0xf]
      %v9330 = vld [vmem:[%s3 + $0x14] sm:$0xf]
      %v9331 = vld [vmem:[%s3 + $0x18] sm:$0xf]
      %v9332 = vld [vmem:[%s3 + $0x1c] sm:$0xf]
      %v9333 = vld [vmem:[%s3 + $0x20] sm:$0xf]
      %v9334 = vld [vmem:[%s3 + $0x24] sm:$0xf]
      %v9335 = vld [vmem:[%s3 + $0x28] sm:$0xf]
      %v9336 = vld [vmem:[%s3 + $0x2c] sm:$0xf]
      %v9337 = vld [vmem:[%s3 + $0x30] sm:$0xf]
      %v9338 = vld [vmem:[%s3 + $0x34] sm:$0xf]
      %v9339 = vld [vmem:[%s3 + $0x38] sm:$0xf]
      %v9340 = vld [vmem:[%s3 + $0x3c] sm:$0xf]
      %v9341 = vld [vmem:[%s4] sm:$0x1]
      %v9343 = vperm.slane %v9341, 0
      %v9363 = vunpack.c.l.b16 %v9307
      %v9364 = vunpack.c.l.b16 %v9308
      %v9365 = vunpack.c.l.b16 %v9309
      %v9366 = vunpack.c.l.b16 %v9310
      %v9367 = vunpack.c.l.b16 %v9311
      %v9368 = vunpack.c.l.b16 %v9312
      %v9369 = vunpack.c.l.b16 %v9313
      %v9370 = vunpack.c.l.b16 %v9314
      %v9371 = vunpack.c.l.b16 %v9315
      %v9372 = vunpack.c.l.b16 %v9316
      %v9373 = vunpack.c.l.b16 %v9317
      %v9374 = vunpack.c.l.b16 %v9318
      %v9375 = vunpack.c.l.b16 %v9319
      %v9376 = vunpack.c.l.b16 %v9320
      %v9377 = vunpack.c.l.b16 %v9321
      %v9378 = vunpack.c.l.b16 %v9322
      %v9379 = vunpack.c.l.b16 %v9323
      %v9380 = vunpack.c.l.b16 %v9324
      %v9381 = vpack.c.b16 %v9364, %v9363
      %v9382 = vpack.c.b16 %v9366, %v9365
      %v9383 = vpack.c.b16 %v9368, %v9367
      %v9384 = vpack.c.b16 %v9370, %v9369
      %v9385 = vpack.c.b16 %v9372, %v9371
      %v9386 = vpack.c.b16 %v9374, %v9373
      %v9387 = vpack.c.b16 %v9376, %v9375
      %v9388 = vpack.c.b16 %v9378, %v9377
      %v9389 = vpack.c.b16 %v9380, %v9379
      %v9415 = vunpack.c.l.b16 %v9325
      %v9416 = vunpack.c.l.b16 %v9326
      %v9417 = vunpack.c.l.b16 %v9327
      %v9418 = vunpack.c.l.b16 %v9328
      %v9419 = vunpack.c.l.b16 %v9329
      %v9420 = vunpack.c.l.b16 %v9330
      %v9421 = vunpack.c.l.b16 %v9331
      %v9422 = vunpack.c.l.b16 %v9332
      %v9423 = vunpack.c.l.b16 %v9333
      %v9424 = vunpack.c.l.b16 %v9334
      %v9425 = vunpack.c.l.b16 %v9335
      %v9426 = vunpack.c.l.b16 %v9336
      %v9427 = vunpack.c.l.b16 %v9337
      %v9428 = vunpack.c.l.b16 %v9338
      %v9429 = vunpack.c.l.b16 %v9339
      %v9430 = vunpack.c.l.b16 %v9340
      %v9431 = vpack.c.b16 %v9416, %v9415
      %v9432 = vpack.c.b16 %v9418, %v9417
      %v9433 = vpack.c.b16 %v9420, %v9419
      %v9434 = vpack.c.b16 %v9422, %v9421
      %v9435 = vpack.c.b16 %v9424, %v9423
      %v9436 = vpack.c.b16 %v9426, %v9425
      %v9437 = vpack.c.b16 %v9428, %v9427
      %v9438 = vpack.c.b16 %v9430, %v9429
      %9447 = vmatpush.bf16.msra.mxu0 %v9438
      %9448 = vmatpush.bf16.msra.mxu0 %v9437
      %9449 = vmatpush.bf16.msra.mxu0 %v9436
      %9450 = vmatpush.bf16.msra.mxu0 %v9435
      %9451 = vmatpush.bf16.msra.mxu0 %v9434
      %9452 = vmatpush.bf16.msra.mxu0 %v9433
      %9453 = vmatpush.bf16.msra.mxu0 %v9432
      %9454 = vmatpush.bf16.msra.mxu0 %v9431
      %9455 = vmatmul.bf16.gmra.mxu0 %v9381
      %v9456 = vpop.f32.mrf.mxu0
      %v9457 = vadd.f32 %v9343, %v9456
      %v9458 = vpop.f32.mrf.mxu0
      %v9459 = vadd.f32 %v9343, %v9458
      %9460 = vmatmul.bf16.gmra.mxu0 %v9382
      %v9461 = vpop.f32.mrf.mxu0
      %v9462 = vadd.f32 %v9343, %v9461
      %v9463 = vpop.f32.mrf.mxu0
      %v9464 = vadd.f32 %v9343, %v9463
      %9465 = vmatmul.bf16.gmra.mxu0 %v9383
      %v9466 = vpop.f32.mrf.mxu0
      %v9467 = vadd.f32 %v9343, %v9466
      %v9468 = vpop.f32.mrf.mxu0
      %v9469 = vadd.f32 %v9343, %v9468
      %9470 = vmatmul.bf16.gmra.mxu0 %v9384
      %v9471 = vpop.f32.mrf.mxu0
      %v9472 = vadd.f32 %v9343, %v9471
      %v9473 = vpop.f32.mrf.mxu0
      %v9474 = vadd.f32 %v9343, %v9473
      %9475 = vmatmul.bf16.gmra.mxu0 %v9385
      %v9476 = vpop.f32.mrf.mxu0
      %v9477 = vadd.f32 %v9343, %v9476
      %v9478 = vpop.f32.mrf.mxu0
      %v9479 = vadd.f32 %v9343, %v9478
      %9480 = vmatmul.bf16.gmra.mxu0 %v9386
      %v9481 = vpop.f32.mrf.mxu0
      %v9482 = vadd.f32 %v9343, %v9481
      %v9483 = vpop.f32.mrf.mxu0
      %v9484 = vadd.f32 %v9343, %v9483
      %9485 = vmatmul.bf16.gmra.mxu0 %v9387
      %v9486 = vpop.f32.mrf.mxu0
      %v9487 = vadd.f32 %v9343, %v9486
      %v9488 = vpop.f32.mrf.mxu0
      %v9489 = vadd.f32 %v9343, %v9488
      %9490 = vmatmul.bf16.gmra.mxu0 %v9388
      %v9491 = vpop.f32.mrf.mxu0
      %v9492 = vadd.f32 %v9343, %v9491
      %v9493 = vpop.f32.mrf.mxu0
      %v9494 = vadd.f32 %v9343, %v9493
      %9495 = vmatmul.bf16.gmra.mxu0 %v9389
      %v9496 = vpop.f32.mrf.mxu0
      %v9497 = vadd.f32 %v9343, %v9496
      %v9498 = vpop.f32.mrf.mxu0
      %v9499 = vadd.f32 %v9343, %v9498
      %9500 = vdwg.mxu0
      %v9501 = vmax.f32 %v9457, 0.0
      %v9502 = vmax.f32 %v9459, 0.0
      %v9503 = vmax.f32 %v9462, 0.0
      %v9504 = vmax.f32 %v9464, 0.0
      %v9505 = vmax.f32 %v9467, 0.0
      %v9506 = vmax.f32 %v9469, 0.0
      %v9507 = vmax.f32 %v9472, 0.0
      %v9508 = vmax.f32 %v9474, 0.0
      %v9509 = vmax.f32 %v9477, 0.0
      %v9510 = vmax.f32 %v9479, 0.0
      %v9511 = vmax.f32 %v9482, 0.0
      %v9512 = vmax.f32 %v9484, 0.0
      %v9513 = vmax.f32 %v9487, 0.0
      %v9514 = vmax.f32 %v9489, 0.0
      %v9515 = vmax.f32 %v9492, 0.0
      %v9516 = vmax.f32 %v9494, 0.0
      %v9517 = vmax.f32 %v9497, 0.0
      %v9518 = vmax.f32 %v9499, 0.0
      %vm9519 = vcmask 64512
      %9520 = vst.msk [vmem:[%s224] sm:$0xff] %vm9519, %v9501
      %9521 = vst.msk [vmem:[%s224 + $0x8] sm:$0xff] %vm9519, %v9502
      %9522 = vst.msk [vmem:[%s224 + $0x10] sm:$0xff] %vm9519, %v9503
      %9523 = vst.msk [vmem:[%s224 + $0x18] sm:$0xff] %vm9519, %v9504
      %9524 = vst.msk [vmem:[%s224 + $0x20] sm:$0xff] %vm9519, %v9505
      %9525 = vst.msk [vmem:[%s224 + $0x28] sm:$0xff] %vm9519, %v9506
      %9526 = vst.msk [vmem:[%s224 + $0x30] sm:$0xff] %vm9519, %v9507
      %9527 = vst.msk [vmem:[%s224 + $0x38] sm:$0xff] %vm9519, %v9508
      %9528 = vst.msk [vmem:[%s224 + $0x40] sm:$0xff] %vm9519, %v9509
      %9529 = vst.msk [vmem:[%s224 + $0x48] sm:$0xff] %vm9519, %v9510
      %9530 = vst.msk [vmem:[%s224 + $0x50] sm:$0xff] %vm9519, %v9511
      %9531 = vst.msk [vmem:[%s224 + $0x58] sm:$0xff] %vm9519, %v9512
      %9532 = vst.msk [vmem:[%s224 + $0x60] sm:$0xff] %vm9519, %v9513
      %9533 = vst.msk [vmem:[%s224 + $0x68] sm:$0xff] %vm9519, %v9514
      %9534 = vst.msk [vmem:[%s224 + $0x70] sm:$0xff] %vm9519, %v9515
      %9535 = vst.msk [vmem:[%s224 + $0x78] sm:$0xff] %vm9519, %v9516
      %9536 = vst.msk [vmem:[%s224 + $0x80] sm:$0xff] %vm9519, %v9517
      %9537 = vst.msk [vmem:[%s224 + $0x88] sm:$0xff] %vm9519, %v9518
      %v9538 = vld [vmem:[#allocation2 + $0x48] sm:$0xf]
      %v9539 = vld [vmem:[#allocation2 + $0x4c] sm:$0xf]
      %v9540 = vld [vmem:[#allocation2 + $0x50] sm:$0xf]
      %v9541 = vld [vmem:[#allocation2 + $0x54] sm:$0xf]
      %v9542 = vld [vmem:[#allocation2 + $0x58] sm:$0xf]
      %v9543 = vld [vmem:[#allocation2 + $0x5c] sm:$0xf]
      %v9544 = vld [vmem:[#allocation2 + $0x60] sm:$0xf]
      %v9545 = vld [vmem:[#allocation2 + $0x64] sm:$0xf]
      %v9546 = vld [vmem:[#allocation2 + $0x68] sm:$0xf]
      %v9547 = vld [vmem:[#allocation2 + $0x6c] sm:$0xf]
      %v9548 = vld [vmem:[#allocation2 + $0x70] sm:$0xf]
      %v9549 = vld [vmem:[#allocation2 + $0x74] sm:$0xf]
      %v9550 = vld [vmem:[#allocation2 + $0x78] sm:$0xf]
      %v9551 = vld [vmem:[#allocation2 + $0x7c] sm:$0xf]
      %v9552 = vld [vmem:[#allocation2 + $0x80] sm:$0xf]
      %v9553 = vld [vmem:[#allocation2 + $0x84] sm:$0xf]
      %v9554 = vld [vmem:[#allocation2 + $0x88] sm:$0xf]
      %v9555 = vld [vmem:[#allocation2 + $0x8c] sm:$0xf]
      %v9556 = vld [vmem:[%s3] sm:$0xf]
      %v9557 = vld [vmem:[%s3 + $0x4] sm:$0xf]
      %v9558 = vld [vmem:[%s3 + $0x8] sm:$0xf]
      %v9559 = vld [vmem:[%s3 + $0xc] sm:$0xf]
      %v9560 = vld [vmem:[%s3 + $0x10] sm:$0xf]
      %v9561 = vld [vmem:[%s3 + $0x14] sm:$0xf]
      %v9562 = vld [vmem:[%s3 + $0x18] sm:$0xf]
      %v9563 = vld [vmem:[%s3 + $0x1c] sm:$0xf]
      %v9564 = vld [vmem:[%s3 + $0x20] sm:$0xf]
      %v9565 = vld [vmem:[%s3 + $0x24] sm:$0xf]
      %v9566 = vld [vmem:[%s3 + $0x28] sm:$0xf]
      %v9567 = vld [vmem:[%s3 + $0x2c] sm:$0xf]
      %v9568 = vld [vmem:[%s3 + $0x30] sm:$0xf]
      %v9569 = vld [vmem:[%s3 + $0x34] sm:$0xf]
      %v9570 = vld [vmem:[%s3 + $0x38] sm:$0xf]
      %v9571 = vld [vmem:[%s3 + $0x3c] sm:$0xf]
      %v9572 = vld [vmem:[%s4] sm:$0x1]
      %v9574 = vperm.slane %v9572, 0
      %v9594 = vunpack.c.l.b16 %v9538
      %v9595 = vunpack.c.l.b16 %v9539
      %v9596 = vunpack.c.l.b16 %v9540
      %v9597 = vunpack.c.l.b16 %v9541
      %v9598 = vunpack.c.l.b16 %v9542
      %v9599 = vunpack.c.l.b16 %v9543
      %v9600 = vunpack.c.l.b16 %v9544
      %v9601 = vunpack.c.l.b16 %v9545
      %v9602 = vunpack.c.l.b16 %v9546
      %v9603 = vunpack.c.l.b16 %v9547
      %v9604 = vunpack.c.l.b16 %v9548
      %v9605 = vunpack.c.l.b16 %v9549
      %v9606 = vunpack.c.l.b16 %v9550
      %v9607 = vunpack.c.l.b16 %v9551
      %v9608 = vunpack.c.l.b16 %v9552
      %v9609 = vunpack.c.l.b16 %v9553
      %v9610 = vunpack.c.l.b16 %v9554
      %v9611 = vunpack.c.l.b16 %v9555
      %v9612 = vpack.c.b16 %v9595, %v9594
      %v9613 = vpack.c.b16 %v9597, %v9596
      %v9614 = vpack.c.b16 %v9599, %v9598
      %v9615 = vpack.c.b16 %v9601, %v9600
      %v9616 = vpack.c.b16 %v9603, %v9602
      %v9617 = vpack.c.b16 %v9605, %v9604
      %v9618 = vpack.c.b16 %v9607, %v9606
      %v9619 = vpack.c.b16 %v9609, %v9608
      %v9620 = vpack.c.b16 %v9611, %v9610
      %v9646 = vunpack.c.l.b16 %v9556
      %v9647 = vunpack.c.l.b16 %v9557
      %v9648 = vunpack.c.l.b16 %v9558
      %v9649 = vunpack.c.l.b16 %v9559
      %v9650 = vunpack.c.l.b16 %v9560
      %v9651 = vunpack.c.l.b16 %v9561
      %v9652 = vunpack.c.l.b16 %v9562
      %v9653 = vunpack.c.l.b16 %v9563
      %v9654 = vunpack.c.l.b16 %v9564
      %v9655 = vunpack.c.l.b16 %v9565
      %v9656 = vunpack.c.l.b16 %v9566
      %v9657 = vunpack.c.l.b16 %v9567
      %v9658 = vunpack.c.l.b16 %v9568
      %v9659 = vunpack.c.l.b16 %v9569
      %v9660 = vunpack.c.l.b16 %v9570
      %v9661 = vunpack.c.l.b16 %v9571
      %v9662 = vpack.c.b16 %v9647, %v9646
      %v9663 = vpack.c.b16 %v9649, %v9648
      %v9664 = vpack.c.b16 %v9651, %v9650
      %v9665 = vpack.c.b16 %v9653, %v9652
      %v9666 = vpack.c.b16 %v9655, %v9654
      %v9667 = vpack.c.b16 %v9657, %v9656
      %v9668 = vpack.c.b16 %v9659, %v9658
      %v9669 = vpack.c.b16 %v9661, %v9660
      %9678 = vmatpush.bf16.msra.mxu0 %v9669
      %9679 = vmatpush.bf16.msra.mxu0 %v9668
      %9680 = vmatpush.bf16.msra.mxu0 %v9667
      %9681 = vmatpush.bf16.msra.mxu0 %v9666
      %9682 = vmatpush.bf16.msra.mxu0 %v9665
      %9683 = vmatpush.bf16.msra.mxu0 %v9664
      %9684 = vmatpush.bf16.msra.mxu0 %v9663
      %9685 = vmatpush.bf16.msra.mxu0 %v9662
      %9686 = vmatmul.bf16.gmra.mxu0 %v9612
      %v9687 = vpop.f32.mrf.mxu0
      %v9688 = vadd.f32 %v9574, %v9687
      %v9689 = vpop.f32.mrf.mxu0
      %v9690 = vadd.f32 %v9574, %v9689
      %9691 = vmatmul.bf16.gmra.mxu0 %v9613
      %v9692 = vpop.f32.mrf.mxu0
      %v9693 = vadd.f32 %v9574, %v9692
      %v9694 = vpop.f32.mrf.mxu0
      %v9695 = vadd.f32 %v9574, %v9694
      %9696 = vmatmul.bf16.gmra.mxu0 %v9614
      %v9697 = vpop.f32.mrf.mxu0
      %v9698 = vadd.f32 %v9574, %v9697
      %v9699 = vpop.f32.mrf.mxu0
      %v9700 = vadd.f32 %v9574, %v9699
      %9701 = vmatmul.bf16.gmra.mxu0 %v9615
      %v9702 = vpop.f32.mrf.mxu0
      %v9703 = vadd.f32 %v9574, %v9702
      %v9704 = vpop.f32.mrf.mxu0
      %v9705 = vadd.f32 %v9574, %v9704
      %9706 = vmatmul.bf16.gmra.mxu0 %v9616
      %v9707 = vpop.f32.mrf.mxu0
      %v9708 = vadd.f32 %v9574, %v9707
      %v9709 = vpop.f32.mrf.mxu0
      %v9710 = vadd.f32 %v9574, %v9709
      %9711 = vmatmul.bf16.gmra.mxu0 %v9617
      %v9712 = vpop.f32.mrf.mxu0
      %v9713 = vadd.f32 %v9574, %v9712
      %v9714 = vpop.f32.mrf.mxu0
      %v9715 = vadd.f32 %v9574, %v9714
      %9716 = vmatmul.bf16.gmra.mxu0 %v9618
      %v9717 = vpop.f32.mrf.mxu0
      %v9718 = vadd.f32 %v9574, %v9717
      %v9719 = vpop.f32.mrf.mxu0
      %v9720 = vadd.f32 %v9574, %v9719
      %9721 = vmatmul.bf16.gmra.mxu0 %v9619
      %v9722 = vpop.f32.mrf.mxu0
      %v9723 = vadd.f32 %v9574, %v9722
      %v9724 = vpop.f32.mrf.mxu0
      %v9725 = vadd.f32 %v9574, %v9724
      %9726 = vmatmul.bf16.gmra.mxu0 %v9620
      %v9727 = vpop.f32.mrf.mxu0
      %v9728 = vadd.f32 %v9574, %v9727
      %v9729 = vpop.f32.mrf.mxu0
      %v9730 = vadd.f32 %v9574, %v9729
      %9731 = vdwg.mxu0
      %v9732 = vmax.f32 %v9688, 0.0
      %v9733 = vmax.f32 %v9690, 0.0
      %v9734 = vmax.f32 %v9693, 0.0
      %v9735 = vmax.f32 %v9695, 0.0
      %v9736 = vmax.f32 %v9698, 0.0
      %v9737 = vmax.f32 %v9700, 0.0
      %v9738 = vmax.f32 %v9703, 0.0
      %v9739 = vmax.f32 %v9705, 0.0
      %v9740 = vmax.f32 %v9708, 0.0
      %v9741 = vmax.f32 %v9710, 0.0
      %v9742 = vmax.f32 %v9713, 0.0
      %v9743 = vmax.f32 %v9715, 0.0
      %v9744 = vmax.f32 %v9718, 0.0
      %v9745 = vmax.f32 %v9720, 0.0
      %v9746 = vmax.f32 %v9723, 0.0
      %v9747 = vmax.f32 %v9725, 0.0
      %v9748 = vmax.f32 %v9728, 0.0
      %v9749 = vmax.f32 %v9730, 0.0
      %9750 = vst.msk [vmem:[%s224 + $0x90] sm:$0xff] %vm9519, %v9732
      %9751 = vst.msk [vmem:[%s224 + $0x98] sm:$0xff] %vm9519, %v9733
      %9752 = vst.msk [vmem:[%s224 + $0xa0] sm:$0xff] %vm9519, %v9734
      %9753 = vst.msk [vmem:[%s224 + $0xa8] sm:$0xff] %vm9519, %v9735
      %9754 = vst.msk [vmem:[%s224 + $0xb0] sm:$0xff] %vm9519, %v9736
      %9755 = vst.msk [vmem:[%s224 + $0xb8] sm:$0xff] %vm9519, %v9737
      %9756 = vst.msk [vmem:[%s224 + $0xc0] sm:$0xff] %vm9519, %v9738
      %9757 = vst.msk [vmem:[%s224 + $0xc8] sm:$0xff] %vm9519, %v9739
      %9758 = vst.msk [vmem:[%s224 + $0xd0] sm:$0xff] %vm9519, %v9740
      %9759 = vst.msk [vmem:[%s224 + $0xd8] sm:$0xff] %vm9519, %v9741
      %9760 = vst.msk [vmem:[%s224 + $0xe0] sm:$0xff] %vm9519, %v9742
      %9761 = vst.msk [vmem:[%s224 + $0xe8] sm:$0xff] %vm9519, %v9743
      %9762 = vst.msk [vmem:[%s224 + $0xf0] sm:$0xff] %vm9519, %v9744
      %9763 = vst.msk [vmem:[%s224 + $0xf8] sm:$0xff] %vm9519, %v9745
      %9764 = vst.msk [vmem:[%s224 + $0x100] sm:$0xff] %vm9519, %v9746
      %9765 = vst.msk [vmem:[%s224 + $0x108] sm:$0xff] %vm9519, %v9747
      %9766 = vst.msk [vmem:[%s224 + $0x110] sm:$0xff] %vm9519, %v9748
      %9767 = vst.msk [vmem:[%s224 + $0x118] sm:$0xff] %vm9519, %v9749
      %p9768 = scmp.lt.s32.totalorder %s16, 1
      %s9769 = scalar_select %p9768, %s16, 1
      %s9770 = smul.addr %s9769, 36
      %s9771 = smul.addr %s9770, 8
      %s9772 = scalar_lea.vmem %s5, %s9771
      // Predicated region
      $region41: #{double_conv.1} parent=39 // pred_check
        %p9773 = pneg %p144
      $region42: #{double_conv.1} parent=39 // pred_check_branch
        %9775 = sbr.rel (%p9773) target = $region44
      $region43: #{double_conv.1} parent=39 // pred_region
        _
      $region44: #{double_conv.1} parent=39 // pred_fallthru
        _
    $region40: #{double_conv.1} parent=5 // pred_fallthru
      _
    %p9776 = scmp.le.s32.totalorder 2, %s11
    // Predicated region
    $region45: #{double_conv.1} parent=5 // pred_check
      %p9777 = pneg %p9776
    $region46: #{double_conv.1} parent=5 // pred_check_branch
      %9779 = sbr.rel (%p9777) target = $region48
    $region47: #{double_conv.1} parent=5 // pred_region
      %s9780 = ssub.s32 %s11, 2
      // Predicated region
      $region49: #{double_conv.1} parent=47 // pred_check
        %p9781 = pneg %p150
      $region50: #{double_conv.1} parent=47 // pred_check_branch
        %9783 = sbr.rel (%p9781) target = $region52
      $region51: #{double_conv.1} parent=47 // pred_region
        %p9784 = scmp.lt.s32.totalorder %s17, 1
        %s9785 = scalar_select %p9784, %s17, 1
        %s9786 = smul.addr %s9785, 36
        %s9787 = smul.addr %s9786, 8
        %s9788 = scalar_lea.vmem %s5, %s9787
      $region52: #{double_conv.1} parent=47 // pred_fallthru
        _
    $region48: #{double_conv.1} parent=5 // pred_fallthru
      _
  $region6: #{double_conv.1} parent=0 // loop_footer
    %s15 = sadd.s32 1, %s11
  $region7: #{double_conv.1} parent=0 // loop_footer_branch
    %10 = sbr.rel target = $region3
  $region8: #{double_conv.1} parent=0 // loop_exit
    _

</llo_original>
